<compile_context>
chip_gen: v7x
topology: tpu7x:2x2x1
jax: 0.10.0
libtpu: 0.0.40
codegen_flags: <defaults>
</compile_context>

<pallas_src>
import functools

import jax
import jax.numpy as jnp
from jax import lax
from jax.experimental import pallas as pl
from jax.experimental.pallas import tpu as pltpu


# ----------------------------------------------------------------------------
# Pallas kernel
# ----------------------------------------------------------------------------
def _lstm_cell(gates, c_prev, H):
    """PyTorch LSTM cell from pre-activation gates laid out as [i | f | g | o]."""
    i = jax.nn.sigmoid(gates[:, 0 * H:1 * H])
    f = jax.nn.sigmoid(gates[:, 1 * H:2 * H])
    g = jnp.tanh(gates[:, 2 * H:3 * H])
    o = jax.nn.sigmoid(gates[:, 3 * H:4 * H])
    c_new = f * c_prev + i * g
    h_new = o * jnp.tanh(c_new)
    return h_new, c_new


def _seq_classifier_kernel(
        x_ref,                                   # (T*B, E)
        w0_ih_ref, b0_ref, w0f_hh_ref, w0b_hh_ref,   # (E,8H),(1,8H),(H,4H),(H,4H)
        w1_ih_ref, b1_ref, w1f_hh_ref, w1b_hh_ref,   # (2H,8H),(1,8H),(H,4H),(H,4H)
        wc_ih_ref, bc_ref, wc_hh_ref,                # (2H,4O),(1,4O),(O,4O)
        out_ref,                                 # (T*B, O)
        xp_scr,                                  # (T*B, 8H)  hoisted projection
        act0_scr,                                # (T*B, 2H)  layer0 output
        act1_scr,                                # (T*B, 2H)  layer1 output
        xpc_scr,                                 # (T*B, 4O)  classifier projection
        *, T, B, H, OUT):
    f32 = jnp.float32

    def bidir_layer(inp, w_ih_ref, b_ref, whh_f_ref, whh_b_ref, out_scr):
        # Hoisted input projection for BOTH directions in one MXU-friendly
        # matmul: (T*B, D) @ (D, 8H) + bias, computed once per layer.
        xp_scr[...] = (
            jnp.dot(inp, w_ih_ref[...], preferred_element_type=f32) + b_ref[...]
        )
        whh_f = whh_f_ref[...]
        whh_b = whh_b_ref[...]
        hf = jnp.zeros((B, H), f32)
        cf = jnp.zeros((B, H), f32)
        hb = jnp.zeros((B, H), f32)
        cb = jnp.zeros((B, H), f32)
        # Fully unrolled recurrence; fwd step s and bwd step T-1-s are
        # independent so their small h @ W_hh matmuls + EUP work interleave.
        for s in range(T):
            tf = s
            tb = T - 1 - s
            gf = xp_scr[tf * B:(tf + 1) * B, 0:4 * H] + jnp.dot(
                hf, whh_f, preferred_element_type=f32)
            gb = xp_scr[tb * B:(tb + 1) * B, 4 * H:8 * H] + jnp.dot(
                hb, whh_b, preferred_element_type=f32)
            hf, cf = _lstm_cell(gf, cf, H)
            hb, cb = _lstm_cell(gb, cb, H)
            out_scr[tf * B:(tf + 1) * B, 0:H] = hf
            out_scr[tb * B:(tb + 1) * B, H:2 * H] = hb

    # ---- layer 0 (bidirectional), input = x --------------------------------
    bidir_layer(x_ref[...], w0_ih_ref, b0_ref, w0f_hh_ref, w0b_hh_ref, act0_scr)
    # dropout(0.5) between stacked LSTM layers: identity at inference time.
    # ---- layer 1 (bidirectional), input = layer0 activations ---------------
    bidir_layer(act0_scr[...], w1_ih_ref, b1_ref, w1f_hh_ref, w1b_hh_ref,
                act1_scr)
    # ---- classifier: unidirectional LSTM with hidden_size = OUT ------------
    xpc_scr[...] = (
        jnp.dot(act1_scr[...], wc_ih_ref[...], preferred_element_type=f32)
        + bc_ref[...]
    )
    whh_c = wc_hh_ref[...]
    h = jnp.zeros((B, OUT), f32)
    c = jnp.zeros((B, OUT), f32)
    for t in range(T):
        g = xpc_scr[t * B:(t + 1) * B, :] + jnp.dot(
            h, whh_c, preferred_element_type=f32)
        h, c = _lstm_cell(g, c, OUT)
        out_ref[t * B:(t + 1) * B, :] = h


# ----------------------------------------------------------------------------
# Wrapper (glue only: transpose/reshape at the batch_first boundary)
# ----------------------------------------------------------------------------
def seq_classifier_forward(x, params):
    """x: (B, T, emb_size) -> logits (B, T, out). Eval-mode forward."""
    B, T, E = x.shape
    H = params["l0_f"][1].shape[0]      # w_hh is (H, 4H)
    OUT = params["clf"][1].shape[0]     # classifier w_hh is (OUT, 4*OUT)

    def cat_dirs(fwd, bwd):
        # Concatenate both directions' input->gate weights / biases so the
        # hoisted projection for a bidirectional layer is a single matmul.
        w_ih = jnp.concatenate([fwd[0], bwd[0]], axis=1)   # (D, 8H)
        bias = jnp.concatenate([fwd[2], bwd[2]], axis=1)   # (1, 8H)
        return w_ih, bias, fwd[1], bwd[1]

    w0_ih, b0, w0f_hh, w0b_hh = cat_dirs(params["l0_f"], params["l0_b"])
    w1_ih, b1, w1f_hh, w1b_hh = cat_dirs(params["l1_f"], params["l1_b"])
    wc_ih, wc_hh, bc = params["clf"]

    # batch_first -> time-major flattened rows: row t*B + b corresponds to (t, b)
    x_tm = jnp.transpose(x, (1, 0, 2)).reshape(T * B, E)

    out_flat = pl.pallas_call(
        functools.partial(_seq_classifier_kernel, T=T, B=B, H=H, OUT=OUT),
        out_shape=jax.ShapeDtypeStruct((T * B, OUT), jnp.float32),
        in_specs=[pl.BlockSpec(memory_space=pltpu.MemorySpace.VMEM)] * 12,
        out_specs=pl.BlockSpec(memory_space=pltpu.MemorySpace.VMEM),
        scratch_shapes=[
            pltpu.VMEM((T * B, 8 * H), jnp.float32),   # projection (reused)
            pltpu.VMEM((T * B, 2 * H), jnp.float32),   # layer0 output
            pltpu.VMEM((T * B, 2 * H), jnp.float32),   # layer1 output
            pltpu.VMEM((T * B, 4 * OUT), jnp.float32),  # classifier projection
        ],
    )(x_tm, w0_ih, b0, w0f_hh, w0b_hh,
      w1_ih, b1, w1f_hh, w1b_hh,
      wc_ih, bc, wc_hh)

    return jnp.transpose(out_flat.reshape(T, B, OUT), (1, 0, 2))


# ----------------------------------------------------------------------------
# Parameter init (PyTorch nn.LSTM: U(-1/sqrt(H), 1/sqrt(H)))
# ----------------------------------------------------------------------------
def init_lstm_dir_params(key, input_size, hidden):
    bound = 1.0 / float(hidden) ** 0.5
    k1, k2, k3, k4 = jax.random.split(key, 4)
    # PyTorch stores weight_ih as (4H, D); we store the transpose (D, 4H).
    w_ih = jax.random.uniform(k1, (input_size, 4 * hidden), jnp.float32, -bound, bound)
    w_hh = jax.random.uniform(k2, (hidden, 4 * hidden), jnp.float32, -bound, bound)
    b_ih = jax.random.uniform(k3, (4 * hidden,), jnp.float32, -bound, bound)
    b_hh = jax.random.uniform(k4, (4 * hidden,), jnp.float32, -bound, bound)
    bias = (b_ih + b_hh).reshape(1, 4 * hidden)
    return w_ih, w_hh, bias


def init_seq_classifier_params(key, emb_size, H, out):
    keys = jax.random.split(key, 5)
    return {
        "l0_f": init_lstm_dir_params(keys[0], emb_size, H),
        "l0_b": init_lstm_dir_params(keys[1], emb_size, H),
        "l1_f": init_lstm_dir_params(keys[2], 2 * H, H),
        "l1_b": init_lstm_dir_params(keys[3], 2 * H, H),
        "clf": init_lstm_dir_params(keys[4], 2 * H, out),
    }


# ----------------------------------------------------------------------------
# Pure-JAX reference (for correctness checking only)
# ----------------------------------------------------------------------------
def _lstm_dir_ref(x_tm, w_ih, w_hh, bias, hidden):
    T, B, _ = x_tm.shape
    hi = lax.Precision.HIGHEST

    def step(carry, x_t):
        h, c = carry
        gates = (jnp.dot(x_t, w_ih, precision=hi)
                 + jnp.dot(h, w_hh, precision=hi) + bias)
        i = jax.nn.sigmoid(gates[:, 0 * hidden:1 * hidden])
        f = jax.nn.sigmoid(gates[:, 1 * hidden:2 * hidden])
        g = jnp.tanh(gates[:, 2 * hidden:3 * hidden])
        o = jax.nn.sigmoid(gates[:, 3 * hidden:4 * hidden])
        c = f * c + i * g
        h = o * jnp.tanh(c)
        return (h, c), h

    init = (jnp.zeros((B, hidden), jnp.float32),
            jnp.zeros((B, hidden), jnp.float32))
    _, ys = lax.scan(step, init, x_tm)
    return ys


def seq_classifier_ref(x, params, H, OUT):
    x_tm = jnp.transpose(x, (1, 0, 2))
    yf = _lstm_dir_ref(x_tm, *params["l0_f"], H)
    yb = jnp.flip(_lstm_dir_ref(jnp.flip(x_tm, 0), *params["l0_b"], H), 0)
    h = jnp.concatenate([yf, yb], axis=-1)
    yf = _lstm_dir_ref(h, *params["l1_f"], H)
    yb = jnp.flip(_lstm_dir_ref(jnp.flip(h, 0), *params["l1_b"], H), 0)
    h = jnp.concatenate([yf, yb], axis=-1)
    y = _lstm_dir_ref(h, *params["clf"], OUT)
    return jnp.transpose(y, (1, 0, 2))


if __name__ == "__main__":
    # Small shapes consistent with the module's batch_first forward.
    B, T, EMB, H, OUT = 2, 8, 64, 32, 8

    key = jax.random.PRNGKey(0)
    k_params, k_x = jax.random.split(key)
    params = init_seq_classifier_params(k_params, EMB, H, OUT)
    x = jax.random.normal(k_x, (B, T, EMB), dtype=jnp.float32)

    logits = jax.block_until_ready(seq_classifier_forward(x, params))
    assert logits.shape == (B, T, OUT), logits.shape
    assert bool(jnp.all(jnp.isfinite(logits)))

    ref = jax.block_until_ready(seq_classifier_ref(x, params, H, OUT))
    err = float(jnp.max(jnp.abs(logits - ref)))
    assert err < 1e-2, f"max abs err vs reference: {err}"

    print("KERNEL_OK")
</pallas_src>

<mosaic_0001>
module attributes {stable_mosaic.version = 11 : i64} {
  func.func @_seq_classifier_kernel(%arg0: memref<16x64xf32, #tpu.memory_space<vmem>>, %arg1: memref<64x256xf32, #tpu.memory_space<vmem>>, %arg2: memref<1x256xf32, #tpu.memory_space<vmem>>, %arg3: memref<32x128xf32, #tpu.memory_space<vmem>>, %arg4: memref<32x128xf32, #tpu.memory_space<vmem>>, %arg5: memref<64x256xf32, #tpu.memory_space<vmem>>, %arg6: memref<1x256xf32, #tpu.memory_space<vmem>>, %arg7: memref<32x128xf32, #tpu.memory_space<vmem>>, %arg8: memref<32x128xf32, #tpu.memory_space<vmem>>, %arg9: memref<64x32xf32, #tpu.memory_space<vmem>>, %arg10: memref<1x32xf32, #tpu.memory_space<vmem>>, %arg11: memref<8x32xf32, #tpu.memory_space<vmem>>, %arg12: memref<16x8xf32, #tpu.memory_space<vmem>>, %arg13: memref<16x256xf32, #tpu.memory_space<vmem>>, %arg14: memref<16x64xf32, #tpu.memory_space<vmem>>, %arg15: memref<16x64xf32, #tpu.memory_space<vmem>>, %arg16: memref<16x32xf32, #tpu.memory_space<vmem>>) attributes {dimension_semantics = [], scalar_prefetch = 0 : i64, scratch_operands = 4 : i64, tpu.core_type = #tpu.core_type<tc>} {
    %c0 = arith.constant 0 : index
    %c0_0 = arith.constant 0 : index
    %0 = vector.load %arg0[%c0, %c0_0] : memref<16x64xf32, #tpu.memory_space<vmem>>, vector<16x64xf32>
    %c0_1 = arith.constant 0 : index
    %c0_2 = arith.constant 0 : index
    %1 = vector.load %arg1[%c0_1, %c0_2] : memref<64x256xf32, #tpu.memory_space<vmem>>, vector<64x256xf32>
    %cst = arith.constant dense<0.000000e+00> : vector<16x256xf32>
    %2 = tpu.matmul %0, %1, %cst {dimension_numbers = #tpu.dot_dimension_numbers<[1], [0], [0], [1], [0, 0, 1, 1], [], []>} : vector<16x64xf32>, vector<64x256xf32>, vector<16x256xf32> -> vector<16x256xf32>
    %c0_3 = arith.constant 0 : index
    %c0_4 = arith.constant 0 : index
    %3 = vector.load %arg2[%c0_3, %c0_4] : memref<1x256xf32, #tpu.memory_space<vmem>>, vector<1x256xf32>
    %4 = vector.broadcast %3 : vector<1x256xf32> to vector<16x256xf32>
    %5 = arith.addf %2, %4 : vector<16x256xf32>
    %c0_5 = arith.constant 0 : index
    %c0_6 = arith.constant 0 : index
    %6 = vector.load %arg13[%c0_5, %c0_6] : memref<16x256xf32, #tpu.memory_space<vmem>>, vector<16x256xf32>
    tpu.vector_store %arg13[%c0_5, %c0_6], %5 {strides = array<i32>} : memref<16x256xf32, #tpu.memory_space<vmem>>, vector<16x256xf32>,
    %c0_7 = arith.constant 0 : index
    %c0_8 = arith.constant 0 : index
    %7 = vector.load %arg3[%c0_7, %c0_8] : memref<32x128xf32, #tpu.memory_space<vmem>>, vector<32x128xf32>
    %c0_9 = arith.constant 0 : index
    %c0_10 = arith.constant 0 : index
    %8 = vector.load %arg4[%c0_9, %c0_10] : memref<32x128xf32, #tpu.memory_space<vmem>>, vector<32x128xf32>
    %cst_11 = arith.constant 0.000000e+00 : f32
    %9 = vector.broadcast %cst_11 : f32 to vector<2x32xf32>
    %cst_12 = arith.constant 0.000000e+00 : f32
    %10 = vector.broadcast %cst_12 : f32 to vector<2x32xf32>
    %cst_13 = arith.constant 0.000000e+00 : f32
    %11 = vector.broadcast %cst_13 : f32 to vector<2x32xf32>
    %cst_14 = arith.constant 0.000000e+00 : f32
    %12 = vector.broadcast %cst_14 : f32 to vector<2x32xf32>
    %c0_15 = arith.constant 0 : index
    %c0_16 = arith.constant 0 : index
    %13 = vector.load %arg13[%c0_15, %c0_16] : memref<16x256xf32, #tpu.memory_space<vmem>>, vector<2x128xf32>
    %cst_17 = arith.constant dense<0.000000e+00> : vector<2x128xf32>
    %14 = tpu.matmul %9, %7, %cst_17 {dimension_numbers = #tpu.dot_dimension_numbers<[1], [0], [0], [1], [0, 0, 1, 1], [], []>} : vector<2x32xf32>, vector<32x128xf32>, vector<2x128xf32> -> vector<2x128xf32>
    %15 = arith.addf %13, %14 : vector<2x128xf32>
    %c14 = arith.constant 14 : index
    %c128 = arith.constant 128 : index
    %16 = vector.load %arg13[%c14, %c128] : memref<16x256xf32, #tpu.memory_space<vmem>>, vector<2x128xf32>
    %cst_18 = arith.constant dense<0.000000e+00> : vector<2x128xf32>
    %17 = tpu.matmul %11, %8, %cst_18 {dimension_numbers = #tpu.dot_dimension_numbers<[1], [0], [0], [1], [0, 0, 1, 1], [], []>} : vector<2x32xf32>, vector<32x128xf32>, vector<2x128xf32> -> vector<2x128xf32>
    %18 = arith.addf %16, %17 : vector<2x128xf32>
    %19 = vector.extract_strided_slice %15 {offsets = [0, 0], sizes = [2, 32], strides = [1, 1]} : vector<2x128xf32> to vector<2x32xf32>
    %20 = arith.negf %19 : vector<2x32xf32>
    %21 = math.exp %20 : vector<2x32xf32>
    %cst_19 = arith.constant 1.000000e+00 : f32
    %22 = vector.broadcast %cst_19 : f32 to vector<2x32xf32>
    %23 = arith.addf %22, %21 : vector<2x32xf32>
    %24 = arith.divf %22, %23 : vector<2x32xf32>
    %25 = vector.extract_strided_slice %15 {offsets = [0, 32], sizes = [2, 32], strides = [1, 1]} : vector<2x128xf32> to vector<2x32xf32>
    %26 = arith.negf %25 : vector<2x32xf32>
    %27 = math.exp %26 : vector<2x32xf32>
    %cst_20 = arith.constant 1.000000e+00 : f32
    %28 = vector.broadcast %cst_20 : f32 to vector<2x32xf32>
    %29 = arith.addf %28, %27 : vector<2x32xf32>
    %30 = arith.divf %28, %29 : vector<2x32xf32>
    %31 = vector.extract_strided_slice %15 {offsets = [0, 64], sizes = [2, 32], strides = [1, 1]} : vector<2x128xf32> to vector<2x32xf32>
    %32 = math.tanh %31 : vector<2x32xf32>
    %33 = vector.extract_strided_slice %15 {offsets = [0, 96], sizes = [2, 32], strides = [1, 1]} : vector<2x128xf32> to vector<2x32xf32>
    %34 = arith.negf %33 : vector<2x32xf32>
    %35 = math.exp %34 : vector<2x32xf32>
    %cst_21 = arith.constant 1.000000e+00 : f32
    %36 = vector.broadcast %cst_21 : f32 to vector<2x32xf32>
    %37 = arith.addf %36, %35 : vector<2x32xf32>
    %38 = arith.divf %36, %37 : vector<2x32xf32>
    %39 = arith.mulf %30, %10 : vector<2x32xf32>
    %40 = arith.mulf %24, %32 : vector<2x32xf32>
    %41 = arith.addf %39, %40 : vector<2x32xf32>
    %42 = math.tanh %41 : vector<2x32xf32>
    %43 = arith.mulf %38, %42 : vector<2x32xf32>
    %44 = vector.extract_strided_slice %18 {offsets = [0, 0], sizes = [2, 32], strides = [1, 1]} : vector<2x128xf32> to vector<2x32xf32>
    %45 = arith.negf %44 : vector<2x32xf32>
    %46 = math.exp %45 : vector<2x32xf32>
    %cst_22 = arith.constant 1.000000e+00 : f32
    %47 = vector.broadcast %cst_22 : f32 to vector<2x32xf32>
    %48 = arith.addf %47, %46 : vector<2x32xf32>
    %49 = arith.divf %47, %48 : vector<2x32xf32>
    %50 = vector.extract_strided_slice %18 {offsets = [0, 32], sizes = [2, 32], strides = [1, 1]} : vector<2x128xf32> to vector<2x32xf32>
    %51 = arith.negf %50 : vector<2x32xf32>
    %52 = math.exp %51 : vector<2x32xf32>
    %cst_23 = arith.constant 1.000000e+00 : f32
    %53 = vector.broadcast %cst_23 : f32 to vector<2x32xf32>
    %54 = arith.addf %53, %52 : vector<2x32xf32>
    %55 = arith.divf %53, %54 : vector<2x32xf32>
    %56 = vector.extract_strided_slice %18 {offsets = [0, 64], sizes = [2, 32], strides = [1, 1]} : vector<2x128xf32> to vector<2x32xf32>
    %57 = math.tanh %56 : vector<2x32xf32>
    %58 = vector.extract_strided_slice %18 {offsets = [0, 96], sizes = [2, 32], strides = [1, 1]} : vector<2x128xf32> to vector<2x32xf32>
    %59 = arith.negf %58 : vector<2x32xf32>
    %60 = math.exp %59 : vector<2x32xf32>
    %cst_24 = arith.constant 1.000000e+00 : f32
    %61 = vector.broadcast %cst_24 : f32 to vector<2x32xf32>
    %62 = arith.addf %61, %60 : vector<2x32xf32>
    %63 = arith.divf %61, %62 : vector<2x32xf32>
    %64 = arith.mulf %55, %12 : vector<2x32xf32>
    %65 = arith.mulf %49, %57 : vector<2x32xf32>
    %66 = arith.addf %64, %65 : vector<2x32xf32>
    %67 = math.tanh %66 : vector<2x32xf32>
    %68 = arith.mulf %63, %67 : vector<2x32xf32>
    %c0_25 = arith.constant 0 : index
    %c0_26 = arith.constant 0 : index
    %69 = vector.load %arg14[%c0_25, %c0_26] : memref<16x64xf32, #tpu.memory_space<vmem>>, vector<2x32xf32>
    tpu.vector_store %arg14[%c0_25, %c0_26], %43 {strides = array<i32>} : memref<16x64xf32, #tpu.memory_space<vmem>>, vector<2x32xf32>,
    %c14_27 = arith.constant 14 : index
    %c32 = arith.constant 32 : index
    %70 = vector.load %arg14[%c14_27, %c32] : memref<16x64xf32, #tpu.memory_space<vmem>>, vector<2x32xf32>
    tpu.vector_store %arg14[%c14_27, %c32], %68 {strides = array<i32>} : memref<16x64xf32, #tpu.memory_space<vmem>>, vector<2x32xf32>,
    %c2 = arith.constant 2 : index
    %c0_28 = arith.constant 0 : index
    %71 = vector.load %arg13[%c2, %c0_28] : memref<16x256xf32, #tpu.memory_space<vmem>>, vector<2x128xf32>
    %cst_29 = arith.constant dense<0.000000e+00> : vector<2x128xf32>
    %72 = tpu.matmul %43, %7, %cst_29 {dimension_numbers = #tpu.dot_dimension_numbers<[1], [0], [0], [1], [0, 0, 1, 1], [], []>} : vector<2x32xf32>, vector<32x128xf32>, vector<2x128xf32> -> vector<2x128xf32>
    %73 = arith.addf %71, %72 : vector<2x128xf32>
    %c12 = arith.constant 12 : index
    %c128_30 = arith.constant 128 : index
    %74 = vector.load %arg13[%c12, %c128_30] : memref<16x256xf32, #tpu.memory_space<vmem>>, vector<2x128xf32>
    %cst_31 = arith.constant dense<0.000000e+00> : vector<2x128xf32>
    %75 = tpu.matmul %68, %8, %cst_31 {dimension_numbers = #tpu.dot_dimension_numbers<[1], [0], [0], [1], [0, 0, 1, 1], [], []>} : vector<2x32xf32>, vector<32x128xf32>, vector<2x128xf32> -> vector<2x128xf32>
    %76 = arith.addf %74, %75 : vector<2x128xf32>
    %77 = vector.extract_strided_slice %73 {offsets = [0, 0], sizes = [2, 32], strides = [1, 1]} : vector<2x128xf32> to vector<2x32xf32>
    %78 = arith.negf %77 : vector<2x32xf32>
    %79 = math.exp %78 : vector<2x32xf32>
    %cst_32 = arith.constant 1.000000e+00 : f32
    %80 = vector.broadcast %cst_32 : f32 to vector<2x32xf32>
    %81 = arith.addf %80, %79 : vector<2x32xf32>
    %82 = arith.divf %80, %81 : vector<2x32xf32>
    %83 = vector.extract_strided_slice %73 {offsets = [0, 32], sizes = [2, 32], strides = [1, 1]} : vector<2x128xf32> to vector<2x32xf32>
    %84 = arith.negf %83 : vector<2x32xf32>
    %85 = math.exp %84 : vector<2x32xf32>
    %cst_33 = arith.constant 1.000000e+00 : f32
    %86 = vector.broadcast %cst_33 : f32 to vector<2x32xf32>
    %87 = arith.addf %86, %85 : vector<2x32xf32>
    %88 = arith.divf %86, %87 : vector<2x32xf32>
    %89 = vector.extract_strided_slice %73 {offsets = [0, 64], sizes = [2, 32], strides = [1, 1]} : vector<2x128xf32> to vector<2x32xf32>
    %90 = math.tanh %89 : vector<2x32xf32>
    %91 = vector.extract_strided_slice %73 {offsets = [0, 96], sizes = [2, 32], strides = [1, 1]} : vector<2x128xf32> to vector<2x32xf32>
    %92 = arith.negf %91 : vector<2x32xf32>
    %93 = math.exp %92 : vector<2x32xf32>
    %cst_34 = arith.constant 1.000000e+00 : f32
    %94 = vector.broadcast %cst_34 : f32 to vector<2x32xf32>
    %95 = arith.addf %94, %93 : vector<2x32xf32>
    %96 = arith.divf %94, %95 : vector<2x32xf32>
    %97 = arith.mulf %88, %41 : vector<2x32xf32>
    %98 = arith.mulf %82, %90 : vector<2x32xf32>
    %99 = arith.addf %97, %98 : vector<2x32xf32>
    %100 = math.tanh %99 : vector<2x32xf32>
    %101 = arith.mulf %96, %100 : vector<2x32xf32>
    %102 = vector.extract_strided_slice %76 {offsets = [0, 0], sizes = [2, 32], strides = [1, 1]} : vector<2x128xf32> to vector<2x32xf32>
    %103 = arith.negf %102 : vector<2x32xf32>
    %104 = math.exp %103 : vector<2x32xf32>
    %cst_35 = arith.constant 1.000000e+00 : f32
    %105 = vector.broadcast %cst_35 : f32 to vector<2x32xf32>
    %106 = arith.addf %105, %104 : vector<2x32xf32>
    %107 = arith.divf %105, %106 : vector<2x32xf32>
    %108 = vector.extract_strided_slice %76 {offsets = [0, 32], sizes = [2, 32], strides = [1, 1]} : vector<2x128xf32> to vector<2x32xf32>
    %109 = arith.negf %108 : vector<2x32xf32>
    %110 = math.exp %109 : vector<2x32xf32>
    %cst_36 = arith.constant 1.000000e+00 : f32
    %111 = vector.broadcast %cst_36 : f32 to vector<2x32xf32>
    %112 = arith.addf %111, %110 : vector<2x32xf32>
    %113 = arith.divf %111, %112 : vector<2x32xf32>
    %114 = vector.extract_strided_slice %76 {offsets = [0, 64], sizes = [2, 32], strides = [1, 1]} : vector<2x128xf32> to vector<2x32xf32>
    %115 = math.tanh %114 : vector<2x32xf32>
    %116 = vector.extract_strided_slice %76 {offsets = [0, 96], sizes = [2, 32], strides = [1, 1]} : vector<2x128xf32> to vector<2x32xf32>
    %117 = arith.negf %116 : vector<2x32xf32>
    %118 = math.exp %117 : vector<2x32xf32>
    %cst_37 = arith.constant 1.000000e+00 : f32
    %119 = vector.broadcast %cst_37 : f32 to vector<2x32xf32>
    %120 = arith.addf %119, %118 : vector<2x32xf32>
    %121 = arith.divf %119, %120 : vector<2x32xf32>
    %122 = arith.mulf %113, %66 : vector<2x32xf32>
    %123 = arith.mulf %107, %115 : vector<2x32xf32>
    %124 = arith.addf %122, %123 : vector<2x32xf32>
    %125 = math.tanh %124 : vector<2x32xf32>
    %126 = arith.mulf %121, %125 : vector<2x32xf32>
    %c2_38 = arith.constant 2 : index
    %c0_39 = arith.constant 0 : index
    %127 = vector.load %arg14[%c2_38, %c0_39] : memref<16x64xf32, #tpu.memory_space<vmem>>, vector<2x32xf32>
    tpu.vector_store %arg14[%c2_38, %c0_39], %101 {strides = array<i32>} : memref<16x64xf32, #tpu.memory_space<vmem>>, vector<2x32xf32>,
    %c12_40 = arith.constant 12 : index
    %c32_41 = arith.constant 32 : index
    %128 = vector.load %arg14[%c12_40, %c32_41] : memref<16x64xf32, #tpu.memory_space<vmem>>, vector<2x32xf32>
    tpu.vector_store %arg14[%c12_40, %c32_41], %126 {strides = array<i32>} : memref<16x64xf32, #tpu.memory_space<vmem>>, vector<2x32xf32>,
    %c4 = arith.constant 4 : index
    %c0_42 = arith.constant 0 : index
    %129 = vector.load %arg13[%c4, %c0_42] : memref<16x256xf32, #tpu.memory_space<vmem>>, vector<2x128xf32>
    %cst_43 = arith.constant dense<0.000000e+00> : vector<2x128xf32>
    %130 = tpu.matmul %101, %7, %cst_43 {dimension_numbers = #tpu.dot_dimension_numbers<[1], [0], [0], [1], [0, 0, 1, 1], [], []>} : vector<2x32xf32>, vector<32x128xf32>, vector<2x128xf32> -> vector<2x128xf32>
    %131 = arith.addf %129, %130 : vector<2x128xf32>
    %c10 = arith.constant 10 : index
    %c128_44 = arith.constant 128 : index
    %132 = vector.load %arg13[%c10, %c128_44] : memref<16x256xf32, #tpu.memory_space<vmem>>, vector<2x128xf32>
    %cst_45 = arith.constant dense<0.000000e+00> : vector<2x128xf32>
    %133 = tpu.matmul %126, %8, %cst_45 {dimension_numbers = #tpu.dot_dimension_numbers<[1], [0], [0], [1], [0, 0, 1, 1], [], []>} : vector<2x32xf32>, vector<32x128xf32>, vector<2x128xf32> -> vector<2x128xf32>
    %134 = arith.addf %132, %133 : vector<2x128xf32>
    %135 = vector.extract_strided_slice %131 {offsets = [0, 0], sizes = [2, 32], strides = [1, 1]} : vector<2x128xf32> to vector<2x32xf32>
    %136 = arith.negf %135 : vector<2x32xf32>
    %137 = math.exp %136 : vector<2x32xf32>
    %cst_46 = arith.constant 1.000000e+00 : f32
    %138 = vector.broadcast %cst_46 : f32 to vector<2x32xf32>
    %139 = arith.addf %138, %137 : vector<2x32xf32>
    %140 = arith.divf %138, %139 : vector<2x32xf32>
    %141 = vector.extract_strided_slice %131 {offsets = [0, 32], sizes = [2, 32], strides = [1, 1]} : vector<2x128xf32> to vector<2x32xf32>
    %142 = arith.negf %141 : vector<2x32xf32>
    %143 = math.exp %142 : vector<2x32xf32>
    %cst_47 = arith.constant 1.000000e+00 : f32
    %144 = vector.broadcast %cst_47 : f32 to vector<2x32xf32>
    %145 = arith.addf %144, %143 : vector<2x32xf32>
    %146 = arith.divf %144, %145 : vector<2x32xf32>
    %147 = vector.extract_strided_slice %131 {offsets = [0, 64], sizes = [2, 32], strides = [1, 1]} : vector<2x128xf32> to vector<2x32xf32>
    %148 = math.tanh %147 : vector<2x32xf32>
    %149 = vector.extract_strided_slice %131 {offsets = [0, 96], sizes = [2, 32], strides = [1, 1]} : vector<2x128xf32> to vector<2x32xf32>
    %150 = arith.negf %149 : vector<2x32xf32>
    %151 = math.exp %150 : vector<2x32xf32>
    %cst_48 = arith.constant 1.000000e+00 : f32
    %152 = vector.broadcast %cst_48 : f32 to vector<2x32xf32>
    %153 = arith.addf %152, %151 : vector<2x32xf32>
    %154 = arith.divf %152, %153 : vector<2x32xf32>
    %155 = arith.mulf %146, %99 : vector<2x32xf32>
    %156 = arith.mulf %140, %148 : vector<2x32xf32>
    %157 = arith.addf %155, %156 : vector<2x32xf32>
    %158 = math.tanh %157 : vector<2x32xf32>
    %159 = arith.mulf %154, %158 : vector<2x32xf32>
    %160 = vector.extract_strided_slice %134 {offsets = [0, 0], sizes = [2, 32], strides = [1, 1]} : vector<2x128xf32> to vector<2x32xf32>
    %161 = arith.negf %160 : vector<2x32xf32>
    %162 = math.exp %161 : vector<2x32xf32>
    %cst_49 = arith.constant 1.000000e+00 : f32
    %163 = vector.broadcast %cst_49 : f32 to vector<2x32xf32>
    %164 = arith.addf %163, %162 : vector<2x32xf32>
    %165 = arith.divf %163, %164 : vector<2x32xf32>
    %166 = vector.extract_strided_slice %134 {offsets = [0, 32], sizes = [2, 32], strides = [1, 1]} : vector<2x128xf32> to vector<2x32xf32>
    %167 = arith.negf %166 : vector<2x32xf32>
    %168 = math.exp %167 : vector<2x32xf32>
    %cst_50 = arith.constant 1.000000e+00 : f32
    %169 = vector.broadcast %cst_50 : f32 to vector<2x32xf32>
    %170 = arith.addf %169, %168 : vector<2x32xf32>
    %171 = arith.divf %169, %170 : vector<2x32xf32>
    %172 = vector.extract_strided_slice %134 {offsets = [0, 64], sizes = [2, 32], strides = [1, 1]} : vector<2x128xf32> to vector<2x32xf32>
    %173 = math.tanh %172 : vector<2x32xf32>
    %174 = vector.extract_strided_slice %134 {offsets = [0, 96], sizes = [2, 32], strides = [1, 1]} : vector<2x128xf32> to vector<2x32xf32>
    %175 = arith.negf %174 : vector<2x32xf32>
    %176 = math.exp %175 : vector<2x32xf32>
    %cst_51 = arith.constant 1.000000e+00 : f32
    %177 = vector.broadcast %cst_51 : f32 to vector<2x32xf32>
    %178 = arith.addf %177, %176 : vector<2x32xf32>
    %179 = arith.divf %177, %178 : vector<2x32xf32>
    %180 = arith.mulf %171, %124 : vector<2x32xf32>
    %181 = arith.mulf %165, %173 : vector<2x32xf32>
    %182 = arith.addf %180, %181 : vector<2x32xf32>
    %183 = math.tanh %182 : vector<2x32xf32>
    %184 = arith.mulf %179, %183 : vector<2x32xf32>
    %c4_52 = arith.constant 4 : index
    %c0_53 = arith.constant 0 : index
    %185 = vector.load %arg14[%c4_52, %c0_53] : memref<16x64xf32, #tpu.memory_space<vmem>>, vector<2x32xf32>
    tpu.vector_store %arg14[%c4_52, %c0_53], %159 {strides = array<i32>} : memref<16x64xf32, #tpu.memory_space<vmem>>, vector<2x32xf32>,
    %c10_54 = arith.constant 10 : index
    %c32_55 = arith.constant 32 : index
    %186 = vector.load %arg14[%c10_54, %c32_55] : memref<16x64xf32, #tpu.memory_space<vmem>>, vector<2x32xf32>
    tpu.vector_store %arg14[%c10_54, %c32_55], %184 {strides = array<i32>} : memref<16x64xf32, #tpu.memory_space<vmem>>, vector<2x32xf32>,
    %c6 = arith.constant 6 : index
    %c0_56 = arith.constant 0 : index
    %187 = vector.load %arg13[%c6, %c0_56] : memref<16x256xf32, #tpu.memory_space<vmem>>, vector<2x128xf32>
    %cst_57 = arith.constant dense<0.000000e+00> : vector<2x128xf32>
    %188 = tpu.matmul %159, %7, %cst_57 {dimension_numbers = #tpu.dot_dimension_numbers<[1], [0], [0], [1], [0, 0, 1, 1], [], []>} : vector<2x32xf32>, vector<32x128xf32>, vector<2x128xf32> -> vector<2x128xf32>
    %189 = arith.addf %187, %188 : vector<2x128xf32>
    %c8 = arith.constant 8 : index
    %c128_58 = arith.constant 128 : index
    %190 = vector.load %arg13[%c8, %c128_58] : memref<16x256xf32, #tpu.memory_space<vmem>>, vector<2x128xf32>
    %cst_59 = arith.constant dense<0.000000e+00> : vector<2x128xf32>
    %191 = tpu.matmul %184, %8, %cst_59 {dimension_numbers = #tpu.dot_dimension_numbers<[1], [0], [0], [1], [0, 0, 1, 1], [], []>} : vector<2x32xf32>, vector<32x128xf32>, vector<2x128xf32> -> vector<2x128xf32>
    %192 = arith.addf %190, %191 : vector<2x128xf32>
    %193 = vector.extract_strided_slice %189 {offsets = [0, 0], sizes = [2, 32], strides = [1, 1]} : vector<2x128xf32> to vector<2x32xf32>
    %194 = arith.negf %193 : vector<2x32xf32>
    %195 = math.exp %194 : vector<2x32xf32>
    %cst_60 = arith.constant 1.000000e+00 : f32
    %196 = vector.broadcast %cst_60 : f32 to vector<2x32xf32>
    %197 = arith.addf %196, %195 : vector<2x32xf32>
    %198 = arith.divf %196, %197 : vector<2x32xf32>
    %199 = vector.extract_strided_slice %189 {offsets = [0, 32], sizes = [2, 32], strides = [1, 1]} : vector<2x128xf32> to vector<2x32xf32>
    %200 = arith.negf %199 : vector<2x32xf32>
    %201 = math.exp %200 : vector<2x32xf32>
    %cst_61 = arith.constant 1.000000e+00 : f32
    %202 = vector.broadcast %cst_61 : f32 to vector<2x32xf32>
    %203 = arith.addf %202, %201 : vector<2x32xf32>
    %204 = arith.divf %202, %203 : vector<2x32xf32>
    %205 = vector.extract_strided_slice %189 {offsets = [0, 64], sizes = [2, 32], strides = [1, 1]} : vector<2x128xf32> to vector<2x32xf32>
    %206 = math.tanh %205 : vector<2x32xf32>
    %207 = vector.extract_strided_slice %189 {offsets = [0, 96], sizes = [2, 32], strides = [1, 1]} : vector<2x128xf32> to vector<2x32xf32>
    %208 = arith.negf %207 : vector<2x32xf32>
    %209 = math.exp %208 : vector<2x32xf32>
    %cst_62 = arith.constant 1.000000e+00 : f32
    %210 = vector.broadcast %cst_62 : f32 to vector<2x32xf32>
    %211 = arith.addf %210, %209 : vector<2x32xf32>
    %212 = arith.divf %210, %211 : vector<2x32xf32>
    %213 = arith.mulf %204, %157 : vector<2x32xf32>
    %214 = arith.mulf %198, %206 : vector<2x32xf32>
    %215 = arith.addf %213, %214 : vector<2x32xf32>
    %216 = math.tanh %215 : vector<2x32xf32>
    %217 = arith.mulf %212, %216 : vector<2x32xf32>
    %218 = vector.extract_strided_slice %192 {offsets = [0, 0], sizes = [2, 32], strides = [1, 1]} : vector<2x128xf32> to vector<2x32xf32>
    %219 = arith.negf %218 : vector<2x32xf32>
    %220 = math.exp %219 : vector<2x32xf32>
    %cst_63 = arith.constant 1.000000e+00 : f32
    %221 = vector.broadcast %cst_63 : f32 to vector<2x32xf32>
    %222 = arith.addf %221, %220 : vector<2x32xf32>
    %223 = arith.divf %221, %222 : vector<2x32xf32>
    %224 = vector.extract_strided_slice %192 {offsets = [0, 32], sizes = [2, 32], strides = [1, 1]} : vector<2x128xf32> to vector<2x32xf32>
    %225 = arith.negf %224 : vector<2x32xf32>
    %226 = math.exp %225 : vector<2x32xf32>
    %cst_64 = arith.constant 1.000000e+00 : f32
    %227 = vector.broadcast %cst_64 : f32 to vector<2x32xf32>
    %228 = arith.addf %227, %226 : vector<2x32xf32>
    %229 = arith.divf %227, %228 : vector<2x32xf32>
    %230 = vector.extract_strided_slice %192 {offsets = [0, 64], sizes = [2, 32], strides = [1, 1]} : vector<2x128xf32> to vector<2x32xf32>
    %231 = math.tanh %230 : vector<2x32xf32>
    %232 = vector.extract_strided_slice %192 {offsets = [0, 96], sizes = [2, 32], strides = [1, 1]} : vector<2x128xf32> to vector<2x32xf32>
    %233 = arith.negf %232 : vector<2x32xf32>
    %234 = math.exp %233 : vector<2x32xf32>
    %cst_65 = arith.constant 1.000000e+00 : f32
    %235 = vector.broadcast %cst_65 : f32 to vector<2x32xf32>
    %236 = arith.addf %235, %234 : vector<2x32xf32>
    %237 = arith.divf %235, %236 : vector<2x32xf32>
    %238 = arith.mulf %229, %182 : vector<2x32xf32>
    %239 = arith.mulf %223, %231 : vector<2x32xf32>
    %240 = arith.addf %238, %239 : vector<2x32xf32>
    %241 = math.tanh %240 : vector<2x32xf32>
    %242 = arith.mulf %237, %241 : vector<2x32xf32>
    %c6_66 = arith.constant 6 : index
    %c0_67 = arith.constant 0 : index
    %243 = vector.load %arg14[%c6_66, %c0_67] : memref<16x64xf32, #tpu.memory_space<vmem>>, vector<2x32xf32>
    tpu.vector_store %arg14[%c6_66, %c0_67], %217 {strides = array<i32>} : memref<16x64xf32, #tpu.memory_space<vmem>>, vector<2x32xf32>,
    %c8_68 = arith.constant 8 : index
    %c32_69 = arith.constant 32 : index
    %244 = vector.load %arg14[%c8_68, %c32_69] : memref<16x64xf32, #tpu.memory_space<vmem>>, vector<2x32xf32>
    tpu.vector_store %arg14[%c8_68, %c32_69], %242 {strides = array<i32>} : memref<16x64xf32, #tpu.memory_space<vmem>>, vector<2x32xf32>,
    %c8_70 = arith.constant 8 : index
    %c0_71 = arith.constant 0 : index
    %245 = vector.load %arg13[%c8_70, %c0_71] : memref<16x256xf32, #tpu.memory_space<vmem>>, vector<2x128xf32>
    %cst_72 = arith.constant dense<0.000000e+00> : vector<2x128xf32>
    %246 = tpu.matmul %217, %7, %cst_72 {dimension_numbers = #tpu.dot_dimension_numbers<[1], [0], [0], [1], [0, 0, 1, 1], [], []>} : vector<2x32xf32>, vector<32x128xf32>, vector<2x128xf32> -> vector<2x128xf32>
    %247 = arith.addf %245, %246 : vector<2x128xf32>
    %c6_73 = arith.constant 6 : index
    %c128_74 = arith.constant 128 : index
    %248 = vector.load %arg13[%c6_73, %c128_74] : memref<16x256xf32, #tpu.memory_space<vmem>>, vector<2x128xf32>
    %cst_75 = arith.constant dense<0.000000e+00> : vector<2x128xf32>
    %249 = tpu.matmul %242, %8, %cst_75 {dimension_numbers = #tpu.dot_dimension_numbers<[1], [0], [0], [1], [0, 0, 1, 1], [], []>} : vector<2x32xf32>, vector<32x128xf32>, vector<2x128xf32> -> vector<2x128xf32>
    %250 = arith.addf %248, %249 : vector<2x128xf32>
    %251 = vector.extract_strided_slice %247 {offsets = [0, 0], sizes = [2, 32], strides = [1, 1]} : vector<2x128xf32> to vector<2x32xf32>
    %252 = arith.negf %251 : vector<2x32xf32>
    %253 = math.exp %252 : vector<2x32xf32>
    %cst_76 = arith.constant 1.000000e+00 : f32
    %254 = vector.broadcast %cst_76 : f32 to vector<2x32xf32>
    %255 = arith.addf %254, %253 : vector<2x32xf32>
    %256 = arith.divf %254, %255 : vector<2x32xf32>
    %257 = vector.extract_strided_slice %247 {offsets = [0, 32], sizes = [2, 32], strides = [1, 1]} : vector<2x128xf32> to vector<2x32xf32>
    %258 = arith.negf %257 : vector<2x32xf32>
    %259 = math.exp %258 : vector<2x32xf32>
    %cst_77 = arith.constant 1.000000e+00 : f32
    %260 = vector.broadcast %cst_77 : f32 to vector<2x32xf32>
    %261 = arith.addf %260, %259 : vector<2x32xf32>
    %262 = arith.divf %260, %261 : vector<2x32xf32>
    %263 = vector.extract_strided_slice %247 {offsets = [0, 64], sizes = [2, 32], strides = [1, 1]} : vector<2x128xf32> to vector<2x32xf32>
    %264 = math.tanh %263 : vector<2x32xf32>
    %265 = vector.extract_strided_slice %247 {offsets = [0, 96], sizes = [2, 32], strides = [1, 1]} : vector<2x128xf32> to vector<2x32xf32>
    %266 = arith.negf %265 : vector<2x32xf32>
    %267 = math.exp %266 : vector<2x32xf32>
    %cst_78 = arith.constant 1.000000e+00 : f32
    %268 = vector.broadcast %cst_78 : f32 to vector<2x32xf32>
    %269 = arith.addf %268, %267 : vector<2x32xf32>
    %270 = arith.divf %268, %269 : vector<2x32xf32>
    %271 = arith.mulf %262, %215 : vector<2x32xf32>
    %272 = arith.mulf %256, %264 : vector<2x32xf32>
    %273 = arith.addf %271, %272 : vector<2x32xf32>
    %274 = math.tanh %273 : vector<2x32xf32>
    %275 = arith.mulf %270, %274 : vector<2x32xf32>
    %276 = vector.extract_strided_slice %250 {offsets = [0, 0], sizes = [2, 32], strides = [1, 1]} : vector<2x128xf32> to vector<2x32xf32>
    %277 = arith.negf %276 : vector<2x32xf32>
    %278 = math.exp %277 : vector<2x32xf32>
    %cst_79 = arith.constant 1.000000e+00 : f32
    %279 = vector.broadcast %cst_79 : f32 to vector<2x32xf32>
    %280 = arith.addf %279, %278 : vector<2x32xf32>
    %281 = arith.divf %279, %280 : vector<2x32xf32>
    %282 = vector.extract_strided_slice %250 {offsets = [0, 32], sizes = [2, 32], strides = [1, 1]} : vector<2x128xf32> to vector<2x32xf32>
    %283 = arith.negf %282 : vector<2x32xf32>
    %284 = math.exp %283 : vector<2x32xf32>
    %cst_80 = arith.constant 1.000000e+00 : f32
    %285 = vector.broadcast %cst_80 : f32 to vector<2x32xf32>
    %286 = arith.addf %285, %284 : vector<2x32xf32>
    %287 = arith.divf %285, %286 : vector<2x32xf32>
    %288 = vector.extract_strided_slice %250 {offsets = [0, 64], sizes = [2, 32], strides = [1, 1]} : vector<2x128xf32> to vector<2x32xf32>
    %289 = math.tanh %288 : vector<2x32xf32>
    %290 = vector.extract_strided_slice %250 {offsets = [0, 96], sizes = [2, 32], strides = [1, 1]} : vector<2x128xf32> to vector<2x32xf32>
    %291 = arith.negf %290 : vector<2x32xf32>
    %292 = math.exp %291 : vector<2x32xf32>
    %cst_81 = arith.constant 1.000000e+00 : f32
    %293 = vector.broadcast %cst_81 : f32 to vector<2x32xf32>
    %294 = arith.addf %293, %292 : vector<2x32xf32>
    %295 = arith.divf %293, %294 : vector<2x32xf32>
    %296 = arith.mulf %287, %240 : vector<2x32xf32>
    %297 = arith.mulf %281, %289 : vector<2x32xf32>
    %298 = arith.addf %296, %297 : vector<2x32xf32>
    %299 = math.tanh %298 : vector<2x32xf32>
    %300 = arith.mulf %295, %299 : vector<2x32xf32>
    %c8_82 = arith.constant 8 : index
    %c0_83 = arith.constant 0 : index
    %301 = vector.load %arg14[%c8_82, %c0_83] : memref<16x64xf32, #tpu.memory_space<vmem>>, vector<2x32xf32>
    tpu.vector_store %arg14[%c8_82, %c0_83], %275 {strides = array<i32>} : memref<16x64xf32, #tpu.memory_space<vmem>>, vector<2x32xf32>,
    %c6_84 = arith.constant 6 : index
    %c32_85 = arith.constant 32 : index
    %302 = vector.load %arg14[%c6_84, %c32_85] : memref<16x64xf32, #tpu.memory_space<vmem>>, vector<2x32xf32>
    tpu.vector_store %arg14[%c6_84, %c32_85], %300 {strides = array<i32>} : memref<16x64xf32, #tpu.memory_space<vmem>>, vector<2x32xf32>,
    %c10_86 = arith.constant 10 : index
    %c0_87 = arith.constant 0 : index
    %303 = vector.load %arg13[%c10_86, %c0_87] : memref<16x256xf32, #tpu.memory_space<vmem>>, vector<2x128xf32>
    %cst_88 = arith.constant dense<0.000000e+00> : vector<2x128xf32>
    %304 = tpu.matmul %275, %7, %cst_88 {dimension_numbers = #tpu.dot_dimension_numbers<[1], [0], [0], [1], [0, 0, 1, 1], [], []>} : vector<2x32xf32>, vector<32x128xf32>, vector<2x128xf32> -> vector<2x128xf32>
    %305 = arith.addf %303, %304 : vector<2x128xf32>
    %c4_89 = arith.constant 4 : index
    %c128_90 = arith.constant 128 : index
    %306 = vector.load %arg13[%c4_89, %c128_90] : memref<16x256xf32, #tpu.memory_space<vmem>>, vector<2x128xf32>
    %cst_91 = arith.constant dense<0.000000e+00> : vector<2x128xf32>
    %307 = tpu.matmul %300, %8, %cst_91 {dimension_numbers = #tpu.dot_dimension_numbers<[1], [0], [0], [1], [0, 0, 1, 1], [], []>} : vector<2x32xf32>, vector<32x128xf32>, vector<2x128xf32> -> vector<2x128xf32>
    %308 = arith.addf %306, %307 : vector<2x128xf32>
    %309 = vector.extract_strided_slice %305 {offsets = [0, 0], sizes = [2, 32], strides = [1, 1]} : vector<2x128xf32> to vector<2x32xf32>
    %310 = arith.negf %309 : vector<2x32xf32>
    %311 = math.exp %310 : vector<2x32xf32>
    %cst_92 = arith.constant 1.000000e+00 : f32
    %312 = vector.broadcast %cst_92 : f32 to vector<2x32xf32>
    %313 = arith.addf %312, %311 : vector<2x32xf32>
    %314 = arith.divf %312, %313 : vector<2x32xf32>
    %315 = vector.extract_strided_slice %305 {offsets = [0, 32], sizes = [2, 32], strides = [1, 1]} : vector<2x128xf32> to vector<2x32xf32>
    %316 = arith.negf %315 : vector<2x32xf32>
    %317 = math.exp %316 : vector<2x32xf32>
    %cst_93 = arith.constant 1.000000e+00 : f32
    %318 = vector.broadcast %cst_93 : f32 to vector<2x32xf32>
    %319 = arith.addf %318, %317 : vector<2x32xf32>
    %320 = arith.divf %318, %319 : vector<2x32xf32>
    %321 = vector.extract_strided_slice %305 {offsets = [0, 64], sizes = [2, 32], strides = [1, 1]} : vector<2x128xf32> to vector<2x32xf32>
    %322 = math.tanh %321 : vector<2x32xf32>
    %323 = vector.extract_strided_slice %305 {offsets = [0, 96], sizes = [2, 32], strides = [1, 1]} : vector<2x128xf32> to vector<2x32xf32>
    %324 = arith.negf %323 : vector<2x32xf32>
    %325 = math.exp %324 : vector<2x32xf32>
    %cst_94 = arith.constant 1.000000e+00 : f32
    %326 = vector.broadcast %cst_94 : f32 to vector<2x32xf32>
    %327 = arith.addf %326, %325 : vector<2x32xf32>
    %328 = arith.divf %326, %327 : vector<2x32xf32>
    %329 = arith.mulf %320, %273 : vector<2x32xf32>
    %330 = arith.mulf %314, %322 : vector<2x32xf32>
    %331 = arith.addf %329, %330 : vector<2x32xf32>
    %332 = math.tanh %331 : vector<2x32xf32>
    %333 = arith.mulf %328, %332 : vector<2x32xf32>
    %334 = vector.extract_strided_slice %308 {offsets = [0, 0], sizes = [2, 32], strides = [1, 1]} : vector<2x128xf32> to vector<2x32xf32>
    %335 = arith.negf %334 : vector<2x32xf32>
    %336 = math.exp %335 : vector<2x32xf32>
    %cst_95 = arith.constant 1.000000e+00 : f32
    %337 = vector.broadcast %cst_95 : f32 to vector<2x32xf32>
    %338 = arith.addf %337, %336 : vector<2x32xf32>
    %339 = arith.divf %337, %338 : vector<2x32xf32>
    %340 = vector.extract_strided_slice %308 {offsets = [0, 32], sizes = [2, 32], strides = [1, 1]} : vector<2x128xf32> to vector<2x32xf32>
    %341 = arith.negf %340 : vector<2x32xf32>
    %342 = math.exp %341 : vector<2x32xf32>
    %cst_96 = arith.constant 1.000000e+00 : f32
    %343 = vector.broadcast %cst_96 : f32 to vector<2x32xf32>
    %344 = arith.addf %343, %342 : vector<2x32xf32>
    %345 = arith.divf %343, %344 : vector<2x32xf32>
    %346 = vector.extract_strided_slice %308 {offsets = [0, 64], sizes = [2, 32], strides = [1, 1]} : vector<2x128xf32> to vector<2x32xf32>
    %347 = math.tanh %346 : vector<2x32xf32>
    %348 = vector.extract_strided_slice %308 {offsets = [0, 96], sizes = [2, 32], strides = [1, 1]} : vector<2x128xf32> to vector<2x32xf32>
    %349 = arith.negf %348 : vector<2x32xf32>
    %350 = math.exp %349 : vector<2x32xf32>
    %cst_97 = arith.constant 1.000000e+00 : f32
    %351 = vector.broadcast %cst_97 : f32 to vector<2x32xf32>
    %352 = arith.addf %351, %350 : vector<2x32xf32>
    %353 = arith.divf %351, %352 : vector<2x32xf32>
    %354 = arith.mulf %345, %298 : vector<2x32xf32>
    %355 = arith.mulf %339, %347 : vector<2x32xf32>
    %356 = arith.addf %354, %355 : vector<2x32xf32>
    %357 = math.tanh %356 : vector<2x32xf32>
    %358 = arith.mulf %353, %357 : vector<2x32xf32>
    %c10_98 = arith.constant 10 : index
    %c0_99 = arith.constant 0 : index
    %359 = vector.load %arg14[%c10_98, %c0_99] : memref<16x64xf32, #tpu.memory_space<vmem>>, vector<2x32xf32>
    tpu.vector_store %arg14[%c10_98, %c0_99], %333 {strides = array<i32>} : memref<16x64xf32, #tpu.memory_space<vmem>>, vector<2x32xf32>,
    %c4_100 = arith.constant 4 : index
    %c32_101 = arith.constant 32 : index
    %360 = vector.load %arg14[%c4_100, %c32_101] : memref<16x64xf32, #tpu.memory_space<vmem>>, vector<2x32xf32>
    tpu.vector_store %arg14[%c4_100, %c32_101], %358 {strides = array<i32>} : memref<16x64xf32, #tpu.memory_space<vmem>>, vector<2x32xf32>,
    %c12_102 = arith.constant 12 : index
    %c0_103 = arith.constant 0 : index
    %361 = vector.load %arg13[%c12_102, %c0_103] : memref<16x256xf32, #tpu.memory_space<vmem>>, vector<2x128xf32>
    %cst_104 = arith.constant dense<0.000000e+00> : vector<2x128xf32>
    %362 = tpu.matmul %333, %7, %cst_104 {dimension_numbers = #tpu.dot_dimension_numbers<[1], [0], [0], [1], [0, 0, 1, 1], [], []>} : vector<2x32xf32>, vector<32x128xf32>, vector<2x128xf32> -> vector<2x128xf32>
    %363 = arith.addf %361, %362 : vector<2x128xf32>
    %c2_105 = arith.constant 2 : index
    %c128_106 = arith.constant 128 : index
    %364 = vector.load %arg13[%c2_105, %c128_106] : memref<16x256xf32, #tpu.memory_space<vmem>>, vector<2x128xf32>
    %cst_107 = arith.constant dense<0.000000e+00> : vector<2x128xf32>
    %365 = tpu.matmul %358, %8, %cst_107 {dimension_numbers = #tpu.dot_dimension_numbers<[1], [0], [0], [1], [0, 0, 1, 1], [], []>} : vector<2x32xf32>, vector<32x128xf32>, vector<2x128xf32> -> vector<2x128xf32>
    %366 = arith.addf %364, %365 : vector<2x128xf32>
    %367 = vector.extract_strided_slice %363 {offsets = [0, 0], sizes = [2, 32], strides = [1, 1]} : vector<2x128xf32> to vector<2x32xf32>
    %368 = arith.negf %367 : vector<2x32xf32>
    %369 = math.exp %368 : vector<2x32xf32>
    %cst_108 = arith.constant 1.000000e+00 : f32
    %370 = vector.broadcast %cst_108 : f32 to vector<2x32xf32>
    %371 = arith.addf %370, %369 : vector<2x32xf32>
    %372 = arith.divf %370, %371 : vector<2x32xf32>
    %373 = vector.extract_strided_slice %363 {offsets = [0, 32], sizes = [2, 32], strides = [1, 1]} : vector<2x128xf32> to vector<2x32xf32>
    %374 = arith.negf %373 : vector<2x32xf32>
    %375 = math.exp %374 : vector<2x32xf32>
    %cst_109 = arith.constant 1.000000e+00 : f32
    %376 = vector.broadcast %cst_109 : f32 to vector<2x32xf32>
    %377 = arith.addf %376, %375 : vector<2x32xf32>
    %378 = arith.divf %376, %377 : vector<2x32xf32>
    %379 = vector.extract_strided_slice %363 {offsets = [0, 64], sizes = [2, 32], strides = [1, 1]} : vector<2x128xf32> to vector<2x32xf32>
    %380 = math.tanh %379 : vector<2x32xf32>
    %381 = vector.extract_strided_slice %363 {offsets = [0, 96], sizes = [2, 32], strides = [1, 1]} : vector<2x128xf32> to vector<2x32xf32>
    %382 = arith.negf %381 : vector<2x32xf32>
    %383 = math.exp %382 : vector<2x32xf32>
    %cst_110 = arith.constant 1.000000e+00 : f32
    %384 = vector.broadcast %cst_110 : f32 to vector<2x32xf32>
    %385 = arith.addf %384, %383 : vector<2x32xf32>
    %386 = arith.divf %384, %385 : vector<2x32xf32>
    %387 = arith.mulf %378, %331 : vector<2x32xf32>
    %388 = arith.mulf %372, %380 : vector<2x32xf32>
    %389 = arith.addf %387, %388 : vector<2x32xf32>
    %390 = math.tanh %389 : vector<2x32xf32>
    %391 = arith.mulf %386, %390 : vector<2x32xf32>
    %392 = vector.extract_strided_slice %366 {offsets = [0, 0], sizes = [2, 32], strides = [1, 1]} : vector<2x128xf32> to vector<2x32xf32>
    %393 = arith.negf %392 : vector<2x32xf32>
    %394 = math.exp %393 : vector<2x32xf32>
    %cst_111 = arith.constant 1.000000e+00 : f32
    %395 = vector.broadcast %cst_111 : f32 to vector<2x32xf32>
    %396 = arith.addf %395, %394 : vector<2x32xf32>
    %397 = arith.divf %395, %396 : vector<2x32xf32>
    %398 = vector.extract_strided_slice %366 {offsets = [0, 32], sizes = [2, 32], strides = [1, 1]} : vector<2x128xf32> to vector<2x32xf32>
    %399 = arith.negf %398 : vector<2x32xf32>
    %400 = math.exp %399 : vector<2x32xf32>
    %cst_112 = arith.constant 1.000000e+00 : f32
    %401 = vector.broadcast %cst_112 : f32 to vector<2x32xf32>
    %402 = arith.addf %401, %400 : vector<2x32xf32>
    %403 = arith.divf %401, %402 : vector<2x32xf32>
    %404 = vector.extract_strided_slice %366 {offsets = [0, 64], sizes = [2, 32], strides = [1, 1]} : vector<2x128xf32> to vector<2x32xf32>
    %405 = math.tanh %404 : vector<2x32xf32>
    %406 = vector.extract_strided_slice %366 {offsets = [0, 96], sizes = [2, 32], strides = [1, 1]} : vector<2x128xf32> to vector<2x32xf32>
    %407 = arith.negf %406 : vector<2x32xf32>
    %408 = math.exp %407 : vector<2x32xf32>
    %cst_113 = arith.constant 1.000000e+00 : f32
    %409 = vector.broadcast %cst_113 : f32 to vector<2x32xf32>
    %410 = arith.addf %409, %408 : vector<2x32xf32>
    %411 = arith.divf %409, %410 : vector<2x32xf32>
    %412 = arith.mulf %403, %356 : vector<2x32xf32>
    %413 = arith.mulf %397, %405 : vector<2x32xf32>
    %414 = arith.addf %412, %413 : vector<2x32xf32>
    %415 = math.tanh %414 : vector<2x32xf32>
    %416 = arith.mulf %411, %415 : vector<2x32xf32>
    %c12_114 = arith.constant 12 : index
    %c0_115 = arith.constant 0 : index
    %417 = vector.load %arg14[%c12_114, %c0_115] : memref<16x64xf32, #tpu.memory_space<vmem>>, vector<2x32xf32>
    tpu.vector_store %arg14[%c12_114, %c0_115], %391 {strides = array<i32>} : memref<16x64xf32, #tpu.memory_space<vmem>>, vector<2x32xf32>,
    %c2_116 = arith.constant 2 : index
    %c32_117 = arith.constant 32 : index
    %418 = vector.load %arg14[%c2_116, %c32_117] : memref<16x64xf32, #tpu.memory_space<vmem>>, vector<2x32xf32>
    tpu.vector_store %arg14[%c2_116, %c32_117], %416 {strides = array<i32>} : memref<16x64xf32, #tpu.memory_space<vmem>>, vector<2x32xf32>,
    %c14_118 = arith.constant 14 : index
    %c0_119 = arith.constant 0 : index
    %419 = vector.load %arg13[%c14_118, %c0_119] : memref<16x256xf32, #tpu.memory_space<vmem>>, vector<2x128xf32>
    %cst_120 = arith.constant dense<0.000000e+00> : vector<2x128xf32>
    %420 = tpu.matmul %391, %7, %cst_120 {dimension_numbers = #tpu.dot_dimension_numbers<[1], [0], [0], [1], [0, 0, 1, 1], [], []>} : vector<2x32xf32>, vector<32x128xf32>, vector<2x128xf32> -> vector<2x128xf32>
    %421 = arith.addf %419, %420 : vector<2x128xf32>
    %c0_121 = arith.constant 0 : index
    %c128_122 = arith.constant 128 : index
    %422 = vector.load %arg13[%c0_121, %c128_122] : memref<16x256xf32, #tpu.memory_space<vmem>>, vector<2x128xf32>
    %cst_123 = arith.constant dense<0.000000e+00> : vector<2x128xf32>
    %423 = tpu.matmul %416, %8, %cst_123 {dimension_numbers = #tpu.dot_dimension_numbers<[1], [0], [0], [1], [0, 0, 1, 1], [], []>} : vector<2x32xf32>, vector<32x128xf32>, vector<2x128xf32> -> vector<2x128xf32>
    %424 = arith.addf %422, %423 : vector<2x128xf32>
    %425 = vector.extract_strided_slice %421 {offsets = [0, 0], sizes = [2, 32], strides = [1, 1]} : vector<2x128xf32> to vector<2x32xf32>
    %426 = arith.negf %425 : vector<2x32xf32>
    %427 = math.exp %426 : vector<2x32xf32>
    %cst_124 = arith.constant 1.000000e+00 : f32
    %428 = vector.broadcast %cst_124 : f32 to vector<2x32xf32>
    %429 = arith.addf %428, %427 : vector<2x32xf32>
    %430 = arith.divf %428, %429 : vector<2x32xf32>
    %431 = vector.extract_strided_slice %421 {offsets = [0, 32], sizes = [2, 32], strides = [1, 1]} : vector<2x128xf32> to vector<2x32xf32>
    %432 = arith.negf %431 : vector<2x32xf32>
    %433 = math.exp %432 : vector<2x32xf32>
    %cst_125 = arith.constant 1.000000e+00 : f32
    %434 = vector.broadcast %cst_125 : f32 to vector<2x32xf32>
    %435 = arith.addf %434, %433 : vector<2x32xf32>
    %436 = arith.divf %434, %435 : vector<2x32xf32>
    %437 = vector.extract_strided_slice %421 {offsets = [0, 64], sizes = [2, 32], strides = [1, 1]} : vector<2x128xf32> to vector<2x32xf32>
    %438 = math.tanh %437 : vector<2x32xf32>
    %439 = vector.extract_strided_slice %421 {offsets = [0, 96], sizes = [2, 32], strides = [1, 1]} : vector<2x128xf32> to vector<2x32xf32>
    %440 = arith.negf %439 : vector<2x32xf32>
    %441 = math.exp %440 : vector<2x32xf32>
    %cst_126 = arith.constant 1.000000e+00 : f32
    %442 = vector.broadcast %cst_126 : f32 to vector<2x32xf32>
    %443 = arith.addf %442, %441 : vector<2x32xf32>
    %444 = arith.divf %442, %443 : vector<2x32xf32>
    %445 = arith.mulf %436, %389 : vector<2x32xf32>
    %446 = arith.mulf %430, %438 : vector<2x32xf32>
    %447 = arith.addf %445, %446 : vector<2x32xf32>
    %448 = math.tanh %447 : vector<2x32xf32>
    %449 = arith.mulf %444, %448 : vector<2x32xf32>
    %450 = vector.extract_strided_slice %424 {offsets = [0, 0], sizes = [2, 32], strides = [1, 1]} : vector<2x128xf32> to vector<2x32xf32>
    %451 = arith.negf %450 : vector<2x32xf32>
    %452 = math.exp %451 : vector<2x32xf32>
    %cst_127 = arith.constant 1.000000e+00 : f32
    %453 = vector.broadcast %cst_127 : f32 to vector<2x32xf32>
    %454 = arith.addf %453, %452 : vector<2x32xf32>
    %455 = arith.divf %453, %454 : vector<2x32xf32>
    %456 = vector.extract_strided_slice %424 {offsets = [0, 32], sizes = [2, 32], strides = [1, 1]} : vector<2x128xf32> to vector<2x32xf32>
    %457 = arith.negf %456 : vector<2x32xf32>
    %458 = math.exp %457 : vector<2x32xf32>
    %cst_128 = arith.constant 1.000000e+00 : f32
    %459 = vector.broadcast %cst_128 : f32 to vector<2x32xf32>
    %460 = arith.addf %459, %458 : vector<2x32xf32>
    %461 = arith.divf %459, %460 : vector<2x32xf32>
    %462 = vector.extract_strided_slice %424 {offsets = [0, 64], sizes = [2, 32], strides = [1, 1]} : vector<2x128xf32> to vector<2x32xf32>
    %463 = math.tanh %462 : vector<2x32xf32>
    %464 = vector.extract_strided_slice %424 {offsets = [0, 96], sizes = [2, 32], strides = [1, 1]} : vector<2x128xf32> to vector<2x32xf32>
    %465 = arith.negf %464 : vector<2x32xf32>
    %466 = math.exp %465 : vector<2x32xf32>
    %cst_129 = arith.constant 1.000000e+00 : f32
    %467 = vector.broadcast %cst_129 : f32 to vector<2x32xf32>
    %468 = arith.addf %467, %466 : vector<2x32xf32>
    %469 = arith.divf %467, %468 : vector<2x32xf32>
    %470 = arith.mulf %461, %414 : vector<2x32xf32>
    %471 = arith.mulf %455, %463 : vector<2x32xf32>
    %472 = arith.addf %470, %471 : vector<2x32xf32>
    %473 = math.tanh %472 : vector<2x32xf32>
    %474 = arith.mulf %469, %473 : vector<2x32xf32>
    %c14_130 = arith.constant 14 : index
    %c0_131 = arith.constant 0 : index
    %475 = vector.load %arg14[%c14_130, %c0_131] : memref<16x64xf32, #tpu.memory_space<vmem>>, vector<2x32xf32>
    tpu.vector_store %arg14[%c14_130, %c0_131], %449 {strides = array<i32>} : memref<16x64xf32, #tpu.memory_space<vmem>>, vector<2x32xf32>,
    %c0_132 = arith.constant 0 : index
    %c32_133 = arith.constant 32 : index
    %476 = vector.load %arg14[%c0_132, %c32_133] : memref<16x64xf32, #tpu.memory_space<vmem>>, vector<2x32xf32>
    tpu.vector_store %arg14[%c0_132, %c32_133], %474 {strides = array<i32>} : memref<16x64xf32, #tpu.memory_space<vmem>>, vector<2x32xf32>,
    %c0_134 = arith.constant 0 : index
    %c0_135 = arith.constant 0 : index
    %477 = vector.load %arg14[%c0_134, %c0_135] : memref<16x64xf32, #tpu.memory_space<vmem>>, vector<16x64xf32>
    %c0_136 = arith.constant 0 : index
    %c0_137 = arith.constant 0 : index
    %478 = vector.load %arg5[%c0_136, %c0_137] : memref<64x256xf32, #tpu.memory_space<vmem>>, vector<64x256xf32>
    %cst_138 = arith.constant dense<0.000000e+00> : vector<16x256xf32>
    %479 = tpu.matmul %477, %478, %cst_138 {dimension_numbers = #tpu.dot_dimension_numbers<[1], [0], [0], [1], [0, 0, 1, 1], [], []>} : vector<16x64xf32>, vector<64x256xf32>, vector<16x256xf32> -> vector<16x256xf32>
    %c0_139 = arith.constant 0 : index
    %c0_140 = arith.constant 0 : index
    %480 = vector.load %arg6[%c0_139, %c0_140] : memref<1x256xf32, #tpu.memory_space<vmem>>, vector<1x256xf32>
    %481 = vector.broadcast %480 : vector<1x256xf32> to vector<16x256xf32>
    %482 = arith.addf %479, %481 : vector<16x256xf32>
    %c0_141 = arith.constant 0 : index
    %c0_142 = arith.constant 0 : index
    %483 = vector.load %arg13[%c0_141, %c0_142] : memref<16x256xf32, #tpu.memory_space<vmem>>, vector<16x256xf32>
    tpu.vector_store %arg13[%c0_141, %c0_142], %482 {strides = array<i32>} : memref<16x256xf32, #tpu.memory_space<vmem>>, vector<16x256xf32>,
    %c0_143 = arith.constant 0 : index
    %c0_144 = arith.constant 0 : index
    %484 = vector.load %arg7[%c0_143, %c0_144] : memref<32x128xf32, #tpu.memory_space<vmem>>, vector<32x128xf32>
    %c0_145 = arith.constant 0 : index
    %c0_146 = arith.constant 0 : index
    %485 = vector.load %arg8[%c0_145, %c0_146] : memref<32x128xf32, #tpu.memory_space<vmem>>, vector<32x128xf32>
    %cst_147 = arith.constant 0.000000e+00 : f32
    %486 = vector.broadcast %cst_147 : f32 to vector<2x32xf32>
    %cst_148 = arith.constant 0.000000e+00 : f32
    %487 = vector.broadcast %cst_148 : f32 to vector<2x32xf32>
    %cst_149 = arith.constant 0.000000e+00 : f32
    %488 = vector.broadcast %cst_149 : f32 to vector<2x32xf32>
    %cst_150 = arith.constant 0.000000e+00 : f32
    %489 = vector.broadcast %cst_150 : f32 to vector<2x32xf32>
    %c0_151 = arith.constant 0 : index
    %c0_152 = arith.constant 0 : index
    %490 = vector.load %arg13[%c0_151, %c0_152] : memref<16x256xf32, #tpu.memory_space<vmem>>, vector<2x128xf32>
    %cst_153 = arith.constant dense<0.000000e+00> : vector<2x128xf32>
    %491 = tpu.matmul %486, %484, %cst_153 {dimension_numbers = #tpu.dot_dimension_numbers<[1], [0], [0], [1], [0, 0, 1, 1], [], []>} : vector<2x32xf32>, vector<32x128xf32>, vector<2x128xf32> -> vector<2x128xf32>
    %492 = arith.addf %490, %491 : vector<2x128xf32>
    %c14_154 = arith.constant 14 : index
    %c128_155 = arith.constant 128 : index
    %493 = vector.load %arg13[%c14_154, %c128_155] : memref<16x256xf32, #tpu.memory_space<vmem>>, vector<2x128xf32>
    %cst_156 = arith.constant dense<0.000000e+00> : vector<2x128xf32>
    %494 = tpu.matmul %488, %485, %cst_156 {dimension_numbers = #tpu.dot_dimension_numbers<[1], [0], [0], [1], [0, 0, 1, 1], [], []>} : vector<2x32xf32>, vector<32x128xf32>, vector<2x128xf32> -> vector<2x128xf32>
    %495 = arith.addf %493, %494 : vector<2x128xf32>
    %496 = vector.extract_strided_slice %492 {offsets = [0, 0], sizes = [2, 32], strides = [1, 1]} : vector<2x128xf32> to vector<2x32xf32>
    %497 = arith.negf %496 : vector<2x32xf32>
    %498 = math.exp %497 : vector<2x32xf32>
    %cst_157 = arith.constant 1.000000e+00 : f32
    %499 = vector.broadcast %cst_157 : f32 to vector<2x32xf32>
    %500 = arith.addf %499, %498 : vector<2x32xf32>
    %501 = arith.divf %499, %500 : vector<2x32xf32>
    %502 = vector.extract_strided_slice %492 {offsets = [0, 32], sizes = [2, 32], strides = [1, 1]} : vector<2x128xf32> to vector<2x32xf32>
    %503 = arith.negf %502 : vector<2x32xf32>
    %504 = math.exp %503 : vector<2x32xf32>
    %cst_158 = arith.constant 1.000000e+00 : f32
    %505 = vector.broadcast %cst_158 : f32 to vector<2x32xf32>
    %506 = arith.addf %505, %504 : vector<2x32xf32>
    %507 = arith.divf %505, %506 : vector<2x32xf32>
    %508 = vector.extract_strided_slice %492 {offsets = [0, 64], sizes = [2, 32], strides = [1, 1]} : vector<2x128xf32> to vector<2x32xf32>
    %509 = math.tanh %508 : vector<2x32xf32>
    %510 = vector.extract_strided_slice %492 {offsets = [0, 96], sizes = [2, 32], strides = [1, 1]} : vector<2x128xf32> to vector<2x32xf32>
    %511 = arith.negf %510 : vector<2x32xf32>
    %512 = math.exp %511 : vector<2x32xf32>
    %cst_159 = arith.constant 1.000000e+00 : f32
    %513 = vector.broadcast %cst_159 : f32 to vector<2x32xf32>
    %514 = arith.addf %513, %512 : vector<2x32xf32>
    %515 = arith.divf %513, %514 : vector<2x32xf32>
    %516 = arith.mulf %507, %487 : vector<2x32xf32>
    %517 = arith.mulf %501, %509 : vector<2x32xf32>
    %518 = arith.addf %516, %517 : vector<2x32xf32>
    %519 = math.tanh %518 : vector<2x32xf32>
    %520 = arith.mulf %515, %519 : vector<2x32xf32>
    %521 = vector.extract_strided_slice %495 {offsets = [0, 0], sizes = [2, 32], strides = [1, 1]} : vector<2x128xf32> to vector<2x32xf32>
    %522 = arith.negf %521 : vector<2x32xf32>
    %523 = math.exp %522 : vector<2x32xf32>
    %cst_160 = arith.constant 1.000000e+00 : f32
    %524 = vector.broadcast %cst_160 : f32 to vector<2x32xf32>
    %525 = arith.addf %524, %523 : vector<2x32xf32>
    %526 = arith.divf %524, %525 : vector<2x32xf32>
    %527 = vector.extract_strided_slice %495 {offsets = [0, 32], sizes = [2, 32], strides = [1, 1]} : vector<2x128xf32> to vector<2x32xf32>
    %528 = arith.negf %527 : vector<2x32xf32>
    %529 = math.exp %528 : vector<2x32xf32>
    %cst_161 = arith.constant 1.000000e+00 : f32
    %530 = vector.broadcast %cst_161 : f32 to vector<2x32xf32>
    %531 = arith.addf %530, %529 : vector<2x32xf32>
    %532 = arith.divf %530, %531 : vector<2x32xf32>
    %533 = vector.extract_strided_slice %495 {offsets = [0, 64], sizes = [2, 32], strides = [1, 1]} : vector<2x128xf32> to vector<2x32xf32>
    %534 = math.tanh %533 : vector<2x32xf32>
    %535 = vector.extract_strided_slice %495 {offsets = [0, 96], sizes = [2, 32], strides = [1, 1]} : vector<2x128xf32> to vector<2x32xf32>
    %536 = arith.negf %535 : vector<2x32xf32>
    %537 = math.exp %536 : vector<2x32xf32>
    %cst_162 = arith.constant 1.000000e+00 : f32
    %538 = vector.broadcast %cst_162 : f32 to vector<2x32xf32>
    %539 = arith.addf %538, %537 : vector<2x32xf32>
    %540 = arith.divf %538, %539 : vector<2x32xf32>
    %541 = arith.mulf %532, %489 : vector<2x32xf32>
    %542 = arith.mulf %526, %534 : vector<2x32xf32>
    %543 = arith.addf %541, %542 : vector<2x32xf32>
    %544 = math.tanh %543 : vector<2x32xf32>
    %545 = arith.mulf %540, %544 : vector<2x32xf32>
    %c0_163 = arith.constant 0 : index
    %c0_164 = arith.constant 0 : index
    %546 = vector.load %arg15[%c0_163, %c0_164] : memref<16x64xf32, #tpu.memory_space<vmem>>, vector<2x32xf32>
    tpu.vector_store %arg15[%c0_163, %c0_164], %520 {strides = array<i32>} : memref<16x64xf32, #tpu.memory_space<vmem>>, vector<2x32xf32>,
    %c14_165 = arith.constant 14 : index
    %c32_166 = arith.constant 32 : index
    %547 = vector.load %arg15[%c14_165, %c32_166] : memref<16x64xf32, #tpu.memory_space<vmem>>, vector<2x32xf32>
    tpu.vector_store %arg15[%c14_165, %c32_166], %545 {strides = array<i32>} : memref<16x64xf32, #tpu.memory_space<vmem>>, vector<2x32xf32>,
    %c2_167 = arith.constant 2 : index
    %c0_168 = arith.constant 0 : index
    %548 = vector.load %arg13[%c2_167, %c0_168] : memref<16x256xf32, #tpu.memory_space<vmem>>, vector<2x128xf32>
    %cst_169 = arith.constant dense<0.000000e+00> : vector<2x128xf32>
    %549 = tpu.matmul %520, %484, %cst_169 {dimension_numbers = #tpu.dot_dimension_numbers<[1], [0], [0], [1], [0, 0, 1, 1], [], []>} : vector<2x32xf32>, vector<32x128xf32>, vector<2x128xf32> -> vector<2x128xf32>
    %550 = arith.addf %548, %549 : vector<2x128xf32>
    %c12_170 = arith.constant 12 : index
    %c128_171 = arith.constant 128 : index
    %551 = vector.load %arg13[%c12_170, %c128_171] : memref<16x256xf32, #tpu.memory_space<vmem>>, vector<2x128xf32>
    %cst_172 = arith.constant dense<0.000000e+00> : vector<2x128xf32>
    %552 = tpu.matmul %545, %485, %cst_172 {dimension_numbers = #tpu.dot_dimension_numbers<[1], [0], [0], [1], [0, 0, 1, 1], [], []>} : vector<2x32xf32>, vector<32x128xf32>, vector<2x128xf32> -> vector<2x128xf32>
    %553 = arith.addf %551, %552 : vector<2x128xf32>
    %554 = vector.extract_strided_slice %550 {offsets = [0, 0], sizes = [2, 32], strides = [1, 1]} : vector<2x128xf32> to vector<2x32xf32>
    %555 = arith.negf %554 : vector<2x32xf32>
    %556 = math.exp %555 : vector<2x32xf32>
    %cst_173 = arith.constant 1.000000e+00 : f32
    %557 = vector.broadcast %cst_173 : f32 to vector<2x32xf32>
    %558 = arith.addf %557, %556 : vector<2x32xf32>
    %559 = arith.divf %557, %558 : vector<2x32xf32>
    %560 = vector.extract_strided_slice %550 {offsets = [0, 32], sizes = [2, 32], strides = [1, 1]} : vector<2x128xf32> to vector<2x32xf32>
    %561 = arith.negf %560 : vector<2x32xf32>
    %562 = math.exp %561 : vector<2x32xf32>
    %cst_174 = arith.constant 1.000000e+00 : f32
    %563 = vector.broadcast %cst_174 : f32 to vector<2x32xf32>
    %564 = arith.addf %563, %562 : vector<2x32xf32>
    %565 = arith.divf %563, %564 : vector<2x32xf32>
    %566 = vector.extract_strided_slice %550 {offsets = [0, 64], sizes = [2, 32], strides = [1, 1]} : vector<2x128xf32> to vector<2x32xf32>
    %567 = math.tanh %566 : vector<2x32xf32>
    %568 = vector.extract_strided_slice %550 {offsets = [0, 96], sizes = [2, 32], strides = [1, 1]} : vector<2x128xf32> to vector<2x32xf32>
    %569 = arith.negf %568 : vector<2x32xf32>
    %570 = math.exp %569 : vector<2x32xf32>
    %cst_175 = arith.constant 1.000000e+00 : f32
    %571 = vector.broadcast %cst_175 : f32 to vector<2x32xf32>
    %572 = arith.addf %571, %570 : vector<2x32xf32>
    %573 = arith.divf %571, %572 : vector<2x32xf32>
    %574 = arith.mulf %565, %518 : vector<2x32xf32>
    %575 = arith.mulf %559, %567 : vector<2x32xf32>
    %576 = arith.addf %574, %575 : vector<2x32xf32>
    %577 = math.tanh %576 : vector<2x32xf32>
    %578 = arith.mulf %573, %577 : vector<2x32xf32>
    %579 = vector.extract_strided_slice %553 {offsets = [0, 0], sizes = [2, 32], strides = [1, 1]} : vector<2x128xf32> to vector<2x32xf32>
    %580 = arith.negf %579 : vector<2x32xf32>
    %581 = math.exp %580 : vector<2x32xf32>
    %cst_176 = arith.constant 1.000000e+00 : f32
    %582 = vector.broadcast %cst_176 : f32 to vector<2x32xf32>
    %583 = arith.addf %582, %581 : vector<2x32xf32>
    %584 = arith.divf %582, %583 : vector<2x32xf32>
    %585 = vector.extract_strided_slice %553 {offsets = [0, 32], sizes = [2, 32], strides = [1, 1]} : vector<2x128xf32> to vector<2x32xf32>
    %586 = arith.negf %585 : vector<2x32xf32>
    %587 = math.exp %586 : vector<2x32xf32>
    %cst_177 = arith.constant 1.000000e+00 : f32
    %588 = vector.broadcast %cst_177 : f32 to vector<2x32xf32>
    %589 = arith.addf %588, %587 : vector<2x32xf32>
    %590 = arith.divf %588, %589 : vector<2x32xf32>
    %591 = vector.extract_strided_slice %553 {offsets = [0, 64], sizes = [2, 32], strides = [1, 1]} : vector<2x128xf32> to vector<2x32xf32>
    %592 = math.tanh %591 : vector<2x32xf32>
    %593 = vector.extract_strided_slice %553 {offsets = [0, 96], sizes = [2, 32], strides = [1, 1]} : vector<2x128xf32> to vector<2x32xf32>
    %594 = arith.negf %593 : vector<2x32xf32>
    %595 = math.exp %594 : vector<2x32xf32>
    %cst_178 = arith.constant 1.000000e+00 : f32
    %596 = vector.broadcast %cst_178 : f32 to vector<2x32xf32>
    %597 = arith.addf %596, %595 : vector<2x32xf32>
    %598 = arith.divf %596, %597 : vector<2x32xf32>
    %599 = arith.mulf %590, %543 : vector<2x32xf32>
    %600 = arith.mulf %584, %592 : vector<2x32xf32>
    %601 = arith.addf %599, %600 : vector<2x32xf32>
    %602 = math.tanh %601 : vector<2x32xf32>
    %603 = arith.mulf %598, %602 : vector<2x32xf32>
    %c2_179 = arith.constant 2 : index
    %c0_180 = arith.constant 0 : index
    %604 = vector.load %arg15[%c2_179, %c0_180] : memref<16x64xf32, #tpu.memory_space<vmem>>, vector<2x32xf32>
    tpu.vector_store %arg15[%c2_179, %c0_180], %578 {strides = array<i32>} : memref<16x64xf32, #tpu.memory_space<vmem>>, vector<2x32xf32>,
    %c12_181 = arith.constant 12 : index
    %c32_182 = arith.constant 32 : index
    %605 = vector.load %arg15[%c12_181, %c32_182] : memref<16x64xf32, #tpu.memory_space<vmem>>, vector<2x32xf32>
    tpu.vector_store %arg15[%c12_181, %c32_182], %603 {strides = array<i32>} : memref<16x64xf32, #tpu.memory_space<vmem>>, vector<2x32xf32>,
    %c4_183 = arith.constant 4 : index
    %c0_184 = arith.constant 0 : index
    %606 = vector.load %arg13[%c4_183, %c0_184] : memref<16x256xf32, #tpu.memory_space<vmem>>, vector<2x128xf32>
    %cst_185 = arith.constant dense<0.000000e+00> : vector<2x128xf32>
    %607 = tpu.matmul %578, %484, %cst_185 {dimension_numbers = #tpu.dot_dimension_numbers<[1], [0], [0], [1], [0, 0, 1, 1], [], []>} : vector<2x32xf32>, vector<32x128xf32>, vector<2x128xf32> -> vector<2x128xf32>
    %608 = arith.addf %606, %607 : vector<2x128xf32>
    %c10_186 = arith.constant 10 : index
    %c128_187 = arith.constant 128 : index
    %609 = vector.load %arg13[%c10_186, %c128_187] : memref<16x256xf32, #tpu.memory_space<vmem>>, vector<2x128xf32>
    %cst_188 = arith.constant dense<0.000000e+00> : vector<2x128xf32>
    %610 = tpu.matmul %603, %485, %cst_188 {dimension_numbers = #tpu.dot_dimension_numbers<[1], [0], [0], [1], [0, 0, 1, 1], [], []>} : vector<2x32xf32>, vector<32x128xf32>, vector<2x128xf32> -> vector<2x128xf32>
    %611 = arith.addf %609, %610 : vector<2x128xf32>
    %612 = vector.extract_strided_slice %608 {offsets = [0, 0], sizes = [2, 32], strides = [1, 1]} : vector<2x128xf32> to vector<2x32xf32>
    %613 = arith.negf %612 : vector<2x32xf32>
    %614 = math.exp %613 : vector<2x32xf32>
    %cst_189 = arith.constant 1.000000e+00 : f32
    %615 = vector.broadcast %cst_189 : f32 to vector<2x32xf32>
    %616 = arith.addf %615, %614 : vector<2x32xf32>
    %617 = arith.divf %615, %616 : vector<2x32xf32>
    %618 = vector.extract_strided_slice %608 {offsets = [0, 32], sizes = [2, 32], strides = [1, 1]} : vector<2x128xf32> to vector<2x32xf32>
    %619 = arith.negf %618 : vector<2x32xf32>
    %620 = math.exp %619 : vector<2x32xf32>
    %cst_190 = arith.constant 1.000000e+00 : f32
    %621 = vector.broadcast %cst_190 : f32 to vector<2x32xf32>
    %622 = arith.addf %621, %620 : vector<2x32xf32>
    %623 = arith.divf %621, %622 : vector<2x32xf32>
    %624 = vector.extract_strided_slice %608 {offsets = [0, 64], sizes = [2, 32], strides = [1, 1]} : vector<2x128xf32> to vector<2x32xf32>
    %625 = math.tanh %624 : vector<2x32xf32>
    %626 = vector.extract_strided_slice %608 {offsets = [0, 96], sizes = [2, 32], strides = [1, 1]} : vector<2x128xf32> to vector<2x32xf32>
    %627 = arith.negf %626 : vector<2x32xf32>
    %628 = math.exp %627 : vector<2x32xf32>
    %cst_191 = arith.constant 1.000000e+00 : f32
    %629 = vector.broadcast %cst_191 : f32 to vector<2x32xf32>
    %630 = arith.addf %629, %628 : vector<2x32xf32>
    %631 = arith.divf %629, %630 : vector<2x32xf32>
    %632 = arith.mulf %623, %576 : vector<2x32xf32>
    %633 = arith.mulf %617, %625 : vector<2x32xf32>
    %634 = arith.addf %632, %633 : vector<2x32xf32>
    %635 = math.tanh %634 : vector<2x32xf32>
    %636 = arith.mulf %631, %635 : vector<2x32xf32>
    %637 = vector.extract_strided_slice %611 {offsets = [0, 0], sizes = [2, 32], strides = [1, 1]} : vector<2x128xf32> to vector<2x32xf32>
    %638 = arith.negf %637 : vector<2x32xf32>
    %639 = math.exp %638 : vector<2x32xf32>
    %cst_192 = arith.constant 1.000000e+00 : f32
    %640 = vector.broadcast %cst_192 : f32 to vector<2x32xf32>
    %641 = arith.addf %640, %639 : vector<2x32xf32>
    %642 = arith.divf %640, %641 : vector<2x32xf32>
    %643 = vector.extract_strided_slice %611 {offsets = [0, 32], sizes = [2, 32], strides = [1, 1]} : vector<2x128xf32> to vector<2x32xf32>
    %644 = arith.negf %643 : vector<2x32xf32>
    %645 = math.exp %644 : vector<2x32xf32>
    %cst_193 = arith.constant 1.000000e+00 : f32
    %646 = vector.broadcast %cst_193 : f32 to vector<2x32xf32>
    %647 = arith.addf %646, %645 : vector<2x32xf32>
    %648 = arith.divf %646, %647 : vector<2x32xf32>
    %649 = vector.extract_strided_slice %611 {offsets = [0, 64], sizes = [2, 32], strides = [1, 1]} : vector<2x128xf32> to vector<2x32xf32>
    %650 = math.tanh %649 : vector<2x32xf32>
    %651 = vector.extract_strided_slice %611 {offsets = [0, 96], sizes = [2, 32], strides = [1, 1]} : vector<2x128xf32> to vector<2x32xf32>
    %652 = arith.negf %651 : vector<2x32xf32>
    %653 = math.exp %652 : vector<2x32xf32>
    %cst_194 = arith.constant 1.000000e+00 : f32
    %654 = vector.broadcast %cst_194 : f32 to vector<2x32xf32>
    %655 = arith.addf %654, %653 : vector<2x32xf32>
    %656 = arith.divf %654, %655 : vector<2x32xf32>
    %657 = arith.mulf %648, %601 : vector<2x32xf32>
    %658 = arith.mulf %642, %650 : vector<2x32xf32>
    %659 = arith.addf %657, %658 : vector<2x32xf32>
    %660 = math.tanh %659 : vector<2x32xf32>
    %661 = arith.mulf %656, %660 : vector<2x32xf32>
    %c4_195 = arith.constant 4 : index
    %c0_196 = arith.constant 0 : index
    %662 = vector.load %arg15[%c4_195, %c0_196] : memref<16x64xf32, #tpu.memory_space<vmem>>, vector<2x32xf32>
    tpu.vector_store %arg15[%c4_195, %c0_196], %636 {strides = array<i32>} : memref<16x64xf32, #tpu.memory_space<vmem>>, vector<2x32xf32>,
    %c10_197 = arith.constant 10 : index
    %c32_198 = arith.constant 32 : index
    %663 = vector.load %arg15[%c10_197, %c32_198] : memref<16x64xf32, #tpu.memory_space<vmem>>, vector<2x32xf32>
    tpu.vector_store %arg15[%c10_197, %c32_198], %661 {strides = array<i32>} : memref<16x64xf32, #tpu.memory_space<vmem>>, vector<2x32xf32>,
    %c6_199 = arith.constant 6 : index
    %c0_200 = arith.constant 0 : index
    %664 = vector.load %arg13[%c6_199, %c0_200] : memref<16x256xf32, #tpu.memory_space<vmem>>, vector<2x128xf32>
    %cst_201 = arith.constant dense<0.000000e+00> : vector<2x128xf32>
    %665 = tpu.matmul %636, %484, %cst_201 {dimension_numbers = #tpu.dot_dimension_numbers<[1], [0], [0], [1], [0, 0, 1, 1], [], []>} : vector<2x32xf32>, vector<32x128xf32>, vector<2x128xf32> -> vector<2x128xf32>
    %666 = arith.addf %664, %665 : vector<2x128xf32>
    %c8_202 = arith.constant 8 : index
    %c128_203 = arith.constant 128 : index
    %667 = vector.load %arg13[%c8_202, %c128_203] : memref<16x256xf32, #tpu.memory_space<vmem>>, vector<2x128xf32>
    %cst_204 = arith.constant dense<0.000000e+00> : vector<2x128xf32>
    %668 = tpu.matmul %661, %485, %cst_204 {dimension_numbers = #tpu.dot_dimension_numbers<[1], [0], [0], [1], [0, 0, 1, 1], [], []>} : vector<2x32xf32>, vector<32x128xf32>, vector<2x128xf32> -> vector<2x128xf32>
    %669 = arith.addf %667, %668 : vector<2x128xf32>
    %670 = vector.extract_strided_slice %666 {offsets = [0, 0], sizes = [2, 32], strides = [1, 1]} : vector<2x128xf32> to vector<2x32xf32>
    %671 = arith.negf %670 : vector<2x32xf32>
    %672 = math.exp %671 : vector<2x32xf32>
    %cst_205 = arith.constant 1.000000e+00 : f32
    %673 = vector.broadcast %cst_205 : f32 to vector<2x32xf32>
    %674 = arith.addf %673, %672 : vector<2x32xf32>
    %675 = arith.divf %673, %674 : vector<2x32xf32>
    %676 = vector.extract_strided_slice %666 {offsets = [0, 32], sizes = [2, 32], strides = [1, 1]} : vector<2x128xf32> to vector<2x32xf32>
    %677 = arith.negf %676 : vector<2x32xf32>
    %678 = math.exp %677 : vector<2x32xf32>
    %cst_206 = arith.constant 1.000000e+00 : f32
    %679 = vector.broadcast %cst_206 : f32 to vector<2x32xf32>
    %680 = arith.addf %679, %678 : vector<2x32xf32>
    %681 = arith.divf %679, %680 : vector<2x32xf32>
    %682 = vector.extract_strided_slice %666 {offsets = [0, 64], sizes = [2, 32], strides = [1, 1]} : vector<2x128xf32> to vector<2x32xf32>
    %683 = math.tanh %682 : vector<2x32xf32>
    %684 = vector.extract_strided_slice %666 {offsets = [0, 96], sizes = [2, 32], strides = [1, 1]} : vector<2x128xf32> to vector<2x32xf32>
    %685 = arith.negf %684 : vector<2x32xf32>
    %686 = math.exp %685 : vector<2x32xf32>
    %cst_207 = arith.constant 1.000000e+00 : f32
    %687 = vector.broadcast %cst_207 : f32 to vector<2x32xf32>
    %688 = arith.addf %687, %686 : vector<2x32xf32>
    %689 = arith.divf %687, %688 : vector<2x32xf32>
    %690 = arith.mulf %681, %634 : vector<2x32xf32>
    %691 = arith.mulf %675, %683 : vector<2x32xf32>
    %692 = arith.addf %690, %691 : vector<2x32xf32>
    %693 = math.tanh %692 : vector<2x32xf32>
    %694 = arith.mulf %689, %693 : vector<2x32xf32>
    %695 = vector.extract_strided_slice %669 {offsets = [0, 0], sizes = [2, 32], strides = [1, 1]} : vector<2x128xf32> to vector<2x32xf32>
    %696 = arith.negf %695 : vector<2x32xf32>
    %697 = math.exp %696 : vector<2x32xf32>
    %cst_208 = arith.constant 1.000000e+00 : f32
    %698 = vector.broadcast %cst_208 : f32 to vector<2x32xf32>
    %699 = arith.addf %698, %697 : vector<2x32xf32>
    %700 = arith.divf %698, %699 : vector<2x32xf32>
    %701 = vector.extract_strided_slice %669 {offsets = [0, 32], sizes = [2, 32], strides = [1, 1]} : vector<2x128xf32> to vector<2x32xf32>
    %702 = arith.negf %701 : vector<2x32xf32>
    %703 = math.exp %702 : vector<2x32xf32>
    %cst_209 = arith.constant 1.000000e+00 : f32
    %704 = vector.broadcast %cst_209 : f32 to vector<2x32xf32>
    %705 = arith.addf %704, %703 : vector<2x32xf32>
    %706 = arith.divf %704, %705 : vector<2x32xf32>
    %707 = vector.extract_strided_slice %669 {offsets = [0, 64], sizes = [2, 32], strides = [1, 1]} : vector<2x128xf32> to vector<2x32xf32>
    %708 = math.tanh %707 : vector<2x32xf32>
    %709 = vector.extract_strided_slice %669 {offsets = [0, 96], sizes = [2, 32], strides = [1, 1]} : vector<2x128xf32> to vector<2x32xf32>
    %710 = arith.negf %709 : vector<2x32xf32>
    %711 = math.exp %710 : vector<2x32xf32>
    %cst_210 = arith.constant 1.000000e+00 : f32
    %712 = vector.broadcast %cst_210 : f32 to vector<2x32xf32>
    %713 = arith.addf %712, %711 : vector<2x32xf32>
    %714 = arith.divf %712, %713 : vector<2x32xf32>
    %715 = arith.mulf %706, %659 : vector<2x32xf32>
    %716 = arith.mulf %700, %708 : vector<2x32xf32>
    %717 = arith.addf %715, %716 : vector<2x32xf32>
    %718 = math.tanh %717 : vector<2x32xf32>
    %719 = arith.mulf %714, %718 : vector<2x32xf32>
    %c6_211 = arith.constant 6 : index
    %c0_212 = arith.constant 0 : index
    %720 = vector.load %arg15[%c6_211, %c0_212] : memref<16x64xf32, #tpu.memory_space<vmem>>, vector<2x32xf32>
    tpu.vector_store %arg15[%c6_211, %c0_212], %694 {strides = array<i32>} : memref<16x64xf32, #tpu.memory_space<vmem>>, vector<2x32xf32>,
    %c8_213 = arith.constant 8 : index
    %c32_214 = arith.constant 32 : index
    %721 = vector.load %arg15[%c8_213, %c32_214] : memref<16x64xf32, #tpu.memory_space<vmem>>, vector<2x32xf32>
    tpu.vector_store %arg15[%c8_213, %c32_214], %719 {strides = array<i32>} : memref<16x64xf32, #tpu.memory_space<vmem>>, vector<2x32xf32>,
    %c8_215 = arith.constant 8 : index
    %c0_216 = arith.constant 0 : index
    %722 = vector.load %arg13[%c8_215, %c0_216] : memref<16x256xf32, #tpu.memory_space<vmem>>, vector<2x128xf32>
    %cst_217 = arith.constant dense<0.000000e+00> : vector<2x128xf32>
    %723 = tpu.matmul %694, %484, %cst_217 {dimension_numbers = #tpu.dot_dimension_numbers<[1], [0], [0], [1], [0, 0, 1, 1], [], []>} : vector<2x32xf32>, vector<32x128xf32>, vector<2x128xf32> -> vector<2x128xf32>
    %724 = arith.addf %722, %723 : vector<2x128xf32>
    %c6_218 = arith.constant 6 : index
    %c128_219 = arith.constant 128 : index
    %725 = vector.load %arg13[%c6_218, %c128_219] : memref<16x256xf32, #tpu.memory_space<vmem>>, vector<2x128xf32>
    %cst_220 = arith.constant dense<0.000000e+00> : vector<2x128xf32>
    %726 = tpu.matmul %719, %485, %cst_220 {dimension_numbers = #tpu.dot_dimension_numbers<[1], [0], [0], [1], [0, 0, 1, 1], [], []>} : vector<2x32xf32>, vector<32x128xf32>, vector<2x128xf32> -> vector<2x128xf32>
    %727 = arith.addf %725, %726 : vector<2x128xf32>
    %728 = vector.extract_strided_slice %724 {offsets = [0, 0], sizes = [2, 32], strides = [1, 1]} : vector<2x128xf32> to vector<2x32xf32>
    %729 = arith.negf %728 : vector<2x32xf32>
    %730 = math.exp %729 : vector<2x32xf32>
    %cst_221 = arith.constant 1.000000e+00 : f32
    %731 = vector.broadcast %cst_221 : f32 to vector<2x32xf32>
    %732 = arith.addf %731, %730 : vector<2x32xf32>
    %733 = arith.divf %731, %732 : vector<2x32xf32>
    %734 = vector.extract_strided_slice %724 {offsets = [0, 32], sizes = [2, 32], strides = [1, 1]} : vector<2x128xf32> to vector<2x32xf32>
    %735 = arith.negf %734 : vector<2x32xf32>
    %736 = math.exp %735 : vector<2x32xf32>
    %cst_222 = arith.constant 1.000000e+00 : f32
    %737 = vector.broadcast %cst_222 : f32 to vector<2x32xf32>
    %738 = arith.addf %737, %736 : vector<2x32xf32>
    %739 = arith.divf %737, %738 : vector<2x32xf32>
    %740 = vector.extract_strided_slice %724 {offsets = [0, 64], sizes = [2, 32], strides = [1, 1]} : vector<2x128xf32> to vector<2x32xf32>
    %741 = math.tanh %740 : vector<2x32xf32>
    %742 = vector.extract_strided_slice %724 {offsets = [0, 96], sizes = [2, 32], strides = [1, 1]} : vector<2x128xf32> to vector<2x32xf32>
    %743 = arith.negf %742 : vector<2x32xf32>
    %744 = math.exp %743 : vector<2x32xf32>
    %cst_223 = arith.constant 1.000000e+00 : f32
    %745 = vector.broadcast %cst_223 : f32 to vector<2x32xf32>
    %746 = arith.addf %745, %744 : vector<2x32xf32>
    %747 = arith.divf %745, %746 : vector<2x32xf32>
    %748 = arith.mulf %739, %692 : vector<2x32xf32>
    %749 = arith.mulf %733, %741 : vector<2x32xf32>
    %750 = arith.addf %748, %749 : vector<2x32xf32>
    %751 = math.tanh %750 : vector<2x32xf32>
    %752 = arith.mulf %747, %751 : vector<2x32xf32>
    %753 = vector.extract_strided_slice %727 {offsets = [0, 0], sizes = [2, 32], strides = [1, 1]} : vector<2x128xf32> to vector<2x32xf32>
    %754 = arith.negf %753 : vector<2x32xf32>
    %755 = math.exp %754 : vector<2x32xf32>
    %cst_224 = arith.constant 1.000000e+00 : f32
    %756 = vector.broadcast %cst_224 : f32 to vector<2x32xf32>
    %757 = arith.addf %756, %755 : vector<2x32xf32>
    %758 = arith.divf %756, %757 : vector<2x32xf32>
    %759 = vector.extract_strided_slice %727 {offsets = [0, 32], sizes = [2, 32], strides = [1, 1]} : vector<2x128xf32> to vector<2x32xf32>
    %760 = arith.negf %759 : vector<2x32xf32>
    %761 = math.exp %760 : vector<2x32xf32>
    %cst_225 = arith.constant 1.000000e+00 : f32
    %762 = vector.broadcast %cst_225 : f32 to vector<2x32xf32>
    %763 = arith.addf %762, %761 : vector<2x32xf32>
    %764 = arith.divf %762, %763 : vector<2x32xf32>
    %765 = vector.extract_strided_slice %727 {offsets = [0, 64], sizes = [2, 32], strides = [1, 1]} : vector<2x128xf32> to vector<2x32xf32>
    %766 = math.tanh %765 : vector<2x32xf32>
    %767 = vector.extract_strided_slice %727 {offsets = [0, 96], sizes = [2, 32], strides = [1, 1]} : vector<2x128xf32> to vector<2x32xf32>
    %768 = arith.negf %767 : vector<2x32xf32>
    %769 = math.exp %768 : vector<2x32xf32>
    %cst_226 = arith.constant 1.000000e+00 : f32
    %770 = vector.broadcast %cst_226 : f32 to vector<2x32xf32>
    %771 = arith.addf %770, %769 : vector<2x32xf32>
    %772 = arith.divf %770, %771 : vector<2x32xf32>
    %773 = arith.mulf %764, %717 : vector<2x32xf32>
    %774 = arith.mulf %758, %766 : vector<2x32xf32>
    %775 = arith.addf %773, %774 : vector<2x32xf32>
    %776 = math.tanh %775 : vector<2x32xf32>
    %777 = arith.mulf %772, %776 : vector<2x32xf32>
    %c8_227 = arith.constant 8 : index
    %c0_228 = arith.constant 0 : index
    %778 = vector.load %arg15[%c8_227, %c0_228] : memref<16x64xf32, #tpu.memory_space<vmem>>, vector<2x32xf32>
    tpu.vector_store %arg15[%c8_227, %c0_228], %752 {strides = array<i32>} : memref<16x64xf32, #tpu.memory_space<vmem>>, vector<2x32xf32>,
    %c6_229 = arith.constant 6 : index
    %c32_230 = arith.constant 32 : index
    %779 = vector.load %arg15[%c6_229, %c32_230] : memref<16x64xf32, #tpu.memory_space<vmem>>, vector<2x32xf32>
    tpu.vector_store %arg15[%c6_229, %c32_230], %777 {strides = array<i32>} : memref<16x64xf32, #tpu.memory_space<vmem>>, vector<2x32xf32>,
    %c10_231 = arith.constant 10 : index
    %c0_232 = arith.constant 0 : index
    %780 = vector.load %arg13[%c10_231, %c0_232] : memref<16x256xf32, #tpu.memory_space<vmem>>, vector<2x128xf32>
    %cst_233 = arith.constant dense<0.000000e+00> : vector<2x128xf32>
    %781 = tpu.matmul %752, %484, %cst_233 {dimension_numbers = #tpu.dot_dimension_numbers<[1], [0], [0], [1], [0, 0, 1, 1], [], []>} : vector<2x32xf32>, vector<32x128xf32>, vector<2x128xf32> -> vector<2x128xf32>
    %782 = arith.addf %780, %781 : vector<2x128xf32>
    %c4_234 = arith.constant 4 : index
    %c128_235 = arith.constant 128 : index
    %783 = vector.load %arg13[%c4_234, %c128_235] : memref<16x256xf32, #tpu.memory_space<vmem>>, vector<2x128xf32>
    %cst_236 = arith.constant dense<0.000000e+00> : vector<2x128xf32>
    %784 = tpu.matmul %777, %485, %cst_236 {dimension_numbers = #tpu.dot_dimension_numbers<[1], [0], [0], [1], [0, 0, 1, 1], [], []>} : vector<2x32xf32>, vector<32x128xf32>, vector<2x128xf32> -> vector<2x128xf32>
    %785 = arith.addf %783, %784 : vector<2x128xf32>
    %786 = vector.extract_strided_slice %782 {offsets = [0, 0], sizes = [2, 32], strides = [1, 1]} : vector<2x128xf32> to vector<2x32xf32>
    %787 = arith.negf %786 : vector<2x32xf32>
    %788 = math.exp %787 : vector<2x32xf32>
    %cst_237 = arith.constant 1.000000e+00 : f32
    %789 = vector.broadcast %cst_237 : f32 to vector<2x32xf32>
    %790 = arith.addf %789, %788 : vector<2x32xf32>
    %791 = arith.divf %789, %790 : vector<2x32xf32>
    %792 = vector.extract_strided_slice %782 {offsets = [0, 32], sizes = [2, 32], strides = [1, 1]} : vector<2x128xf32> to vector<2x32xf32>
    %793 = arith.negf %792 : vector<2x32xf32>
    %794 = math.exp %793 : vector<2x32xf32>
    %cst_238 = arith.constant 1.000000e+00 : f32
    %795 = vector.broadcast %cst_238 : f32 to vector<2x32xf32>
    %796 = arith.addf %795, %794 : vector<2x32xf32>
    %797 = arith.divf %795, %796 : vector<2x32xf32>
    %798 = vector.extract_strided_slice %782 {offsets = [0, 64], sizes = [2, 32], strides = [1, 1]} : vector<2x128xf32> to vector<2x32xf32>
    %799 = math.tanh %798 : vector<2x32xf32>
    %800 = vector.extract_strided_slice %782 {offsets = [0, 96], sizes = [2, 32], strides = [1, 1]} : vector<2x128xf32> to vector<2x32xf32>
    %801 = arith.negf %800 : vector<2x32xf32>
    %802 = math.exp %801 : vector<2x32xf32>
    %cst_239 = arith.constant 1.000000e+00 : f32
    %803 = vector.broadcast %cst_239 : f32 to vector<2x32xf32>
    %804 = arith.addf %803, %802 : vector<2x32xf32>
    %805 = arith.divf %803, %804 : vector<2x32xf32>
    %806 = arith.mulf %797, %750 : vector<2x32xf32>
    %807 = arith.mulf %791, %799 : vector<2x32xf32>
    %808 = arith.addf %806, %807 : vector<2x32xf32>
    %809 = math.tanh %808 : vector<2x32xf32>
    %810 = arith.mulf %805, %809 : vector<2x32xf32>
    %811 = vector.extract_strided_slice %785 {offsets = [0, 0], sizes = [2, 32], strides = [1, 1]} : vector<2x128xf32> to vector<2x32xf32>
    %812 = arith.negf %811 : vector<2x32xf32>
    %813 = math.exp %812 : vector<2x32xf32>
    %cst_240 = arith.constant 1.000000e+00 : f32
    %814 = vector.broadcast %cst_240 : f32 to vector<2x32xf32>
    %815 = arith.addf %814, %813 : vector<2x32xf32>
    %816 = arith.divf %814, %815 : vector<2x32xf32>
    %817 = vector.extract_strided_slice %785 {offsets = [0, 32], sizes = [2, 32], strides = [1, 1]} : vector<2x128xf32> to vector<2x32xf32>
    %818 = arith.negf %817 : vector<2x32xf32>
    %819 = math.exp %818 : vector<2x32xf32>
    %cst_241 = arith.constant 1.000000e+00 : f32
    %820 = vector.broadcast %cst_241 : f32 to vector<2x32xf32>
    %821 = arith.addf %820, %819 : vector<2x32xf32>
    %822 = arith.divf %820, %821 : vector<2x32xf32>
    %823 = vector.extract_strided_slice %785 {offsets = [0, 64], sizes = [2, 32], strides = [1, 1]} : vector<2x128xf32> to vector<2x32xf32>
    %824 = math.tanh %823 : vector<2x32xf32>
    %825 = vector.extract_strided_slice %785 {offsets = [0, 96], sizes = [2, 32], strides = [1, 1]} : vector<2x128xf32> to vector<2x32xf32>
    %826 = arith.negf %825 : vector<2x32xf32>
    %827 = math.exp %826 : vector<2x32xf32>
    %cst_242 = arith.constant 1.000000e+00 : f32
    %828 = vector.broadcast %cst_242 : f32 to vector<2x32xf32>
    %829 = arith.addf %828, %827 : vector<2x32xf32>
    %830 = arith.divf %828, %829 : vector<2x32xf32>
    %831 = arith.mulf %822, %775 : vector<2x32xf32>
    %832 = arith.mulf %816, %824 : vector<2x32xf32>
    %833 = arith.addf %831, %832 : vector<2x32xf32>
    %834 = math.tanh %833 : vector<2x32xf32>
    %835 = arith.mulf %830, %834 : vector<2x32xf32>
    %c10_243 = arith.constant 10 : index
    %c0_244 = arith.constant 0 : index
    %836 = vector.load %arg15[%c10_243, %c0_244] : memref<16x64xf32, #tpu.memory_space<vmem>>, vector<2x32xf32>
    tpu.vector_store %arg15[%c10_243, %c0_244], %810 {strides = array<i32>} : memref<16x64xf32, #tpu.memory_space<vmem>>, vector<2x32xf32>,
    %c4_245 = arith.constant 4 : index
    %c32_246 = arith.constant 32 : index
    %837 = vector.load %arg15[%c4_245, %c32_246] : memref<16x64xf32, #tpu.memory_space<vmem>>, vector<2x32xf32>
    tpu.vector_store %arg15[%c4_245, %c32_246], %835 {strides = array<i32>} : memref<16x64xf32, #tpu.memory_space<vmem>>, vector<2x32xf32>,
    %c12_247 = arith.constant 12 : index
    %c0_248 = arith.constant 0 : index
    %838 = vector.load %arg13[%c12_247, %c0_248] : memref<16x256xf32, #tpu.memory_space<vmem>>, vector<2x128xf32>
    %cst_249 = arith.constant dense<0.000000e+00> : vector<2x128xf32>
    %839 = tpu.matmul %810, %484, %cst_249 {dimension_numbers = #tpu.dot_dimension_numbers<[1], [0], [0], [1], [0, 0, 1, 1], [], []>} : vector<2x32xf32>, vector<32x128xf32>, vector<2x128xf32> -> vector<2x128xf32>
    %840 = arith.addf %838, %839 : vector<2x128xf32>
    %c2_250 = arith.constant 2 : index
    %c128_251 = arith.constant 128 : index
    %841 = vector.load %arg13[%c2_250, %c128_251] : memref<16x256xf32, #tpu.memory_space<vmem>>, vector<2x128xf32>
    %cst_252 = arith.constant dense<0.000000e+00> : vector<2x128xf32>
    %842 = tpu.matmul %835, %485, %cst_252 {dimension_numbers = #tpu.dot_dimension_numbers<[1], [0], [0], [1], [0, 0, 1, 1], [], []>} : vector<2x32xf32>, vector<32x128xf32>, vector<2x128xf32> -> vector<2x128xf32>
    %843 = arith.addf %841, %842 : vector<2x128xf32>
    %844 = vector.extract_strided_slice %840 {offsets = [0, 0], sizes = [2, 32], strides = [1, 1]} : vector<2x128xf32> to vector<2x32xf32>
    %845 = arith.negf %844 : vector<2x32xf32>
    %846 = math.exp %845 : vector<2x32xf32>
    %cst_253 = arith.constant 1.000000e+00 : f32
    %847 = vector.broadcast %cst_253 : f32 to vector<2x32xf32>
    %848 = arith.addf %847, %846 : vector<2x32xf32>
    %849 = arith.divf %847, %848 : vector<2x32xf32>
    %850 = vector.extract_strided_slice %840 {offsets = [0, 32], sizes = [2, 32], strides = [1, 1]} : vector<2x128xf32> to vector<2x32xf32>
    %851 = arith.negf %850 : vector<2x32xf32>
    %852 = math.exp %851 : vector<2x32xf32>
    %cst_254 = arith.constant 1.000000e+00 : f32
    %853 = vector.broadcast %cst_254 : f32 to vector<2x32xf32>
    %854 = arith.addf %853, %852 : vector<2x32xf32>
    %855 = arith.divf %853, %854 : vector<2x32xf32>
    %856 = vector.extract_strided_slice %840 {offsets = [0, 64], sizes = [2, 32], strides = [1, 1]} : vector<2x128xf32> to vector<2x32xf32>
    %857 = math.tanh %856 : vector<2x32xf32>
    %858 = vector.extract_strided_slice %840 {offsets = [0, 96], sizes = [2, 32], strides = [1, 1]} : vector<2x128xf32> to vector<2x32xf32>
    %859 = arith.negf %858 : vector<2x32xf32>
    %860 = math.exp %859 : vector<2x32xf32>
    %cst_255 = arith.constant 1.000000e+00 : f32
    %861 = vector.broadcast %cst_255 : f32 to vector<2x32xf32>
    %862 = arith.addf %861, %860 : vector<2x32xf32>
    %863 = arith.divf %861, %862 : vector<2x32xf32>
    %864 = arith.mulf %855, %808 : vector<2x32xf32>
    %865 = arith.mulf %849, %857 : vector<2x32xf32>
    %866 = arith.addf %864, %865 : vector<2x32xf32>
    %867 = math.tanh %866 : vector<2x32xf32>
    %868 = arith.mulf %863, %867 : vector<2x32xf32>
    %869 = vector.extract_strided_slice %843 {offsets = [0, 0], sizes = [2, 32], strides = [1, 1]} : vector<2x128xf32> to vector<2x32xf32>
    %870 = arith.negf %869 : vector<2x32xf32>
    %871 = math.exp %870 : vector<2x32xf32>
    %cst_256 = arith.constant 1.000000e+00 : f32
    %872 = vector.broadcast %cst_256 : f32 to vector<2x32xf32>
    %873 = arith.addf %872, %871 : vector<2x32xf32>
    %874 = arith.divf %872, %873 : vector<2x32xf32>
    %875 = vector.extract_strided_slice %843 {offsets = [0, 32], sizes = [2, 32], strides = [1, 1]} : vector<2x128xf32> to vector<2x32xf32>
    %876 = arith.negf %875 : vector<2x32xf32>
    %877 = math.exp %876 : vector<2x32xf32>
    %cst_257 = arith.constant 1.000000e+00 : f32
    %878 = vector.broadcast %cst_257 : f32 to vector<2x32xf32>
    %879 = arith.addf %878, %877 : vector<2x32xf32>
    %880 = arith.divf %878, %879 : vector<2x32xf32>
    %881 = vector.extract_strided_slice %843 {offsets = [0, 64], sizes = [2, 32], strides = [1, 1]} : vector<2x128xf32> to vector<2x32xf32>
    %882 = math.tanh %881 : vector<2x32xf32>
    %883 = vector.extract_strided_slice %843 {offsets = [0, 96], sizes = [2, 32], strides = [1, 1]} : vector<2x128xf32> to vector<2x32xf32>
    %884 = arith.negf %883 : vector<2x32xf32>
    %885 = math.exp %884 : vector<2x32xf32>
    %cst_258 = arith.constant 1.000000e+00 : f32
    %886 = vector.broadcast %cst_258 : f32 to vector<2x32xf32>
    %887 = arith.addf %886, %885 : vector<2x32xf32>
    %888 = arith.divf %886, %887 : vector<2x32xf32>
    %889 = arith.mulf %880, %833 : vector<2x32xf32>
    %890 = arith.mulf %874, %882 : vector<2x32xf32>
    %891 = arith.addf %889, %890 : vector<2x32xf32>
    %892 = math.tanh %891 : vector<2x32xf32>
    %893 = arith.mulf %888, %892 : vector<2x32xf32>
    %c12_259 = arith.constant 12 : index
    %c0_260 = arith.constant 0 : index
    %894 = vector.load %arg15[%c12_259, %c0_260] : memref<16x64xf32, #tpu.memory_space<vmem>>, vector<2x32xf32>
    tpu.vector_store %arg15[%c12_259, %c0_260], %868 {strides = array<i32>} : memref<16x64xf32, #tpu.memory_space<vmem>>, vector<2x32xf32>,
    %c2_261 = arith.constant 2 : index
    %c32_262 = arith.constant 32 : index
    %895 = vector.load %arg15[%c2_261, %c32_262] : memref<16x64xf32, #tpu.memory_space<vmem>>, vector<2x32xf32>
    tpu.vector_store %arg15[%c2_261, %c32_262], %893 {strides = array<i32>} : memref<16x64xf32, #tpu.memory_space<vmem>>, vector<2x32xf32>,
    %c14_263 = arith.constant 14 : index
    %c0_264 = arith.constant 0 : index
    %896 = vector.load %arg13[%c14_263, %c0_264] : memref<16x256xf32, #tpu.memory_space<vmem>>, vector<2x128xf32>
    %cst_265 = arith.constant dense<0.000000e+00> : vector<2x128xf32>
    %897 = tpu.matmul %868, %484, %cst_265 {dimension_numbers = #tpu.dot_dimension_numbers<[1], [0], [0], [1], [0, 0, 1, 1], [], []>} : vector<2x32xf32>, vector<32x128xf32>, vector<2x128xf32> -> vector<2x128xf32>
    %898 = arith.addf %896, %897 : vector<2x128xf32>
    %c0_266 = arith.constant 0 : index
    %c128_267 = arith.constant 128 : index
    %899 = vector.load %arg13[%c0_266, %c128_267] : memref<16x256xf32, #tpu.memory_space<vmem>>, vector<2x128xf32>
    %cst_268 = arith.constant dense<0.000000e+00> : vector<2x128xf32>
    %900 = tpu.matmul %893, %485, %cst_268 {dimension_numbers = #tpu.dot_dimension_numbers<[1], [0], [0], [1], [0, 0, 1, 1], [], []>} : vector<2x32xf32>, vector<32x128xf32>, vector<2x128xf32> -> vector<2x128xf32>
    %901 = arith.addf %899, %900 : vector<2x128xf32>
    %902 = vector.extract_strided_slice %898 {offsets = [0, 0], sizes = [2, 32], strides = [1, 1]} : vector<2x128xf32> to vector<2x32xf32>
    %903 = arith.negf %902 : vector<2x32xf32>
    %904 = math.exp %903 : vector<2x32xf32>
    %cst_269 = arith.constant 1.000000e+00 : f32
    %905 = vector.broadcast %cst_269 : f32 to vector<2x32xf32>
    %906 = arith.addf %905, %904 : vector<2x32xf32>
    %907 = arith.divf %905, %906 : vector<2x32xf32>
    %908 = vector.extract_strided_slice %898 {offsets = [0, 32], sizes = [2, 32], strides = [1, 1]} : vector<2x128xf32> to vector<2x32xf32>
    %909 = arith.negf %908 : vector<2x32xf32>
    %910 = math.exp %909 : vector<2x32xf32>
    %cst_270 = arith.constant 1.000000e+00 : f32
    %911 = vector.broadcast %cst_270 : f32 to vector<2x32xf32>
    %912 = arith.addf %911, %910 : vector<2x32xf32>
    %913 = arith.divf %911, %912 : vector<2x32xf32>
    %914 = vector.extract_strided_slice %898 {offsets = [0, 64], sizes = [2, 32], strides = [1, 1]} : vector<2x128xf32> to vector<2x32xf32>
    %915 = math.tanh %914 : vector<2x32xf32>
    %916 = vector.extract_strided_slice %898 {offsets = [0, 96], sizes = [2, 32], strides = [1, 1]} : vector<2x128xf32> to vector<2x32xf32>
    %917 = arith.negf %916 : vector<2x32xf32>
    %918 = math.exp %917 : vector<2x32xf32>
    %cst_271 = arith.constant 1.000000e+00 : f32
    %919 = vector.broadcast %cst_271 : f32 to vector<2x32xf32>
    %920 = arith.addf %919, %918 : vector<2x32xf32>
    %921 = arith.divf %919, %920 : vector<2x32xf32>
    %922 = arith.mulf %913, %866 : vector<2x32xf32>
    %923 = arith.mulf %907, %915 : vector<2x32xf32>
    %924 = arith.addf %922, %923 : vector<2x32xf32>
    %925 = math.tanh %924 : vector<2x32xf32>
    %926 = arith.mulf %921, %925 : vector<2x32xf32>
    %927 = vector.extract_strided_slice %901 {offsets = [0, 0], sizes = [2, 32], strides = [1, 1]} : vector<2x128xf32> to vector<2x32xf32>
    %928 = arith.negf %927 : vector<2x32xf32>
    %929 = math.exp %928 : vector<2x32xf32>
    %cst_272 = arith.constant 1.000000e+00 : f32
    %930 = vector.broadcast %cst_272 : f32 to vector<2x32xf32>
    %931 = arith.addf %930, %929 : vector<2x32xf32>
    %932 = arith.divf %930, %931 : vector<2x32xf32>
    %933 = vector.extract_strided_slice %901 {offsets = [0, 32], sizes = [2, 32], strides = [1, 1]} : vector<2x128xf32> to vector<2x32xf32>
    %934 = arith.negf %933 : vector<2x32xf32>
    %935 = math.exp %934 : vector<2x32xf32>
    %cst_273 = arith.constant 1.000000e+00 : f32
    %936 = vector.broadcast %cst_273 : f32 to vector<2x32xf32>
    %937 = arith.addf %936, %935 : vector<2x32xf32>
    %938 = arith.divf %936, %937 : vector<2x32xf32>
    %939 = vector.extract_strided_slice %901 {offsets = [0, 64], sizes = [2, 32], strides = [1, 1]} : vector<2x128xf32> to vector<2x32xf32>
    %940 = math.tanh %939 : vector<2x32xf32>
    %941 = vector.extract_strided_slice %901 {offsets = [0, 96], sizes = [2, 32], strides = [1, 1]} : vector<2x128xf32> to vector<2x32xf32>
    %942 = arith.negf %941 : vector<2x32xf32>
    %943 = math.exp %942 : vector<2x32xf32>
    %cst_274 = arith.constant 1.000000e+00 : f32
    %944 = vector.broadcast %cst_274 : f32 to vector<2x32xf32>
    %945 = arith.addf %944, %943 : vector<2x32xf32>
    %946 = arith.divf %944, %945 : vector<2x32xf32>
    %947 = arith.mulf %938, %891 : vector<2x32xf32>
    %948 = arith.mulf %932, %940 : vector<2x32xf32>
    %949 = arith.addf %947, %948 : vector<2x32xf32>
    %950 = math.tanh %949 : vector<2x32xf32>
    %951 = arith.mulf %946, %950 : vector<2x32xf32>
    %c14_275 = arith.constant 14 : index
    %c0_276 = arith.constant 0 : index
    %952 = vector.load %arg15[%c14_275, %c0_276] : memref<16x64xf32, #tpu.memory_space<vmem>>, vector<2x32xf32>
    tpu.vector_store %arg15[%c14_275, %c0_276], %926 {strides = array<i32>} : memref<16x64xf32, #tpu.memory_space<vmem>>, vector<2x32xf32>,
    %c0_277 = arith.constant 0 : index
    %c32_278 = arith.constant 32 : index
    %953 = vector.load %arg15[%c0_277, %c32_278] : memref<16x64xf32, #tpu.memory_space<vmem>>, vector<2x32xf32>
    tpu.vector_store %arg15[%c0_277, %c32_278], %951 {strides = array<i32>} : memref<16x64xf32, #tpu.memory_space<vmem>>, vector<2x32xf32>,
    %c0_279 = arith.constant 0 : index
    %c0_280 = arith.constant 0 : index
    %954 = vector.load %arg15[%c0_279, %c0_280] : memref<16x64xf32, #tpu.memory_space<vmem>>, vector<16x64xf32>
    %c0_281 = arith.constant 0 : index
    %c0_282 = arith.constant 0 : index
    %955 = vector.load %arg9[%c0_281, %c0_282] : memref<64x32xf32, #tpu.memory_space<vmem>>, vector<64x32xf32>
    %cst_283 = arith.constant dense<0.000000e+00> : vector<16x32xf32>
    %956 = tpu.matmul %954, %955, %cst_283 {dimension_numbers = #tpu.dot_dimension_numbers<[1], [0], [0], [1], [0, 0, 1, 1], [], []>} : vector<16x64xf32>, vector<64x32xf32>, vector<16x32xf32> -> vector<16x32xf32>
    %c0_284 = arith.constant 0 : index
    %c0_285 = arith.constant 0 : index
    %957 = vector.load %arg10[%c0_284, %c0_285] : memref<1x32xf32, #tpu.memory_space<vmem>>, vector<1x32xf32>
    %958 = vector.broadcast %957 : vector<1x32xf32> to vector<16x32xf32>
    %959 = arith.addf %956, %958 : vector<16x32xf32>
    %c0_286 = arith.constant 0 : index
    %c0_287 = arith.constant 0 : index
    %960 = vector.load %arg16[%c0_286, %c0_287] : memref<16x32xf32, #tpu.memory_space<vmem>>, vector<16x32xf32>
    tpu.vector_store %arg16[%c0_286, %c0_287], %959 {strides = array<i32>} : memref<16x32xf32, #tpu.memory_space<vmem>>, vector<16x32xf32>,
    %c0_288 = arith.constant 0 : index
    %c0_289 = arith.constant 0 : index
    %961 = vector.load %arg11[%c0_288, %c0_289] : memref<8x32xf32, #tpu.memory_space<vmem>>, vector<8x32xf32>
    %cst_290 = arith.constant 0.000000e+00 : f32
    %962 = vector.broadcast %cst_290 : f32 to vector<2x8xf32>
    %cst_291 = arith.constant 0.000000e+00 : f32
    %963 = vector.broadcast %cst_291 : f32 to vector<2x8xf32>
    %c0_292 = arith.constant 0 : index
    %c0_293 = arith.constant 0 : index
    %964 = vector.load %arg16[%c0_292, %c0_293] : memref<16x32xf32, #tpu.memory_space<vmem>>, vector<2x32xf32>
    %cst_294 = arith.constant dense<0.000000e+00> : vector<2x32xf32>
    %965 = tpu.matmul %962, %961, %cst_294 {dimension_numbers = #tpu.dot_dimension_numbers<[1], [0], [0], [1], [0, 0, 1, 1], [], []>} : vector<2x8xf32>, vector<8x32xf32>, vector<2x32xf32> -> vector<2x32xf32>
    %966 = arith.addf %964, %965 : vector<2x32xf32>
    %967 = vector.extract_strided_slice %966 {offsets = [0, 0], sizes = [2, 8], strides = [1, 1]} : vector<2x32xf32> to vector<2x8xf32>
    %968 = arith.negf %967 : vector<2x8xf32>
    %969 = math.exp %968 : vector<2x8xf32>
    %cst_295 = arith.constant 1.000000e+00 : f32
    %970 = vector.broadcast %cst_295 : f32 to vector<2x8xf32>
    %971 = arith.addf %970, %969 : vector<2x8xf32>
    %972 = arith.divf %970, %971 : vector<2x8xf32>
    %973 = vector.extract_strided_slice %966 {offsets = [0, 8], sizes = [2, 8], strides = [1, 1]} : vector<2x32xf32> to vector<2x8xf32>
    %974 = arith.negf %973 : vector<2x8xf32>
    %975 = math.exp %974 : vector<2x8xf32>
    %cst_296 = arith.constant 1.000000e+00 : f32
    %976 = vector.broadcast %cst_296 : f32 to vector<2x8xf32>
    %977 = arith.addf %976, %975 : vector<2x8xf32>
    %978 = arith.divf %976, %977 : vector<2x8xf32>
    %979 = vector.extract_strided_slice %966 {offsets = [0, 16], sizes = [2, 8], strides = [1, 1]} : vector<2x32xf32> to vector<2x8xf32>
    %980 = math.tanh %979 : vector<2x8xf32>
    %981 = vector.extract_strided_slice %966 {offsets = [0, 24], sizes = [2, 8], strides = [1, 1]} : vector<2x32xf32> to vector<2x8xf32>
    %982 = arith.negf %981 : vector<2x8xf32>
    %983 = math.exp %982 : vector<2x8xf32>
    %cst_297 = arith.constant 1.000000e+00 : f32
    %984 = vector.broadcast %cst_297 : f32 to vector<2x8xf32>
    %985 = arith.addf %984, %983 : vector<2x8xf32>
    %986 = arith.divf %984, %985 : vector<2x8xf32>
    %987 = arith.mulf %978, %963 : vector<2x8xf32>
    %988 = arith.mulf %972, %980 : vector<2x8xf32>
    %989 = arith.addf %987, %988 : vector<2x8xf32>
    %990 = math.tanh %989 : vector<2x8xf32>
    %991 = arith.mulf %986, %990 : vector<2x8xf32>
    %c0_298 = arith.constant 0 : index
    %c0_299 = arith.constant 0 : index
    %992 = vector.load %arg12[%c0_298, %c0_299] : memref<16x8xf32, #tpu.memory_space<vmem>>, vector<2x8xf32>
    tpu.vector_store %arg12[%c0_298, %c0_299], %991 {strides = array<i32>} : memref<16x8xf32, #tpu.memory_space<vmem>>, vector<2x8xf32>,
    %c2_300 = arith.constant 2 : index
    %c0_301 = arith.constant 0 : index
    %993 = vector.load %arg16[%c2_300, %c0_301] : memref<16x32xf32, #tpu.memory_space<vmem>>, vector<2x32xf32>
    %cst_302 = arith.constant dense<0.000000e+00> : vector<2x32xf32>
    %994 = tpu.matmul %991, %961, %cst_302 {dimension_numbers = #tpu.dot_dimension_numbers<[1], [0], [0], [1], [0, 0, 1, 1], [], []>} : vector<2x8xf32>, vector<8x32xf32>, vector<2x32xf32> -> vector<2x32xf32>
    %995 = arith.addf %993, %994 : vector<2x32xf32>
    %996 = vector.extract_strided_slice %995 {offsets = [0, 0], sizes = [2, 8], strides = [1, 1]} : vector<2x32xf32> to vector<2x8xf32>
    %997 = arith.negf %996 : vector<2x8xf32>
    %998 = math.exp %997 : vector<2x8xf32>
    %cst_303 = arith.constant 1.000000e+00 : f32
    %999 = vector.broadcast %cst_303 : f32 to vector<2x8xf32>
    %1000 = arith.addf %999, %998 : vector<2x8xf32>
    %1001 = arith.divf %999, %1000 : vector<2x8xf32>
    %1002 = vector.extract_strided_slice %995 {offsets = [0, 8], sizes = [2, 8], strides = [1, 1]} : vector<2x32xf32> to vector<2x8xf32>
    %1003 = arith.negf %1002 : vector<2x8xf32>
    %1004 = math.exp %1003 : vector<2x8xf32>
    %cst_304 = arith.constant 1.000000e+00 : f32
    %1005 = vector.broadcast %cst_304 : f32 to vector<2x8xf32>
    %1006 = arith.addf %1005, %1004 : vector<2x8xf32>
    %1007 = arith.divf %1005, %1006 : vector<2x8xf32>
    %1008 = vector.extract_strided_slice %995 {offsets = [0, 16], sizes = [2, 8], strides = [1, 1]} : vector<2x32xf32> to vector<2x8xf32>
    %1009 = math.tanh %1008 : vector<2x8xf32>
    %1010 = vector.extract_strided_slice %995 {offsets = [0, 24], sizes = [2, 8], strides = [1, 1]} : vector<2x32xf32> to vector<2x8xf32>
    %1011 = arith.negf %1010 : vector<2x8xf32>
    %1012 = math.exp %1011 : vector<2x8xf32>
    %cst_305 = arith.constant 1.000000e+00 : f32
    %1013 = vector.broadcast %cst_305 : f32 to vector<2x8xf32>
    %1014 = arith.addf %1013, %1012 : vector<2x8xf32>
    %1015 = arith.divf %1013, %1014 : vector<2x8xf32>
    %1016 = arith.mulf %1007, %989 : vector<2x8xf32>
    %1017 = arith.mulf %1001, %1009 : vector<2x8xf32>
    %1018 = arith.addf %1016, %1017 : vector<2x8xf32>
    %1019 = math.tanh %1018 : vector<2x8xf32>
    %1020 = arith.mulf %1015, %1019 : vector<2x8xf32>
    %c2_306 = arith.constant 2 : index
    %c0_307 = arith.constant 0 : index
    %1021 = vector.load %arg12[%c2_306, %c0_307] : memref<16x8xf32, #tpu.memory_space<vmem>>, vector<2x8xf32>
    tpu.vector_store %arg12[%c2_306, %c0_307], %1020 {strides = array<i32>} : memref<16x8xf32, #tpu.memory_space<vmem>>, vector<2x8xf32>,
    %c4_308 = arith.constant 4 : index
    %c0_309 = arith.constant 0 : index
    %1022 = vector.load %arg16[%c4_308, %c0_309] : memref<16x32xf32, #tpu.memory_space<vmem>>, vector<2x32xf32>
    %cst_310 = arith.constant dense<0.000000e+00> : vector<2x32xf32>
    %1023 = tpu.matmul %1020, %961, %cst_310 {dimension_numbers = #tpu.dot_dimension_numbers<[1], [0], [0], [1], [0, 0, 1, 1], [], []>} : vector<2x8xf32>, vector<8x32xf32>, vector<2x32xf32> -> vector<2x32xf32>
    %1024 = arith.addf %1022, %1023 : vector<2x32xf32>
    %1025 = vector.extract_strided_slice %1024 {offsets = [0, 0], sizes = [2, 8], strides = [1, 1]} : vector<2x32xf32> to vector<2x8xf32>
    %1026 = arith.negf %1025 : vector<2x8xf32>
    %1027 = math.exp %1026 : vector<2x8xf32>
    %cst_311 = arith.constant 1.000000e+00 : f32
    %1028 = vector.broadcast %cst_311 : f32 to vector<2x8xf32>
    %1029 = arith.addf %1028, %1027 : vector<2x8xf32>
    %1030 = arith.divf %1028, %1029 : vector<2x8xf32>
    %1031 = vector.extract_strided_slice %1024 {offsets = [0, 8], sizes = [2, 8], strides = [1, 1]} : vector<2x32xf32> to vector<2x8xf32>
    %1032 = arith.negf %1031 : vector<2x8xf32>
    %1033 = math.exp %1032 : vector<2x8xf32>
    %cst_312 = arith.constant 1.000000e+00 : f32
    %1034 = vector.broadcast %cst_312 : f32 to vector<2x8xf32>
    %1035 = arith.addf %1034, %1033 : vector<2x8xf32>
    %1036 = arith.divf %1034, %1035 : vector<2x8xf32>
    %1037 = vector.extract_strided_slice %1024 {offsets = [0, 16], sizes = [2, 8], strides = [1, 1]} : vector<2x32xf32> to vector<2x8xf32>
    %1038 = math.tanh %1037 : vector<2x8xf32>
    %1039 = vector.extract_strided_slice %1024 {offsets = [0, 24], sizes = [2, 8], strides = [1, 1]} : vector<2x32xf32> to vector<2x8xf32>
    %1040 = arith.negf %1039 : vector<2x8xf32>
    %1041 = math.exp %1040 : vector<2x8xf32>
    %cst_313 = arith.constant 1.000000e+00 : f32
    %1042 = vector.broadcast %cst_313 : f32 to vector<2x8xf32>
    %1043 = arith.addf %1042, %1041 : vector<2x8xf32>
    %1044 = arith.divf %1042, %1043 : vector<2x8xf32>
    %1045 = arith.mulf %1036, %1018 : vector<2x8xf32>
    %1046 = arith.mulf %1030, %1038 : vector<2x8xf32>
    %1047 = arith.addf %1045, %1046 : vector<2x8xf32>
    %1048 = math.tanh %1047 : vector<2x8xf32>
    %1049 = arith.mulf %1044, %1048 : vector<2x8xf32>
    %c4_314 = arith.constant 4 : index
    %c0_315 = arith.constant 0 : index
    %1050 = vector.load %arg12[%c4_314, %c0_315] : memref<16x8xf32, #tpu.memory_space<vmem>>, vector<2x8xf32>
    tpu.vector_store %arg12[%c4_314, %c0_315], %1049 {strides = array<i32>} : memref<16x8xf32, #tpu.memory_space<vmem>>, vector<2x8xf32>,
    %c6_316 = arith.constant 6 : index
    %c0_317 = arith.constant 0 : index
    %1051 = vector.load %arg16[%c6_316, %c0_317] : memref<16x32xf32, #tpu.memory_space<vmem>>, vector<2x32xf32>
    %cst_318 = arith.constant dense<0.000000e+00> : vector<2x32xf32>
    %1052 = tpu.matmul %1049, %961, %cst_318 {dimension_numbers = #tpu.dot_dimension_numbers<[1], [0], [0], [1], [0, 0, 1, 1], [], []>} : vector<2x8xf32>, vector<8x32xf32>, vector<2x32xf32> -> vector<2x32xf32>
    %1053 = arith.addf %1051, %1052 : vector<2x32xf32>
    %1054 = vector.extract_strided_slice %1053 {offsets = [0, 0], sizes = [2, 8], strides = [1, 1]} : vector<2x32xf32> to vector<2x8xf32>
    %1055 = arith.negf %1054 : vector<2x8xf32>
    %1056 = math.exp %1055 : vector<2x8xf32>
    %cst_319 = arith.constant 1.000000e+00 : f32
    %1057 = vector.broadcast %cst_319 : f32 to vector<2x8xf32>
    %1058 = arith.addf %1057, %1056 : vector<2x8xf32>
    %1059 = arith.divf %1057, %1058 : vector<2x8xf32>
    %1060 = vector.extract_strided_slice %1053 {offsets = [0, 8], sizes = [2, 8], strides = [1, 1]} : vector<2x32xf32> to vector<2x8xf32>
    %1061 = arith.negf %1060 : vector<2x8xf32>
    %1062 = math.exp %1061 : vector<2x8xf32>
    %cst_320 = arith.constant 1.000000e+00 : f32
    %1063 = vector.broadcast %cst_320 : f32 to vector<2x8xf32>
    %1064 = arith.addf %1063, %1062 : vector<2x8xf32>
    %1065 = arith.divf %1063, %1064 : vector<2x8xf32>
    %1066 = vector.extract_strided_slice %1053 {offsets = [0, 16], sizes = [2, 8], strides = [1, 1]} : vector<2x32xf32> to vector<2x8xf32>
    %1067 = math.tanh %1066 : vector<2x8xf32>
    %1068 = vector.extract_strided_slice %1053 {offsets = [0, 24], sizes = [2, 8], strides = [1, 1]} : vector<2x32xf32> to vector<2x8xf32>
    %1069 = arith.negf %1068 : vector<2x8xf32>
    %1070 = math.exp %1069 : vector<2x8xf32>
    %cst_321 = arith.constant 1.000000e+00 : f32
    %1071 = vector.broadcast %cst_321 : f32 to vector<2x8xf32>
    %1072 = arith.addf %1071, %1070 : vector<2x8xf32>
    %1073 = arith.divf %1071, %1072 : vector<2x8xf32>
    %1074 = arith.mulf %1065, %1047 : vector<2x8xf32>
    %1075 = arith.mulf %1059, %1067 : vector<2x8xf32>
    %1076 = arith.addf %1074, %1075 : vector<2x8xf32>
    %1077 = math.tanh %1076 : vector<2x8xf32>
    %1078 = arith.mulf %1073, %1077 : vector<2x8xf32>
    %c6_322 = arith.constant 6 : index
    %c0_323 = arith.constant 0 : index
    %1079 = vector.load %arg12[%c6_322, %c0_323] : memref<16x8xf32, #tpu.memory_space<vmem>>, vector<2x8xf32>
    tpu.vector_store %arg12[%c6_322, %c0_323], %1078 {strides = array<i32>} : memref<16x8xf32, #tpu.memory_space<vmem>>, vector<2x8xf32>,
    %c8_324 = arith.constant 8 : index
    %c0_325 = arith.constant 0 : index
    %1080 = vector.load %arg16[%c8_324, %c0_325] : memref<16x32xf32, #tpu.memory_space<vmem>>, vector<2x32xf32>
    %cst_326 = arith.constant dense<0.000000e+00> : vector<2x32xf32>
    %1081 = tpu.matmul %1078, %961, %cst_326 {dimension_numbers = #tpu.dot_dimension_numbers<[1], [0], [0], [1], [0, 0, 1, 1], [], []>} : vector<2x8xf32>, vector<8x32xf32>, vector<2x32xf32> -> vector<2x32xf32>
    %1082 = arith.addf %1080, %1081 : vector<2x32xf32>
    %1083 = vector.extract_strided_slice %1082 {offsets = [0, 0], sizes = [2, 8], strides = [1, 1]} : vector<2x32xf32> to vector<2x8xf32>
    %1084 = arith.negf %1083 : vector<2x8xf32>
    %1085 = math.exp %1084 : vector<2x8xf32>
    %cst_327 = arith.constant 1.000000e+00 : f32
    %1086 = vector.broadcast %cst_327 : f32 to vector<2x8xf32>
    %1087 = arith.addf %1086, %1085 : vector<2x8xf32>
    %1088 = arith.divf %1086, %1087 : vector<2x8xf32>
    %1089 = vector.extract_strided_slice %1082 {offsets = [0, 8], sizes = [2, 8], strides = [1, 1]} : vector<2x32xf32> to vector<2x8xf32>
    %1090 = arith.negf %1089 : vector<2x8xf32>
    %1091 = math.exp %1090 : vector<2x8xf32>
    %cst_328 = arith.constant 1.000000e+00 : f32
    %1092 = vector.broadcast %cst_328 : f32 to vector<2x8xf32>
    %1093 = arith.addf %1092, %1091 : vector<2x8xf32>
    %1094 = arith.divf %1092, %1093 : vector<2x8xf32>
    %1095 = vector.extract_strided_slice %1082 {offsets = [0, 16], sizes = [2, 8], strides = [1, 1]} : vector<2x32xf32> to vector<2x8xf32>
    %1096 = math.tanh %1095 : vector<2x8xf32>
    %1097 = vector.extract_strided_slice %1082 {offsets = [0, 24], sizes = [2, 8], strides = [1, 1]} : vector<2x32xf32> to vector<2x8xf32>
    %1098 = arith.negf %1097 : vector<2x8xf32>
    %1099 = math.exp %1098 : vector<2x8xf32>
    %cst_329 = arith.constant 1.000000e+00 : f32
    %1100 = vector.broadcast %cst_329 : f32 to vector<2x8xf32>
    %1101 = arith.addf %1100, %1099 : vector<2x8xf32>
    %1102 = arith.divf %1100, %1101 : vector<2x8xf32>
    %1103 = arith.mulf %1094, %1076 : vector<2x8xf32>
    %1104 = arith.mulf %1088, %1096 : vector<2x8xf32>
    %1105 = arith.addf %1103, %1104 : vector<2x8xf32>
    %1106 = math.tanh %1105 : vector<2x8xf32>
    %1107 = arith.mulf %1102, %1106 : vector<2x8xf32>
    %c8_330 = arith.constant 8 : index
    %c0_331 = arith.constant 0 : index
    %1108 = vector.load %arg12[%c8_330, %c0_331] : memref<16x8xf32, #tpu.memory_space<vmem>>, vector<2x8xf32>
    tpu.vector_store %arg12[%c8_330, %c0_331], %1107 {strides = array<i32>} : memref<16x8xf32, #tpu.memory_space<vmem>>, vector<2x8xf32>,
    %c10_332 = arith.constant 10 : index
    %c0_333 = arith.constant 0 : index
    %1109 = vector.load %arg16[%c10_332, %c0_333] : memref<16x32xf32, #tpu.memory_space<vmem>>, vector<2x32xf32>
    %cst_334 = arith.constant dense<0.000000e+00> : vector<2x32xf32>
    %1110 = tpu.matmul %1107, %961, %cst_334 {dimension_numbers = #tpu.dot_dimension_numbers<[1], [0], [0], [1], [0, 0, 1, 1], [], []>} : vector<2x8xf32>, vector<8x32xf32>, vector<2x32xf32> -> vector<2x32xf32>
    %1111 = arith.addf %1109, %1110 : vector<2x32xf32>
    %1112 = vector.extract_strided_slice %1111 {offsets = [0, 0], sizes = [2, 8], strides = [1, 1]} : vector<2x32xf32> to vector<2x8xf32>
    %1113 = arith.negf %1112 : vector<2x8xf32>
    %1114 = math.exp %1113 : vector<2x8xf32>
    %cst_335 = arith.constant 1.000000e+00 : f32
    %1115 = vector.broadcast %cst_335 : f32 to vector<2x8xf32>
    %1116 = arith.addf %1115, %1114 : vector<2x8xf32>
    %1117 = arith.divf %1115, %1116 : vector<2x8xf32>
    %1118 = vector.extract_strided_slice %1111 {offsets = [0, 8], sizes = [2, 8], strides = [1, 1]} : vector<2x32xf32> to vector<2x8xf32>
    %1119 = arith.negf %1118 : vector<2x8xf32>
    %1120 = math.exp %1119 : vector<2x8xf32>
    %cst_336 = arith.constant 1.000000e+00 : f32
    %1121 = vector.broadcast %cst_336 : f32 to vector<2x8xf32>
    %1122 = arith.addf %1121, %1120 : vector<2x8xf32>
    %1123 = arith.divf %1121, %1122 : vector<2x8xf32>
    %1124 = vector.extract_strided_slice %1111 {offsets = [0, 16], sizes = [2, 8], strides = [1, 1]} : vector<2x32xf32> to vector<2x8xf32>
    %1125 = math.tanh %1124 : vector<2x8xf32>
    %1126 = vector.extract_strided_slice %1111 {offsets = [0, 24], sizes = [2, 8], strides = [1, 1]} : vector<2x32xf32> to vector<2x8xf32>
    %1127 = arith.negf %1126 : vector<2x8xf32>
    %1128 = math.exp %1127 : vector<2x8xf32>
    %cst_337 = arith.constant 1.000000e+00 : f32
    %1129 = vector.broadcast %cst_337 : f32 to vector<2x8xf32>
    %1130 = arith.addf %1129, %1128 : vector<2x8xf32>
    %1131 = arith.divf %1129, %1130 : vector<2x8xf32>
    %1132 = arith.mulf %1123, %1105 : vector<2x8xf32>
    %1133 = arith.mulf %1117, %1125 : vector<2x8xf32>
    %1134 = arith.addf %1132, %1133 : vector<2x8xf32>
    %1135 = math.tanh %1134 : vector<2x8xf32>
    %1136 = arith.mulf %1131, %1135 : vector<2x8xf32>
    %c10_338 = arith.constant 10 : index
    %c0_339 = arith.constant 0 : index
    %1137 = vector.load %arg12[%c10_338, %c0_339] : memref<16x8xf32, #tpu.memory_space<vmem>>, vector<2x8xf32>
    tpu.vector_store %arg12[%c10_338, %c0_339], %1136 {strides = array<i32>} : memref<16x8xf32, #tpu.memory_space<vmem>>, vector<2x8xf32>,
    %c12_340 = arith.constant 12 : index
    %c0_341 = arith.constant 0 : index
    %1138 = vector.load %arg16[%c12_340, %c0_341] : memref<16x32xf32, #tpu.memory_space<vmem>>, vector<2x32xf32>
    %cst_342 = arith.constant dense<0.000000e+00> : vector<2x32xf32>
    %1139 = tpu.matmul %1136, %961, %cst_342 {dimension_numbers = #tpu.dot_dimension_numbers<[1], [0], [0], [1], [0, 0, 1, 1], [], []>} : vector<2x8xf32>, vector<8x32xf32>, vector<2x32xf32> -> vector<2x32xf32>
    %1140 = arith.addf %1138, %1139 : vector<2x32xf32>
    %1141 = vector.extract_strided_slice %1140 {offsets = [0, 0], sizes = [2, 8], strides = [1, 1]} : vector<2x32xf32> to vector<2x8xf32>
    %1142 = arith.negf %1141 : vector<2x8xf32>
    %1143 = math.exp %1142 : vector<2x8xf32>
    %cst_343 = arith.constant 1.000000e+00 : f32
    %1144 = vector.broadcast %cst_343 : f32 to vector<2x8xf32>
    %1145 = arith.addf %1144, %1143 : vector<2x8xf32>
    %1146 = arith.divf %1144, %1145 : vector<2x8xf32>
    %1147 = vector.extract_strided_slice %1140 {offsets = [0, 8], sizes = [2, 8], strides = [1, 1]} : vector<2x32xf32> to vector<2x8xf32>
    %1148 = arith.negf %1147 : vector<2x8xf32>
    %1149 = math.exp %1148 : vector<2x8xf32>
    %cst_344 = arith.constant 1.000000e+00 : f32
    %1150 = vector.broadcast %cst_344 : f32 to vector<2x8xf32>
    %1151 = arith.addf %1150, %1149 : vector<2x8xf32>
    %1152 = arith.divf %1150, %1151 : vector<2x8xf32>
    %1153 = vector.extract_strided_slice %1140 {offsets = [0, 16], sizes = [2, 8], strides = [1, 1]} : vector<2x32xf32> to vector<2x8xf32>
    %1154 = math.tanh %1153 : vector<2x8xf32>
    %1155 = vector.extract_strided_slice %1140 {offsets = [0, 24], sizes = [2, 8], strides = [1, 1]} : vector<2x32xf32> to vector<2x8xf32>
    %1156 = arith.negf %1155 : vector<2x8xf32>
    %1157 = math.exp %1156 : vector<2x8xf32>
    %cst_345 = arith.constant 1.000000e+00 : f32
    %1158 = vector.broadcast %cst_345 : f32 to vector<2x8xf32>
    %1159 = arith.addf %1158, %1157 : vector<2x8xf32>
    %1160 = arith.divf %1158, %1159 : vector<2x8xf32>
    %1161 = arith.mulf %1152, %1134 : vector<2x8xf32>
    %1162 = arith.mulf %1146, %1154 : vector<2x8xf32>
    %1163 = arith.addf %1161, %1162 : vector<2x8xf32>
    %1164 = math.tanh %1163 : vector<2x8xf32>
    %1165 = arith.mulf %1160, %1164 : vector<2x8xf32>
    %c12_346 = arith.constant 12 : index
    %c0_347 = arith.constant 0 : index
    %1166 = vector.load %arg12[%c12_346, %c0_347] : memref<16x8xf32, #tpu.memory_space<vmem>>, vector<2x8xf32>
    tpu.vector_store %arg12[%c12_346, %c0_347], %1165 {strides = array<i32>} : memref<16x8xf32, #tpu.memory_space<vmem>>, vector<2x8xf32>,
    %c14_348 = arith.constant 14 : index
    %c0_349 = arith.constant 0 : index
    %1167 = vector.load %arg16[%c14_348, %c0_349] : memref<16x32xf32, #tpu.memory_space<vmem>>, vector<2x32xf32>
    %cst_350 = arith.constant dense<0.000000e+00> : vector<2x32xf32>
    %1168 = tpu.matmul %1165, %961, %cst_350 {dimension_numbers = #tpu.dot_dimension_numbers<[1], [0], [0], [1], [0, 0, 1, 1], [], []>} : vector<2x8xf32>, vector<8x32xf32>, vector<2x32xf32> -> vector<2x32xf32>
    %1169 = arith.addf %1167, %1168 : vector<2x32xf32>
    %1170 = vector.extract_strided_slice %1169 {offsets = [0, 0], sizes = [2, 8], strides = [1, 1]} : vector<2x32xf32> to vector<2x8xf32>
    %1171 = arith.negf %1170 : vector<2x8xf32>
    %1172 = math.exp %1171 : vector<2x8xf32>
    %cst_351 = arith.constant 1.000000e+00 : f32
    %1173 = vector.broadcast %cst_351 : f32 to vector<2x8xf32>
    %1174 = arith.addf %1173, %1172 : vector<2x8xf32>
    %1175 = arith.divf %1173, %1174 : vector<2x8xf32>
    %1176 = vector.extract_strided_slice %1169 {offsets = [0, 8], sizes = [2, 8], strides = [1, 1]} : vector<2x32xf32> to vector<2x8xf32>
    %1177 = arith.negf %1176 : vector<2x8xf32>
    %1178 = math.exp %1177 : vector<2x8xf32>
    %cst_352 = arith.constant 1.000000e+00 : f32
    %1179 = vector.broadcast %cst_352 : f32 to vector<2x8xf32>
    %1180 = arith.addf %1179, %1178 : vector<2x8xf32>
    %1181 = arith.divf %1179, %1180 : vector<2x8xf32>
    %1182 = vector.extract_strided_slice %1169 {offsets = [0, 16], sizes = [2, 8], strides = [1, 1]} : vector<2x32xf32> to vector<2x8xf32>
    %1183 = math.tanh %1182 : vector<2x8xf32>
    %1184 = vector.extract_strided_slice %1169 {offsets = [0, 24], sizes = [2, 8], strides = [1, 1]} : vector<2x32xf32> to vector<2x8xf32>
    %1185 = arith.negf %1184 : vector<2x8xf32>
    %1186 = math.exp %1185 : vector<2x8xf32>
    %cst_353 = arith.constant 1.000000e+00 : f32
    %1187 = vector.broadcast %cst_353 : f32 to vector<2x8xf32>
    %1188 = arith.addf %1187, %1186 : vector<2x8xf32>
    %1189 = arith.divf %1187, %1188 : vector<2x8xf32>
    %1190 = arith.mulf %1181, %1163 : vector<2x8xf32>
    %1191 = arith.mulf %1175, %1183 : vector<2x8xf32>
    %1192 = arith.addf %1190, %1191 : vector<2x8xf32>
    %1193 = math.tanh %1192 : vector<2x8xf32>
    %1194 = arith.mulf %1189, %1193 : vector<2x8xf32>
    %c14_354 = arith.constant 14 : index
    %c0_355 = arith.constant 0 : index
    %1195 = vector.load %arg12[%c14_354, %c0_355] : memref<16x8xf32, #tpu.memory_space<vmem>>, vector<2x8xf32>
    tpu.vector_store %arg12[%c14_354, %c0_355], %1194 {strides = array<i32>} : memref<16x8xf32, #tpu.memory_space<vmem>>, vector<2x8xf32>,
    return
  }
}

</mosaic_0001>

<llo_original>
// kernel: tpu_custom_call.1
$region0: #{tpu_custom_call.1}
  #allocation0 [shape = 'u32[]', space=smem, size = 0x4, offset = 0x4, fixed_abs, tag = 'smem constant byte address 0x4 - core index']
  #allocation1 [shape = 'u32[144,128]{1,0:T(1,128)}', space=vmem, size = 0x12000, scoped, tag = 'internal scratch']
  #allocation2 [shape = 'f32[16,256]{1,0:T(8,128)}', space=vmem, size = 0x4000, scoped, tag = 'scratch operand']
  #allocation3 [shape = 'f32[16,64]{1,0:T(8,128)}', space=vmem, size = 0x2000, scoped, tag = 'scratch operand']
  #allocation4 [shape = 'f32[16,64]{1,0:T(8,128)}', space=vmem, size = 0x2000, scoped, tag = 'scratch operand']
  #allocation5 [shape = 'f32[16,32]{1,0:T(8,128)}', space=vmem, size = 0x2000, scoped, tag = 'scratch operand']
  %s0 = inlined_call_operand.hbm [shape: f32[16,64], index: 0, kind: input, shape index: {}]
  %s1 = inlined_call_operand.hbm [shape: f32[64,256], index: 1, kind: input, shape index: {}]
  %s2 = inlined_call_operand.hbm [shape: f32[1,256], index: 2, kind: input, shape index: {}]
  %s3 = inlined_call_operand.vmem [shape: f32[32,128], index: 3, kind: input, shape index: {}]
  %s4 = inlined_call_operand.vmem [shape: f32[32,128], index: 4, kind: input, shape index: {}]
  %s5 = inlined_call_operand.hbm [shape: f32[64,256], index: 5, kind: input, shape index: {}]
  %s6 = inlined_call_operand.hbm [shape: f32[1,256], index: 6, kind: input, shape index: {}]
  %s7 = inlined_call_operand.vmem [shape: f32[32,128], index: 7, kind: input, shape index: {}]
  %s8 = inlined_call_operand.hbm [shape: f32[32,128], index: 8, kind: input, shape index: {}]
  %s9 = inlined_call_operand.vmem [shape: f32[64,32], index: 9, kind: input, shape index: {}]
  %s10 = inlined_call_operand.vmem [shape: f32[1,32], index: 10, kind: input, shape index: {}]
  %s11 = inlined_call_operand.vmem [shape: f32[8,32], index: 11, kind: input, shape index: {}]
  %s12 = inlined_call_operand.vmem [shape: f32[16,8], index: 12, kind: output, shape index: {}]
  %s13 = sld [smem:[#allocation0]]
  $region82: #{tpu_custom_call.1} parent=0
    _
  %s15 = ssub.s32 1, %s13
  %s16 = scalar_select 0, %s15, %s13
  $region1: #{tpu_custom_call.1} parent=0
    #allocation6 [shape = 'u8[8192]{0}', space=vmem, size = 0x2000, scoped, tag = 'input window, operand 0, single buffered']
    #allocation7 [shape = 's32[1]{0}', space=sflag, size = 0x4, scoped, tag = 'scoped memory for tpu_custom_call.1']
    #allocation8 [shape = 'u8[65536]{0}', space=vmem, size = 0x10000, scoped, tag = 'input window, operand 1, single buffered']
    #allocation9 [shape = 's32[1]{0}', space=sflag, size = 0x4, scoped, tag = 'scoped memory for tpu_custom_call.1']
    #allocation10 [shape = 'u8[1024]{0}', space=vmem, size = 0x400, scoped, tag = 'input window, operand 2, single buffered']
    #allocation11 [shape = 'u8[65536]{0}', space=vmem, size = 0x10000, scoped, tag = 'input window, operand 5, single buffered']
    #allocation12 [shape = 's32[1]{0}', space=sflag, size = 0x4, scoped, tag = 'scoped memory for tpu_custom_call.1']
    #allocation13 [shape = 'u8[1024]{0}', space=vmem, size = 0x400, scoped, tag = 'input window, operand 6, single buffered']
    #allocation14 [shape = 'u8[16384]{0}', space=vmem, size = 0x4000, scoped, tag = 'input window, operand 8, single buffered']
    #allocation15 [shape = 's32[1]{0}', space=sflag, size = 0x4, scoped, tag = 'scoped memory for tpu_custom_call.1']
    %17 = vsyncpa [#allocation7], 0
    %18 = vsyncpa [#allocation9], 0
    %19 = vsyncpa [#allocation12], 0
    %20 = vsyncpa [#allocation15], 0
    // Predicated region
    $region2: #{tpu_custom_call.1} parent=1 // pred_check
      _
    $region3: #{tpu_custom_call.1} parent=1 // pred_check_branch
      %22 = sbr.rel (0) target = $region5
    $region4: #{tpu_custom_call.1} parent=1 // pred_region
      %s24 = ssub.s32 256, 256
      %25 = vsyncadd [#allocation7], %s24
      %s26 = sshll.u32 [#allocation6], 4
      %s27 = int_to_ptr.vmem [resolvable:$true] %s26
      %32 = dma.hbm_to_vmem [thread:$0]  %s0, 256, %s27, [#allocation7], 128, 128, 8
    $region5: #{tpu_custom_call.1} parent=1 // pred_fallthru
      _
    // Predicated region
    $region6: #{tpu_custom_call.1} parent=1 // pred_check
      _
    $region7: #{tpu_custom_call.1} parent=1 // pred_check_branch
      %34 = sbr.rel (0) target = $region9
    $region8: #{tpu_custom_call.1} parent=1 // pred_region
      %s36 = ssub.s32 2048, 2048
      %37 = vsyncadd [#allocation9], %s36
      %s38 = sshll.u32 [#allocation8], 4
      %s39 = int_to_ptr.vmem [resolvable:$true] %s38
      %44 = dma.hbm_to_vmem [thread:$0]  %s1, 2048, %s39, [#allocation9], 256, 256, 16
    $region9: #{tpu_custom_call.1} parent=1 // pred_fallthru
      _
    // Predicated region
    $region10: #{tpu_custom_call.1} parent=1 // pred_check
      _
    $region11: #{tpu_custom_call.1} parent=1 // pred_check_branch
      %46 = sbr.rel (0) target = $region13
    $region12: #{tpu_custom_call.1} parent=1 // pred_region
      %s48 = ssub.s32 32, 32
      %49 = vsyncadd [#allocation9], %s48
      %s51 = sshll.u32 [#allocation10], 4
      %s52 = int_to_ptr.vmem [resolvable:$true] %s51
      %54 = dma.hbm_to_vmem [thread:$0]  %s2, 32, %s52, [#allocation9]
    $region13: #{tpu_custom_call.1} parent=1 // pred_fallthru
      _
    // Predicated region
    $region14: #{tpu_custom_call.1} parent=1 // pred_check
      _
    $region15: #{tpu_custom_call.1} parent=1 // pred_check_branch
      %56 = sbr.rel (0) target = $region17
    $region16: #{tpu_custom_call.1} parent=1 // pred_region
      _
    $region17: #{tpu_custom_call.1} parent=1 // pred_fallthru
      _
    // Predicated region
    $region18: #{tpu_custom_call.1} parent=1 // pred_check
      _
    $region19: #{tpu_custom_call.1} parent=1 // pred_check_branch
      %58 = sbr.rel (0) target = $region21
    $region20: #{tpu_custom_call.1} parent=1 // pred_region
      _
    $region21: #{tpu_custom_call.1} parent=1 // pred_fallthru
      _
    // Predicated region
    $region22: #{tpu_custom_call.1} parent=1 // pred_check
      _
    $region23: #{tpu_custom_call.1} parent=1 // pred_check_branch
      %60 = sbr.rel (0) target = $region25
    $region24: #{tpu_custom_call.1} parent=1 // pred_region
      %s62 = ssub.s32 2048, 2048
      %63 = vsyncadd [#allocation12], %s62
      %s64 = sshll.u32 [#allocation11], 4
      %s65 = int_to_ptr.vmem [resolvable:$true] %s64
      %70 = dma.hbm_to_vmem [thread:$0]  %s5, 2048, %s65, [#allocation12], 256, 256, 16
    $region25: #{tpu_custom_call.1} parent=1 // pred_fallthru
      _
    // Predicated region
    $region26: #{tpu_custom_call.1} parent=1 // pred_check
      _
    $region27: #{tpu_custom_call.1} parent=1 // pred_check_branch
      %72 = sbr.rel (0) target = $region29
    $region28: #{tpu_custom_call.1} parent=1 // pred_region
      %s74 = ssub.s32 32, 32
      %75 = vsyncadd [#allocation12], %s74
      %s77 = sshll.u32 [#allocation13], 4
      %s78 = int_to_ptr.vmem [resolvable:$true] %s77
      %80 = dma.hbm_to_vmem [thread:$0]  %s6, 32, %s78, [#allocation12]
    $region29: #{tpu_custom_call.1} parent=1 // pred_fallthru
      _
    // Predicated region
    $region30: #{tpu_custom_call.1} parent=1 // pred_check
      _
    $region31: #{tpu_custom_call.1} parent=1 // pred_check_branch
      %82 = sbr.rel (0) target = $region33
    $region32: #{tpu_custom_call.1} parent=1 // pred_region
      _
    $region33: #{tpu_custom_call.1} parent=1 // pred_fallthru
      _
    // Predicated region
    $region34: #{tpu_custom_call.1} parent=1 // pred_check
      _
    $region35: #{tpu_custom_call.1} parent=1 // pred_check_branch
      %84 = sbr.rel (0) target = $region37
    $region36: #{tpu_custom_call.1} parent=1 // pred_region
      %s86 = ssub.s32 512, 512
      %87 = vsyncadd [#allocation15], %s86
      %s88 = sshll.u32 [#allocation14], 4
      %s89 = int_to_ptr.vmem [resolvable:$true] %s88
      %94 = dma.hbm_to_vmem [thread:$0]  %s8, 512, %s89, [#allocation15], 128, 128, 8
    $region37: #{tpu_custom_call.1} parent=1 // pred_fallthru
      _
    // Predicated region
    $region38: #{tpu_custom_call.1} parent=1 // pred_check
      _
    $region39: #{tpu_custom_call.1} parent=1 // pred_check_branch
      %96 = sbr.rel (0) target = $region41
    $region40: #{tpu_custom_call.1} parent=1 // pred_region
      _
    $region41: #{tpu_custom_call.1} parent=1 // pred_fallthru
      _
    // Predicated region
    $region42: #{tpu_custom_call.1} parent=1 // pred_check
      _
    $region43: #{tpu_custom_call.1} parent=1 // pred_check_branch
      %98 = sbr.rel (0) target = $region45
    $region44: #{tpu_custom_call.1} parent=1 // pred_region
      _
    $region45: #{tpu_custom_call.1} parent=1 // pred_fallthru
      _
    // Predicated region
    $region46: #{tpu_custom_call.1} parent=1 // pred_check
      _
    $region47: #{tpu_custom_call.1} parent=1 // pred_check_branch
      %100 = sbr.rel (0) target = $region49
    $region48: #{tpu_custom_call.1} parent=1 // pred_region
      _
    $region49: #{tpu_custom_call.1} parent=1 // pred_fallthru
      _
    // Predicated region
    $region50: #{tpu_custom_call.1} parent=1 // pred_check
      _
    $region51: #{tpu_custom_call.1} parent=1 // pred_check_branch
      %102 = sbr.rel (0) target = $region53
    $region52: #{tpu_custom_call.1} parent=1 // pred_region
      %103 = dma.done [#allocation7], 256
    $region53: #{tpu_custom_call.1} parent=1 // pred_fallthru
      _
    // Predicated region
    $region54: #{tpu_custom_call.1} parent=1 // pred_check
      _
    $region55: #{tpu_custom_call.1} parent=1 // pred_check_branch
      %105 = sbr.rel (0) target = $region57
    $region56: #{tpu_custom_call.1} parent=1 // pred_region
      %106 = dma.done [#allocation9], 2048
    $region57: #{tpu_custom_call.1} parent=1 // pred_fallthru
      _
    // Predicated region
    $region58: #{tpu_custom_call.1} parent=1 // pred_check
      _
    $region59: #{tpu_custom_call.1} parent=1 // pred_check_branch
      %108 = sbr.rel (0) target = $region61
    $region60: #{tpu_custom_call.1} parent=1 // pred_region
      %109 = dma.done [#allocation9], 32
    $region61: #{tpu_custom_call.1} parent=1 // pred_fallthru
      _
    // Predicated region
    $region62: #{tpu_custom_call.1} parent=1 // pred_check
      _
    $region63: #{tpu_custom_call.1} parent=1 // pred_check_branch
      %111 = sbr.rel (0) target = $region65
    $region64: #{tpu_custom_call.1} parent=1 // pred_region
      %112 = dma.done [#allocation12], 2048
    $region65: #{tpu_custom_call.1} parent=1 // pred_fallthru
      _
    // Predicated region
    $region66: #{tpu_custom_call.1} parent=1 // pred_check
      _
    $region67: #{tpu_custom_call.1} parent=1 // pred_check_branch
      %114 = sbr.rel (0) target = $region69
    $region68: #{tpu_custom_call.1} parent=1 // pred_region
      %115 = dma.done [#allocation12], 32
    $region69: #{tpu_custom_call.1} parent=1 // pred_fallthru
      _
    // Predicated region
    $region70: #{tpu_custom_call.1} parent=1 // pred_check
      _
    $region71: #{tpu_custom_call.1} parent=1 // pred_check_branch
      %117 = sbr.rel (0) target = $region73
    $region72: #{tpu_custom_call.1} parent=1 // pred_region
      %118 = dma.done [#allocation15], 512
    $region73: #{tpu_custom_call.1} parent=1 // pred_fallthru
      _
    %v119 = vld [vmem:[#allocation6] sm:$0xff]
    %v120 = vld [vmem:[#allocation6 + $0x8] sm:$0xff]
    %v121 = vld [vmem:[#allocation8] sm:$0xff]
    %v122 = vld [vmem:[#allocation8 + $0x8] sm:$0xff]
    %v123 = vld [vmem:[#allocation8 + $0x10] sm:$0xff]
    %v124 = vld [vmem:[#allocation8 + $0x18] sm:$0xff]
    %v125 = vld [vmem:[#allocation8 + $0x20] sm:$0xff]
    %v126 = vld [vmem:[#allocation8 + $0x28] sm:$0xff]
    %v127 = vld [vmem:[#allocation8 + $0x30] sm:$0xff]
    %v128 = vld [vmem:[#allocation8 + $0x38] sm:$0xff]
    %v129 = vld [vmem:[#allocation8 + $0x40] sm:$0xff]
    %v130 = vld [vmem:[#allocation8 + $0x48] sm:$0xff]
    %v131 = vld [vmem:[#allocation8 + $0x50] sm:$0xff]
    %v132 = vld [vmem:[#allocation8 + $0x58] sm:$0xff]
    %v133 = vld [vmem:[#allocation8 + $0x60] sm:$0xff]
    %v134 = vld [vmem:[#allocation8 + $0x68] sm:$0xff]
    %v135 = vld [vmem:[#allocation8 + $0x70] sm:$0xff]
    %v136 = vld [vmem:[#allocation8 + $0x78] sm:$0xff]
    %v137 = vld [vmem:[#allocation10] sm:$0x3]
    %v139 = vlaneseq
    %v140 = vshrl.u32 %v139, 7
    %v141 = vsub.s32 0, %v140
    %v142 = vrot.slane %v137, %v141
    %v143 = vlaneseq
    %v144 = vshrl.u32 %v143, 7
    %v145 = vsub.s32 1, %v144
    %v146 = vrot.slane %v137, %v145
    %vm149 = vcmask 523264
    %v151 = vsel %vm149, %v119, 0
    %v154 = vsel %vm149, %v120, 0
    %156 = vmatprep.subr.mxu0 %v122
    %157 = vmatpush1.msra.mxu0 %v121
    %158 = vmatprep.subr.mxu0 %v124
    %159 = vmatpush1.msra.mxu0 %v123
    %160 = vmatprep.subr.mxu0 %v126
    %161 = vmatpush1.msra.mxu0 %v125
    %162 = vmatprep.subr.mxu0 %v128
    %163 = vmatpush1.msra.mxu0 %v127
    %164 = vmatprep.subr.mxu0 %v130
    %165 = vmatpush1.msra.mxu0 %v129
    %166 = vmatprep.subr.mxu0 %v132
    %167 = vmatpush1.msra.mxu0 %v131
    %168 = vmatprep.subr.mxu0 %v134
    %169 = vmatpush1.msra.mxu0 %v133
    %170 = vmatprep.subr.mxu0 %v136
    %171 = vmatpush1.msra.mxu0 %v135
    %172 = vmatprep.subr.mxu0 0.0
    %173 = vmatpush1.msra.mxu0 0.0
    %174 = vmatprep.subr.mxu0 0.0
    %175 = vmatpush1.msra.mxu0 0.0
    %176 = vmatprep.subr.mxu0 0.0
    %177 = vmatpush1.msra.mxu0 0.0
    %178 = vmatprep.subr.mxu0 0.0
    %179 = vmatpush1.msra.mxu0 0.0
    %180 = vmatprep.subr.mxu0 0.0
    %181 = vmatpush1.msra.mxu0 0.0
    %182 = vmatprep.subr.mxu0 0.0
    %183 = vmatpush1.msra.mxu0 0.0
    %184 = vmatprep.subr.mxu0 0.0
    %185 = vmatpush1.msra.mxu0 0.0
    %186 = vmatprep.subr.mxu0 0.0
    %187 = vmatpush1.msra.mxu0 0.0
    %188 = vmatprep.subr.mxu0 0.0
    %189 = vmatpush1.msra.mxu0 0.0
    %190 = vmatprep.subr.mxu0 0.0
    %191 = vmatpush1.msra.mxu0 0.0
    %192 = vmatprep.subr.mxu0 0.0
    %193 = vmatpush1.msra.mxu0 0.0
    %194 = vmatprep.subr.mxu0 0.0
    %195 = vmatpush1.msra.mxu0 0.0
    %196 = vmatprep.subr.mxu0 0.0
    %197 = vmatpush1.msra.mxu0 0.0
    %198 = vmatprep.subr.mxu0 0.0
    %199 = vmatpush1.msra.mxu0 0.0
    %200 = vmatprep.subr.mxu0 0.0
    %201 = vmatpush1.msra.mxu0 0.0
    %202 = vmatprep.subr.mxu0 0.0
    %203 = vmatpush1.msra.mxu0 0.0
    %204 = vmatprep.subr.mxu0 0.0
    %205 = vmatpush1.msra.mxu0 0.0
    %206 = vmatprep.subr.mxu0 0.0
    %207 = vmatpush1.msra.mxu0 0.0
    %208 = vmatprep.subr.mxu0 0.0
    %209 = vmatpush1.msra.mxu0 0.0
    %210 = vmatprep.subr.mxu0 0.0
    %211 = vmatpush1.msra.mxu0 0.0
    %212 = vmatprep.subr.mxu0 0.0
    %213 = vmatpush1.msra.mxu0 0.0
    %214 = vmatprep.subr.mxu0 0.0
    %215 = vmatpush1.msra.mxu0 0.0
    %216 = vmatprep.subr.mxu0 0.0
    %217 = vmatpush1.msra.mxu0 0.0
    %218 = vmatprep.subr.mxu0 0.0
    %219 = vmatpush1.msra.mxu0 0.0
    %220 = vmatprep.mubr.f32.mxu0 0.0
    %221 = vmatmul.mubr.f32.gmra.mrb[0].mxu0 %v151
    %v222 = vpop.f32.mrb[0].mxu0
    %v223 = vadd.f32 %v142, %v222
    %v224 = vpop.f32.mrb[0].mxu0
    %v225 = vadd.f32 %v146, %v224
    %226 = vmatprep.mubr.f32.mxu0 0.0
    %227 = vmatmul.mubr.f32.gmra.mrb[0].mxu0 %v154
    %v228 = vpop.f32.mrb[0].mxu0
    %v229 = vadd.f32 %v142, %v228
    %v230 = vpop.f32.mrb[0].mxu0
    %v231 = vadd.f32 %v146, %v230
    %232 = vdwg.mxu0
    %233 = vst [vmem:[#allocation2] sm:$0xff] %v223
    %234 = vst [vmem:[#allocation2 + $0x8] sm:$0xff] %v225
    %235 = vst [vmem:[#allocation2 + $0x10] sm:$0xff] %v229
    %236 = vst [vmem:[#allocation2 + $0x18] sm:$0xff] %v231
    %v237 = vld [vmem:[%s3] sm:$0xff]
    %v238 = vld [vmem:[%s3 + $0x8] sm:$0xff]
    %v239 = vld [vmem:[%s3 + $0x10] sm:$0xff]
    %v240 = vld [vmem:[%s3 + $0x18] sm:$0xff]
    %v241 = vld [vmem:[%s4] sm:$0xff]
    %v242 = vld [vmem:[%s4 + $0x8] sm:$0xff]
    %v243 = vld [vmem:[%s4 + $0x10] sm:$0xff]
    %v244 = vld [vmem:[%s4 + $0x18] sm:$0xff]
    %v245 = vld [vmem:[#allocation2] sm:$0x3]
    %vm246 = vcmask 261120
    %v248 = vsel %vm246, 0.0, 0
    %250 = vmatprep.subr.mxu0 0.0
    %251 = vmatpush1.msra.mxu0 %v237
    %252 = vmatprep.subr.mxu0 0.0
    %253 = vmatpush1.msra.mxu0 %v238
    %254 = vmatprep.subr.mxu0 0.0
    %255 = vmatpush1.msra.mxu0 %v239
    %256 = vmatprep.subr.mxu0 0.0
    %257 = vmatpush1.msra.mxu0 %v240
    %258 = vmatprep.subr.mxu0 0.0
    %259 = vmatpush1.msra.mxu0 0.0
    %260 = vmatprep.subr.mxu0 0.0
    %261 = vmatpush1.msra.mxu0 0.0
    %262 = vmatprep.subr.mxu0 0.0
    %263 = vmatpush1.msra.mxu0 0.0
    %264 = vmatprep.subr.mxu0 0.0
    %265 = vmatpush1.msra.mxu0 0.0
    %266 = vmatprep.subr.mxu0 0.0
    %267 = vmatpush1.msra.mxu0 0.0
    %268 = vmatprep.subr.mxu0 0.0
    %269 = vmatpush1.msra.mxu0 0.0
    %270 = vmatprep.subr.mxu0 0.0
    %271 = vmatpush1.msra.mxu0 0.0
    %272 = vmatprep.subr.mxu0 0.0
    %273 = vmatpush1.msra.mxu0 0.0
    %274 = vmatprep.subr.mxu0 0.0
    %275 = vmatpush1.msra.mxu0 0.0
    %276 = vmatprep.subr.mxu0 0.0
    %277 = vmatpush1.msra.mxu0 0.0
    %278 = vmatprep.subr.mxu0 0.0
    %279 = vmatpush1.msra.mxu0 0.0
    %280 = vmatprep.subr.mxu0 0.0
    %281 = vmatpush1.msra.mxu0 0.0
    %282 = vmatprep.subr.mxu0 0.0
    %283 = vmatpush1.msra.mxu0 0.0
    %284 = vmatprep.subr.mxu0 0.0
    %285 = vmatpush1.msra.mxu0 0.0
    %286 = vmatprep.subr.mxu0 0.0
    %287 = vmatpush1.msra.mxu0 0.0
    %288 = vmatprep.subr.mxu0 0.0
    %289 = vmatpush1.msra.mxu0 0.0
    %290 = vmatprep.subr.mxu0 0.0
    %291 = vmatpush1.msra.mxu0 0.0
    %292 = vmatprep.subr.mxu0 0.0
    %293 = vmatpush1.msra.mxu0 0.0
    %294 = vmatprep.subr.mxu0 0.0
    %295 = vmatpush1.msra.mxu0 0.0
    %296 = vmatprep.subr.mxu0 0.0
    %297 = vmatpush1.msra.mxu0 0.0
    %298 = vmatprep.subr.mxu0 0.0
    %299 = vmatpush1.msra.mxu0 0.0
    %300 = vmatprep.subr.mxu0 0.0
    %301 = vmatpush1.msra.mxu0 0.0
    %302 = vmatprep.subr.mxu0 0.0
    %303 = vmatpush1.msra.mxu0 0.0
    %304 = vmatprep.subr.mxu0 0.0
    %305 = vmatpush1.msra.mxu0 0.0
    %306 = vmatprep.subr.mxu0 0.0
    %307 = vmatpush1.msra.mxu0 0.0
    %308 = vmatprep.subr.mxu0 0.0
    %309 = vmatpush1.msra.mxu0 0.0
    %310 = vmatprep.subr.mxu0 0.0
    %311 = vmatpush1.msra.mxu0 0.0
    %312 = vmatprep.subr.mxu0 0.0
    %313 = vmatpush1.msra.mxu0 0.0
    %314 = vmatprep.mubr.f32.mxu0 0.0
    %315 = vmatmul.mubr.f32.gmra.mrb[0].mxu0 %v248
    %v316 = vpop.f32.mrb[0].mxu0
    %v317 = vadd.f32 0.0, %v316
    %v318 = vpop.f32.mrb[0].mxu0
    %319 = vdwg.mxu0
    %v320 = vadd.f32 %v245, %v317
    %v321 = vld [vmem:[#allocation2 + $0x18] sm:$0xc0]
    %322 = vmatprep.subr.mxu0 0.0
    %323 = vmatpush1.msra.mxu0 %v241
    %324 = vmatprep.subr.mxu0 0.0
    %325 = vmatpush1.msra.mxu0 %v242
    %326 = vmatprep.subr.mxu0 0.0
    %327 = vmatpush1.msra.mxu0 %v243
    %328 = vmatprep.subr.mxu0 0.0
    %329 = vmatpush1.msra.mxu0 %v244
    %330 = vmatprep.subr.mxu0 0.0
    %331 = vmatpush1.msra.mxu0 0.0
    %332 = vmatprep.subr.mxu0 0.0
    %333 = vmatpush1.msra.mxu0 0.0
    %334 = vmatprep.subr.mxu0 0.0
    %335 = vmatpush1.msra.mxu0 0.0
    %336 = vmatprep.subr.mxu0 0.0
    %337 = vmatpush1.msra.mxu0 0.0
    %338 = vmatprep.subr.mxu0 0.0
    %339 = vmatpush1.msra.mxu0 0.0
    %340 = vmatprep.subr.mxu0 0.0
    %341 = vmatpush1.msra.mxu0 0.0
    %342 = vmatprep.subr.mxu0 0.0
    %343 = vmatpush1.msra.mxu0 0.0
    %344 = vmatprep.subr.mxu0 0.0
    %345 = vmatpush1.msra.mxu0 0.0
    %346 = vmatprep.subr.mxu0 0.0
    %347 = vmatpush1.msra.mxu0 0.0
    %348 = vmatprep.subr.mxu0 0.0
    %349 = vmatpush1.msra.mxu0 0.0
    %350 = vmatprep.subr.mxu0 0.0
    %351 = vmatpush1.msra.mxu0 0.0
    %352 = vmatprep.subr.mxu0 0.0
    %353 = vmatpush1.msra.mxu0 0.0
    %354 = vmatprep.subr.mxu0 0.0
    %355 = vmatpush1.msra.mxu0 0.0
    %356 = vmatprep.subr.mxu0 0.0
    %357 = vmatpush1.msra.mxu0 0.0
    %358 = vmatprep.subr.mxu0 0.0
    %359 = vmatpush1.msra.mxu0 0.0
    %360 = vmatprep.subr.mxu0 0.0
    %361 = vmatpush1.msra.mxu0 0.0
    %362 = vmatprep.subr.mxu0 0.0
    %363 = vmatpush1.msra.mxu0 0.0
    %364 = vmatprep.subr.mxu0 0.0
    %365 = vmatpush1.msra.mxu0 0.0
    %366 = vmatprep.subr.mxu0 0.0
    %367 = vmatpush1.msra.mxu0 0.0
    %368 = vmatprep.subr.mxu0 0.0
    %369 = vmatpush1.msra.mxu0 0.0
    %370 = vmatprep.subr.mxu0 0.0
    %371 = vmatpush1.msra.mxu0 0.0
    %372 = vmatprep.subr.mxu0 0.0
    %373 = vmatpush1.msra.mxu0 0.0
    %374 = vmatprep.subr.mxu0 0.0
    %375 = vmatpush1.msra.mxu0 0.0
    %376 = vmatprep.subr.mxu0 0.0
    %377 = vmatpush1.msra.mxu0 0.0
    %378 = vmatprep.subr.mxu0 0.0
    %379 = vmatpush1.msra.mxu0 0.0
    %380 = vmatprep.subr.mxu0 0.0
    %381 = vmatpush1.msra.mxu0 0.0
    %382 = vmatprep.subr.mxu0 0.0
    %383 = vmatpush1.msra.mxu0 0.0
    %384 = vmatprep.subr.mxu0 0.0
    %385 = vmatpush1.msra.mxu0 0.0
    %386 = vmatprep.mubr.f32.mxu0 0.0
    %387 = vmatmul.mubr.f32.gmra.mrb[0].mxu0 %v248
    %v388 = vpop.f32.mrb[0].mxu0
    %v389 = vadd.f32 0.0, %v388
    %v390 = vpop.f32.mrb[0].mxu0
    %391 = vdwg.mxu0
    %v393 = vrot.slane %v389, 2
    %v395 = vadd.f32 %v321, %v393
    %v396 = vxor.u32 %v320, 2147483648
    %v397 = vmul.f32 %v396, 1.442695
    %v398 = vpow.pop %v397
    %v399 = vadd.f32 %v398, 1.0
    %v400 = vrcp.pop %v399
    %v401 = vmul.f32 1.0, %v400
    %v402 = vtanh.pop %v320
    %v403 = vmul.f32 %v401, 0.0
    %405 = vrot.lane.b32.xlu0 %v402, 64
    %v406 = vpop.permute.xlu0 %405
    %v408 = vmul.f32 %v401, %v406
    %410 = vrot.lane.b32.xlu0 %v408, 32
    %v411 = vpop.permute.xlu0 %410
    %v413 = vadd.f32 %v403, %v411
    %v414 = vtanh.pop %v413
    %416 = vrot.lane.b32.xlu0 %v414, 64
    %v417 = vpop.permute.xlu0 %416
    %v419 = vmul.f32 %v401, %v417
    %v420 = vxor.u32 %v395, 2147483648
    %v421 = vmul.f32 %v420, 1.442695
    %v422 = vpow.pop %v421
    %v423 = vadd.f32 %v422, 1.0
    %v424 = vrcp.pop %v423
    %v425 = vmul.f32 1.0, %v424
    %v426 = vtanh.pop %v395
    %v427 = vmul.f32 %v425, 0.0
    %429 = vrot.lane.b32.xlu0 %v426, 64
    %v430 = vpop.permute.xlu0 %429
    %v432 = vmul.f32 %v425, %v430
    %434 = vrot.lane.b32.xlu0 %v432, 32
    %v435 = vpop.permute.xlu0 %434
    %v437 = vadd.f32 %v427, %v435
    %v438 = vtanh.pop %v437
    %440 = vrot.lane.b32.xlu0 %v438, 64
    %v441 = vpop.permute.xlu0 %440
    %v443 = vmul.f32 %v425, %v441
    %445 = vrot.lane.b32.xlu0 %v419, 32
    %v446 = vpop.permute.xlu0 %445
    %vm448 = vcmask 254976
    %449 = vst.msk [vmem:[#allocation3] sm:$0x3] %vm448, %v446
    %451 = vrot.lane.b32.xlu0 %v443, 64
    %v452 = vpop.permute.xlu0 %451
    %vm454 = vcmask 523526
    %455 = vst.msk [vmem:[#allocation3 + $0x8] sm:$0xc0] %vm454, %v452
    %v456 = vld [vmem:[#allocation2] sm:$0xc]
    %v457 = vsel %vm246, %v446, 0
    %459 = vmatprep.subr.mxu0 0.0
    %460 = vmatpush1.msra.mxu0 %v237
    %461 = vmatprep.subr.mxu0 0.0
    %462 = vmatpush1.msra.mxu0 %v238
    %463 = vmatprep.subr.mxu0 0.0
    %464 = vmatpush1.msra.mxu0 %v239
    %465 = vmatprep.subr.mxu0 0.0
    %466 = vmatpush1.msra.mxu0 %v240
    %467 = vmatprep.subr.mxu0 0.0
    %468 = vmatpush1.msra.mxu0 0.0
    %469 = vmatprep.subr.mxu0 0.0
    %470 = vmatpush1.msra.mxu0 0.0
    %471 = vmatprep.subr.mxu0 0.0
    %472 = vmatpush1.msra.mxu0 0.0
    %473 = vmatprep.subr.mxu0 0.0
    %474 = vmatpush1.msra.mxu0 0.0
    %475 = vmatprep.subr.mxu0 0.0
    %476 = vmatpush1.msra.mxu0 0.0
    %477 = vmatprep.subr.mxu0 0.0
    %478 = vmatpush1.msra.mxu0 0.0
    %479 = vmatprep.subr.mxu0 0.0
    %480 = vmatpush1.msra.mxu0 0.0
    %481 = vmatprep.subr.mxu0 0.0
    %482 = vmatpush1.msra.mxu0 0.0
    %483 = vmatprep.subr.mxu0 0.0
    %484 = vmatpush1.msra.mxu0 0.0
    %485 = vmatprep.subr.mxu0 0.0
    %486 = vmatpush1.msra.mxu0 0.0
    %487 = vmatprep.subr.mxu0 0.0
    %488 = vmatpush1.msra.mxu0 0.0
    %489 = vmatprep.subr.mxu0 0.0
    %490 = vmatpush1.msra.mxu0 0.0
    %491 = vmatprep.subr.mxu0 0.0
    %492 = vmatpush1.msra.mxu0 0.0
    %493 = vmatprep.subr.mxu0 0.0
    %494 = vmatpush1.msra.mxu0 0.0
    %495 = vmatprep.subr.mxu0 0.0
    %496 = vmatpush1.msra.mxu0 0.0
    %497 = vmatprep.subr.mxu0 0.0
    %498 = vmatpush1.msra.mxu0 0.0
    %499 = vmatprep.subr.mxu0 0.0
    %500 = vmatpush1.msra.mxu0 0.0
    %501 = vmatprep.subr.mxu0 0.0
    %502 = vmatpush1.msra.mxu0 0.0
    %503 = vmatprep.subr.mxu0 0.0
    %504 = vmatpush1.msra.mxu0 0.0
    %505 = vmatprep.subr.mxu0 0.0
    %506 = vmatpush1.msra.mxu0 0.0
    %507 = vmatprep.subr.mxu0 0.0
    %508 = vmatpush1.msra.mxu0 0.0
    %509 = vmatprep.subr.mxu0 0.0
    %510 = vmatpush1.msra.mxu0 0.0
    %511 = vmatprep.subr.mxu0 0.0
    %512 = vmatpush1.msra.mxu0 0.0
    %513 = vmatprep.subr.mxu0 0.0
    %514 = vmatpush1.msra.mxu0 0.0
    %515 = vmatprep.subr.mxu0 0.0
    %516 = vmatpush1.msra.mxu0 0.0
    %517 = vmatprep.subr.mxu0 0.0
    %518 = vmatpush1.msra.mxu0 0.0
    %519 = vmatprep.subr.mxu0 0.0
    %520 = vmatpush1.msra.mxu0 0.0
    %521 = vmatprep.subr.mxu0 0.0
    %522 = vmatpush1.msra.mxu0 0.0
    %523 = vmatprep.mubr.f32.mxu0 0.0
    %524 = vmatmul.mubr.f32.gmra.mrb[0].mxu0 %v457
    %v525 = vpop.f32.mrb[0].mxu0
    %v526 = vadd.f32 0.0, %v525
    %v527 = vpop.f32.mrb[0].mxu0
    %528 = vdwg.mxu0
    %v530 = vrot.slane %v526, 6
    %v532 = vadd.f32 %v456, %v530
    %v533 = vld [vmem:[#allocation2 + $0x18] sm:$0x30]
    %v534 = vrot.slane %v443, 6
    %535 = vrot.lane.b32.xlu0 %v534, 32
    %v536 = vpop.permute.xlu0 %535
    %v537 = vsel %vm246, %v536, 0
    %539 = vmatprep.subr.mxu0 0.0
    %540 = vmatpush1.msra.mxu0 %v241
    %541 = vmatprep.subr.mxu0 0.0
    %542 = vmatpush1.msra.mxu0 %v242
    %543 = vmatprep.subr.mxu0 0.0
    %544 = vmatpush1.msra.mxu0 %v243
    %545 = vmatprep.subr.mxu0 0.0
    %546 = vmatpush1.msra.mxu0 %v244
    %547 = vmatprep.subr.mxu0 0.0
    %548 = vmatpush1.msra.mxu0 0.0
    %549 = vmatprep.subr.mxu0 0.0
    %550 = vmatpush1.msra.mxu0 0.0
    %551 = vmatprep.subr.mxu0 0.0
    %552 = vmatpush1.msra.mxu0 0.0
    %553 = vmatprep.subr.mxu0 0.0
    %554 = vmatpush1.msra.mxu0 0.0
    %555 = vmatprep.subr.mxu0 0.0
    %556 = vmatpush1.msra.mxu0 0.0
    %557 = vmatprep.subr.mxu0 0.0
    %558 = vmatpush1.msra.mxu0 0.0
    %559 = vmatprep.subr.mxu0 0.0
    %560 = vmatpush1.msra.mxu0 0.0
    %561 = vmatprep.subr.mxu0 0.0
    %562 = vmatpush1.msra.mxu0 0.0
    %563 = vmatprep.subr.mxu0 0.0
    %564 = vmatpush1.msra.mxu0 0.0
    %565 = vmatprep.subr.mxu0 0.0
    %566 = vmatpush1.msra.mxu0 0.0
    %567 = vmatprep.subr.mxu0 0.0
    %568 = vmatpush1.msra.mxu0 0.0
    %569 = vmatprep.subr.mxu0 0.0
    %570 = vmatpush1.msra.mxu0 0.0
    %571 = vmatprep.subr.mxu0 0.0
    %572 = vmatpush1.msra.mxu0 0.0
    %573 = vmatprep.subr.mxu0 0.0
    %574 = vmatpush1.msra.mxu0 0.0
    %575 = vmatprep.subr.mxu0 0.0
    %576 = vmatpush1.msra.mxu0 0.0
    %577 = vmatprep.subr.mxu0 0.0
    %578 = vmatpush1.msra.mxu0 0.0
    %579 = vmatprep.subr.mxu0 0.0
    %580 = vmatpush1.msra.mxu0 0.0
    %581 = vmatprep.subr.mxu0 0.0
    %582 = vmatpush1.msra.mxu0 0.0
    %583 = vmatprep.subr.mxu0 0.0
    %584 = vmatpush1.msra.mxu0 0.0
    %585 = vmatprep.subr.mxu0 0.0
    %586 = vmatpush1.msra.mxu0 0.0
    %587 = vmatprep.subr.mxu0 0.0
    %588 = vmatpush1.msra.mxu0 0.0
    %589 = vmatprep.subr.mxu0 0.0
    %590 = vmatpush1.msra.mxu0 0.0
    %591 = vmatprep.subr.mxu0 0.0
    %592 = vmatpush1.msra.mxu0 0.0
    %593 = vmatprep.subr.mxu0 0.0
    %594 = vmatpush1.msra.mxu0 0.0
    %595 = vmatprep.subr.mxu0 0.0
    %596 = vmatpush1.msra.mxu0 0.0
    %597 = vmatprep.subr.mxu0 0.0
    %598 = vmatpush1.msra.mxu0 0.0
    %599 = vmatprep.subr.mxu0 0.0
    %600 = vmatpush1.msra.mxu0 0.0
    %601 = vmatprep.subr.mxu0 0.0
    %602 = vmatpush1.msra.mxu0 0.0
    %603 = vmatprep.mubr.f32.mxu0 0.0
    %604 = vmatmul.mubr.f32.gmra.mrb[0].mxu0 %v537
    %v605 = vpop.f32.mrb[0].mxu0
    %v606 = vadd.f32 0.0, %v605
    %v607 = vpop.f32.mrb[0].mxu0
    %608 = vdwg.mxu0
    %v610 = vrot.slane %v606, 4
    %v612 = vadd.f32 %v533, %v610
    %v613 = vxor.u32 %v532, 2147483648
    %v614 = vmul.f32 %v613, 1.442695
    %v615 = vpow.pop %v614
    %v616 = vadd.f32 %v615, 1.0
    %v617 = vrcp.pop %v616
    %v618 = vmul.f32 1.0, %v617
    %v619 = vtanh.pop %v532
    %v621 = vrot.slane %v413, 6
    %v623 = vmul.f32 %v618, %v621
    %625 = vrot.lane.b32.xlu0 %v619, 64
    %v626 = vpop.permute.xlu0 %625
    %v628 = vmul.f32 %v618, %v626
    %630 = vrot.lane.b32.xlu0 %v628, 32
    %v631 = vpop.permute.xlu0 %630
    %v633 = vadd.f32 %v623, %v631
    %v634 = vtanh.pop %v633
    %636 = vrot.lane.b32.xlu0 %v634, 64
    %v637 = vpop.permute.xlu0 %636
    %v639 = vmul.f32 %v618, %v637
    %v640 = vxor.u32 %v612, 2147483648
    %v641 = vmul.f32 %v640, 1.442695
    %v642 = vpow.pop %v641
    %v643 = vadd.f32 %v642, 1.0
    %v644 = vrcp.pop %v643
    %v645 = vmul.f32 1.0, %v644
    %v646 = vtanh.pop %v612
    %v648 = vrot.slane %v437, 2
    %v650 = vmul.f32 %v645, %v648
    %652 = vrot.lane.b32.xlu0 %v646, 64
    %v653 = vpop.permute.xlu0 %652
    %v655 = vmul.f32 %v645, %v653
    %657 = vrot.lane.b32.xlu0 %v655, 32
    %v658 = vpop.permute.xlu0 %657
    %v660 = vadd.f32 %v650, %v658
    %v661 = vtanh.pop %v660
    %663 = vrot.lane.b32.xlu0 %v661, 64
    %v664 = vpop.permute.xlu0 %663
    %v666 = vmul.f32 %v645, %v664
    %668 = vrot.lane.b32.xlu0 %v639, 32
    %v669 = vpop.permute.xlu0 %668
    %vm671 = vcmask 257026
    %672 = vst.msk [vmem:[#allocation3] sm:$0xc] %vm671, %v669
    %674 = vrot.lane.b32.xlu0 %v666, 64
    %v675 = vpop.permute.xlu0 %674
    %vm677 = vcmask 521476
    %678 = vst.msk [vmem:[#allocation3 + $0x8] sm:$0x30] %vm677, %v675
    %v679 = vld [vmem:[#allocation2] sm:$0x30]
    %v680 = vrot.slane %v639, 2
    %681 = vrot.lane.b32.xlu0 %v680, 32
    %v682 = vpop.permute.xlu0 %681
    %v683 = vsel %vm246, %v682, 0
    %685 = vmatprep.subr.mxu0 0.0
    %686 = vmatpush1.msra.mxu0 %v237
    %687 = vmatprep.subr.mxu0 0.0
    %688 = vmatpush1.msra.mxu0 %v238
    %689 = vmatprep.subr.mxu0 0.0
    %690 = vmatpush1.msra.mxu0 %v239
    %691 = vmatprep.subr.mxu0 0.0
    %692 = vmatpush1.msra.mxu0 %v240
    %693 = vmatprep.subr.mxu0 0.0
    %694 = vmatpush1.msra.mxu0 0.0
    %695 = vmatprep.subr.mxu0 0.0
    %696 = vmatpush1.msra.mxu0 0.0
    %697 = vmatprep.subr.mxu0 0.0
    %698 = vmatpush1.msra.mxu0 0.0
    %699 = vmatprep.subr.mxu0 0.0
    %700 = vmatpush1.msra.mxu0 0.0
    %701 = vmatprep.subr.mxu0 0.0
    %702 = vmatpush1.msra.mxu0 0.0
    %703 = vmatprep.subr.mxu0 0.0
    %704 = vmatpush1.msra.mxu0 0.0
    %705 = vmatprep.subr.mxu0 0.0
    %706 = vmatpush1.msra.mxu0 0.0
    %707 = vmatprep.subr.mxu0 0.0
    %708 = vmatpush1.msra.mxu0 0.0
    %709 = vmatprep.subr.mxu0 0.0
    %710 = vmatpush1.msra.mxu0 0.0
    %711 = vmatprep.subr.mxu0 0.0
    %712 = vmatpush1.msra.mxu0 0.0
    %713 = vmatprep.subr.mxu0 0.0
    %714 = vmatpush1.msra.mxu0 0.0
    %715 = vmatprep.subr.mxu0 0.0
    %716 = vmatpush1.msra.mxu0 0.0
    %717 = vmatprep.subr.mxu0 0.0
    %718 = vmatpush1.msra.mxu0 0.0
    %719 = vmatprep.subr.mxu0 0.0
    %720 = vmatpush1.msra.mxu0 0.0
    %721 = vmatprep.subr.mxu0 0.0
    %722 = vmatpush1.msra.mxu0 0.0
    %723 = vmatprep.subr.mxu0 0.0
    %724 = vmatpush1.msra.mxu0 0.0
    %725 = vmatprep.subr.mxu0 0.0
    %726 = vmatpush1.msra.mxu0 0.0
    %727 = vmatprep.subr.mxu0 0.0
    %728 = vmatpush1.msra.mxu0 0.0
    %729 = vmatprep.subr.mxu0 0.0
    %730 = vmatpush1.msra.mxu0 0.0
    %731 = vmatprep.subr.mxu0 0.0
    %732 = vmatpush1.msra.mxu0 0.0
    %733 = vmatprep.subr.mxu0 0.0
    %734 = vmatpush1.msra.mxu0 0.0
    %735 = vmatprep.subr.mxu0 0.0
    %736 = vmatpush1.msra.mxu0 0.0
    %737 = vmatprep.subr.mxu0 0.0
    %738 = vmatpush1.msra.mxu0 0.0
    %739 = vmatprep.subr.mxu0 0.0
    %740 = vmatpush1.msra.mxu0 0.0
    %741 = vmatprep.subr.mxu0 0.0
    %742 = vmatpush1.msra.mxu0 0.0
    %743 = vmatprep.subr.mxu0 0.0
    %744 = vmatpush1.msra.mxu0 0.0
    %745 = vmatprep.subr.mxu0 0.0
    %746 = vmatpush1.msra.mxu0 0.0
    %747 = vmatprep.subr.mxu0 0.0
    %748 = vmatpush1.msra.mxu0 0.0
    %749 = vmatprep.mubr.f32.mxu0 0.0
    %750 = vmatmul.mubr.f32.gmra.mrb[0].mxu0 %v683
    %v751 = vpop.f32.mrb[0].mxu0
    %v752 = vadd.f32 0.0, %v751
    %v753 = vpop.f32.mrb[0].mxu0
    %754 = vdwg.mxu0
    %v756 = vrot.slane %v752, 4
    %v758 = vadd.f32 %v679, %v756
    %v759 = vld [vmem:[#allocation2 + $0x18] sm:$0xc]
    %v760 = vrot.slane %v666, 4
    %761 = vrot.lane.b32.xlu0 %v760, 32
    %v762 = vpop.permute.xlu0 %761
    %v763 = vsel %vm246, %v762, 0
    %765 = vmatprep.subr.mxu0 0.0
    %766 = vmatpush1.msra.mxu0 %v241
    %767 = vmatprep.subr.mxu0 0.0
    %768 = vmatpush1.msra.mxu0 %v242
    %769 = vmatprep.subr.mxu0 0.0
    %770 = vmatpush1.msra.mxu0 %v243
    %771 = vmatprep.subr.mxu0 0.0
    %772 = vmatpush1.msra.mxu0 %v244
    %773 = vmatprep.subr.mxu0 0.0
    %774 = vmatpush1.msra.mxu0 0.0
    %775 = vmatprep.subr.mxu0 0.0
    %776 = vmatpush1.msra.mxu0 0.0
    %777 = vmatprep.subr.mxu0 0.0
    %778 = vmatpush1.msra.mxu0 0.0
    %779 = vmatprep.subr.mxu0 0.0
    %780 = vmatpush1.msra.mxu0 0.0
    %781 = vmatprep.subr.mxu0 0.0
    %782 = vmatpush1.msra.mxu0 0.0
    %783 = vmatprep.subr.mxu0 0.0
    %784 = vmatpush1.msra.mxu0 0.0
    %785 = vmatprep.subr.mxu0 0.0
    %786 = vmatpush1.msra.mxu0 0.0
    %787 = vmatprep.subr.mxu0 0.0
    %788 = vmatpush1.msra.mxu0 0.0
    %789 = vmatprep.subr.mxu0 0.0
    %790 = vmatpush1.msra.mxu0 0.0
    %791 = vmatprep.subr.mxu0 0.0
    %792 = vmatpush1.msra.mxu0 0.0
    %793 = vmatprep.subr.mxu0 0.0
    %794 = vmatpush1.msra.mxu0 0.0
    %795 = vmatprep.subr.mxu0 0.0
    %796 = vmatpush1.msra.mxu0 0.0
    %797 = vmatprep.subr.mxu0 0.0
    %798 = vmatpush1.msra.mxu0 0.0
    %799 = vmatprep.subr.mxu0 0.0
    %800 = vmatpush1.msra.mxu0 0.0
    %801 = vmatprep.subr.mxu0 0.0
    %802 = vmatpush1.msra.mxu0 0.0
    %803 = vmatprep.subr.mxu0 0.0
    %804 = vmatpush1.msra.mxu0 0.0
    %805 = vmatprep.subr.mxu0 0.0
    %806 = vmatpush1.msra.mxu0 0.0
    %807 = vmatprep.subr.mxu0 0.0
    %808 = vmatpush1.msra.mxu0 0.0
    %809 = vmatprep.subr.mxu0 0.0
    %810 = vmatpush1.msra.mxu0 0.0
    %811 = vmatprep.subr.mxu0 0.0
    %812 = vmatpush1.msra.mxu0 0.0
    %813 = vmatprep.subr.mxu0 0.0
    %814 = vmatpush1.msra.mxu0 0.0
    %815 = vmatprep.subr.mxu0 0.0
    %816 = vmatpush1.msra.mxu0 0.0
    %817 = vmatprep.subr.mxu0 0.0
    %818 = vmatpush1.msra.mxu0 0.0
    %819 = vmatprep.subr.mxu0 0.0
    %820 = vmatpush1.msra.mxu0 0.0
    %821 = vmatprep.subr.mxu0 0.0
    %822 = vmatpush1.msra.mxu0 0.0
    %823 = vmatprep.subr.mxu0 0.0
    %824 = vmatpush1.msra.mxu0 0.0
    %825 = vmatprep.subr.mxu0 0.0
    %826 = vmatpush1.msra.mxu0 0.0
    %827 = vmatprep.subr.mxu0 0.0
    %828 = vmatpush1.msra.mxu0 0.0
    %829 = vmatprep.mubr.f32.mxu0 0.0
    %830 = vmatmul.mubr.f32.gmra.mrb[0].mxu0 %v763
    %v831 = vpop.f32.mrb[0].mxu0
    %v832 = vadd.f32 0.0, %v831
    %v833 = vpop.f32.mrb[0].mxu0
    %834 = vdwg.mxu0
    %v836 = vrot.slane %v832, 6
    %v838 = vadd.f32 %v759, %v836
    %v839 = vxor.u32 %v758, 2147483648
    %v840 = vmul.f32 %v839, 1.442695
    %v841 = vpow.pop %v840
    %v842 = vadd.f32 %v841, 1.0
    %v843 = vrcp.pop %v842
    %v844 = vmul.f32 1.0, %v843
    %v845 = vtanh.pop %v758
    %v847 = vrot.slane %v633, 6
    %v849 = vmul.f32 %v844, %v847
    %851 = vrot.lane.b32.xlu0 %v845, 64
    %v852 = vpop.permute.xlu0 %851
    %v854 = vmul.f32 %v844, %v852
    %856 = vrot.lane.b32.xlu0 %v854, 32
    %v857 = vpop.permute.xlu0 %856
    %v859 = vadd.f32 %v849, %v857
    %v860 = vtanh.pop %v859
    %862 = vrot.lane.b32.xlu0 %v860, 64
    %v863 = vpop.permute.xlu0 %862
    %v865 = vmul.f32 %v844, %v863
    %v866 = vxor.u32 %v838, 2147483648
    %v867 = vmul.f32 %v866, 1.442695
    %v868 = vpow.pop %v867
    %v869 = vadd.f32 %v868, 1.0
    %v870 = vrcp.pop %v869
    %v871 = vmul.f32 1.0, %v870
    %v872 = vtanh.pop %v838
    %v874 = vrot.slane %v660, 2
    %v876 = vmul.f32 %v871, %v874
    %878 = vrot.lane.b32.xlu0 %v872, 64
    %v879 = vpop.permute.xlu0 %878
    %v881 = vmul.f32 %v871, %v879
    %883 = vrot.lane.b32.xlu0 %v881, 32
    %v884 = vpop.permute.xlu0 %883
    %v886 = vadd.f32 %v876, %v884
    %v887 = vtanh.pop %v886
    %889 = vrot.lane.b32.xlu0 %v887, 64
    %v890 = vpop.permute.xlu0 %889
    %v892 = vmul.f32 %v871, %v890
    %894 = vrot.lane.b32.xlu0 %v865, 32
    %v895 = vpop.permute.xlu0 %894
    %vm897 = vcmask 259076
    %898 = vst.msk [vmem:[#allocation3] sm:$0x30] %vm897, %v895
    %900 = vrot.lane.b32.xlu0 %v892, 64
    %v901 = vpop.permute.xlu0 %900
    %vm903 = vcmask 519426
    %904 = vst.msk [vmem:[#allocation3 + $0x8] sm:$0xc] %vm903, %v901
    %v905 = vld [vmem:[#allocation2] sm:$0xc0]
    %v906 = vrot.slane %v865, 4
    %907 = vrot.lane.b32.xlu0 %v906, 32
    %v908 = vpop.permute.xlu0 %907
    %v909 = vsel %vm246, %v908, 0
    %911 = vmatprep.subr.mxu0 0.0
    %912 = vmatpush1.msra.mxu0 %v237
    %913 = vmatprep.subr.mxu0 0.0
    %914 = vmatpush1.msra.mxu0 %v238
    %915 = vmatprep.subr.mxu0 0.0
    %916 = vmatpush1.msra.mxu0 %v239
    %917 = vmatprep.subr.mxu0 0.0
    %918 = vmatpush1.msra.mxu0 %v240
    %919 = vmatprep.subr.mxu0 0.0
    %920 = vmatpush1.msra.mxu0 0.0
    %921 = vmatprep.subr.mxu0 0.0
    %922 = vmatpush1.msra.mxu0 0.0
    %923 = vmatprep.subr.mxu0 0.0
    %924 = vmatpush1.msra.mxu0 0.0
    %925 = vmatprep.subr.mxu0 0.0
    %926 = vmatpush1.msra.mxu0 0.0
    %927 = vmatprep.subr.mxu0 0.0
    %928 = vmatpush1.msra.mxu0 0.0
    %929 = vmatprep.subr.mxu0 0.0
    %930 = vmatpush1.msra.mxu0 0.0
    %931 = vmatprep.subr.mxu0 0.0
    %932 = vmatpush1.msra.mxu0 0.0
    %933 = vmatprep.subr.mxu0 0.0
    %934 = vmatpush1.msra.mxu0 0.0
    %935 = vmatprep.subr.mxu0 0.0
    %936 = vmatpush1.msra.mxu0 0.0
    %937 = vmatprep.subr.mxu0 0.0
    %938 = vmatpush1.msra.mxu0 0.0
    %939 = vmatprep.subr.mxu0 0.0
    %940 = vmatpush1.msra.mxu0 0.0
    %941 = vmatprep.subr.mxu0 0.0
    %942 = vmatpush1.msra.mxu0 0.0
    %943 = vmatprep.subr.mxu0 0.0
    %944 = vmatpush1.msra.mxu0 0.0
    %945 = vmatprep.subr.mxu0 0.0
    %946 = vmatpush1.msra.mxu0 0.0
    %947 = vmatprep.subr.mxu0 0.0
    %948 = vmatpush1.msra.mxu0 0.0
    %949 = vmatprep.subr.mxu0 0.0
    %950 = vmatpush1.msra.mxu0 0.0
    %951 = vmatprep.subr.mxu0 0.0
    %952 = vmatpush1.msra.mxu0 0.0
    %953 = vmatprep.subr.mxu0 0.0
    %954 = vmatpush1.msra.mxu0 0.0
    %955 = vmatprep.subr.mxu0 0.0
    %956 = vmatpush1.msra.mxu0 0.0
    %957 = vmatprep.subr.mxu0 0.0
    %958 = vmatpush1.msra.mxu0 0.0
    %959 = vmatprep.subr.mxu0 0.0
    %960 = vmatpush1.msra.mxu0 0.0
    %961 = vmatprep.subr.mxu0 0.0
    %962 = vmatpush1.msra.mxu0 0.0
    %963 = vmatprep.subr.mxu0 0.0
    %964 = vmatpush1.msra.mxu0 0.0
    %965 = vmatprep.subr.mxu0 0.0
    %966 = vmatpush1.msra.mxu0 0.0
    %967 = vmatprep.subr.mxu0 0.0
    %968 = vmatpush1.msra.mxu0 0.0
    %969 = vmatprep.subr.mxu0 0.0
    %970 = vmatpush1.msra.mxu0 0.0
    %971 = vmatprep.subr.mxu0 0.0
    %972 = vmatpush1.msra.mxu0 0.0
    %973 = vmatprep.subr.mxu0 0.0
    %974 = vmatpush1.msra.mxu0 0.0
    %975 = vmatprep.mubr.f32.mxu0 0.0
    %976 = vmatmul.mubr.f32.gmra.mrb[0].mxu0 %v909
    %v977 = vpop.f32.mrb[0].mxu0
    %v978 = vadd.f32 0.0, %v977
    %v979 = vpop.f32.mrb[0].mxu0
    %980 = vdwg.mxu0
    %v982 = vrot.slane %v978, 2
    %v984 = vadd.f32 %v905, %v982
    %v985 = vld [vmem:[#allocation2 + $0x18] sm:$0x3]
    %v986 = vrot.slane %v892, 2
    %987 = vrot.lane.b32.xlu0 %v986, 32
    %v988 = vpop.permute.xlu0 %987
    %v989 = vsel %vm246, %v988, 0
    %991 = vmatprep.subr.mxu0 0.0
    %992 = vmatpush1.msra.mxu0 %v241
    %993 = vmatprep.subr.mxu0 0.0
    %994 = vmatpush1.msra.mxu0 %v242
    %995 = vmatprep.subr.mxu0 0.0
    %996 = vmatpush1.msra.mxu0 %v243
    %997 = vmatprep.subr.mxu0 0.0
    %998 = vmatpush1.msra.mxu0 %v244
    %999 = vmatprep.subr.mxu0 0.0
    %1000 = vmatpush1.msra.mxu0 0.0
    %1001 = vmatprep.subr.mxu0 0.0
    %1002 = vmatpush1.msra.mxu0 0.0
    %1003 = vmatprep.subr.mxu0 0.0
    %1004 = vmatpush1.msra.mxu0 0.0
    %1005 = vmatprep.subr.mxu0 0.0
    %1006 = vmatpush1.msra.mxu0 0.0
    %1007 = vmatprep.subr.mxu0 0.0
    %1008 = vmatpush1.msra.mxu0 0.0
    %1009 = vmatprep.subr.mxu0 0.0
    %1010 = vmatpush1.msra.mxu0 0.0
    %1011 = vmatprep.subr.mxu0 0.0
    %1012 = vmatpush1.msra.mxu0 0.0
    %1013 = vmatprep.subr.mxu0 0.0
    %1014 = vmatpush1.msra.mxu0 0.0
    %1015 = vmatprep.subr.mxu0 0.0
    %1016 = vmatpush1.msra.mxu0 0.0
    %1017 = vmatprep.subr.mxu0 0.0
    %1018 = vmatpush1.msra.mxu0 0.0
    %1019 = vmatprep.subr.mxu0 0.0
    %1020 = vmatpush1.msra.mxu0 0.0
    %1021 = vmatprep.subr.mxu0 0.0
    %1022 = vmatpush1.msra.mxu0 0.0
    %1023 = vmatprep.subr.mxu0 0.0
    %1024 = vmatpush1.msra.mxu0 0.0
    %1025 = vmatprep.subr.mxu0 0.0
    %1026 = vmatpush1.msra.mxu0 0.0
    %1027 = vmatprep.subr.mxu0 0.0
    %1028 = vmatpush1.msra.mxu0 0.0
    %1029 = vmatprep.subr.mxu0 0.0
    %1030 = vmatpush1.msra.mxu0 0.0
    %1031 = vmatprep.subr.mxu0 0.0
    %1032 = vmatpush1.msra.mxu0 0.0
    %1033 = vmatprep.subr.mxu0 0.0
    %1034 = vmatpush1.msra.mxu0 0.0
    %1035 = vmatprep.subr.mxu0 0.0
    %1036 = vmatpush1.msra.mxu0 0.0
    %1037 = vmatprep.subr.mxu0 0.0
    %1038 = vmatpush1.msra.mxu0 0.0
    %1039 = vmatprep.subr.mxu0 0.0
    %1040 = vmatpush1.msra.mxu0 0.0
    %1041 = vmatprep.subr.mxu0 0.0
    %1042 = vmatpush1.msra.mxu0 0.0
    %1043 = vmatprep.subr.mxu0 0.0
    %1044 = vmatpush1.msra.mxu0 0.0
    %1045 = vmatprep.subr.mxu0 0.0
    %1046 = vmatpush1.msra.mxu0 0.0
    %1047 = vmatprep.subr.mxu0 0.0
    %1048 = vmatpush1.msra.mxu0 0.0
    %1049 = vmatprep.subr.mxu0 0.0
    %1050 = vmatpush1.msra.mxu0 0.0
    %1051 = vmatprep.subr.mxu0 0.0
    %1052 = vmatpush1.msra.mxu0 0.0
    %1053 = vmatprep.subr.mxu0 0.0
    %1054 = vmatpush1.msra.mxu0 0.0
    %1055 = vmatprep.mubr.f32.mxu0 0.0
    %1056 = vmatmul.mubr.f32.gmra.mrb[0].mxu0 %v989
    %v1057 = vpop.f32.mrb[0].mxu0
    %v1058 = vadd.f32 0.0, %v1057
    %v1059 = vpop.f32.mrb[0].mxu0
    %1060 = vdwg.mxu0
    %v1061 = vadd.f32 %v985, %v1058
    %v1062 = vxor.u32 %v984, 2147483648
    %v1063 = vmul.f32 %v1062, 1.442695
    %v1064 = vpow.pop %v1063
    %v1065 = vadd.f32 %v1064, 1.0
    %v1066 = vrcp.pop %v1065
    %v1067 = vmul.f32 1.0, %v1066
    %v1068 = vtanh.pop %v984
    %v1070 = vrot.slane %v859, 6
    %v1072 = vmul.f32 %v1067, %v1070
    %1074 = vrot.lane.b32.xlu0 %v1068, 64
    %v1075 = vpop.permute.xlu0 %1074
    %v1077 = vmul.f32 %v1067, %v1075
    %1079 = vrot.lane.b32.xlu0 %v1077, 32
    %v1080 = vpop.permute.xlu0 %1079
    %v1082 = vadd.f32 %v1072, %v1080
    %v1083 = vtanh.pop %v1082
    %1085 = vrot.lane.b32.xlu0 %v1083, 64
    %v1086 = vpop.permute.xlu0 %1085
    %v1088 = vmul.f32 %v1067, %v1086
    %v1089 = vxor.u32 %v1061, 2147483648
    %v1090 = vmul.f32 %v1089, 1.442695
    %v1091 = vpow.pop %v1090
    %v1092 = vadd.f32 %v1091, 1.0
    %v1093 = vrcp.pop %v1092
    %v1094 = vmul.f32 1.0, %v1093
    %v1095 = vtanh.pop %v1061
    %v1097 = vrot.slane %v886, 2
    %v1099 = vmul.f32 %v1094, %v1097
    %1101 = vrot.lane.b32.xlu0 %v1095, 64
    %v1102 = vpop.permute.xlu0 %1101
    %v1104 = vmul.f32 %v1094, %v1102
    %1106 = vrot.lane.b32.xlu0 %v1104, 32
    %v1107 = vpop.permute.xlu0 %1106
    %v1109 = vadd.f32 %v1099, %v1107
    %v1110 = vtanh.pop %v1109
    %1112 = vrot.lane.b32.xlu0 %v1110, 64
    %v1113 = vpop.permute.xlu0 %1112
    %v1115 = vmul.f32 %v1094, %v1113
    %1117 = vrot.lane.b32.xlu0 %v1088, 32
    %v1118 = vpop.permute.xlu0 %1117
    %vm1120 = vcmask 261126
    %1121 = vst.msk [vmem:[#allocation3] sm:$0xc0] %vm1120, %v1118
    %1123 = vrot.lane.b32.xlu0 %v1115, 64
    %v1124 = vpop.permute.xlu0 %1123
    %vm1126 = vcmask 517376
    %1127 = vst.msk [vmem:[#allocation3 + $0x8] sm:$0x3] %vm1126, %v1124
    %v1128 = vld [vmem:[#allocation2 + $0x10] sm:$0x3]
    %v1129 = vrot.slane %v1088, 6
    %1130 = vrot.lane.b32.xlu0 %v1129, 32
    %v1131 = vpop.permute.xlu0 %1130
    %v1132 = vsel %vm246, %v1131, 0
    %1134 = vmatprep.subr.mxu0 0.0
    %1135 = vmatpush1.msra.mxu0 %v237
    %1136 = vmatprep.subr.mxu0 0.0
    %1137 = vmatpush1.msra.mxu0 %v238
    %1138 = vmatprep.subr.mxu0 0.0
    %1139 = vmatpush1.msra.mxu0 %v239
    %1140 = vmatprep.subr.mxu0 0.0
    %1141 = vmatpush1.msra.mxu0 %v240
    %1142 = vmatprep.subr.mxu0 0.0
    %1143 = vmatpush1.msra.mxu0 0.0
    %1144 = vmatprep.subr.mxu0 0.0
    %1145 = vmatpush1.msra.mxu0 0.0
    %1146 = vmatprep.subr.mxu0 0.0
    %1147 = vmatpush1.msra.mxu0 0.0
    %1148 = vmatprep.subr.mxu0 0.0
    %1149 = vmatpush1.msra.mxu0 0.0
    %1150 = vmatprep.subr.mxu0 0.0
    %1151 = vmatpush1.msra.mxu0 0.0
    %1152 = vmatprep.subr.mxu0 0.0
    %1153 = vmatpush1.msra.mxu0 0.0
    %1154 = vmatprep.subr.mxu0 0.0
    %1155 = vmatpush1.msra.mxu0 0.0
    %1156 = vmatprep.subr.mxu0 0.0
    %1157 = vmatpush1.msra.mxu0 0.0
    %1158 = vmatprep.subr.mxu0 0.0
    %1159 = vmatpush1.msra.mxu0 0.0
    %1160 = vmatprep.subr.mxu0 0.0
    %1161 = vmatpush1.msra.mxu0 0.0
    %1162 = vmatprep.subr.mxu0 0.0
    %1163 = vmatpush1.msra.mxu0 0.0
    %1164 = vmatprep.subr.mxu0 0.0
    %1165 = vmatpush1.msra.mxu0 0.0
    %1166 = vmatprep.subr.mxu0 0.0
    %1167 = vmatpush1.msra.mxu0 0.0
    %1168 = vmatprep.subr.mxu0 0.0
    %1169 = vmatpush1.msra.mxu0 0.0
    %1170 = vmatprep.subr.mxu0 0.0
    %1171 = vmatpush1.msra.mxu0 0.0
    %1172 = vmatprep.subr.mxu0 0.0
    %1173 = vmatpush1.msra.mxu0 0.0
    %1174 = vmatprep.subr.mxu0 0.0
    %1175 = vmatpush1.msra.mxu0 0.0
    %1176 = vmatprep.subr.mxu0 0.0
    %1177 = vmatpush1.msra.mxu0 0.0
    %1178 = vmatprep.subr.mxu0 0.0
    %1179 = vmatpush1.msra.mxu0 0.0
    %1180 = vmatprep.subr.mxu0 0.0
    %1181 = vmatpush1.msra.mxu0 0.0
    %1182 = vmatprep.subr.mxu0 0.0
    %1183 = vmatpush1.msra.mxu0 0.0
    %1184 = vmatprep.subr.mxu0 0.0
    %1185 = vmatpush1.msra.mxu0 0.0
    %1186 = vmatprep.subr.mxu0 0.0
    %1187 = vmatpush1.msra.mxu0 0.0
    %1188 = vmatprep.subr.mxu0 0.0
    %1189 = vmatpush1.msra.mxu0 0.0
    %1190 = vmatprep.subr.mxu0 0.0
    %1191 = vmatpush1.msra.mxu0 0.0
    %1192 = vmatprep.subr.mxu0 0.0
    %1193 = vmatpush1.msra.mxu0 0.0
    %1194 = vmatprep.subr.mxu0 0.0
    %1195 = vmatpush1.msra.mxu0 0.0
    %1196 = vmatprep.subr.mxu0 0.0
    %1197 = vmatpush1.msra.mxu0 0.0
    %1198 = vmatprep.mubr.f32.mxu0 0.0
    %1199 = vmatmul.mubr.f32.gmra.mrb[0].mxu0 %v1132
    %v1200 = vpop.f32.mrb[0].mxu0
    %v1201 = vadd.f32 0.0, %v1200
    %v1202 = vpop.f32.mrb[0].mxu0
    %1203 = vdwg.mxu0
    %v1204 = vadd.f32 %v1128, %v1201
    %v1205 = vld [vmem:[#allocation2 + $0x8] sm:$0xc0]
    %1206 = vrot.lane.b32.xlu0 %v1115, 32
    %v1207 = vpop.permute.xlu0 %1206
    %v1208 = vsel %vm246, %v1207, 0
    %1210 = vmatprep.subr.mxu0 0.0
    %1211 = vmatpush1.msra.mxu0 %v241
    %1212 = vmatprep.subr.mxu0 0.0
    %1213 = vmatpush1.msra.mxu0 %v242
    %1214 = vmatprep.subr.mxu0 0.0
    %1215 = vmatpush1.msra.mxu0 %v243
    %1216 = vmatprep.subr.mxu0 0.0
    %1217 = vmatpush1.msra.mxu0 %v244
    %1218 = vmatprep.subr.mxu0 0.0
    %1219 = vmatpush1.msra.mxu0 0.0
    %1220 = vmatprep.subr.mxu0 0.0
    %1221 = vmatpush1.msra.mxu0 0.0
    %1222 = vmatprep.subr.mxu0 0.0
    %1223 = vmatpush1.msra.mxu0 0.0
    %1224 = vmatprep.subr.mxu0 0.0
    %1225 = vmatpush1.msra.mxu0 0.0
    %1226 = vmatprep.subr.mxu0 0.0
    %1227 = vmatpush1.msra.mxu0 0.0
    %1228 = vmatprep.subr.mxu0 0.0
    %1229 = vmatpush1.msra.mxu0 0.0
    %1230 = vmatprep.subr.mxu0 0.0
    %1231 = vmatpush1.msra.mxu0 0.0
    %1232 = vmatprep.subr.mxu0 0.0
    %1233 = vmatpush1.msra.mxu0 0.0
    %1234 = vmatprep.subr.mxu0 0.0
    %1235 = vmatpush1.msra.mxu0 0.0
    %1236 = vmatprep.subr.mxu0 0.0
    %1237 = vmatpush1.msra.mxu0 0.0
    %1238 = vmatprep.subr.mxu0 0.0
    %1239 = vmatpush1.msra.mxu0 0.0
    %1240 = vmatprep.subr.mxu0 0.0
    %1241 = vmatpush1.msra.mxu0 0.0
    %1242 = vmatprep.subr.mxu0 0.0
    %1243 = vmatpush1.msra.mxu0 0.0
    %1244 = vmatprep.subr.mxu0 0.0
    %1245 = vmatpush1.msra.mxu0 0.0
    %1246 = vmatprep.subr.mxu0 0.0
    %1247 = vmatpush1.msra.mxu0 0.0
    %1248 = vmatprep.subr.mxu0 0.0
    %1249 = vmatpush1.msra.mxu0 0.0
    %1250 = vmatprep.subr.mxu0 0.0
    %1251 = vmatpush1.msra.mxu0 0.0
    %1252 = vmatprep.subr.mxu0 0.0
    %1253 = vmatpush1.msra.mxu0 0.0
    %1254 = vmatprep.subr.mxu0 0.0
    %1255 = vmatpush1.msra.mxu0 0.0
    %1256 = vmatprep.subr.mxu0 0.0
    %1257 = vmatpush1.msra.mxu0 0.0
    %1258 = vmatprep.subr.mxu0 0.0
    %1259 = vmatpush1.msra.mxu0 0.0
    %1260 = vmatprep.subr.mxu0 0.0
    %1261 = vmatpush1.msra.mxu0 0.0
    %1262 = vmatprep.subr.mxu0 0.0
    %1263 = vmatpush1.msra.mxu0 0.0
    %1264 = vmatprep.subr.mxu0 0.0
    %1265 = vmatpush1.msra.mxu0 0.0
    %1266 = vmatprep.subr.mxu0 0.0
    %1267 = vmatpush1.msra.mxu0 0.0
    %1268 = vmatprep.subr.mxu0 0.0
    %1269 = vmatpush1.msra.mxu0 0.0
    %1270 = vmatprep.subr.mxu0 0.0
    %1271 = vmatpush1.msra.mxu0 0.0
    %1272 = vmatprep.subr.mxu0 0.0
    %1273 = vmatpush1.msra.mxu0 0.0
    %1274 = vmatprep.mubr.f32.mxu0 0.0
    %1275 = vmatmul.mubr.f32.gmra.mrb[0].mxu0 %v1208
    %v1276 = vpop.f32.mrb[0].mxu0
    %v1277 = vadd.f32 0.0, %v1276
    %v1278 = vpop.f32.mrb[0].mxu0
    %1279 = vdwg.mxu0
    %v1281 = vrot.slane %v1277, 2
    %v1283 = vadd.f32 %v1205, %v1281
    %v1284 = vxor.u32 %v1204, 2147483648
    %v1285 = vmul.f32 %v1284, 1.442695
    %v1286 = vpow.pop %v1285
    %v1287 = vadd.f32 %v1286, 1.0
    %v1288 = vrcp.pop %v1287
    %v1289 = vmul.f32 1.0, %v1288
    %v1290 = vtanh.pop %v1204
    %v1292 = vrot.slane %v1082, 6
    %v1294 = vmul.f32 %v1289, %v1292
    %1296 = vrot.lane.b32.xlu0 %v1290, 64
    %v1297 = vpop.permute.xlu0 %1296
    %v1299 = vmul.f32 %v1289, %v1297
    %1301 = vrot.lane.b32.xlu0 %v1299, 32
    %v1302 = vpop.permute.xlu0 %1301
    %v1304 = vadd.f32 %v1294, %v1302
    %v1305 = vtanh.pop %v1304
    %1307 = vrot.lane.b32.xlu0 %v1305, 64
    %v1308 = vpop.permute.xlu0 %1307
    %v1310 = vmul.f32 %v1289, %v1308
    %v1311 = vxor.u32 %v1283, 2147483648
    %v1312 = vmul.f32 %v1311, 1.442695
    %v1313 = vpow.pop %v1312
    %v1314 = vadd.f32 %v1313, 1.0
    %v1315 = vrcp.pop %v1314
    %v1316 = vmul.f32 1.0, %v1315
    %v1317 = vtanh.pop %v1283
    %v1319 = vrot.slane %v1109, 2
    %v1321 = vmul.f32 %v1316, %v1319
    %1323 = vrot.lane.b32.xlu0 %v1317, 64
    %v1324 = vpop.permute.xlu0 %1323
    %v1326 = vmul.f32 %v1316, %v1324
    %1328 = vrot.lane.b32.xlu0 %v1326, 32
    %v1329 = vpop.permute.xlu0 %1328
    %v1331 = vadd.f32 %v1321, %v1329
    %v1332 = vtanh.pop %v1331
    %1334 = vrot.lane.b32.xlu0 %v1332, 64
    %v1335 = vpop.permute.xlu0 %1334
    %v1337 = vmul.f32 %v1316, %v1335
    %1339 = vrot.lane.b32.xlu0 %v1310, 32
    %v1340 = vpop.permute.xlu0 %1339
    %1342 = vst.msk [vmem:[#allocation3 + $0x8] sm:$0x3] %vm448, %v1340
    %1344 = vrot.lane.b32.xlu0 %v1337, 64
    %v1345 = vpop.permute.xlu0 %1344
    %1347 = vst.msk [vmem:[#allocation3] sm:$0xc0] %vm454, %v1345
    %v1348 = vld [vmem:[#allocation2 + $0x10] sm:$0xc]
    %v1349 = vsel %vm246, %v1340, 0
    %1351 = vmatprep.subr.mxu0 0.0
    %1352 = vmatpush1.msra.mxu0 %v237
    %1353 = vmatprep.subr.mxu0 0.0
    %1354 = vmatpush1.msra.mxu0 %v238
    %1355 = vmatprep.subr.mxu0 0.0
    %1356 = vmatpush1.msra.mxu0 %v239
    %1357 = vmatprep.subr.mxu0 0.0
    %1358 = vmatpush1.msra.mxu0 %v240
    %1359 = vmatprep.subr.mxu0 0.0
    %1360 = vmatpush1.msra.mxu0 0.0
    %1361 = vmatprep.subr.mxu0 0.0
    %1362 = vmatpush1.msra.mxu0 0.0
    %1363 = vmatprep.subr.mxu0 0.0
    %1364 = vmatpush1.msra.mxu0 0.0
    %1365 = vmatprep.subr.mxu0 0.0
    %1366 = vmatpush1.msra.mxu0 0.0
    %1367 = vmatprep.subr.mxu0 0.0
    %1368 = vmatpush1.msra.mxu0 0.0
    %1369 = vmatprep.subr.mxu0 0.0
    %1370 = vmatpush1.msra.mxu0 0.0
    %1371 = vmatprep.subr.mxu0 0.0
    %1372 = vmatpush1.msra.mxu0 0.0
    %1373 = vmatprep.subr.mxu0 0.0
    %1374 = vmatpush1.msra.mxu0 0.0
    %1375 = vmatprep.subr.mxu0 0.0
    %1376 = vmatpush1.msra.mxu0 0.0
    %1377 = vmatprep.subr.mxu0 0.0
    %1378 = vmatpush1.msra.mxu0 0.0
    %1379 = vmatprep.subr.mxu0 0.0
    %1380 = vmatpush1.msra.mxu0 0.0
    %1381 = vmatprep.subr.mxu0 0.0
    %1382 = vmatpush1.msra.mxu0 0.0
    %1383 = vmatprep.subr.mxu0 0.0
    %1384 = vmatpush1.msra.mxu0 0.0
    %1385 = vmatprep.subr.mxu0 0.0
    %1386 = vmatpush1.msra.mxu0 0.0
    %1387 = vmatprep.subr.mxu0 0.0
    %1388 = vmatpush1.msra.mxu0 0.0
    %1389 = vmatprep.subr.mxu0 0.0
    %1390 = vmatpush1.msra.mxu0 0.0
    %1391 = vmatprep.subr.mxu0 0.0
    %1392 = vmatpush1.msra.mxu0 0.0
    %1393 = vmatprep.subr.mxu0 0.0
    %1394 = vmatpush1.msra.mxu0 0.0
    %1395 = vmatprep.subr.mxu0 0.0
    %1396 = vmatpush1.msra.mxu0 0.0
    %1397 = vmatprep.subr.mxu0 0.0
    %1398 = vmatpush1.msra.mxu0 0.0
    %1399 = vmatprep.subr.mxu0 0.0
    %1400 = vmatpush1.msra.mxu0 0.0
    %1401 = vmatprep.subr.mxu0 0.0
    %1402 = vmatpush1.msra.mxu0 0.0
    %1403 = vmatprep.subr.mxu0 0.0
    %1404 = vmatpush1.msra.mxu0 0.0
    %1405 = vmatprep.subr.mxu0 0.0
    %1406 = vmatpush1.msra.mxu0 0.0
    %1407 = vmatprep.subr.mxu0 0.0
    %1408 = vmatpush1.msra.mxu0 0.0
    %1409 = vmatprep.subr.mxu0 0.0
    %1410 = vmatpush1.msra.mxu0 0.0
    %1411 = vmatprep.subr.mxu0 0.0
    %1412 = vmatpush1.msra.mxu0 0.0
    %1413 = vmatprep.subr.mxu0 0.0
    %1414 = vmatpush1.msra.mxu0 0.0
    %1415 = vmatprep.mubr.f32.mxu0 0.0
    %1416 = vmatmul.mubr.f32.gmra.mrb[0].mxu0 %v1349
    %v1417 = vpop.f32.mrb[0].mxu0
    %v1418 = vadd.f32 0.0, %v1417
    %v1419 = vpop.f32.mrb[0].mxu0
    %1420 = vdwg.mxu0
    %v1422 = vrot.slane %v1418, 6
    %v1424 = vadd.f32 %v1348, %v1422
    %v1425 = vld [vmem:[#allocation2 + $0x8] sm:$0x30]
    %v1426 = vrot.slane %v1337, 6
    %1427 = vrot.lane.b32.xlu0 %v1426, 32
    %v1428 = vpop.permute.xlu0 %1427
    %v1429 = vsel %vm246, %v1428, 0
    %1431 = vmatprep.subr.mxu0 0.0
    %1432 = vmatpush1.msra.mxu0 %v241
    %1433 = vmatprep.subr.mxu0 0.0
    %1434 = vmatpush1.msra.mxu0 %v242
    %1435 = vmatprep.subr.mxu0 0.0
    %1436 = vmatpush1.msra.mxu0 %v243
    %1437 = vmatprep.subr.mxu0 0.0
    %1438 = vmatpush1.msra.mxu0 %v244
    %1439 = vmatprep.subr.mxu0 0.0
    %1440 = vmatpush1.msra.mxu0 0.0
    %1441 = vmatprep.subr.mxu0 0.0
    %1442 = vmatpush1.msra.mxu0 0.0
    %1443 = vmatprep.subr.mxu0 0.0
    %1444 = vmatpush1.msra.mxu0 0.0
    %1445 = vmatprep.subr.mxu0 0.0
    %1446 = vmatpush1.msra.mxu0 0.0
    %1447 = vmatprep.subr.mxu0 0.0
    %1448 = vmatpush1.msra.mxu0 0.0
    %1449 = vmatprep.subr.mxu0 0.0
    %1450 = vmatpush1.msra.mxu0 0.0
    %1451 = vmatprep.subr.mxu0 0.0
    %1452 = vmatpush1.msra.mxu0 0.0
    %1453 = vmatprep.subr.mxu0 0.0
    %1454 = vmatpush1.msra.mxu0 0.0
    %1455 = vmatprep.subr.mxu0 0.0
    %1456 = vmatpush1.msra.mxu0 0.0
    %1457 = vmatprep.subr.mxu0 0.0
    %1458 = vmatpush1.msra.mxu0 0.0
    %1459 = vmatprep.subr.mxu0 0.0
    %1460 = vmatpush1.msra.mxu0 0.0
    %1461 = vmatprep.subr.mxu0 0.0
    %1462 = vmatpush1.msra.mxu0 0.0
    %1463 = vmatprep.subr.mxu0 0.0
    %1464 = vmatpush1.msra.mxu0 0.0
    %1465 = vmatprep.subr.mxu0 0.0
    %1466 = vmatpush1.msra.mxu0 0.0
    %1467 = vmatprep.subr.mxu0 0.0
    %1468 = vmatpush1.msra.mxu0 0.0
    %1469 = vmatprep.subr.mxu0 0.0
    %1470 = vmatpush1.msra.mxu0 0.0
    %1471 = vmatprep.subr.mxu0 0.0
    %1472 = vmatpush1.msra.mxu0 0.0
    %1473 = vmatprep.subr.mxu0 0.0
    %1474 = vmatpush1.msra.mxu0 0.0
    %1475 = vmatprep.subr.mxu0 0.0
    %1476 = vmatpush1.msra.mxu0 0.0
    %1477 = vmatprep.subr.mxu0 0.0
    %1478 = vmatpush1.msra.mxu0 0.0
    %1479 = vmatprep.subr.mxu0 0.0
    %1480 = vmatpush1.msra.mxu0 0.0
    %1481 = vmatprep.subr.mxu0 0.0
    %1482 = vmatpush1.msra.mxu0 0.0
    %1483 = vmatprep.subr.mxu0 0.0
    %1484 = vmatpush1.msra.mxu0 0.0
    %1485 = vmatprep.subr.mxu0 0.0
    %1486 = vmatpush1.msra.mxu0 0.0
    %1487 = vmatprep.subr.mxu0 0.0
    %1488 = vmatpush1.msra.mxu0 0.0
    %1489 = vmatprep.subr.mxu0 0.0
    %1490 = vmatpush1.msra.mxu0 0.0
    %1491 = vmatprep.subr.mxu0 0.0
    %1492 = vmatpush1.msra.mxu0 0.0
    %1493 = vmatprep.subr.mxu0 0.0
    %1494 = vmatpush1.msra.mxu0 0.0
    %1495 = vmatprep.mubr.f32.mxu0 0.0
    %1496 = vmatmul.mubr.f32.gmra.mrb[0].mxu0 %v1429
    %v1497 = vpop.f32.mrb[0].mxu0
    %v1498 = vadd.f32 0.0, %v1497
    %v1499 = vpop.f32.mrb[0].mxu0
    %1500 = vdwg.mxu0
    %v1502 = vrot.slane %v1498, 4
    %v1504 = vadd.f32 %v1425, %v1502
    %v1505 = vxor.u32 %v1424, 2147483648
    %v1506 = vmul.f32 %v1505, 1.442695
    %v1507 = vpow.pop %v1506
    %v1508 = vadd.f32 %v1507, 1.0
    %v1509 = vrcp.pop %v1508
    %v1510 = vmul.f32 1.0, %v1509
    %v1511 = vtanh.pop %v1424
    %v1513 = vrot.slane %v1304, 6
    %v1515 = vmul.f32 %v1510, %v1513
    %1517 = vrot.lane.b32.xlu0 %v1511, 64
    %v1518 = vpop.permute.xlu0 %1517
    %v1520 = vmul.f32 %v1510, %v1518
    %1522 = vrot.lane.b32.xlu0 %v1520, 32
    %v1523 = vpop.permute.xlu0 %1522
    %v1525 = vadd.f32 %v1515, %v1523
    %v1526 = vtanh.pop %v1525
    %1528 = vrot.lane.b32.xlu0 %v1526, 64
    %v1529 = vpop.permute.xlu0 %1528
    %v1531 = vmul.f32 %v1510, %v1529
    %v1532 = vxor.u32 %v1504, 2147483648
    %v1533 = vmul.f32 %v1532, 1.442695
    %v1534 = vpow.pop %v1533
    %v1535 = vadd.f32 %v1534, 1.0
    %v1536 = vrcp.pop %v1535
    %v1537 = vmul.f32 1.0, %v1536
    %v1538 = vtanh.pop %v1504
    %v1540 = vrot.slane %v1331, 2
    %v1542 = vmul.f32 %v1537, %v1540
    %1544 = vrot.lane.b32.xlu0 %v1538, 64
    %v1545 = vpop.permute.xlu0 %1544
    %v1547 = vmul.f32 %v1537, %v1545
    %1549 = vrot.lane.b32.xlu0 %v1547, 32
    %v1550 = vpop.permute.xlu0 %1549
    %v1552 = vadd.f32 %v1542, %v1550
    %v1553 = vtanh.pop %v1552
    %1555 = vrot.lane.b32.xlu0 %v1553, 64
    %v1556 = vpop.permute.xlu0 %1555
    %v1558 = vmul.f32 %v1537, %v1556
    %1560 = vrot.lane.b32.xlu0 %v1531, 32
    %v1561 = vpop.permute.xlu0 %1560
    %1563 = vst.msk [vmem:[#allocation3 + $0x8] sm:$0xc] %vm671, %v1561
    %1565 = vrot.lane.b32.xlu0 %v1558, 64
    %v1566 = vpop.permute.xlu0 %1565
    %1568 = vst.msk [vmem:[#allocation3] sm:$0x30] %vm677, %v1566
    %v1569 = vld [vmem:[#allocation2 + $0x10] sm:$0x30]
    %v1570 = vrot.slane %v1531, 2
    %1571 = vrot.lane.b32.xlu0 %v1570, 32
    %v1572 = vpop.permute.xlu0 %1571
    %v1573 = vsel %vm246, %v1572, 0
    %1575 = vmatprep.subr.mxu0 0.0
    %1576 = vmatpush1.msra.mxu0 %v237
    %1577 = vmatprep.subr.mxu0 0.0
    %1578 = vmatpush1.msra.mxu0 %v238
    %1579 = vmatprep.subr.mxu0 0.0
    %1580 = vmatpush1.msra.mxu0 %v239
    %1581 = vmatprep.subr.mxu0 0.0
    %1582 = vmatpush1.msra.mxu0 %v240
    %1583 = vmatprep.subr.mxu0 0.0
    %1584 = vmatpush1.msra.mxu0 0.0
    %1585 = vmatprep.subr.mxu0 0.0
    %1586 = vmatpush1.msra.mxu0 0.0
    %1587 = vmatprep.subr.mxu0 0.0
    %1588 = vmatpush1.msra.mxu0 0.0
    %1589 = vmatprep.subr.mxu0 0.0
    %1590 = vmatpush1.msra.mxu0 0.0
    %1591 = vmatprep.subr.mxu0 0.0
    %1592 = vmatpush1.msra.mxu0 0.0
    %1593 = vmatprep.subr.mxu0 0.0
    %1594 = vmatpush1.msra.mxu0 0.0
    %1595 = vmatprep.subr.mxu0 0.0
    %1596 = vmatpush1.msra.mxu0 0.0
    %1597 = vmatprep.subr.mxu0 0.0
    %1598 = vmatpush1.msra.mxu0 0.0
    %1599 = vmatprep.subr.mxu0 0.0
    %1600 = vmatpush1.msra.mxu0 0.0
    %1601 = vmatprep.subr.mxu0 0.0
    %1602 = vmatpush1.msra.mxu0 0.0
    %1603 = vmatprep.subr.mxu0 0.0
    %1604 = vmatpush1.msra.mxu0 0.0
    %1605 = vmatprep.subr.mxu0 0.0
    %1606 = vmatpush1.msra.mxu0 0.0
    %1607 = vmatprep.subr.mxu0 0.0
    %1608 = vmatpush1.msra.mxu0 0.0
    %1609 = vmatprep.subr.mxu0 0.0
    %1610 = vmatpush1.msra.mxu0 0.0
    %1611 = vmatprep.subr.mxu0 0.0
    %1612 = vmatpush1.msra.mxu0 0.0
    %1613 = vmatprep.subr.mxu0 0.0
    %1614 = vmatpush1.msra.mxu0 0.0
    %1615 = vmatprep.subr.mxu0 0.0
    %1616 = vmatpush1.msra.mxu0 0.0
    %1617 = vmatprep.subr.mxu0 0.0
    %1618 = vmatpush1.msra.mxu0 0.0
    %1619 = vmatprep.subr.mxu0 0.0
    %1620 = vmatpush1.msra.mxu0 0.0
    %1621 = vmatprep.subr.mxu0 0.0
    %1622 = vmatpush1.msra.mxu0 0.0
    %1623 = vmatprep.subr.mxu0 0.0
    %1624 = vmatpush1.msra.mxu0 0.0
    %1625 = vmatprep.subr.mxu0 0.0
    %1626 = vmatpush1.msra.mxu0 0.0
    %1627 = vmatprep.subr.mxu0 0.0
    %1628 = vmatpush1.msra.mxu0 0.0
    %1629 = vmatprep.subr.mxu0 0.0
    %1630 = vmatpush1.msra.mxu0 0.0
    %1631 = vmatprep.subr.mxu0 0.0
    %1632 = vmatpush1.msra.mxu0 0.0
    %1633 = vmatprep.subr.mxu0 0.0
    %1634 = vmatpush1.msra.mxu0 0.0
    %1635 = vmatprep.subr.mxu0 0.0
    %1636 = vmatpush1.msra.mxu0 0.0
    %1637 = vmatprep.subr.mxu0 0.0
    %1638 = vmatpush1.msra.mxu0 0.0
    %1639 = vmatprep.mubr.f32.mxu0 0.0
    %1640 = vmatmul.mubr.f32.gmra.mrb[0].mxu0 %v1573
    %v1641 = vpop.f32.mrb[0].mxu0
    %v1642 = vadd.f32 0.0, %v1641
    %v1643 = vpop.f32.mrb[0].mxu0
    %1644 = vdwg.mxu0
    %v1646 = vrot.slane %v1642, 4
    %v1648 = vadd.f32 %v1569, %v1646
    %v1649 = vld [vmem:[#allocation2 + $0x8] sm:$0xc]
    %v1650 = vrot.slane %v1558, 4
    %1651 = vrot.lane.b32.xlu0 %v1650, 32
    %v1652 = vpop.permute.xlu0 %1651
    %v1653 = vsel %vm246, %v1652, 0
    %1655 = vmatprep.subr.mxu0 0.0
    %1656 = vmatpush1.msra.mxu0 %v241
    %1657 = vmatprep.subr.mxu0 0.0
    %1658 = vmatpush1.msra.mxu0 %v242
    %1659 = vmatprep.subr.mxu0 0.0
    %1660 = vmatpush1.msra.mxu0 %v243
    %1661 = vmatprep.subr.mxu0 0.0
    %1662 = vmatpush1.msra.mxu0 %v244
    %1663 = vmatprep.subr.mxu0 0.0
    %1664 = vmatpush1.msra.mxu0 0.0
    %1665 = vmatprep.subr.mxu0 0.0
    %1666 = vmatpush1.msra.mxu0 0.0
    %1667 = vmatprep.subr.mxu0 0.0
    %1668 = vmatpush1.msra.mxu0 0.0
    %1669 = vmatprep.subr.mxu0 0.0
    %1670 = vmatpush1.msra.mxu0 0.0
    %1671 = vmatprep.subr.mxu0 0.0
    %1672 = vmatpush1.msra.mxu0 0.0
    %1673 = vmatprep.subr.mxu0 0.0
    %1674 = vmatpush1.msra.mxu0 0.0
    %1675 = vmatprep.subr.mxu0 0.0
    %1676 = vmatpush1.msra.mxu0 0.0
    %1677 = vmatprep.subr.mxu0 0.0
    %1678 = vmatpush1.msra.mxu0 0.0
    %1679 = vmatprep.subr.mxu0 0.0
    %1680 = vmatpush1.msra.mxu0 0.0
    %1681 = vmatprep.subr.mxu0 0.0
    %1682 = vmatpush1.msra.mxu0 0.0
    %1683 = vmatprep.subr.mxu0 0.0
    %1684 = vmatpush1.msra.mxu0 0.0
    %1685 = vmatprep.subr.mxu0 0.0
    %1686 = vmatpush1.msra.mxu0 0.0
    %1687 = vmatprep.subr.mxu0 0.0
    %1688 = vmatpush1.msra.mxu0 0.0
    %1689 = vmatprep.subr.mxu0 0.0
    %1690 = vmatpush1.msra.mxu0 0.0
    %1691 = vmatprep.subr.mxu0 0.0
    %1692 = vmatpush1.msra.mxu0 0.0
    %1693 = vmatprep.subr.mxu0 0.0
    %1694 = vmatpush1.msra.mxu0 0.0
    %1695 = vmatprep.subr.mxu0 0.0
    %1696 = vmatpush1.msra.mxu0 0.0
    %1697 = vmatprep.subr.mxu0 0.0
    %1698 = vmatpush1.msra.mxu0 0.0
    %1699 = vmatprep.subr.mxu0 0.0
    %1700 = vmatpush1.msra.mxu0 0.0
    %1701 = vmatprep.subr.mxu0 0.0
    %1702 = vmatpush1.msra.mxu0 0.0
    %1703 = vmatprep.subr.mxu0 0.0
    %1704 = vmatpush1.msra.mxu0 0.0
    %1705 = vmatprep.subr.mxu0 0.0
    %1706 = vmatpush1.msra.mxu0 0.0
    %1707 = vmatprep.subr.mxu0 0.0
    %1708 = vmatpush1.msra.mxu0 0.0
    %1709 = vmatprep.subr.mxu0 0.0
    %1710 = vmatpush1.msra.mxu0 0.0
    %1711 = vmatprep.subr.mxu0 0.0
    %1712 = vmatpush1.msra.mxu0 0.0
    %1713 = vmatprep.subr.mxu0 0.0
    %1714 = vmatpush1.msra.mxu0 0.0
    %1715 = vmatprep.subr.mxu0 0.0
    %1716 = vmatpush1.msra.mxu0 0.0
    %1717 = vmatprep.subr.mxu0 0.0
    %1718 = vmatpush1.msra.mxu0 0.0
    %1719 = vmatprep.mubr.f32.mxu0 0.0
    %1720 = vmatmul.mubr.f32.gmra.mrb[0].mxu0 %v1653
    %v1721 = vpop.f32.mrb[0].mxu0
    %v1722 = vadd.f32 0.0, %v1721
    %v1723 = vpop.f32.mrb[0].mxu0
    %1724 = vdwg.mxu0
    %v1726 = vrot.slane %v1722, 6
    %v1728 = vadd.f32 %v1649, %v1726
    %v1729 = vxor.u32 %v1648, 2147483648
    %v1730 = vmul.f32 %v1729, 1.442695
    %v1731 = vpow.pop %v1730
    %v1732 = vadd.f32 %v1731, 1.0
    %v1733 = vrcp.pop %v1732
    %v1734 = vmul.f32 1.0, %v1733
    %v1735 = vtanh.pop %v1648
    %v1737 = vrot.slane %v1525, 6
    %v1739 = vmul.f32 %v1734, %v1737
    %1741 = vrot.lane.b32.xlu0 %v1735, 64
    %v1742 = vpop.permute.xlu0 %1741
    %v1744 = vmul.f32 %v1734, %v1742
    %1746 = vrot.lane.b32.xlu0 %v1744, 32
    %v1747 = vpop.permute.xlu0 %1746
    %v1749 = vadd.f32 %v1739, %v1747
    %v1750 = vtanh.pop %v1749
    %1752 = vrot.lane.b32.xlu0 %v1750, 64
    %v1753 = vpop.permute.xlu0 %1752
    %v1755 = vmul.f32 %v1734, %v1753
    %v1756 = vxor.u32 %v1728, 2147483648
    %v1757 = vmul.f32 %v1756, 1.442695
    %v1758 = vpow.pop %v1757
    %v1759 = vadd.f32 %v1758, 1.0
    %v1760 = vrcp.pop %v1759
    %v1761 = vmul.f32 1.0, %v1760
    %v1762 = vtanh.pop %v1728
    %v1764 = vrot.slane %v1552, 2
    %v1766 = vmul.f32 %v1761, %v1764
    %1768 = vrot.lane.b32.xlu0 %v1762, 64
    %v1769 = vpop.permute.xlu0 %1768
    %v1771 = vmul.f32 %v1761, %v1769
    %1773 = vrot.lane.b32.xlu0 %v1771, 32
    %v1774 = vpop.permute.xlu0 %1773
    %v1776 = vadd.f32 %v1766, %v1774
    %v1777 = vtanh.pop %v1776
    %1779 = vrot.lane.b32.xlu0 %v1777, 64
    %v1780 = vpop.permute.xlu0 %1779
    %v1782 = vmul.f32 %v1761, %v1780
    %1784 = vrot.lane.b32.xlu0 %v1755, 32
    %v1785 = vpop.permute.xlu0 %1784
    %1787 = vst.msk [vmem:[#allocation3 + $0x8] sm:$0x30] %vm897, %v1785
    %1789 = vrot.lane.b32.xlu0 %v1782, 64
    %v1790 = vpop.permute.xlu0 %1789
    %1792 = vst.msk [vmem:[#allocation3] sm:$0xc] %vm903, %v1790
    %v1793 = vld [vmem:[#allocation2 + $0x10] sm:$0xc0]
    %v1794 = vrot.slane %v1755, 4
    %1795 = vrot.lane.b32.xlu0 %v1794, 32
    %v1796 = vpop.permute.xlu0 %1795
    %v1797 = vsel %vm246, %v1796, 0
    %1799 = vmatprep.subr.mxu0 0.0
    %1800 = vmatpush1.msra.mxu0 %v237
    %1801 = vmatprep.subr.mxu0 0.0
    %1802 = vmatpush1.msra.mxu0 %v238
    %1803 = vmatprep.subr.mxu0 0.0
    %1804 = vmatpush1.msra.mxu0 %v239
    %1805 = vmatprep.subr.mxu0 0.0
    %1806 = vmatpush1.msra.mxu0 %v240
    %1807 = vmatprep.subr.mxu0 0.0
    %1808 = vmatpush1.msra.mxu0 0.0
    %1809 = vmatprep.subr.mxu0 0.0
    %1810 = vmatpush1.msra.mxu0 0.0
    %1811 = vmatprep.subr.mxu0 0.0
    %1812 = vmatpush1.msra.mxu0 0.0
    %1813 = vmatprep.subr.mxu0 0.0
    %1814 = vmatpush1.msra.mxu0 0.0
    %1815 = vmatprep.subr.mxu0 0.0
    %1816 = vmatpush1.msra.mxu0 0.0
    %1817 = vmatprep.subr.mxu0 0.0
    %1818 = vmatpush1.msra.mxu0 0.0
    %1819 = vmatprep.subr.mxu0 0.0
    %1820 = vmatpush1.msra.mxu0 0.0
    %1821 = vmatprep.subr.mxu0 0.0
    %1822 = vmatpush1.msra.mxu0 0.0
    %1823 = vmatprep.subr.mxu0 0.0
    %1824 = vmatpush1.msra.mxu0 0.0
    %1825 = vmatprep.subr.mxu0 0.0
    %1826 = vmatpush1.msra.mxu0 0.0
    %1827 = vmatprep.subr.mxu0 0.0
    %1828 = vmatpush1.msra.mxu0 0.0
    %1829 = vmatprep.subr.mxu0 0.0
    %1830 = vmatpush1.msra.mxu0 0.0
    %1831 = vmatprep.subr.mxu0 0.0
    %1832 = vmatpush1.msra.mxu0 0.0
    %1833 = vmatprep.subr.mxu0 0.0
    %1834 = vmatpush1.msra.mxu0 0.0
    %1835 = vmatprep.subr.mxu0 0.0
    %1836 = vmatpush1.msra.mxu0 0.0
    %1837 = vmatprep.subr.mxu0 0.0
    %1838 = vmatpush1.msra.mxu0 0.0
    %1839 = vmatprep.subr.mxu0 0.0
    %1840 = vmatpush1.msra.mxu0 0.0
    %1841 = vmatprep.subr.mxu0 0.0
    %1842 = vmatpush1.msra.mxu0 0.0
    %1843 = vmatprep.subr.mxu0 0.0
    %1844 = vmatpush1.msra.mxu0 0.0
    %1845 = vmatprep.subr.mxu0 0.0
    %1846 = vmatpush1.msra.mxu0 0.0
    %1847 = vmatprep.subr.mxu0 0.0
    %1848 = vmatpush1.msra.mxu0 0.0
    %1849 = vmatprep.subr.mxu0 0.0
    %1850 = vmatpush1.msra.mxu0 0.0
    %1851 = vmatprep.subr.mxu0 0.0
    %1852 = vmatpush1.msra.mxu0 0.0
    %1853 = vmatprep.subr.mxu0 0.0
    %1854 = vmatpush1.msra.mxu0 0.0
    %1855 = vmatprep.subr.mxu0 0.0
    %1856 = vmatpush1.msra.mxu0 0.0
    %1857 = vmatprep.subr.mxu0 0.0
    %1858 = vmatpush1.msra.mxu0 0.0
    %1859 = vmatprep.subr.mxu0 0.0
    %1860 = vmatpush1.msra.mxu0 0.0
    %1861 = vmatprep.subr.mxu0 0.0
    %1862 = vmatpush1.msra.mxu0 0.0
    %1863 = vmatprep.mubr.f32.mxu0 0.0
    %1864 = vmatmul.mubr.f32.gmra.mrb[0].mxu0 %v1797
    %v1865 = vpop.f32.mrb[0].mxu0
    %v1866 = vadd.f32 0.0, %v1865
    %v1867 = vpop.f32.mrb[0].mxu0
    %1868 = vdwg.mxu0
    %v1870 = vrot.slane %v1866, 2
    %v1872 = vadd.f32 %v1793, %v1870
    %v1873 = vld [vmem:[#allocation2 + $0x8] sm:$0x3]
    %v1874 = vrot.slane %v1782, 2
    %1875 = vrot.lane.b32.xlu0 %v1874, 32
    %v1876 = vpop.permute.xlu0 %1875
    %v1877 = vsel %vm246, %v1876, 0
    %1879 = vmatprep.subr.mxu0 0.0
    %1880 = vmatpush1.msra.mxu0 %v241
    %1881 = vmatprep.subr.mxu0 0.0
    %1882 = vmatpush1.msra.mxu0 %v242
    %1883 = vmatprep.subr.mxu0 0.0
    %1884 = vmatpush1.msra.mxu0 %v243
    %1885 = vmatprep.subr.mxu0 0.0
    %1886 = vmatpush1.msra.mxu0 %v244
    %1887 = vmatprep.subr.mxu0 0.0
    %1888 = vmatpush1.msra.mxu0 0.0
    %1889 = vmatprep.subr.mxu0 0.0
    %1890 = vmatpush1.msra.mxu0 0.0
    %1891 = vmatprep.subr.mxu0 0.0
    %1892 = vmatpush1.msra.mxu0 0.0
    %1893 = vmatprep.subr.mxu0 0.0
    %1894 = vmatpush1.msra.mxu0 0.0
    %1895 = vmatprep.subr.mxu0 0.0
    %1896 = vmatpush1.msra.mxu0 0.0
    %1897 = vmatprep.subr.mxu0 0.0
    %1898 = vmatpush1.msra.mxu0 0.0
    %1899 = vmatprep.subr.mxu0 0.0
    %1900 = vmatpush1.msra.mxu0 0.0
    %1901 = vmatprep.subr.mxu0 0.0
    %1902 = vmatpush1.msra.mxu0 0.0
    %1903 = vmatprep.subr.mxu0 0.0
    %1904 = vmatpush1.msra.mxu0 0.0
    %1905 = vmatprep.subr.mxu0 0.0
    %1906 = vmatpush1.msra.mxu0 0.0
    %1907 = vmatprep.subr.mxu0 0.0
    %1908 = vmatpush1.msra.mxu0 0.0
    %1909 = vmatprep.subr.mxu0 0.0
    %1910 = vmatpush1.msra.mxu0 0.0
    %1911 = vmatprep.subr.mxu0 0.0
    %1912 = vmatpush1.msra.mxu0 0.0
    %1913 = vmatprep.subr.mxu0 0.0
    %1914 = vmatpush1.msra.mxu0 0.0
    %1915 = vmatprep.subr.mxu0 0.0
    %1916 = vmatpush1.msra.mxu0 0.0
    %1917 = vmatprep.subr.mxu0 0.0
    %1918 = vmatpush1.msra.mxu0 0.0
    %1919 = vmatprep.subr.mxu0 0.0
    %1920 = vmatpush1.msra.mxu0 0.0
    %1921 = vmatprep.subr.mxu0 0.0
    %1922 = vmatpush1.msra.mxu0 0.0
    %1923 = vmatprep.subr.mxu0 0.0
    %1924 = vmatpush1.msra.mxu0 0.0
    %1925 = vmatprep.subr.mxu0 0.0
    %1926 = vmatpush1.msra.mxu0 0.0
    %1927 = vmatprep.subr.mxu0 0.0
    %1928 = vmatpush1.msra.mxu0 0.0
    %1929 = vmatprep.subr.mxu0 0.0
    %1930 = vmatpush1.msra.mxu0 0.0
    %1931 = vmatprep.subr.mxu0 0.0
    %1932 = vmatpush1.msra.mxu0 0.0
    %1933 = vmatprep.subr.mxu0 0.0
    %1934 = vmatpush1.msra.mxu0 0.0
    %1935 = vmatprep.subr.mxu0 0.0
    %1936 = vmatpush1.msra.mxu0 0.0
    %1937 = vmatprep.subr.mxu0 0.0
    %1938 = vmatpush1.msra.mxu0 0.0
    %1939 = vmatprep.subr.mxu0 0.0
    %1940 = vmatpush1.msra.mxu0 0.0
    %1941 = vmatprep.subr.mxu0 0.0
    %1942 = vmatpush1.msra.mxu0 0.0
    %1943 = vmatprep.mubr.f32.mxu0 0.0
    %1944 = vmatmul.mubr.f32.gmra.mrb[0].mxu0 %v1877
    %v1945 = vpop.f32.mrb[0].mxu0
    %v1946 = vadd.f32 0.0, %v1945
    %v1947 = vpop.f32.mrb[0].mxu0
    %1948 = vdwg.mxu0
    %v1949 = vadd.f32 %v1873, %v1946
    %v1950 = vxor.u32 %v1872, 2147483648
    %v1951 = vmul.f32 %v1950, 1.442695
    %v1952 = vpow.pop %v1951
    %v1953 = vadd.f32 %v1952, 1.0
    %v1954 = vrcp.pop %v1953
    %v1955 = vmul.f32 1.0, %v1954
    %v1956 = vtanh.pop %v1872
    %v1958 = vrot.slane %v1749, 6
    %v1960 = vmul.f32 %v1955, %v1958
    %1962 = vrot.lane.b32.xlu0 %v1956, 64
    %v1963 = vpop.permute.xlu0 %1962
    %v1965 = vmul.f32 %v1955, %v1963
    %1967 = vrot.lane.b32.xlu0 %v1965, 32
    %v1968 = vpop.permute.xlu0 %1967
    %v1970 = vadd.f32 %v1960, %v1968
    %v1971 = vtanh.pop %v1970
    %1973 = vrot.lane.b32.xlu0 %v1971, 64
    %v1974 = vpop.permute.xlu0 %1973
    %v1976 = vmul.f32 %v1955, %v1974
    %v1977 = vxor.u32 %v1949, 2147483648
    %v1978 = vmul.f32 %v1977, 1.442695
    %v1979 = vpow.pop %v1978
    %v1980 = vadd.f32 %v1979, 1.0
    %v1981 = vrcp.pop %v1980
    %v1982 = vmul.f32 1.0, %v1981
    %v1983 = vtanh.pop %v1949
    %v1985 = vrot.slane %v1776, 2
    %v1987 = vmul.f32 %v1982, %v1985
    %1989 = vrot.lane.b32.xlu0 %v1983, 64
    %v1990 = vpop.permute.xlu0 %1989
    %v1992 = vmul.f32 %v1982, %v1990
    %1994 = vrot.lane.b32.xlu0 %v1992, 32
    %v1995 = vpop.permute.xlu0 %1994
    %v1997 = vadd.f32 %v1987, %v1995
    %v1998 = vtanh.pop %v1997
    %2000 = vrot.lane.b32.xlu0 %v1998, 64
    %v2001 = vpop.permute.xlu0 %2000
    %v2003 = vmul.f32 %v1982, %v2001
    %2005 = vrot.lane.b32.xlu0 %v1976, 32
    %v2006 = vpop.permute.xlu0 %2005
    %2008 = vst.msk [vmem:[#allocation3 + $0x8] sm:$0xc0] %vm1120, %v2006
    %2010 = vrot.lane.b32.xlu0 %v2003, 64
    %v2011 = vpop.permute.xlu0 %2010
    %2013 = vst.msk [vmem:[#allocation3] sm:$0x3] %vm1126, %v2011
    %v2014 = vld [vmem:[#allocation3] sm:$0xff]
    %v2015 = vld [vmem:[#allocation3 + $0x8] sm:$0xff]
    %v2016 = vld [vmem:[#allocation11] sm:$0xff]
    %v2017 = vld [vmem:[#allocation11 + $0x8] sm:$0xff]
    %v2018 = vld [vmem:[#allocation11 + $0x10] sm:$0xff]
    %v2019 = vld [vmem:[#allocation11 + $0x18] sm:$0xff]
    %v2020 = vld [vmem:[#allocation11 + $0x20] sm:$0xff]
    %v2021 = vld [vmem:[#allocation11 + $0x28] sm:$0xff]
    %v2022 = vld [vmem:[#allocation11 + $0x30] sm:$0xff]
    %v2023 = vld [vmem:[#allocation11 + $0x38] sm:$0xff]
    %v2024 = vld [vmem:[#allocation11 + $0x40] sm:$0xff]
    %v2025 = vld [vmem:[#allocation11 + $0x48] sm:$0xff]
    %v2026 = vld [vmem:[#allocation11 + $0x50] sm:$0xff]
    %v2027 = vld [vmem:[#allocation11 + $0x58] sm:$0xff]
    %v2028 = vld [vmem:[#allocation11 + $0x60] sm:$0xff]
    %v2029 = vld [vmem:[#allocation11 + $0x68] sm:$0xff]
    %v2030 = vld [vmem:[#allocation11 + $0x70] sm:$0xff]
    %v2031 = vld [vmem:[#allocation11 + $0x78] sm:$0xff]
    %v2032 = vld [vmem:[#allocation13] sm:$0x3]
    %v2034 = vlaneseq
    %v2035 = vshrl.u32 %v2034, 7
    %v2036 = vsub.s32 0, %v2035
    %v2037 = vrot.slane %v2032, %v2036
    %v2038 = vlaneseq
    %v2039 = vshrl.u32 %v2038, 7
    %v2040 = vsub.s32 1, %v2039
    %v2041 = vrot.slane %v2032, %v2040
    %v2045 = vsel %vm149, %v2014, 0
    %v2048 = vsel %vm149, %v2015, 0
    %2050 = vmatprep.subr.mxu0 %v2017
    %2051 = vmatpush1.msra.mxu0 %v2016
    %2052 = vmatprep.subr.mxu0 %v2019
    %2053 = vmatpush1.msra.mxu0 %v2018
    %2054 = vmatprep.subr.mxu0 %v2021
    %2055 = vmatpush1.msra.mxu0 %v2020
    %2056 = vmatprep.subr.mxu0 %v2023
    %2057 = vmatpush1.msra.mxu0 %v2022
    %2058 = vmatprep.subr.mxu0 %v2025
    %2059 = vmatpush1.msra.mxu0 %v2024
    %2060 = vmatprep.subr.mxu0 %v2027
    %2061 = vmatpush1.msra.mxu0 %v2026
    %2062 = vmatprep.subr.mxu0 %v2029
    %2063 = vmatpush1.msra.mxu0 %v2028
    %2064 = vmatprep.subr.mxu0 %v2031
    %2065 = vmatpush1.msra.mxu0 %v2030
    %2066 = vmatprep.subr.mxu0 0.0
    %2067 = vmatpush1.msra.mxu0 0.0
    %2068 = vmatprep.subr.mxu0 0.0
    %2069 = vmatpush1.msra.mxu0 0.0
    %2070 = vmatprep.subr.mxu0 0.0
    %2071 = vmatpush1.msra.mxu0 0.0
    %2072 = vmatprep.subr.mxu0 0.0
    %2073 = vmatpush1.msra.mxu0 0.0
    %2074 = vmatprep.subr.mxu0 0.0
    %2075 = vmatpush1.msra.mxu0 0.0
    %2076 = vmatprep.subr.mxu0 0.0
    %2077 = vmatpush1.msra.mxu0 0.0
    %2078 = vmatprep.subr.mxu0 0.0
    %2079 = vmatpush1.msra.mxu0 0.0
    %2080 = vmatprep.subr.mxu0 0.0
    %2081 = vmatpush1.msra.mxu0 0.0
    %2082 = vmatprep.subr.mxu0 0.0
    %2083 = vmatpush1.msra.mxu0 0.0
    %2084 = vmatprep.subr.mxu0 0.0
    %2085 = vmatpush1.msra.mxu0 0.0
    %2086 = vmatprep.subr.mxu0 0.0
    %2087 = vmatpush1.msra.mxu0 0.0
    %2088 = vmatprep.subr.mxu0 0.0
    %2089 = vmatpush1.msra.mxu0 0.0
    %2090 = vmatprep.subr.mxu0 0.0
    %2091 = vmatpush1.msra.mxu0 0.0
    %2092 = vmatprep.subr.mxu0 0.0
    %2093 = vmatpush1.msra.mxu0 0.0
    %2094 = vmatprep.subr.mxu0 0.0
    %2095 = vmatpush1.msra.mxu0 0.0
    %2096 = vmatprep.subr.mxu0 0.0
    %2097 = vmatpush1.msra.mxu0 0.0
    %2098 = vmatprep.subr.mxu0 0.0
    %2099 = vmatpush1.msra.mxu0 0.0
    %2100 = vmatprep.subr.mxu0 0.0
    %2101 = vmatpush1.msra.mxu0 0.0
    %2102 = vmatprep.subr.mxu0 0.0
    %2103 = vmatpush1.msra.mxu0 0.0
    %2104 = vmatprep.subr.mxu0 0.0
    %2105 = vmatpush1.msra.mxu0 0.0
    %2106 = vmatprep.subr.mxu0 0.0
    %2107 = vmatpush1.msra.mxu0 0.0
    %2108 = vmatprep.subr.mxu0 0.0
    %2109 = vmatpush1.msra.mxu0 0.0
    %2110 = vmatprep.subr.mxu0 0.0
    %2111 = vmatpush1.msra.mxu0 0.0
    %2112 = vmatprep.subr.mxu0 0.0
    %2113 = vmatpush1.msra.mxu0 0.0
    %2114 = vmatprep.mubr.f32.mxu0 0.0
    %2115 = vmatmul.mubr.f32.gmra.mrb[0].mxu0 %v2045
    %v2116 = vpop.f32.mrb[0].mxu0
    %v2117 = vadd.f32 %v2037, %v2116
    %v2118 = vpop.f32.mrb[0].mxu0
    %v2119 = vadd.f32 %v2041, %v2118
    %2120 = vmatprep.mubr.f32.mxu0 0.0
    %2121 = vmatmul.mubr.f32.gmra.mrb[0].mxu0 %v2048
    %v2122 = vpop.f32.mrb[0].mxu0
    %v2123 = vadd.f32 %v2037, %v2122
    %v2124 = vpop.f32.mrb[0].mxu0
    %v2125 = vadd.f32 %v2041, %v2124
    %2126 = vdwg.mxu0
    %2127 = vst [vmem:[#allocation2] sm:$0xff] %v2117
    %2128 = vst [vmem:[#allocation2 + $0x8] sm:$0xff] %v2119
    %2129 = vst [vmem:[#allocation2 + $0x10] sm:$0xff] %v2123
    %2130 = vst [vmem:[#allocation2 + $0x18] sm:$0xff] %v2125
    %v2131 = vld [vmem:[%s7] sm:$0xff]
    %v2132 = vld [vmem:[%s7 + $0x8] sm:$0xff]
    %v2133 = vld [vmem:[%s7 + $0x10] sm:$0xff]
    %v2134 = vld [vmem:[%s7 + $0x18] sm:$0xff]
    %v2135 = vld [vmem:[#allocation14] sm:$0xff]
    %v2136 = vld [vmem:[#allocation14 + $0x8] sm:$0xff]
    %v2137 = vld [vmem:[#allocation14 + $0x10] sm:$0xff]
    %v2138 = vld [vmem:[#allocation14 + $0x18] sm:$0xff]
    %v2139 = vld [vmem:[#allocation2] sm:$0x3]
    %2140 = vmatprep.subr.mxu0 0.0
    %2141 = vmatpush1.msra.mxu0 %v2131
    %2142 = vmatprep.subr.mxu0 0.0
    %2143 = vmatpush1.msra.mxu0 %v2132
    %2144 = vmatprep.subr.mxu0 0.0
    %2145 = vmatpush1.msra.mxu0 %v2133
    %2146 = vmatprep.subr.mxu0 0.0
    %2147 = vmatpush1.msra.mxu0 %v2134
    %2148 = vmatprep.subr.mxu0 0.0
    %2149 = vmatpush1.msra.mxu0 0.0
    %2150 = vmatprep.subr.mxu0 0.0
    %2151 = vmatpush1.msra.mxu0 0.0
    %2152 = vmatprep.subr.mxu0 0.0
    %2153 = vmatpush1.msra.mxu0 0.0
    %2154 = vmatprep.subr.mxu0 0.0
    %2155 = vmatpush1.msra.mxu0 0.0
    %2156 = vmatprep.subr.mxu0 0.0
    %2157 = vmatpush1.msra.mxu0 0.0
    %2158 = vmatprep.subr.mxu0 0.0
    %2159 = vmatpush1.msra.mxu0 0.0
    %2160 = vmatprep.subr.mxu0 0.0
    %2161 = vmatpush1.msra.mxu0 0.0
    %2162 = vmatprep.subr.mxu0 0.0
    %2163 = vmatpush1.msra.mxu0 0.0
    %2164 = vmatprep.subr.mxu0 0.0
    %2165 = vmatpush1.msra.mxu0 0.0
    %2166 = vmatprep.subr.mxu0 0.0
    %2167 = vmatpush1.msra.mxu0 0.0
    %2168 = vmatprep.subr.mxu0 0.0
    %2169 = vmatpush1.msra.mxu0 0.0
    %2170 = vmatprep.subr.mxu0 0.0
    %2171 = vmatpush1.msra.mxu0 0.0
    %2172 = vmatprep.subr.mxu0 0.0
    %2173 = vmatpush1.msra.mxu0 0.0
    %2174 = vmatprep.subr.mxu0 0.0
    %2175 = vmatpush1.msra.mxu0 0.0
    %2176 = vmatprep.subr.mxu0 0.0
    %2177 = vmatpush1.msra.mxu0 0.0
    %2178 = vmatprep.subr.mxu0 0.0
    %2179 = vmatpush1.msra.mxu0 0.0
    %2180 = vmatprep.subr.mxu0 0.0
    %2181 = vmatpush1.msra.mxu0 0.0
    %2182 = vmatprep.subr.mxu0 0.0
    %2183 = vmatpush1.msra.mxu0 0.0
    %2184 = vmatprep.subr.mxu0 0.0
    %2185 = vmatpush1.msra.mxu0 0.0
    %2186 = vmatprep.subr.mxu0 0.0
    %2187 = vmatpush1.msra.mxu0 0.0
    %2188 = vmatprep.subr.mxu0 0.0
    %2189 = vmatpush1.msra.mxu0 0.0
    %2190 = vmatprep.subr.mxu0 0.0
    %2191 = vmatpush1.msra.mxu0 0.0
    %2192 = vmatprep.subr.mxu0 0.0
    %2193 = vmatpush1.msra.mxu0 0.0
    %2194 = vmatprep.subr.mxu0 0.0
    %2195 = vmatpush1.msra.mxu0 0.0
    %2196 = vmatprep.subr.mxu0 0.0
    %2197 = vmatpush1.msra.mxu0 0.0
    %2198 = vmatprep.subr.mxu0 0.0
    %2199 = vmatpush1.msra.mxu0 0.0
    %2200 = vmatprep.subr.mxu0 0.0
    %2201 = vmatpush1.msra.mxu0 0.0
    %2202 = vmatprep.subr.mxu0 0.0
    %2203 = vmatpush1.msra.mxu0 0.0
    %2204 = vmatprep.mubr.f32.mxu0 0.0
    %2205 = vmatmul.mubr.f32.gmra.mrb[0].mxu0 %v248
    %v2206 = vpop.f32.mrb[0].mxu0
    %v2207 = vadd.f32 0.0, %v2206
    %v2208 = vpop.f32.mrb[0].mxu0
    %2209 = vdwg.mxu0
    %v2210 = vadd.f32 %v2139, %v2207
    %v2211 = vld [vmem:[#allocation2 + $0x18] sm:$0xc0]
    %2212 = vmatprep.subr.mxu0 0.0
    %2213 = vmatpush1.msra.mxu0 %v2135
    %2214 = vmatprep.subr.mxu0 0.0
    %2215 = vmatpush1.msra.mxu0 %v2136
    %2216 = vmatprep.subr.mxu0 0.0
    %2217 = vmatpush1.msra.mxu0 %v2137
    %2218 = vmatprep.subr.mxu0 0.0
    %2219 = vmatpush1.msra.mxu0 %v2138
    %2220 = vmatprep.subr.mxu0 0.0
    %2221 = vmatpush1.msra.mxu0 0.0
    %2222 = vmatprep.subr.mxu0 0.0
    %2223 = vmatpush1.msra.mxu0 0.0
    %2224 = vmatprep.subr.mxu0 0.0
    %2225 = vmatpush1.msra.mxu0 0.0
    %2226 = vmatprep.subr.mxu0 0.0
    %2227 = vmatpush1.msra.mxu0 0.0
    %2228 = vmatprep.subr.mxu0 0.0
    %2229 = vmatpush1.msra.mxu0 0.0
    %2230 = vmatprep.subr.mxu0 0.0
    %2231 = vmatpush1.msra.mxu0 0.0
    %2232 = vmatprep.subr.mxu0 0.0
    %2233 = vmatpush1.msra.mxu0 0.0
    %2234 = vmatprep.subr.mxu0 0.0
    %2235 = vmatpush1.msra.mxu0 0.0
    %2236 = vmatprep.subr.mxu0 0.0
    %2237 = vmatpush1.msra.mxu0 0.0
    %2238 = vmatprep.subr.mxu0 0.0
    %2239 = vmatpush1.msra.mxu0 0.0
    %2240 = vmatprep.subr.mxu0 0.0
    %2241 = vmatpush1.msra.mxu0 0.0
    %2242 = vmatprep.subr.mxu0 0.0
    %2243 = vmatpush1.msra.mxu0 0.0
    %2244 = vmatprep.subr.mxu0 0.0
    %2245 = vmatpush1.msra.mxu0 0.0
    %2246 = vmatprep.subr.mxu0 0.0
    %2247 = vmatpush1.msra.mxu0 0.0
    %2248 = vmatprep.subr.mxu0 0.0
    %2249 = vmatpush1.msra.mxu0 0.0
    %2250 = vmatprep.subr.mxu0 0.0
    %2251 = vmatpush1.msra.mxu0 0.0
    %2252 = vmatprep.subr.mxu0 0.0
    %2253 = vmatpush1.msra.mxu0 0.0
    %2254 = vmatprep.subr.mxu0 0.0
    %2255 = vmatpush1.msra.mxu0 0.0
    %2256 = vmatprep.subr.mxu0 0.0
    %2257 = vmatpush1.msra.mxu0 0.0
    %2258 = vmatprep.subr.mxu0 0.0
    %2259 = vmatpush1.msra.mxu0 0.0
    %2260 = vmatprep.subr.mxu0 0.0
    %2261 = vmatpush1.msra.mxu0 0.0
    %2262 = vmatprep.subr.mxu0 0.0
    %2263 = vmatpush1.msra.mxu0 0.0
    %2264 = vmatprep.subr.mxu0 0.0
    %2265 = vmatpush1.msra.mxu0 0.0
    %2266 = vmatprep.subr.mxu0 0.0
    %2267 = vmatpush1.msra.mxu0 0.0
    %2268 = vmatprep.subr.mxu0 0.0
    %2269 = vmatpush1.msra.mxu0 0.0
    %2270 = vmatprep.subr.mxu0 0.0
    %2271 = vmatpush1.msra.mxu0 0.0
    %2272 = vmatprep.subr.mxu0 0.0
    %2273 = vmatpush1.msra.mxu0 0.0
    %2274 = vmatprep.subr.mxu0 0.0
    %2275 = vmatpush1.msra.mxu0 0.0
    %2276 = vmatprep.mubr.f32.mxu0 0.0
    %2277 = vmatmul.mubr.f32.gmra.mrb[0].mxu0 %v248
    %v2278 = vpop.f32.mrb[0].mxu0
    %v2279 = vadd.f32 0.0, %v2278
    %v2280 = vpop.f32.mrb[0].mxu0
    %2281 = vdwg.mxu0
    %v2283 = vrot.slane %v2279, 2
    %v2285 = vadd.f32 %v2211, %v2283
    %v2286 = vxor.u32 %v2210, 2147483648
    %v2287 = vmul.f32 %v2286, 1.442695
    %v2288 = vpow.pop %v2287
    %v2289 = vadd.f32 %v2288, 1.0
    %v2290 = vrcp.pop %v2289
    %v2291 = vmul.f32 1.0, %v2290
    %v2292 = vtanh.pop %v2210
    %v2293 = vmul.f32 %v2291, 0.0
    %2295 = vrot.lane.b32.xlu0 %v2292, 64
    %v2296 = vpop.permute.xlu0 %2295
    %v2298 = vmul.f32 %v2291, %v2296
    %2300 = vrot.lane.b32.xlu0 %v2298, 32
    %v2301 = vpop.permute.xlu0 %2300
    %v2303 = vadd.f32 %v2293, %v2301
    %v2304 = vtanh.pop %v2303
    %2306 = vrot.lane.b32.xlu0 %v2304, 64
    %v2307 = vpop.permute.xlu0 %2306
    %v2309 = vmul.f32 %v2291, %v2307
    %v2310 = vxor.u32 %v2285, 2147483648
    %v2311 = vmul.f32 %v2310, 1.442695
    %v2312 = vpow.pop %v2311
    %v2313 = vadd.f32 %v2312, 1.0
    %v2314 = vrcp.pop %v2313
    %v2315 = vmul.f32 1.0, %v2314
    %v2316 = vtanh.pop %v2285
    %v2317 = vmul.f32 %v2315, 0.0
    %2319 = vrot.lane.b32.xlu0 %v2316, 64
    %v2320 = vpop.permute.xlu0 %2319
    %v2322 = vmul.f32 %v2315, %v2320
    %2324 = vrot.lane.b32.xlu0 %v2322, 32
    %v2325 = vpop.permute.xlu0 %2324
    %v2327 = vadd.f32 %v2317, %v2325
    %v2328 = vtanh.pop %v2327
    %2330 = vrot.lane.b32.xlu0 %v2328, 64
    %v2331 = vpop.permute.xlu0 %2330
    %v2333 = vmul.f32 %v2315, %v2331
    %2335 = vrot.lane.b32.xlu0 %v2309, 32
    %v2336 = vpop.permute.xlu0 %2335
    %2338 = vst.msk [vmem:[#allocation4] sm:$0x3] %vm448, %v2336
    %2340 = vrot.lane.b32.xlu0 %v2333, 64
    %v2341 = vpop.permute.xlu0 %2340
    %2343 = vst.msk [vmem:[#allocation4 + $0x8] sm:$0xc0] %vm454, %v2341
    %v2344 = vld [vmem:[#allocation2] sm:$0xc]
    %v2345 = vsel %vm246, %v2336, 0
    %2347 = vmatprep.subr.mxu0 0.0
    %2348 = vmatpush1.msra.mxu0 %v2131
    %2349 = vmatprep.subr.mxu0 0.0
    %2350 = vmatpush1.msra.mxu0 %v2132
    %2351 = vmatprep.subr.mxu0 0.0
    %2352 = vmatpush1.msra.mxu0 %v2133
    %2353 = vmatprep.subr.mxu0 0.0
    %2354 = vmatpush1.msra.mxu0 %v2134
    %2355 = vmatprep.subr.mxu0 0.0
    %2356 = vmatpush1.msra.mxu0 0.0
    %2357 = vmatprep.subr.mxu0 0.0
    %2358 = vmatpush1.msra.mxu0 0.0
    %2359 = vmatprep.subr.mxu0 0.0
    %2360 = vmatpush1.msra.mxu0 0.0
    %2361 = vmatprep.subr.mxu0 0.0
    %2362 = vmatpush1.msra.mxu0 0.0
    %2363 = vmatprep.subr.mxu0 0.0
    %2364 = vmatpush1.msra.mxu0 0.0
    %2365 = vmatprep.subr.mxu0 0.0
    %2366 = vmatpush1.msra.mxu0 0.0
    %2367 = vmatprep.subr.mxu0 0.0
    %2368 = vmatpush1.msra.mxu0 0.0
    %2369 = vmatprep.subr.mxu0 0.0
    %2370 = vmatpush1.msra.mxu0 0.0
    %2371 = vmatprep.subr.mxu0 0.0
    %2372 = vmatpush1.msra.mxu0 0.0
    %2373 = vmatprep.subr.mxu0 0.0
    %2374 = vmatpush1.msra.mxu0 0.0
    %2375 = vmatprep.subr.mxu0 0.0
    %2376 = vmatpush1.msra.mxu0 0.0
    %2377 = vmatprep.subr.mxu0 0.0
    %2378 = vmatpush1.msra.mxu0 0.0
    %2379 = vmatprep.subr.mxu0 0.0
    %2380 = vmatpush1.msra.mxu0 0.0
    %2381 = vmatprep.subr.mxu0 0.0
    %2382 = vmatpush1.msra.mxu0 0.0
    %2383 = vmatprep.subr.mxu0 0.0
    %2384 = vmatpush1.msra.mxu0 0.0
    %2385 = vmatprep.subr.mxu0 0.0
    %2386 = vmatpush1.msra.mxu0 0.0
    %2387 = vmatprep.subr.mxu0 0.0
    %2388 = vmatpush1.msra.mxu0 0.0
    %2389 = vmatprep.subr.mxu0 0.0
    %2390 = vmatpush1.msra.mxu0 0.0
    %2391 = vmatprep.subr.mxu0 0.0
    %2392 = vmatpush1.msra.mxu0 0.0
    %2393 = vmatprep.subr.mxu0 0.0
    %2394 = vmatpush1.msra.mxu0 0.0
    %2395 = vmatprep.subr.mxu0 0.0
    %2396 = vmatpush1.msra.mxu0 0.0
    %2397 = vmatprep.subr.mxu0 0.0
    %2398 = vmatpush1.msra.mxu0 0.0
    %2399 = vmatprep.subr.mxu0 0.0
    %2400 = vmatpush1.msra.mxu0 0.0
    %2401 = vmatprep.subr.mxu0 0.0
    %2402 = vmatpush1.msra.mxu0 0.0
    %2403 = vmatprep.subr.mxu0 0.0
    %2404 = vmatpush1.msra.mxu0 0.0
    %2405 = vmatprep.subr.mxu0 0.0
    %2406 = vmatpush1.msra.mxu0 0.0
    %2407 = vmatprep.subr.mxu0 0.0
    %2408 = vmatpush1.msra.mxu0 0.0
    %2409 = vmatprep.subr.mxu0 0.0
    %2410 = vmatpush1.msra.mxu0 0.0
    %2411 = vmatprep.mubr.f32.mxu0 0.0
    %2412 = vmatmul.mubr.f32.gmra.mrb[0].mxu0 %v2345
    %v2413 = vpop.f32.mrb[0].mxu0
    %v2414 = vadd.f32 0.0, %v2413
    %v2415 = vpop.f32.mrb[0].mxu0
    %2416 = vdwg.mxu0
    %v2418 = vrot.slane %v2414, 6
    %v2420 = vadd.f32 %v2344, %v2418
    %v2421 = vld [vmem:[#allocation2 + $0x18] sm:$0x30]
    %v2422 = vrot.slane %v2333, 6
    %2423 = vrot.lane.b32.xlu0 %v2422, 32
    %v2424 = vpop.permute.xlu0 %2423
    %v2425 = vsel %vm246, %v2424, 0
    %2427 = vmatprep.subr.mxu0 0.0
    %2428 = vmatpush1.msra.mxu0 %v2135
    %2429 = vmatprep.subr.mxu0 0.0
    %2430 = vmatpush1.msra.mxu0 %v2136
    %2431 = vmatprep.subr.mxu0 0.0
    %2432 = vmatpush1.msra.mxu0 %v2137
    %2433 = vmatprep.subr.mxu0 0.0
    %2434 = vmatpush1.msra.mxu0 %v2138
    %2435 = vmatprep.subr.mxu0 0.0
    %2436 = vmatpush1.msra.mxu0 0.0
    %2437 = vmatprep.subr.mxu0 0.0
    %2438 = vmatpush1.msra.mxu0 0.0
    %2439 = vmatprep.subr.mxu0 0.0
    %2440 = vmatpush1.msra.mxu0 0.0
    %2441 = vmatprep.subr.mxu0 0.0
    %2442 = vmatpush1.msra.mxu0 0.0
    %2443 = vmatprep.subr.mxu0 0.0
    %2444 = vmatpush1.msra.mxu0 0.0
    %2445 = vmatprep.subr.mxu0 0.0
    %2446 = vmatpush1.msra.mxu0 0.0
    %2447 = vmatprep.subr.mxu0 0.0
    %2448 = vmatpush1.msra.mxu0 0.0
    %2449 = vmatprep.subr.mxu0 0.0
    %2450 = vmatpush1.msra.mxu0 0.0
    %2451 = vmatprep.subr.mxu0 0.0
    %2452 = vmatpush1.msra.mxu0 0.0
    %2453 = vmatprep.subr.mxu0 0.0
    %2454 = vmatpush1.msra.mxu0 0.0
    %2455 = vmatprep.subr.mxu0 0.0
    %2456 = vmatpush1.msra.mxu0 0.0
    %2457 = vmatprep.subr.mxu0 0.0
    %2458 = vmatpush1.msra.mxu0 0.0
    %2459 = vmatprep.subr.mxu0 0.0
    %2460 = vmatpush1.msra.mxu0 0.0
    %2461 = vmatprep.subr.mxu0 0.0
    %2462 = vmatpush1.msra.mxu0 0.0
    %2463 = vmatprep.subr.mxu0 0.0
    %2464 = vmatpush1.msra.mxu0 0.0
    %2465 = vmatprep.subr.mxu0 0.0
    %2466 = vmatpush1.msra.mxu0 0.0
    %2467 = vmatprep.subr.mxu0 0.0
    %2468 = vmatpush1.msra.mxu0 0.0
    %2469 = vmatprep.subr.mxu0 0.0
    %2470 = vmatpush1.msra.mxu0 0.0
    %2471 = vmatprep.subr.mxu0 0.0
    %2472 = vmatpush1.msra.mxu0 0.0
    %2473 = vmatprep.subr.mxu0 0.0
    %2474 = vmatpush1.msra.mxu0 0.0
    %2475 = vmatprep.subr.mxu0 0.0
    %2476 = vmatpush1.msra.mxu0 0.0
    %2477 = vmatprep.subr.mxu0 0.0
    %2478 = vmatpush1.msra.mxu0 0.0
    %2479 = vmatprep.subr.mxu0 0.0
    %2480 = vmatpush1.msra.mxu0 0.0
    %2481 = vmatprep.subr.mxu0 0.0
    %2482 = vmatpush1.msra.mxu0 0.0
    %2483 = vmatprep.subr.mxu0 0.0
    %2484 = vmatpush1.msra.mxu0 0.0
    %2485 = vmatprep.subr.mxu0 0.0
    %2486 = vmatpush1.msra.mxu0 0.0
    %2487 = vmatprep.subr.mxu0 0.0
    %2488 = vmatpush1.msra.mxu0 0.0
    %2489 = vmatprep.subr.mxu0 0.0
    %2490 = vmatpush1.msra.mxu0 0.0
    %2491 = vmatprep.mubr.f32.mxu0 0.0
    %2492 = vmatmul.mubr.f32.gmra.mrb[0].mxu0 %v2425
    %v2493 = vpop.f32.mrb[0].mxu0
    %v2494 = vadd.f32 0.0, %v2493
    %v2495 = vpop.f32.mrb[0].mxu0
    %2496 = vdwg.mxu0
    %v2498 = vrot.slane %v2494, 4
    %v2500 = vadd.f32 %v2421, %v2498
    %v2501 = vxor.u32 %v2420, 2147483648
    %v2502 = vmul.f32 %v2501, 1.442695
    %v2503 = vpow.pop %v2502
    %v2504 = vadd.f32 %v2503, 1.0
    %v2505 = vrcp.pop %v2504
    %v2506 = vmul.f32 1.0, %v2505
    %v2507 = vtanh.pop %v2420
    %v2509 = vrot.slane %v2303, 6
    %v2511 = vmul.f32 %v2506, %v2509
    %2513 = vrot.lane.b32.xlu0 %v2507, 64
    %v2514 = vpop.permute.xlu0 %2513
    %v2516 = vmul.f32 %v2506, %v2514
    %2518 = vrot.lane.b32.xlu0 %v2516, 32
    %v2519 = vpop.permute.xlu0 %2518
    %v2521 = vadd.f32 %v2511, %v2519
    %v2522 = vtanh.pop %v2521
    %2524 = vrot.lane.b32.xlu0 %v2522, 64
    %v2525 = vpop.permute.xlu0 %2524
    %v2527 = vmul.f32 %v2506, %v2525
    %v2528 = vxor.u32 %v2500, 2147483648
    %v2529 = vmul.f32 %v2528, 1.442695
    %v2530 = vpow.pop %v2529
    %v2531 = vadd.f32 %v2530, 1.0
    %v2532 = vrcp.pop %v2531
    %v2533 = vmul.f32 1.0, %v2532
    %v2534 = vtanh.pop %v2500
    %v2536 = vrot.slane %v2327, 2
    %v2538 = vmul.f32 %v2533, %v2536
    %2540 = vrot.lane.b32.xlu0 %v2534, 64
    %v2541 = vpop.permute.xlu0 %2540
    %v2543 = vmul.f32 %v2533, %v2541
    %2545 = vrot.lane.b32.xlu0 %v2543, 32
    %v2546 = vpop.permute.xlu0 %2545
    %v2548 = vadd.f32 %v2538, %v2546
    %v2549 = vtanh.pop %v2548
    %2551 = vrot.lane.b32.xlu0 %v2549, 64
    %v2552 = vpop.permute.xlu0 %2551
    %v2554 = vmul.f32 %v2533, %v2552
    %2556 = vrot.lane.b32.xlu0 %v2527, 32
    %v2557 = vpop.permute.xlu0 %2556
    %2559 = vst.msk [vmem:[#allocation4] sm:$0xc] %vm671, %v2557
    %2561 = vrot.lane.b32.xlu0 %v2554, 64
    %v2562 = vpop.permute.xlu0 %2561
    %2564 = vst.msk [vmem:[#allocation4 + $0x8] sm:$0x30] %vm677, %v2562
    %v2565 = vld [vmem:[#allocation2] sm:$0x30]
    %v2566 = vrot.slane %v2527, 2
    %2567 = vrot.lane.b32.xlu0 %v2566, 32
    %v2568 = vpop.permute.xlu0 %2567
    %v2569 = vsel %vm246, %v2568, 0
    %2571 = vmatprep.subr.mxu0 0.0
    %2572 = vmatpush1.msra.mxu0 %v2131
    %2573 = vmatprep.subr.mxu0 0.0
    %2574 = vmatpush1.msra.mxu0 %v2132
    %2575 = vmatprep.subr.mxu0 0.0
    %2576 = vmatpush1.msra.mxu0 %v2133
    %2577 = vmatprep.subr.mxu0 0.0
    %2578 = vmatpush1.msra.mxu0 %v2134
    %2579 = vmatprep.subr.mxu0 0.0
    %2580 = vmatpush1.msra.mxu0 0.0
    %2581 = vmatprep.subr.mxu0 0.0
    %2582 = vmatpush1.msra.mxu0 0.0
    %2583 = vmatprep.subr.mxu0 0.0
    %2584 = vmatpush1.msra.mxu0 0.0
    %2585 = vmatprep.subr.mxu0 0.0
    %2586 = vmatpush1.msra.mxu0 0.0
    %2587 = vmatprep.subr.mxu0 0.0
    %2588 = vmatpush1.msra.mxu0 0.0
    %2589 = vmatprep.subr.mxu0 0.0
    %2590 = vmatpush1.msra.mxu0 0.0
    %2591 = vmatprep.subr.mxu0 0.0
    %2592 = vmatpush1.msra.mxu0 0.0
    %2593 = vmatprep.subr.mxu0 0.0
    %2594 = vmatpush1.msra.mxu0 0.0
    %2595 = vmatprep.subr.mxu0 0.0
    %2596 = vmatpush1.msra.mxu0 0.0
    %2597 = vmatprep.subr.mxu0 0.0
    %2598 = vmatpush1.msra.mxu0 0.0
    %2599 = vmatprep.subr.mxu0 0.0
    %2600 = vmatpush1.msra.mxu0 0.0
    %2601 = vmatprep.subr.mxu0 0.0
    %2602 = vmatpush1.msra.mxu0 0.0
    %2603 = vmatprep.subr.mxu0 0.0
    %2604 = vmatpush1.msra.mxu0 0.0
    %2605 = vmatprep.subr.mxu0 0.0
    %2606 = vmatpush1.msra.mxu0 0.0
    %2607 = vmatprep.subr.mxu0 0.0
    %2608 = vmatpush1.msra.mxu0 0.0
    %2609 = vmatprep.subr.mxu0 0.0
    %2610 = vmatpush1.msra.mxu0 0.0
    %2611 = vmatprep.subr.mxu0 0.0
    %2612 = vmatpush1.msra.mxu0 0.0
    %2613 = vmatprep.subr.mxu0 0.0
    %2614 = vmatpush1.msra.mxu0 0.0
    %2615 = vmatprep.subr.mxu0 0.0
    %2616 = vmatpush1.msra.mxu0 0.0
    %2617 = vmatprep.subr.mxu0 0.0
    %2618 = vmatpush1.msra.mxu0 0.0
    %2619 = vmatprep.subr.mxu0 0.0
    %2620 = vmatpush1.msra.mxu0 0.0
    %2621 = vmatprep.subr.mxu0 0.0
    %2622 = vmatpush1.msra.mxu0 0.0
    %2623 = vmatprep.subr.mxu0 0.0
    %2624 = vmatpush1.msra.mxu0 0.0
    %2625 = vmatprep.subr.mxu0 0.0
    %2626 = vmatpush1.msra.mxu0 0.0
    %2627 = vmatprep.subr.mxu0 0.0
    %2628 = vmatpush1.msra.mxu0 0.0
    %2629 = vmatprep.subr.mxu0 0.0
    %2630 = vmatpush1.msra.mxu0 0.0
    %2631 = vmatprep.subr.mxu0 0.0
    %2632 = vmatpush1.msra.mxu0 0.0
    %2633 = vmatprep.subr.mxu0 0.0
    %2634 = vmatpush1.msra.mxu0 0.0
    %2635 = vmatprep.mubr.f32.mxu0 0.0
    %2636 = vmatmul.mubr.f32.gmra.mrb[0].mxu0 %v2569
    %v2637 = vpop.f32.mrb[0].mxu0
    %v2638 = vadd.f32 0.0, %v2637
    %v2639 = vpop.f32.mrb[0].mxu0
    %2640 = vdwg.mxu0
    %v2642 = vrot.slane %v2638, 4
    %v2644 = vadd.f32 %v2565, %v2642
    %v2645 = vld [vmem:[#allocation2 + $0x18] sm:$0xc]
    %v2646 = vrot.slane %v2554, 4
    %2647 = vrot.lane.b32.xlu0 %v2646, 32
    %v2648 = vpop.permute.xlu0 %2647
    %v2649 = vsel %vm246, %v2648, 0
    %2651 = vmatprep.subr.mxu0 0.0
    %2652 = vmatpush1.msra.mxu0 %v2135
    %2653 = vmatprep.subr.mxu0 0.0
    %2654 = vmatpush1.msra.mxu0 %v2136
    %2655 = vmatprep.subr.mxu0 0.0
    %2656 = vmatpush1.msra.mxu0 %v2137
    %2657 = vmatprep.subr.mxu0 0.0
    %2658 = vmatpush1.msra.mxu0 %v2138
    %2659 = vmatprep.subr.mxu0 0.0
    %2660 = vmatpush1.msra.mxu0 0.0
    %2661 = vmatprep.subr.mxu0 0.0
    %2662 = vmatpush1.msra.mxu0 0.0
    %2663 = vmatprep.subr.mxu0 0.0
    %2664 = vmatpush1.msra.mxu0 0.0
    %2665 = vmatprep.subr.mxu0 0.0
    %2666 = vmatpush1.msra.mxu0 0.0
    %2667 = vmatprep.subr.mxu0 0.0
    %2668 = vmatpush1.msra.mxu0 0.0
    %2669 = vmatprep.subr.mxu0 0.0
    %2670 = vmatpush1.msra.mxu0 0.0
    %2671 = vmatprep.subr.mxu0 0.0
    %2672 = vmatpush1.msra.mxu0 0.0
    %2673 = vmatprep.subr.mxu0 0.0
    %2674 = vmatpush1.msra.mxu0 0.0
    %2675 = vmatprep.subr.mxu0 0.0
    %2676 = vmatpush1.msra.mxu0 0.0
    %2677 = vmatprep.subr.mxu0 0.0
    %2678 = vmatpush1.msra.mxu0 0.0
    %2679 = vmatprep.subr.mxu0 0.0
    %2680 = vmatpush1.msra.mxu0 0.0
    %2681 = vmatprep.subr.mxu0 0.0
    %2682 = vmatpush1.msra.mxu0 0.0
    %2683 = vmatprep.subr.mxu0 0.0
    %2684 = vmatpush1.msra.mxu0 0.0
    %2685 = vmatprep.subr.mxu0 0.0
    %2686 = vmatpush1.msra.mxu0 0.0
    %2687 = vmatprep.subr.mxu0 0.0
    %2688 = vmatpush1.msra.mxu0 0.0
    %2689 = vmatprep.subr.mxu0 0.0
    %2690 = vmatpush1.msra.mxu0 0.0
    %2691 = vmatprep.subr.mxu0 0.0
    %2692 = vmatpush1.msra.mxu0 0.0
    %2693 = vmatprep.subr.mxu0 0.0
    %2694 = vmatpush1.msra.mxu0 0.0
    %2695 = vmatprep.subr.mxu0 0.0
    %2696 = vmatpush1.msra.mxu0 0.0
    %2697 = vmatprep.subr.mxu0 0.0
    %2698 = vmatpush1.msra.mxu0 0.0
    %2699 = vmatprep.subr.mxu0 0.0
    %2700 = vmatpush1.msra.mxu0 0.0
    %2701 = vmatprep.subr.mxu0 0.0
    %2702 = vmatpush1.msra.mxu0 0.0
    %2703 = vmatprep.subr.mxu0 0.0
    %2704 = vmatpush1.msra.mxu0 0.0
    %2705 = vmatprep.subr.mxu0 0.0
    %2706 = vmatpush1.msra.mxu0 0.0
    %2707 = vmatprep.subr.mxu0 0.0
    %2708 = vmatpush1.msra.mxu0 0.0
    %2709 = vmatprep.subr.mxu0 0.0
    %2710 = vmatpush1.msra.mxu0 0.0
    %2711 = vmatprep.subr.mxu0 0.0
    %2712 = vmatpush1.msra.mxu0 0.0
    %2713 = vmatprep.subr.mxu0 0.0
    %2714 = vmatpush1.msra.mxu0 0.0
    %2715 = vmatprep.mubr.f32.mxu0 0.0
    %2716 = vmatmul.mubr.f32.gmra.mrb[0].mxu0 %v2649
    %v2717 = vpop.f32.mrb[0].mxu0
    %v2718 = vadd.f32 0.0, %v2717
    %v2719 = vpop.f32.mrb[0].mxu0
    %2720 = vdwg.mxu0
    %v2722 = vrot.slane %v2718, 6
    %v2724 = vadd.f32 %v2645, %v2722
    %v2725 = vxor.u32 %v2644, 2147483648
    %v2726 = vmul.f32 %v2725, 1.442695
    %v2727 = vpow.pop %v2726
    %v2728 = vadd.f32 %v2727, 1.0
    %v2729 = vrcp.pop %v2728
    %v2730 = vmul.f32 1.0, %v2729
    %v2731 = vtanh.pop %v2644
    %v2733 = vrot.slane %v2521, 6
    %v2735 = vmul.f32 %v2730, %v2733
    %2737 = vrot.lane.b32.xlu0 %v2731, 64
    %v2738 = vpop.permute.xlu0 %2737
    %v2740 = vmul.f32 %v2730, %v2738
    %2742 = vrot.lane.b32.xlu0 %v2740, 32
    %v2743 = vpop.permute.xlu0 %2742
    %v2745 = vadd.f32 %v2735, %v2743
    %v2746 = vtanh.pop %v2745
    %2748 = vrot.lane.b32.xlu0 %v2746, 64
    %v2749 = vpop.permute.xlu0 %2748
    %v2751 = vmul.f32 %v2730, %v2749
    %v2752 = vxor.u32 %v2724, 2147483648
    %v2753 = vmul.f32 %v2752, 1.442695
    %v2754 = vpow.pop %v2753
    %v2755 = vadd.f32 %v2754, 1.0
    %v2756 = vrcp.pop %v2755
    %v2757 = vmul.f32 1.0, %v2756
    %v2758 = vtanh.pop %v2724
    %v2760 = vrot.slane %v2548, 2
    %v2762 = vmul.f32 %v2757, %v2760
    %2764 = vrot.lane.b32.xlu0 %v2758, 64
    %v2765 = vpop.permute.xlu0 %2764
    %v2767 = vmul.f32 %v2757, %v2765
    %2769 = vrot.lane.b32.xlu0 %v2767, 32
    %v2770 = vpop.permute.xlu0 %2769
    %v2772 = vadd.f32 %v2762, %v2770
    %v2773 = vtanh.pop %v2772
    %2775 = vrot.lane.b32.xlu0 %v2773, 64
    %v2776 = vpop.permute.xlu0 %2775
    %v2778 = vmul.f32 %v2757, %v2776
    %2780 = vrot.lane.b32.xlu0 %v2751, 32
    %v2781 = vpop.permute.xlu0 %2780
    %2783 = vst.msk [vmem:[#allocation4] sm:$0x30] %vm897, %v2781
    %2785 = vrot.lane.b32.xlu0 %v2778, 64
    %v2786 = vpop.permute.xlu0 %2785
    %2788 = vst.msk [vmem:[#allocation4 + $0x8] sm:$0xc] %vm903, %v2786
    %v2789 = vld [vmem:[#allocation2] sm:$0xc0]
    %v2790 = vrot.slane %v2751, 4
    %2791 = vrot.lane.b32.xlu0 %v2790, 32
    %v2792 = vpop.permute.xlu0 %2791
    %v2793 = vsel %vm246, %v2792, 0
    %2795 = vmatprep.subr.mxu0 0.0
    %2796 = vmatpush1.msra.mxu0 %v2131
    %2797 = vmatprep.subr.mxu0 0.0
    %2798 = vmatpush1.msra.mxu0 %v2132
    %2799 = vmatprep.subr.mxu0 0.0
    %2800 = vmatpush1.msra.mxu0 %v2133
    %2801 = vmatprep.subr.mxu0 0.0
    %2802 = vmatpush1.msra.mxu0 %v2134
    %2803 = vmatprep.subr.mxu0 0.0
    %2804 = vmatpush1.msra.mxu0 0.0
    %2805 = vmatprep.subr.mxu0 0.0
    %2806 = vmatpush1.msra.mxu0 0.0
    %2807 = vmatprep.subr.mxu0 0.0
    %2808 = vmatpush1.msra.mxu0 0.0
    %2809 = vmatprep.subr.mxu0 0.0
    %2810 = vmatpush1.msra.mxu0 0.0
    %2811 = vmatprep.subr.mxu0 0.0
    %2812 = vmatpush1.msra.mxu0 0.0
    %2813 = vmatprep.subr.mxu0 0.0
    %2814 = vmatpush1.msra.mxu0 0.0
    %2815 = vmatprep.subr.mxu0 0.0
    %2816 = vmatpush1.msra.mxu0 0.0
    %2817 = vmatprep.subr.mxu0 0.0
    %2818 = vmatpush1.msra.mxu0 0.0
    %2819 = vmatprep.subr.mxu0 0.0
    %2820 = vmatpush1.msra.mxu0 0.0
    %2821 = vmatprep.subr.mxu0 0.0
    %2822 = vmatpush1.msra.mxu0 0.0
    %2823 = vmatprep.subr.mxu0 0.0
    %2824 = vmatpush1.msra.mxu0 0.0
    %2825 = vmatprep.subr.mxu0 0.0
    %2826 = vmatpush1.msra.mxu0 0.0
    %2827 = vmatprep.subr.mxu0 0.0
    %2828 = vmatpush1.msra.mxu0 0.0
    %2829 = vmatprep.subr.mxu0 0.0
    %2830 = vmatpush1.msra.mxu0 0.0
    %2831 = vmatprep.subr.mxu0 0.0
    %2832 = vmatpush1.msra.mxu0 0.0
    %2833 = vmatprep.subr.mxu0 0.0
    %2834 = vmatpush1.msra.mxu0 0.0
    %2835 = vmatprep.subr.mxu0 0.0
    %2836 = vmatpush1.msra.mxu0 0.0
    %2837 = vmatprep.subr.mxu0 0.0
    %2838 = vmatpush1.msra.mxu0 0.0
    %2839 = vmatprep.subr.mxu0 0.0
    %2840 = vmatpush1.msra.mxu0 0.0
    %2841 = vmatprep.subr.mxu0 0.0
    %2842 = vmatpush1.msra.mxu0 0.0
    %2843 = vmatprep.subr.mxu0 0.0
    %2844 = vmatpush1.msra.mxu0 0.0
    %2845 = vmatprep.subr.mxu0 0.0
    %2846 = vmatpush1.msra.mxu0 0.0
    %2847 = vmatprep.subr.mxu0 0.0
    %2848 = vmatpush1.msra.mxu0 0.0
    %2849 = vmatprep.subr.mxu0 0.0
    %2850 = vmatpush1.msra.mxu0 0.0
    %2851 = vmatprep.subr.mxu0 0.0
    %2852 = vmatpush1.msra.mxu0 0.0
    %2853 = vmatprep.subr.mxu0 0.0
    %2854 = vmatpush1.msra.mxu0 0.0
    %2855 = vmatprep.subr.mxu0 0.0
    %2856 = vmatpush1.msra.mxu0 0.0
    %2857 = vmatprep.subr.mxu0 0.0
    %2858 = vmatpush1.msra.mxu0 0.0
    %2859 = vmatprep.mubr.f32.mxu0 0.0
    %2860 = vmatmul.mubr.f32.gmra.mrb[0].mxu0 %v2793
    %v2861 = vpop.f32.mrb[0].mxu0
    %v2862 = vadd.f32 0.0, %v2861
    %v2863 = vpop.f32.mrb[0].mxu0
    %2864 = vdwg.mxu0
    %v2866 = vrot.slane %v2862, 2
    %v2868 = vadd.f32 %v2789, %v2866
    %v2869 = vld [vmem:[#allocation2 + $0x18] sm:$0x3]
    %v2870 = vrot.slane %v2778, 2
    %2871 = vrot.lane.b32.xlu0 %v2870, 32
    %v2872 = vpop.permute.xlu0 %2871
    %v2873 = vsel %vm246, %v2872, 0
    %2875 = vmatprep.subr.mxu0 0.0
    %2876 = vmatpush1.msra.mxu0 %v2135
    %2877 = vmatprep.subr.mxu0 0.0
    %2878 = vmatpush1.msra.mxu0 %v2136
    %2879 = vmatprep.subr.mxu0 0.0
    %2880 = vmatpush1.msra.mxu0 %v2137
    %2881 = vmatprep.subr.mxu0 0.0
    %2882 = vmatpush1.msra.mxu0 %v2138
    %2883 = vmatprep.subr.mxu0 0.0
    %2884 = vmatpush1.msra.mxu0 0.0
    %2885 = vmatprep.subr.mxu0 0.0
    %2886 = vmatpush1.msra.mxu0 0.0
    %2887 = vmatprep.subr.mxu0 0.0
    %2888 = vmatpush1.msra.mxu0 0.0
    %2889 = vmatprep.subr.mxu0 0.0
    %2890 = vmatpush1.msra.mxu0 0.0
    %2891 = vmatprep.subr.mxu0 0.0
    %2892 = vmatpush1.msra.mxu0 0.0
    %2893 = vmatprep.subr.mxu0 0.0
    %2894 = vmatpush1.msra.mxu0 0.0
    %2895 = vmatprep.subr.mxu0 0.0
    %2896 = vmatpush1.msra.mxu0 0.0
    %2897 = vmatprep.subr.mxu0 0.0
    %2898 = vmatpush1.msra.mxu0 0.0
    %2899 = vmatprep.subr.mxu0 0.0
    %2900 = vmatpush1.msra.mxu0 0.0
    %2901 = vmatprep.subr.mxu0 0.0
    %2902 = vmatpush1.msra.mxu0 0.0
    %2903 = vmatprep.subr.mxu0 0.0
    %2904 = vmatpush1.msra.mxu0 0.0
    %2905 = vmatprep.subr.mxu0 0.0
    %2906 = vmatpush1.msra.mxu0 0.0
    %2907 = vmatprep.subr.mxu0 0.0
    %2908 = vmatpush1.msra.mxu0 0.0
    %2909 = vmatprep.subr.mxu0 0.0
    %2910 = vmatpush1.msra.mxu0 0.0
    %2911 = vmatprep.subr.mxu0 0.0
    %2912 = vmatpush1.msra.mxu0 0.0
    %2913 = vmatprep.subr.mxu0 0.0
    %2914 = vmatpush1.msra.mxu0 0.0
    %2915 = vmatprep.subr.mxu0 0.0
    %2916 = vmatpush1.msra.mxu0 0.0
    %2917 = vmatprep.subr.mxu0 0.0
    %2918 = vmatpush1.msra.mxu0 0.0
    %2919 = vmatprep.subr.mxu0 0.0
    %2920 = vmatpush1.msra.mxu0 0.0
    %2921 = vmatprep.subr.mxu0 0.0
    %2922 = vmatpush1.msra.mxu0 0.0
    %2923 = vmatprep.subr.mxu0 0.0
    %2924 = vmatpush1.msra.mxu0 0.0
    %2925 = vmatprep.subr.mxu0 0.0
    %2926 = vmatpush1.msra.mxu0 0.0
    %2927 = vmatprep.subr.mxu0 0.0
    %2928 = vmatpush1.msra.mxu0 0.0
    %2929 = vmatprep.subr.mxu0 0.0
    %2930 = vmatpush1.msra.mxu0 0.0
    %2931 = vmatprep.subr.mxu0 0.0
    %2932 = vmatpush1.msra.mxu0 0.0
    %2933 = vmatprep.subr.mxu0 0.0
    %2934 = vmatpush1.msra.mxu0 0.0
    %2935 = vmatprep.subr.mxu0 0.0
    %2936 = vmatpush1.msra.mxu0 0.0
    %2937 = vmatprep.subr.mxu0 0.0
    %2938 = vmatpush1.msra.mxu0 0.0
    %2939 = vmatprep.mubr.f32.mxu0 0.0
    %2940 = vmatmul.mubr.f32.gmra.mrb[0].mxu0 %v2873
    %v2941 = vpop.f32.mrb[0].mxu0
    %v2942 = vadd.f32 0.0, %v2941
    %v2943 = vpop.f32.mrb[0].mxu0
    %2944 = vdwg.mxu0
    %v2945 = vadd.f32 %v2869, %v2942
    %v2946 = vxor.u32 %v2868, 2147483648
    %v2947 = vmul.f32 %v2946, 1.442695
    %v2948 = vpow.pop %v2947
    %v2949 = vadd.f32 %v2948, 1.0
    %v2950 = vrcp.pop %v2949
    %v2951 = vmul.f32 1.0, %v2950
    %v2952 = vtanh.pop %v2868
    %v2954 = vrot.slane %v2745, 6
    %v2956 = vmul.f32 %v2951, %v2954
    %2958 = vrot.lane.b32.xlu0 %v2952, 64
    %v2959 = vpop.permute.xlu0 %2958
    %v2961 = vmul.f32 %v2951, %v2959
    %2963 = vrot.lane.b32.xlu0 %v2961, 32
    %v2964 = vpop.permute.xlu0 %2963
    %v2966 = vadd.f32 %v2956, %v2964
    %v2967 = vtanh.pop %v2966
    %2969 = vrot.lane.b32.xlu0 %v2967, 64
    %v2970 = vpop.permute.xlu0 %2969
    %v2972 = vmul.f32 %v2951, %v2970
    %v2973 = vxor.u32 %v2945, 2147483648
    %v2974 = vmul.f32 %v2973, 1.442695
    %v2975 = vpow.pop %v2974
    %v2976 = vadd.f32 %v2975, 1.0
    %v2977 = vrcp.pop %v2976
    %v2978 = vmul.f32 1.0, %v2977
    %v2979 = vtanh.pop %v2945
    %v2981 = vrot.slane %v2772, 2
    %v2983 = vmul.f32 %v2978, %v2981
    %2985 = vrot.lane.b32.xlu0 %v2979, 64
    %v2986 = vpop.permute.xlu0 %2985
    %v2988 = vmul.f32 %v2978, %v2986
    %2990 = vrot.lane.b32.xlu0 %v2988, 32
    %v2991 = vpop.permute.xlu0 %2990
    %v2993 = vadd.f32 %v2983, %v2991
    %v2994 = vtanh.pop %v2993
    %2996 = vrot.lane.b32.xlu0 %v2994, 64
    %v2997 = vpop.permute.xlu0 %2996
    %v2999 = vmul.f32 %v2978, %v2997
    %3001 = vrot.lane.b32.xlu0 %v2972, 32
    %v3002 = vpop.permute.xlu0 %3001
    %3004 = vst.msk [vmem:[#allocation4] sm:$0xc0] %vm1120, %v3002
    %3006 = vrot.lane.b32.xlu0 %v2999, 64
    %v3007 = vpop.permute.xlu0 %3006
    %3009 = vst.msk [vmem:[#allocation4 + $0x8] sm:$0x3] %vm1126, %v3007
    %v3010 = vld [vmem:[#allocation2 + $0x10] sm:$0x3]
    %v3011 = vrot.slane %v2972, 6
    %3012 = vrot.lane.b32.xlu0 %v3011, 32
    %v3013 = vpop.permute.xlu0 %3012
    %v3014 = vsel %vm246, %v3013, 0
    %3016 = vmatprep.subr.mxu0 0.0
    %3017 = vmatpush1.msra.mxu0 %v2131
    %3018 = vmatprep.subr.mxu0 0.0
    %3019 = vmatpush1.msra.mxu0 %v2132
    %3020 = vmatprep.subr.mxu0 0.0
    %3021 = vmatpush1.msra.mxu0 %v2133
    %3022 = vmatprep.subr.mxu0 0.0
    %3023 = vmatpush1.msra.mxu0 %v2134
    %3024 = vmatprep.subr.mxu0 0.0
    %3025 = vmatpush1.msra.mxu0 0.0
    %3026 = vmatprep.subr.mxu0 0.0
    %3027 = vmatpush1.msra.mxu0 0.0
    %3028 = vmatprep.subr.mxu0 0.0
    %3029 = vmatpush1.msra.mxu0 0.0
    %3030 = vmatprep.subr.mxu0 0.0
    %3031 = vmatpush1.msra.mxu0 0.0
    %3032 = vmatprep.subr.mxu0 0.0
    %3033 = vmatpush1.msra.mxu0 0.0
    %3034 = vmatprep.subr.mxu0 0.0
    %3035 = vmatpush1.msra.mxu0 0.0
    %3036 = vmatprep.subr.mxu0 0.0
    %3037 = vmatpush1.msra.mxu0 0.0
    %3038 = vmatprep.subr.mxu0 0.0
    %3039 = vmatpush1.msra.mxu0 0.0
    %3040 = vmatprep.subr.mxu0 0.0
    %3041 = vmatpush1.msra.mxu0 0.0
    %3042 = vmatprep.subr.mxu0 0.0
    %3043 = vmatpush1.msra.mxu0 0.0
    %3044 = vmatprep.subr.mxu0 0.0
    %3045 = vmatpush1.msra.mxu0 0.0
    %3046 = vmatprep.subr.mxu0 0.0
    %3047 = vmatpush1.msra.mxu0 0.0
    %3048 = vmatprep.subr.mxu0 0.0
    %3049 = vmatpush1.msra.mxu0 0.0
    %3050 = vmatprep.subr.mxu0 0.0
    %3051 = vmatpush1.msra.mxu0 0.0
    %3052 = vmatprep.subr.mxu0 0.0
    %3053 = vmatpush1.msra.mxu0 0.0
    %3054 = vmatprep.subr.mxu0 0.0
    %3055 = vmatpush1.msra.mxu0 0.0
    %3056 = vmatprep.subr.mxu0 0.0
    %3057 = vmatpush1.msra.mxu0 0.0
    %3058 = vmatprep.subr.mxu0 0.0
    %3059 = vmatpush1.msra.mxu0 0.0
    %3060 = vmatprep.subr.mxu0 0.0
    %3061 = vmatpush1.msra.mxu0 0.0
    %3062 = vmatprep.subr.mxu0 0.0
    %3063 = vmatpush1.msra.mxu0 0.0
    %3064 = vmatprep.subr.mxu0 0.0
    %3065 = vmatpush1.msra.mxu0 0.0
    %3066 = vmatprep.subr.mxu0 0.0
    %3067 = vmatpush1.msra.mxu0 0.0
    %3068 = vmatprep.subr.mxu0 0.0
    %3069 = vmatpush1.msra.mxu0 0.0
    %3070 = vmatprep.subr.mxu0 0.0
    %3071 = vmatpush1.msra.mxu0 0.0
    %3072 = vmatprep.subr.mxu0 0.0
    %3073 = vmatpush1.msra.mxu0 0.0
    %3074 = vmatprep.subr.mxu0 0.0
    %3075 = vmatpush1.msra.mxu0 0.0
    %3076 = vmatprep.subr.mxu0 0.0
    %3077 = vmatpush1.msra.mxu0 0.0
    %3078 = vmatprep.subr.mxu0 0.0
    %3079 = vmatpush1.msra.mxu0 0.0
    %3080 = vmatprep.mubr.f32.mxu0 0.0
    %3081 = vmatmul.mubr.f32.gmra.mrb[0].mxu0 %v3014
    %v3082 = vpop.f32.mrb[0].mxu0
    %v3083 = vadd.f32 0.0, %v3082
    %v3084 = vpop.f32.mrb[0].mxu0
    %3085 = vdwg.mxu0
    %v3086 = vadd.f32 %v3010, %v3083
    %v3087 = vld [vmem:[#allocation2 + $0x8] sm:$0xc0]
    %3088 = vrot.lane.b32.xlu0 %v2999, 32
    %v3089 = vpop.permute.xlu0 %3088
    %v3090 = vsel %vm246, %v3089, 0
    %3092 = vmatprep.subr.mxu0 0.0
    %3093 = vmatpush1.msra.mxu0 %v2135
    %3094 = vmatprep.subr.mxu0 0.0
    %3095 = vmatpush1.msra.mxu0 %v2136
    %3096 = vmatprep.subr.mxu0 0.0
    %3097 = vmatpush1.msra.mxu0 %v2137
    %3098 = vmatprep.subr.mxu0 0.0
    %3099 = vmatpush1.msra.mxu0 %v2138
    %3100 = vmatprep.subr.mxu0 0.0
    %3101 = vmatpush1.msra.mxu0 0.0
    %3102 = vmatprep.subr.mxu0 0.0
    %3103 = vmatpush1.msra.mxu0 0.0
    %3104 = vmatprep.subr.mxu0 0.0
    %3105 = vmatpush1.msra.mxu0 0.0
    %3106 = vmatprep.subr.mxu0 0.0
    %3107 = vmatpush1.msra.mxu0 0.0
    %3108 = vmatprep.subr.mxu0 0.0
    %3109 = vmatpush1.msra.mxu0 0.0
    %3110 = vmatprep.subr.mxu0 0.0
    %3111 = vmatpush1.msra.mxu0 0.0
    %3112 = vmatprep.subr.mxu0 0.0
    %3113 = vmatpush1.msra.mxu0 0.0
    %3114 = vmatprep.subr.mxu0 0.0
    %3115 = vmatpush1.msra.mxu0 0.0
    %3116 = vmatprep.subr.mxu0 0.0
    %3117 = vmatpush1.msra.mxu0 0.0
    %3118 = vmatprep.subr.mxu0 0.0
    %3119 = vmatpush1.msra.mxu0 0.0
    %3120 = vmatprep.subr.mxu0 0.0
    %3121 = vmatpush1.msra.mxu0 0.0
    %3122 = vmatprep.subr.mxu0 0.0
    %3123 = vmatpush1.msra.mxu0 0.0
    %3124 = vmatprep.subr.mxu0 0.0
    %3125 = vmatpush1.msra.mxu0 0.0
    %3126 = vmatprep.subr.mxu0 0.0
    %3127 = vmatpush1.msra.mxu0 0.0
    %3128 = vmatprep.subr.mxu0 0.0
    %3129 = vmatpush1.msra.mxu0 0.0
    %3130 = vmatprep.subr.mxu0 0.0
    %3131 = vmatpush1.msra.mxu0 0.0
    %3132 = vmatprep.subr.mxu0 0.0
    %3133 = vmatpush1.msra.mxu0 0.0
    %3134 = vmatprep.subr.mxu0 0.0
    %3135 = vmatpush1.msra.mxu0 0.0
    %3136 = vmatprep.subr.mxu0 0.0
    %3137 = vmatpush1.msra.mxu0 0.0
    %3138 = vmatprep.subr.mxu0 0.0
    %3139 = vmatpush1.msra.mxu0 0.0
    %3140 = vmatprep.subr.mxu0 0.0
    %3141 = vmatpush1.msra.mxu0 0.0
    %3142 = vmatprep.subr.mxu0 0.0
    %3143 = vmatpush1.msra.mxu0 0.0
    %3144 = vmatprep.subr.mxu0 0.0
    %3145 = vmatpush1.msra.mxu0 0.0
    %3146 = vmatprep.subr.mxu0 0.0
    %3147 = vmatpush1.msra.mxu0 0.0
    %3148 = vmatprep.subr.mxu0 0.0
    %3149 = vmatpush1.msra.mxu0 0.0
    %3150 = vmatprep.subr.mxu0 0.0
    %3151 = vmatpush1.msra.mxu0 0.0
    %3152 = vmatprep.subr.mxu0 0.0
    %3153 = vmatpush1.msra.mxu0 0.0
    %3154 = vmatprep.subr.mxu0 0.0
    %3155 = vmatpush1.msra.mxu0 0.0
    %3156 = vmatprep.mubr.f32.mxu0 0.0
    %3157 = vmatmul.mubr.f32.gmra.mrb[0].mxu0 %v3090
    %v3158 = vpop.f32.mrb[0].mxu0
    %v3159 = vadd.f32 0.0, %v3158
    %v3160 = vpop.f32.mrb[0].mxu0
    %3161 = vdwg.mxu0
    %v3163 = vrot.slane %v3159, 2
    %v3165 = vadd.f32 %v3087, %v3163
    %v3166 = vxor.u32 %v3086, 2147483648
    %v3167 = vmul.f32 %v3166, 1.442695
    %v3168 = vpow.pop %v3167
    %v3169 = vadd.f32 %v3168, 1.0
    %v3170 = vrcp.pop %v3169
    %v3171 = vmul.f32 1.0, %v3170
    %v3172 = vtanh.pop %v3086
    %v3174 = vrot.slane %v2966, 6
    %v3176 = vmul.f32 %v3171, %v3174
    %3178 = vrot.lane.b32.xlu0 %v3172, 64
    %v3179 = vpop.permute.xlu0 %3178
    %v3181 = vmul.f32 %v3171, %v3179
    %3183 = vrot.lane.b32.xlu0 %v3181, 32
    %v3184 = vpop.permute.xlu0 %3183
    %v3186 = vadd.f32 %v3176, %v3184
    %v3187 = vtanh.pop %v3186
    %3189 = vrot.lane.b32.xlu0 %v3187, 64
    %v3190 = vpop.permute.xlu0 %3189
    %v3192 = vmul.f32 %v3171, %v3190
    %v3193 = vxor.u32 %v3165, 2147483648
    %v3194 = vmul.f32 %v3193, 1.442695
    %v3195 = vpow.pop %v3194
    %v3196 = vadd.f32 %v3195, 1.0
    %v3197 = vrcp.pop %v3196
    %v3198 = vmul.f32 1.0, %v3197
    %v3199 = vtanh.pop %v3165
    %v3201 = vrot.slane %v2993, 2
    %v3203 = vmul.f32 %v3198, %v3201
    %3205 = vrot.lane.b32.xlu0 %v3199, 64
    %v3206 = vpop.permute.xlu0 %3205
    %v3208 = vmul.f32 %v3198, %v3206
    %3210 = vrot.lane.b32.xlu0 %v3208, 32
    %v3211 = vpop.permute.xlu0 %3210
    %v3213 = vadd.f32 %v3203, %v3211
    %v3214 = vtanh.pop %v3213
    %3216 = vrot.lane.b32.xlu0 %v3214, 64
    %v3217 = vpop.permute.xlu0 %3216
    %v3219 = vmul.f32 %v3198, %v3217
    %3221 = vrot.lane.b32.xlu0 %v3192, 32
    %v3222 = vpop.permute.xlu0 %3221
    %3224 = vst.msk [vmem:[#allocation4 + $0x8] sm:$0x3] %vm448, %v3222
    %3226 = vrot.lane.b32.xlu0 %v3219, 64
    %v3227 = vpop.permute.xlu0 %3226
    %3229 = vst.msk [vmem:[#allocation4] sm:$0xc0] %vm454, %v3227
    %v3230 = vld [vmem:[#allocation2 + $0x10] sm:$0xc]
    %v3231 = vsel %vm246, %v3222, 0
    %3233 = vmatprep.subr.mxu0 0.0
    %3234 = vmatpush1.msra.mxu0 %v2131
    %3235 = vmatprep.subr.mxu0 0.0
    %3236 = vmatpush1.msra.mxu0 %v2132
    %3237 = vmatprep.subr.mxu0 0.0
    %3238 = vmatpush1.msra.mxu0 %v2133
    %3239 = vmatprep.subr.mxu0 0.0
    %3240 = vmatpush1.msra.mxu0 %v2134
    %3241 = vmatprep.subr.mxu0 0.0
    %3242 = vmatpush1.msra.mxu0 0.0
    %3243 = vmatprep.subr.mxu0 0.0
    %3244 = vmatpush1.msra.mxu0 0.0
    %3245 = vmatprep.subr.mxu0 0.0
    %3246 = vmatpush1.msra.mxu0 0.0
    %3247 = vmatprep.subr.mxu0 0.0
    %3248 = vmatpush1.msra.mxu0 0.0
    %3249 = vmatprep.subr.mxu0 0.0
    %3250 = vmatpush1.msra.mxu0 0.0
    %3251 = vmatprep.subr.mxu0 0.0
    %3252 = vmatpush1.msra.mxu0 0.0
    %3253 = vmatprep.subr.mxu0 0.0
    %3254 = vmatpush1.msra.mxu0 0.0
    %3255 = vmatprep.subr.mxu0 0.0
    %3256 = vmatpush1.msra.mxu0 0.0
    %3257 = vmatprep.subr.mxu0 0.0
    %3258 = vmatpush1.msra.mxu0 0.0
    %3259 = vmatprep.subr.mxu0 0.0
    %3260 = vmatpush1.msra.mxu0 0.0
    %3261 = vmatprep.subr.mxu0 0.0
    %3262 = vmatpush1.msra.mxu0 0.0
    %3263 = vmatprep.subr.mxu0 0.0
    %3264 = vmatpush1.msra.mxu0 0.0
    %3265 = vmatprep.subr.mxu0 0.0
    %3266 = vmatpush1.msra.mxu0 0.0
    %3267 = vmatprep.subr.mxu0 0.0
    %3268 = vmatpush1.msra.mxu0 0.0
    %3269 = vmatprep.subr.mxu0 0.0
    %3270 = vmatpush1.msra.mxu0 0.0
    %3271 = vmatprep.subr.mxu0 0.0
    %3272 = vmatpush1.msra.mxu0 0.0
    %3273 = vmatprep.subr.mxu0 0.0
    %3274 = vmatpush1.msra.mxu0 0.0
    %3275 = vmatprep.subr.mxu0 0.0
    %3276 = vmatpush1.msra.mxu0 0.0
    %3277 = vmatprep.subr.mxu0 0.0
    %3278 = vmatpush1.msra.mxu0 0.0
    %3279 = vmatprep.subr.mxu0 0.0
    %3280 = vmatpush1.msra.mxu0 0.0
    %3281 = vmatprep.subr.mxu0 0.0
    %3282 = vmatpush1.msra.mxu0 0.0
    %3283 = vmatprep.subr.mxu0 0.0
    %3284 = vmatpush1.msra.mxu0 0.0
    %3285 = vmatprep.subr.mxu0 0.0
    %3286 = vmatpush1.msra.mxu0 0.0
    %3287 = vmatprep.subr.mxu0 0.0
    %3288 = vmatpush1.msra.mxu0 0.0
    %3289 = vmatprep.subr.mxu0 0.0
    %3290 = vmatpush1.msra.mxu0 0.0
    %3291 = vmatprep.subr.mxu0 0.0
    %3292 = vmatpush1.msra.mxu0 0.0
    %3293 = vmatprep.subr.mxu0 0.0
    %3294 = vmatpush1.msra.mxu0 0.0
    %3295 = vmatprep.subr.mxu0 0.0
    %3296 = vmatpush1.msra.mxu0 0.0
    %3297 = vmatprep.mubr.f32.mxu0 0.0
    %3298 = vmatmul.mubr.f32.gmra.mrb[0].mxu0 %v3231
    %v3299 = vpop.f32.mrb[0].mxu0
    %v3300 = vadd.f32 0.0, %v3299
    %v3301 = vpop.f32.mrb[0].mxu0
    %3302 = vdwg.mxu0
    %v3304 = vrot.slane %v3300, 6
    %v3306 = vadd.f32 %v3230, %v3304
    %v3307 = vld [vmem:[#allocation2 + $0x8] sm:$0x30]
    %v3308 = vrot.slane %v3219, 6
    %3309 = vrot.lane.b32.xlu0 %v3308, 32
    %v3310 = vpop.permute.xlu0 %3309
    %v3311 = vsel %vm246, %v3310, 0
    %3313 = vmatprep.subr.mxu0 0.0
    %3314 = vmatpush1.msra.mxu0 %v2135
    %3315 = vmatprep.subr.mxu0 0.0
    %3316 = vmatpush1.msra.mxu0 %v2136
    %3317 = vmatprep.subr.mxu0 0.0
    %3318 = vmatpush1.msra.mxu0 %v2137
    %3319 = vmatprep.subr.mxu0 0.0
    %3320 = vmatpush1.msra.mxu0 %v2138
    %3321 = vmatprep.subr.mxu0 0.0
    %3322 = vmatpush1.msra.mxu0 0.0
    %3323 = vmatprep.subr.mxu0 0.0
    %3324 = vmatpush1.msra.mxu0 0.0
    %3325 = vmatprep.subr.mxu0 0.0
    %3326 = vmatpush1.msra.mxu0 0.0
    %3327 = vmatprep.subr.mxu0 0.0
    %3328 = vmatpush1.msra.mxu0 0.0
    %3329 = vmatprep.subr.mxu0 0.0
    %3330 = vmatpush1.msra.mxu0 0.0
    %3331 = vmatprep.subr.mxu0 0.0
    %3332 = vmatpush1.msra.mxu0 0.0
    %3333 = vmatprep.subr.mxu0 0.0
    %3334 = vmatpush1.msra.mxu0 0.0
    %3335 = vmatprep.subr.mxu0 0.0
    %3336 = vmatpush1.msra.mxu0 0.0
    %3337 = vmatprep.subr.mxu0 0.0
    %3338 = vmatpush1.msra.mxu0 0.0
    %3339 = vmatprep.subr.mxu0 0.0
    %3340 = vmatpush1.msra.mxu0 0.0
    %3341 = vmatprep.subr.mxu0 0.0
    %3342 = vmatpush1.msra.mxu0 0.0
    %3343 = vmatprep.subr.mxu0 0.0
    %3344 = vmatpush1.msra.mxu0 0.0
    %3345 = vmatprep.subr.mxu0 0.0
    %3346 = vmatpush1.msra.mxu0 0.0
    %3347 = vmatprep.subr.mxu0 0.0
    %3348 = vmatpush1.msra.mxu0 0.0
    %3349 = vmatprep.subr.mxu0 0.0
    %3350 = vmatpush1.msra.mxu0 0.0
    %3351 = vmatprep.subr.mxu0 0.0
    %3352 = vmatpush1.msra.mxu0 0.0
    %3353 = vmatprep.subr.mxu0 0.0
    %3354 = vmatpush1.msra.mxu0 0.0
    %3355 = vmatprep.subr.mxu0 0.0
    %3356 = vmatpush1.msra.mxu0 0.0
    %3357 = vmatprep.subr.mxu0 0.0
    %3358 = vmatpush1.msra.mxu0 0.0
    %3359 = vmatprep.subr.mxu0 0.0
    %3360 = vmatpush1.msra.mxu0 0.0
    %3361 = vmatprep.subr.mxu0 0.0
    %3362 = vmatpush1.msra.mxu0 0.0
    %3363 = vmatprep.subr.mxu0 0.0
    %3364 = vmatpush1.msra.mxu0 0.0
    %3365 = vmatprep.subr.mxu0 0.0
    %3366 = vmatpush1.msra.mxu0 0.0
    %3367 = vmatprep.subr.mxu0 0.0
    %3368 = vmatpush1.msra.mxu0 0.0
    %3369 = vmatprep.subr.mxu0 0.0
    %3370 = vmatpush1.msra.mxu0 0.0
    %3371 = vmatprep.subr.mxu0 0.0
    %3372 = vmatpush1.msra.mxu0 0.0
    %3373 = vmatprep.subr.mxu0 0.0
    %3374 = vmatpush1.msra.mxu0 0.0
    %3375 = vmatprep.subr.mxu0 0.0
    %3376 = vmatpush1.msra.mxu0 0.0
    %3377 = vmatprep.mubr.f32.mxu0 0.0
    %3378 = vmatmul.mubr.f32.gmra.mrb[0].mxu0 %v3311
    %v3379 = vpop.f32.mrb[0].mxu0
    %v3380 = vadd.f32 0.0, %v3379
    %v3381 = vpop.f32.mrb[0].mxu0
    %3382 = vdwg.mxu0
    %v3384 = vrot.slane %v3380, 4
    %v3386 = vadd.f32 %v3307, %v3384
    %v3387 = vxor.u32 %v3306, 2147483648
    %v3388 = vmul.f32 %v3387, 1.442695
    %v3389 = vpow.pop %v3388
    %v3390 = vadd.f32 %v3389, 1.0
    %v3391 = vrcp.pop %v3390
    %v3392 = vmul.f32 1.0, %v3391
    %v3393 = vtanh.pop %v3306
    %v3395 = vrot.slane %v3186, 6
    %v3397 = vmul.f32 %v3392, %v3395
    %3399 = vrot.lane.b32.xlu0 %v3393, 64
    %v3400 = vpop.permute.xlu0 %3399
    %v3402 = vmul.f32 %v3392, %v3400
    %3404 = vrot.lane.b32.xlu0 %v3402, 32
    %v3405 = vpop.permute.xlu0 %3404
    %v3407 = vadd.f32 %v3397, %v3405
    %v3408 = vtanh.pop %v3407
    %3410 = vrot.lane.b32.xlu0 %v3408, 64
    %v3411 = vpop.permute.xlu0 %3410
    %v3413 = vmul.f32 %v3392, %v3411
    %v3414 = vxor.u32 %v3386, 2147483648
    %v3415 = vmul.f32 %v3414, 1.442695
    %v3416 = vpow.pop %v3415
    %v3417 = vadd.f32 %v3416, 1.0
    %v3418 = vrcp.pop %v3417
    %v3419 = vmul.f32 1.0, %v3418
    %v3420 = vtanh.pop %v3386
    %v3422 = vrot.slane %v3213, 2
    %v3424 = vmul.f32 %v3419, %v3422
    %3426 = vrot.lane.b32.xlu0 %v3420, 64
    %v3427 = vpop.permute.xlu0 %3426
    %v3429 = vmul.f32 %v3419, %v3427
    %3431 = vrot.lane.b32.xlu0 %v3429, 32
    %v3432 = vpop.permute.xlu0 %3431
    %v3434 = vadd.f32 %v3424, %v3432
    %v3435 = vtanh.pop %v3434
    %3437 = vrot.lane.b32.xlu0 %v3435, 64
    %v3438 = vpop.permute.xlu0 %3437
    %v3440 = vmul.f32 %v3419, %v3438
    %3442 = vrot.lane.b32.xlu0 %v3413, 32
    %v3443 = vpop.permute.xlu0 %3442
    %3445 = vst.msk [vmem:[#allocation4 + $0x8] sm:$0xc] %vm671, %v3443
    %3447 = vrot.lane.b32.xlu0 %v3440, 64
    %v3448 = vpop.permute.xlu0 %3447
    %3450 = vst.msk [vmem:[#allocation4] sm:$0x30] %vm677, %v3448
    %v3451 = vld [vmem:[#allocation2 + $0x10] sm:$0x30]
    %v3452 = vrot.slane %v3413, 2
    %3453 = vrot.lane.b32.xlu0 %v3452, 32
    %v3454 = vpop.permute.xlu0 %3453
    %v3455 = vsel %vm246, %v3454, 0
    %3457 = vmatprep.subr.mxu0 0.0
    %3458 = vmatpush1.msra.mxu0 %v2131
    %3459 = vmatprep.subr.mxu0 0.0
    %3460 = vmatpush1.msra.mxu0 %v2132
    %3461 = vmatprep.subr.mxu0 0.0
    %3462 = vmatpush1.msra.mxu0 %v2133
    %3463 = vmatprep.subr.mxu0 0.0
    %3464 = vmatpush1.msra.mxu0 %v2134
    %3465 = vmatprep.subr.mxu0 0.0
    %3466 = vmatpush1.msra.mxu0 0.0
    %3467 = vmatprep.subr.mxu0 0.0
    %3468 = vmatpush1.msra.mxu0 0.0
    %3469 = vmatprep.subr.mxu0 0.0
    %3470 = vmatpush1.msra.mxu0 0.0
    %3471 = vmatprep.subr.mxu0 0.0
    %3472 = vmatpush1.msra.mxu0 0.0
    %3473 = vmatprep.subr.mxu0 0.0
    %3474 = vmatpush1.msra.mxu0 0.0
    %3475 = vmatprep.subr.mxu0 0.0
    %3476 = vmatpush1.msra.mxu0 0.0
    %3477 = vmatprep.subr.mxu0 0.0
    %3478 = vmatpush1.msra.mxu0 0.0
    %3479 = vmatprep.subr.mxu0 0.0
    %3480 = vmatpush1.msra.mxu0 0.0
    %3481 = vmatprep.subr.mxu0 0.0
    %3482 = vmatpush1.msra.mxu0 0.0
    %3483 = vmatprep.subr.mxu0 0.0
    %3484 = vmatpush1.msra.mxu0 0.0
    %3485 = vmatprep.subr.mxu0 0.0
    %3486 = vmatpush1.msra.mxu0 0.0
    %3487 = vmatprep.subr.mxu0 0.0
    %3488 = vmatpush1.msra.mxu0 0.0
    %3489 = vmatprep.subr.mxu0 0.0
    %3490 = vmatpush1.msra.mxu0 0.0
    %3491 = vmatprep.subr.mxu0 0.0
    %3492 = vmatpush1.msra.mxu0 0.0
    %3493 = vmatprep.subr.mxu0 0.0
    %3494 = vmatpush1.msra.mxu0 0.0
    %3495 = vmatprep.subr.mxu0 0.0
    %3496 = vmatpush1.msra.mxu0 0.0
    %3497 = vmatprep.subr.mxu0 0.0
    %3498 = vmatpush1.msra.mxu0 0.0
    %3499 = vmatprep.subr.mxu0 0.0
    %3500 = vmatpush1.msra.mxu0 0.0
    %3501 = vmatprep.subr.mxu0 0.0
    %3502 = vmatpush1.msra.mxu0 0.0
    %3503 = vmatprep.subr.mxu0 0.0
    %3504 = vmatpush1.msra.mxu0 0.0
    %3505 = vmatprep.subr.mxu0 0.0
    %3506 = vmatpush1.msra.mxu0 0.0
    %3507 = vmatprep.subr.mxu0 0.0
    %3508 = vmatpush1.msra.mxu0 0.0
    %3509 = vmatprep.subr.mxu0 0.0
    %3510 = vmatpush1.msra.mxu0 0.0
    %3511 = vmatprep.subr.mxu0 0.0
    %3512 = vmatpush1.msra.mxu0 0.0
    %3513 = vmatprep.subr.mxu0 0.0
    %3514 = vmatpush1.msra.mxu0 0.0
    %3515 = vmatprep.subr.mxu0 0.0
    %3516 = vmatpush1.msra.mxu0 0.0
    %3517 = vmatprep.subr.mxu0 0.0
    %3518 = vmatpush1.msra.mxu0 0.0
    %3519 = vmatprep.subr.mxu0 0.0
    %3520 = vmatpush1.msra.mxu0 0.0
    %3521 = vmatprep.mubr.f32.mxu0 0.0
    %3522 = vmatmul.mubr.f32.gmra.mrb[0].mxu0 %v3455
    %v3523 = vpop.f32.mrb[0].mxu0
    %v3524 = vadd.f32 0.0, %v3523
    %v3525 = vpop.f32.mrb[0].mxu0
    %3526 = vdwg.mxu0
    %v3528 = vrot.slane %v3524, 4
    %v3530 = vadd.f32 %v3451, %v3528
    %v3531 = vld [vmem:[#allocation2 + $0x8] sm:$0xc]
    %v3532 = vrot.slane %v3440, 4
    %3533 = vrot.lane.b32.xlu0 %v3532, 32
    %v3534 = vpop.permute.xlu0 %3533
    %v3535 = vsel %vm246, %v3534, 0
    %3537 = vmatprep.subr.mxu0 0.0
    %3538 = vmatpush1.msra.mxu0 %v2135
    %3539 = vmatprep.subr.mxu0 0.0
    %3540 = vmatpush1.msra.mxu0 %v2136
    %3541 = vmatprep.subr.mxu0 0.0
    %3542 = vmatpush1.msra.mxu0 %v2137
    %3543 = vmatprep.subr.mxu0 0.0
    %3544 = vmatpush1.msra.mxu0 %v2138
    %3545 = vmatprep.subr.mxu0 0.0
    %3546 = vmatpush1.msra.mxu0 0.0
    %3547 = vmatprep.subr.mxu0 0.0
    %3548 = vmatpush1.msra.mxu0 0.0
    %3549 = vmatprep.subr.mxu0 0.0
    %3550 = vmatpush1.msra.mxu0 0.0
    %3551 = vmatprep.subr.mxu0 0.0
    %3552 = vmatpush1.msra.mxu0 0.0
    %3553 = vmatprep.subr.mxu0 0.0
    %3554 = vmatpush1.msra.mxu0 0.0
    %3555 = vmatprep.subr.mxu0 0.0
    %3556 = vmatpush1.msra.mxu0 0.0
    %3557 = vmatprep.subr.mxu0 0.0
    %3558 = vmatpush1.msra.mxu0 0.0
    %3559 = vmatprep.subr.mxu0 0.0
    %3560 = vmatpush1.msra.mxu0 0.0
    %3561 = vmatprep.subr.mxu0 0.0
    %3562 = vmatpush1.msra.mxu0 0.0
    %3563 = vmatprep.subr.mxu0 0.0
    %3564 = vmatpush1.msra.mxu0 0.0
    %3565 = vmatprep.subr.mxu0 0.0
    %3566 = vmatpush1.msra.mxu0 0.0
    %3567 = vmatprep.subr.mxu0 0.0
    %3568 = vmatpush1.msra.mxu0 0.0
    %3569 = vmatprep.subr.mxu0 0.0
    %3570 = vmatpush1.msra.mxu0 0.0
    %3571 = vmatprep.subr.mxu0 0.0
    %3572 = vmatpush1.msra.mxu0 0.0
    %3573 = vmatprep.subr.mxu0 0.0
    %3574 = vmatpush1.msra.mxu0 0.0
    %3575 = vmatprep.subr.mxu0 0.0
    %3576 = vmatpush1.msra.mxu0 0.0
    %3577 = vmatprep.subr.mxu0 0.0
    %3578 = vmatpush1.msra.mxu0 0.0
    %3579 = vmatprep.subr.mxu0 0.0
    %3580 = vmatpush1.msra.mxu0 0.0
    %3581 = vmatprep.subr.mxu0 0.0
    %3582 = vmatpush1.msra.mxu0 0.0
    %3583 = vmatprep.subr.mxu0 0.0
    %3584 = vmatpush1.msra.mxu0 0.0
    %3585 = vmatprep.subr.mxu0 0.0
    %3586 = vmatpush1.msra.mxu0 0.0
    %3587 = vmatprep.subr.mxu0 0.0
    %3588 = vmatpush1.msra.mxu0 0.0
    %3589 = vmatprep.subr.mxu0 0.0
    %3590 = vmatpush1.msra.mxu0 0.0
    %3591 = vmatprep.subr.mxu0 0.0
    %3592 = vmatpush1.msra.mxu0 0.0
    %3593 = vmatprep.subr.mxu0 0.0
    %3594 = vmatpush1.msra.mxu0 0.0
    %3595 = vmatprep.subr.mxu0 0.0
    %3596 = vmatpush1.msra.mxu0 0.0
    %3597 = vmatprep.subr.mxu0 0.0
    %3598 = vmatpush1.msra.mxu0 0.0
    %3599 = vmatprep.subr.mxu0 0.0
    %3600 = vmatpush1.msra.mxu0 0.0
    %3601 = vmatprep.mubr.f32.mxu0 0.0
    %3602 = vmatmul.mubr.f32.gmra.mrb[0].mxu0 %v3535
    %v3603 = vpop.f32.mrb[0].mxu0
    %v3604 = vadd.f32 0.0, %v3603
    %v3605 = vpop.f32.mrb[0].mxu0
    %3606 = vdwg.mxu0
    %v3608 = vrot.slane %v3604, 6
    %v3610 = vadd.f32 %v3531, %v3608
    %v3611 = vxor.u32 %v3530, 2147483648
    %v3612 = vmul.f32 %v3611, 1.442695
    %v3613 = vpow.pop %v3612
    %v3614 = vadd.f32 %v3613, 1.0
    %v3615 = vrcp.pop %v3614
    %v3616 = vmul.f32 1.0, %v3615
    %v3617 = vtanh.pop %v3530
    %v3619 = vrot.slane %v3407, 6
    %v3621 = vmul.f32 %v3616, %v3619
    %3623 = vrot.lane.b32.xlu0 %v3617, 64
    %v3624 = vpop.permute.xlu0 %3623
    %v3626 = vmul.f32 %v3616, %v3624
    %3628 = vrot.lane.b32.xlu0 %v3626, 32
    %v3629 = vpop.permute.xlu0 %3628
    %v3631 = vadd.f32 %v3621, %v3629
    %v3632 = vtanh.pop %v3631
    %3634 = vrot.lane.b32.xlu0 %v3632, 64
    %v3635 = vpop.permute.xlu0 %3634
    %v3637 = vmul.f32 %v3616, %v3635
    %v3638 = vxor.u32 %v3610, 2147483648
    %v3639 = vmul.f32 %v3638, 1.442695
    %v3640 = vpow.pop %v3639
    %v3641 = vadd.f32 %v3640, 1.0
    %v3642 = vrcp.pop %v3641
    %v3643 = vmul.f32 1.0, %v3642
    %v3644 = vtanh.pop %v3610
    %v3646 = vrot.slane %v3434, 2
    %v3648 = vmul.f32 %v3643, %v3646
    %3650 = vrot.lane.b32.xlu0 %v3644, 64
    %v3651 = vpop.permute.xlu0 %3650
    %v3653 = vmul.f32 %v3643, %v3651
    %3655 = vrot.lane.b32.xlu0 %v3653, 32
    %v3656 = vpop.permute.xlu0 %3655
    %v3658 = vadd.f32 %v3648, %v3656
    %v3659 = vtanh.pop %v3658
    %3661 = vrot.lane.b32.xlu0 %v3659, 64
    %v3662 = vpop.permute.xlu0 %3661
    %v3664 = vmul.f32 %v3643, %v3662
    %3666 = vrot.lane.b32.xlu0 %v3637, 32
    %v3667 = vpop.permute.xlu0 %3666
    %3669 = vst.msk [vmem:[#allocation4 + $0x8] sm:$0x30] %vm897, %v3667
    %3671 = vrot.lane.b32.xlu0 %v3664, 64
    %v3672 = vpop.permute.xlu0 %3671
    %3674 = vst.msk [vmem:[#allocation4] sm:$0xc] %vm903, %v3672
    %v3675 = vld [vmem:[#allocation2 + $0x10] sm:$0xc0]
    %v3676 = vrot.slane %v3637, 4
    %3677 = vrot.lane.b32.xlu0 %v3676, 32
    %v3678 = vpop.permute.xlu0 %3677
    %v3679 = vsel %vm246, %v3678, 0
    %3681 = vmatprep.subr.mxu0 0.0
    %3682 = vmatpush1.msra.mxu0 %v2131
    %3683 = vmatprep.subr.mxu0 0.0
    %3684 = vmatpush1.msra.mxu0 %v2132
    %3685 = vmatprep.subr.mxu0 0.0
    %3686 = vmatpush1.msra.mxu0 %v2133
    %3687 = vmatprep.subr.mxu0 0.0
    %3688 = vmatpush1.msra.mxu0 %v2134
    %3689 = vmatprep.subr.mxu0 0.0
    %3690 = vmatpush1.msra.mxu0 0.0
    %3691 = vmatprep.subr.mxu0 0.0
    %3692 = vmatpush1.msra.mxu0 0.0
    %3693 = vmatprep.subr.mxu0 0.0
    %3694 = vmatpush1.msra.mxu0 0.0
    %3695 = vmatprep.subr.mxu0 0.0
    %3696 = vmatpush1.msra.mxu0 0.0
    %3697 = vmatprep.subr.mxu0 0.0
    %3698 = vmatpush1.msra.mxu0 0.0
    %3699 = vmatprep.subr.mxu0 0.0
    %3700 = vmatpush1.msra.mxu0 0.0
    %3701 = vmatprep.subr.mxu0 0.0
    %3702 = vmatpush1.msra.mxu0 0.0
    %3703 = vmatprep.subr.mxu0 0.0
    %3704 = vmatpush1.msra.mxu0 0.0
    %3705 = vmatprep.subr.mxu0 0.0
    %3706 = vmatpush1.msra.mxu0 0.0
    %3707 = vmatprep.subr.mxu0 0.0
    %3708 = vmatpush1.msra.mxu0 0.0
    %3709 = vmatprep.subr.mxu0 0.0
    %3710 = vmatpush1.msra.mxu0 0.0
    %3711 = vmatprep.subr.mxu0 0.0
    %3712 = vmatpush1.msra.mxu0 0.0
    %3713 = vmatprep.subr.mxu0 0.0
    %3714 = vmatpush1.msra.mxu0 0.0
    %3715 = vmatprep.subr.mxu0 0.0
    %3716 = vmatpush1.msra.mxu0 0.0
    %3717 = vmatprep.subr.mxu0 0.0
    %3718 = vmatpush1.msra.mxu0 0.0
    %3719 = vmatprep.subr.mxu0 0.0
    %3720 = vmatpush1.msra.mxu0 0.0
    %3721 = vmatprep.subr.mxu0 0.0
    %3722 = vmatpush1.msra.mxu0 0.0
    %3723 = vmatprep.subr.mxu0 0.0
    %3724 = vmatpush1.msra.mxu0 0.0
    %3725 = vmatprep.subr.mxu0 0.0
    %3726 = vmatpush1.msra.mxu0 0.0
    %3727 = vmatprep.subr.mxu0 0.0
    %3728 = vmatpush1.msra.mxu0 0.0
    %3729 = vmatprep.subr.mxu0 0.0
    %3730 = vmatpush1.msra.mxu0 0.0
    %3731 = vmatprep.subr.mxu0 0.0
    %3732 = vmatpush1.msra.mxu0 0.0
    %3733 = vmatprep.subr.mxu0 0.0
    %3734 = vmatpush1.msra.mxu0 0.0
    %3735 = vmatprep.subr.mxu0 0.0
    %3736 = vmatpush1.msra.mxu0 0.0
    %3737 = vmatprep.subr.mxu0 0.0
    %3738 = vmatpush1.msra.mxu0 0.0
    %3739 = vmatprep.subr.mxu0 0.0
    %3740 = vmatpush1.msra.mxu0 0.0
    %3741 = vmatprep.subr.mxu0 0.0
    %3742 = vmatpush1.msra.mxu0 0.0
    %3743 = vmatprep.subr.mxu0 0.0
    %3744 = vmatpush1.msra.mxu0 0.0
    %3745 = vmatprep.mubr.f32.mxu0 0.0
    %3746 = vmatmul.mubr.f32.gmra.mrb[0].mxu0 %v3679
    %v3747 = vpop.f32.mrb[0].mxu0
    %v3748 = vadd.f32 0.0, %v3747
    %v3749 = vpop.f32.mrb[0].mxu0
    %3750 = vdwg.mxu0
    %v3752 = vrot.slane %v3748, 2
    %v3754 = vadd.f32 %v3675, %v3752
    %v3755 = vld [vmem:[#allocation2 + $0x8] sm:$0x3]
    %v3756 = vrot.slane %v3664, 2
    %3757 = vrot.lane.b32.xlu0 %v3756, 32
    %v3758 = vpop.permute.xlu0 %3757
    %v3759 = vsel %vm246, %v3758, 0
    %3761 = vmatprep.subr.mxu0 0.0
    %3762 = vmatpush1.msra.mxu0 %v2135
    %3763 = vmatprep.subr.mxu0 0.0
    %3764 = vmatpush1.msra.mxu0 %v2136
    %3765 = vmatprep.subr.mxu0 0.0
    %3766 = vmatpush1.msra.mxu0 %v2137
    %3767 = vmatprep.subr.mxu0 0.0
    %3768 = vmatpush1.msra.mxu0 %v2138
    %3769 = vmatprep.subr.mxu0 0.0
    %3770 = vmatpush1.msra.mxu0 0.0
    %3771 = vmatprep.subr.mxu0 0.0
    %3772 = vmatpush1.msra.mxu0 0.0
    %3773 = vmatprep.subr.mxu0 0.0
    %3774 = vmatpush1.msra.mxu0 0.0
    %3775 = vmatprep.subr.mxu0 0.0
    %3776 = vmatpush1.msra.mxu0 0.0
    %3777 = vmatprep.subr.mxu0 0.0
    %3778 = vmatpush1.msra.mxu0 0.0
    %3779 = vmatprep.subr.mxu0 0.0
    %3780 = vmatpush1.msra.mxu0 0.0
    %3781 = vmatprep.subr.mxu0 0.0
    %3782 = vmatpush1.msra.mxu0 0.0
    %3783 = vmatprep.subr.mxu0 0.0
    %3784 = vmatpush1.msra.mxu0 0.0
    %3785 = vmatprep.subr.mxu0 0.0
    %3786 = vmatpush1.msra.mxu0 0.0
    %3787 = vmatprep.subr.mxu0 0.0
    %3788 = vmatpush1.msra.mxu0 0.0
    %3789 = vmatprep.subr.mxu0 0.0
    %3790 = vmatpush1.msra.mxu0 0.0
    %3791 = vmatprep.subr.mxu0 0.0
    %3792 = vmatpush1.msra.mxu0 0.0
    %3793 = vmatprep.subr.mxu0 0.0
    %3794 = vmatpush1.msra.mxu0 0.0
    %3795 = vmatprep.subr.mxu0 0.0
    %3796 = vmatpush1.msra.mxu0 0.0
    %3797 = vmatprep.subr.mxu0 0.0
    %3798 = vmatpush1.msra.mxu0 0.0
    %3799 = vmatprep.subr.mxu0 0.0
    %3800 = vmatpush1.msra.mxu0 0.0
    %3801 = vmatprep.subr.mxu0 0.0
    %3802 = vmatpush1.msra.mxu0 0.0
    %3803 = vmatprep.subr.mxu0 0.0
    %3804 = vmatpush1.msra.mxu0 0.0
    %3805 = vmatprep.subr.mxu0 0.0
    %3806 = vmatpush1.msra.mxu0 0.0
    %3807 = vmatprep.subr.mxu0 0.0
    %3808 = vmatpush1.msra.mxu0 0.0
    %3809 = vmatprep.subr.mxu0 0.0
    %3810 = vmatpush1.msra.mxu0 0.0
    %3811 = vmatprep.subr.mxu0 0.0
    %3812 = vmatpush1.msra.mxu0 0.0
    %3813 = vmatprep.subr.mxu0 0.0
    %3814 = vmatpush1.msra.mxu0 0.0
    %3815 = vmatprep.subr.mxu0 0.0
    %3816 = vmatpush1.msra.mxu0 0.0
    %3817 = vmatprep.subr.mxu0 0.0
    %3818 = vmatpush1.msra.mxu0 0.0
    %3819 = vmatprep.subr.mxu0 0.0
    %3820 = vmatpush1.msra.mxu0 0.0
    %3821 = vmatprep.subr.mxu0 0.0
    %3822 = vmatpush1.msra.mxu0 0.0
    %3823 = vmatprep.subr.mxu0 0.0
    %3824 = vmatpush1.msra.mxu0 0.0
    %3825 = vmatprep.mubr.f32.mxu0 0.0
    %3826 = vmatmul.mubr.f32.gmra.mrb[0].mxu0 %v3759
    %v3827 = vpop.f32.mrb[0].mxu0
    %v3828 = vadd.f32 0.0, %v3827
    %v3829 = vpop.f32.mrb[0].mxu0
    %3830 = vdwg.mxu0
    %v3831 = vadd.f32 %v3755, %v3828
    %v3832 = vxor.u32 %v3754, 2147483648
    %v3833 = vmul.f32 %v3832, 1.442695
    %v3834 = vpow.pop %v3833
    %v3835 = vadd.f32 %v3834, 1.0
    %v3836 = vrcp.pop %v3835
    %v3837 = vmul.f32 1.0, %v3836
    %v3838 = vtanh.pop %v3754
    %v3840 = vrot.slane %v3631, 6
    %v3842 = vmul.f32 %v3837, %v3840
    %3844 = vrot.lane.b32.xlu0 %v3838, 64
    %v3845 = vpop.permute.xlu0 %3844
    %v3847 = vmul.f32 %v3837, %v3845
    %3849 = vrot.lane.b32.xlu0 %v3847, 32
    %v3850 = vpop.permute.xlu0 %3849
    %v3852 = vadd.f32 %v3842, %v3850
    %v3853 = vtanh.pop %v3852
    %3855 = vrot.lane.b32.xlu0 %v3853, 64
    %v3856 = vpop.permute.xlu0 %3855
    %v3858 = vmul.f32 %v3837, %v3856
    %v3859 = vxor.u32 %v3831, 2147483648
    %v3860 = vmul.f32 %v3859, 1.442695
    %v3861 = vpow.pop %v3860
    %v3862 = vadd.f32 %v3861, 1.0
    %v3863 = vrcp.pop %v3862
    %v3864 = vmul.f32 1.0, %v3863
    %v3865 = vtanh.pop %v3831
    %v3867 = vrot.slane %v3658, 2
    %v3869 = vmul.f32 %v3864, %v3867
    %3871 = vrot.lane.b32.xlu0 %v3865, 64
    %v3872 = vpop.permute.xlu0 %3871
    %v3874 = vmul.f32 %v3864, %v3872
    %3876 = vrot.lane.b32.xlu0 %v3874, 32
    %v3877 = vpop.permute.xlu0 %3876
    %v3879 = vadd.f32 %v3869, %v3877
    %v3880 = vtanh.pop %v3879
    %3882 = vrot.lane.b32.xlu0 %v3880, 64
    %v3883 = vpop.permute.xlu0 %3882
    %v3885 = vmul.f32 %v3864, %v3883
    %3887 = vrot.lane.b32.xlu0 %v3858, 32
    %v3888 = vpop.permute.xlu0 %3887
    %3890 = vst.msk [vmem:[#allocation4 + $0x8] sm:$0xc0] %vm1120, %v3888
    %3892 = vrot.lane.b32.xlu0 %v3885, 64
    %v3893 = vpop.permute.xlu0 %3892
    %3895 = vst.msk [vmem:[#allocation4] sm:$0x3] %vm1126, %v3893
    %v3896 = vld [vmem:[#allocation4] sm:$0xff]
    %v3897 = vld [vmem:[#allocation4 + $0x8] sm:$0xff]
    %v3898 = vld [vmem:[%s9] sm:$0xff]
    %v3899 = vld [vmem:[%s9 + $0x8] sm:$0xff]
    %v3900 = vld [vmem:[%s9 + $0x10] sm:$0xff]
    %v3901 = vld [vmem:[%s9 + $0x18] sm:$0xff]
    %v3902 = vld [vmem:[%s9 + $0x20] sm:$0xff]
    %v3903 = vld [vmem:[%s9 + $0x28] sm:$0xff]
    %v3904 = vld [vmem:[%s9 + $0x30] sm:$0xff]
    %v3905 = vld [vmem:[%s9 + $0x38] sm:$0xff]
    %v3906 = vld [vmem:[%s10] sm:$0x1]
    %v3908 = vlaneseq
    %v3909 = vshrl.u32 %v3908, 7
    %v3910 = vsub.s32 0, %v3909
    %v3911 = vrot.slane %v3906, %v3910
    %v3914 = vsel %vm149, %v3896, 0
    %v3917 = vsel %vm149, %v3897, 0
    %3919 = vmatprep.subr.mxu0 0.0
    %3920 = vmatpush1.msra.mxu0 %v3898
    %3921 = vmatprep.subr.mxu0 0.0
    %3922 = vmatpush1.msra.mxu0 %v3899
    %3923 = vmatprep.subr.mxu0 0.0
    %3924 = vmatpush1.msra.mxu0 %v3900
    %3925 = vmatprep.subr.mxu0 0.0
    %3926 = vmatpush1.msra.mxu0 %v3901
    %3927 = vmatprep.subr.mxu0 0.0
    %3928 = vmatpush1.msra.mxu0 %v3902
    %3929 = vmatprep.subr.mxu0 0.0
    %3930 = vmatpush1.msra.mxu0 %v3903
    %3931 = vmatprep.subr.mxu0 0.0
    %3932 = vmatpush1.msra.mxu0 %v3904
    %3933 = vmatprep.subr.mxu0 0.0
    %3934 = vmatpush1.msra.mxu0 %v3905
    %3935 = vmatprep.subr.mxu0 0.0
    %3936 = vmatpush1.msra.mxu0 0.0
    %3937 = vmatprep.subr.mxu0 0.0
    %3938 = vmatpush1.msra.mxu0 0.0
    %3939 = vmatprep.subr.mxu0 0.0
    %3940 = vmatpush1.msra.mxu0 0.0
    %3941 = vmatprep.subr.mxu0 0.0
    %3942 = vmatpush1.msra.mxu0 0.0
    %3943 = vmatprep.subr.mxu0 0.0
    %3944 = vmatpush1.msra.mxu0 0.0
    %3945 = vmatprep.subr.mxu0 0.0
    %3946 = vmatpush1.msra.mxu0 0.0
    %3947 = vmatprep.subr.mxu0 0.0
    %3948 = vmatpush1.msra.mxu0 0.0
    %3949 = vmatprep.subr.mxu0 0.0
    %3950 = vmatpush1.msra.mxu0 0.0
    %3951 = vmatprep.subr.mxu0 0.0
    %3952 = vmatpush1.msra.mxu0 0.0
    %3953 = vmatprep.subr.mxu0 0.0
    %3954 = vmatpush1.msra.mxu0 0.0
    %3955 = vmatprep.subr.mxu0 0.0
    %3956 = vmatpush1.msra.mxu0 0.0
    %3957 = vmatprep.subr.mxu0 0.0
    %3958 = vmatpush1.msra.mxu0 0.0
    %3959 = vmatprep.subr.mxu0 0.0
    %3960 = vmatpush1.msra.mxu0 0.0
    %3961 = vmatprep.subr.mxu0 0.0
    %3962 = vmatpush1.msra.mxu0 0.0
    %3963 = vmatprep.subr.mxu0 0.0
    %3964 = vmatpush1.msra.mxu0 0.0
    %3965 = vmatprep.subr.mxu0 0.0
    %3966 = vmatpush1.msra.mxu0 0.0
    %3967 = vmatprep.subr.mxu0 0.0
    %3968 = vmatpush1.msra.mxu0 0.0
    %3969 = vmatprep.subr.mxu0 0.0
    %3970 = vmatpush1.msra.mxu0 0.0
    %3971 = vmatprep.subr.mxu0 0.0
    %3972 = vmatpush1.msra.mxu0 0.0
    %3973 = vmatprep.subr.mxu0 0.0
    %3974 = vmatpush1.msra.mxu0 0.0
    %3975 = vmatprep.subr.mxu0 0.0
    %3976 = vmatpush1.msra.mxu0 0.0
    %3977 = vmatprep.subr.mxu0 0.0
    %3978 = vmatpush1.msra.mxu0 0.0
    %3979 = vmatprep.subr.mxu0 0.0
    %3980 = vmatpush1.msra.mxu0 0.0
    %3981 = vmatprep.subr.mxu0 0.0
    %3982 = vmatpush1.msra.mxu0 0.0
    %3983 = vmatprep.mubr.f32.mxu0 0.0
    %3984 = vmatmul.mubr.f32.gmra.mrb[0].mxu0 %v3914
    %v3985 = vpop.f32.mrb[0].mxu0
    %v3986 = vadd.f32 %v3911, %v3985
    %v3987 = vpop.f32.mrb[0].mxu0
    %3988 = vmatprep.mubr.f32.mxu0 0.0
    %3989 = vmatmul.mubr.f32.gmra.mrb[0].mxu0 %v3917
    %v3990 = vpop.f32.mrb[0].mxu0
    %v3991 = vadd.f32 %v3911, %v3990
    %v3992 = vpop.f32.mrb[0].mxu0
    %3993 = vdwg.mxu0
    %3994 = vst.msk [vmem:[#allocation5] sm:$0xff] %vm246, %v3986
    %3995 = vst.msk [vmem:[#allocation5 + $0x8] sm:$0xff] %vm246, %v3991
    %v3996 = vld [vmem:[%s11] sm:$0xff]
    %v3997 = vld [vmem:[#allocation5] sm:$0x3]
    %vm3998 = vcmask 64512
    %v3999 = vsel %vm3998, 0.0, 0
    %4001 = vmatprep.subr.mxu0 0.0
    %4002 = vmatpush1.msra.mxu0 %v3996
    %4003 = vmatprep.subr.mxu0 0.0
    %4004 = vmatpush1.msra.mxu0 0.0
    %4005 = vmatprep.subr.mxu0 0.0
    %4006 = vmatpush1.msra.mxu0 0.0
    %4007 = vmatprep.subr.mxu0 0.0
    %4008 = vmatpush1.msra.mxu0 0.0
    %4009 = vmatprep.subr.mxu0 0.0
    %4010 = vmatpush1.msra.mxu0 0.0
    %4011 = vmatprep.subr.mxu0 0.0
    %4012 = vmatpush1.msra.mxu0 0.0
    %4013 = vmatprep.subr.mxu0 0.0
    %4014 = vmatpush1.msra.mxu0 0.0
    %4015 = vmatprep.subr.mxu0 0.0
    %4016 = vmatpush1.msra.mxu0 0.0
    %4017 = vmatprep.subr.mxu0 0.0
    %4018 = vmatpush1.msra.mxu0 0.0
    %4019 = vmatprep.subr.mxu0 0.0
    %4020 = vmatpush1.msra.mxu0 0.0
    %4021 = vmatprep.subr.mxu0 0.0
    %4022 = vmatpush1.msra.mxu0 0.0
    %4023 = vmatprep.subr.mxu0 0.0
    %4024 = vmatpush1.msra.mxu0 0.0
    %4025 = vmatprep.subr.mxu0 0.0
    %4026 = vmatpush1.msra.mxu0 0.0
    %4027 = vmatprep.subr.mxu0 0.0
    %4028 = vmatpush1.msra.mxu0 0.0
    %4029 = vmatprep.subr.mxu0 0.0
    %4030 = vmatpush1.msra.mxu0 0.0
    %4031 = vmatprep.subr.mxu0 0.0
    %4032 = vmatpush1.msra.mxu0 0.0
    %4033 = vmatprep.subr.mxu0 0.0
    %4034 = vmatpush1.msra.mxu0 0.0
    %4035 = vmatprep.subr.mxu0 0.0
    %4036 = vmatpush1.msra.mxu0 0.0
    %4037 = vmatprep.subr.mxu0 0.0
    %4038 = vmatpush1.msra.mxu0 0.0
    %4039 = vmatprep.subr.mxu0 0.0
    %4040 = vmatpush1.msra.mxu0 0.0
    %4041 = vmatprep.subr.mxu0 0.0
    %4042 = vmatpush1.msra.mxu0 0.0
    %4043 = vmatprep.subr.mxu0 0.0
    %4044 = vmatpush1.msra.mxu0 0.0
    %4045 = vmatprep.subr.mxu0 0.0
    %4046 = vmatpush1.msra.mxu0 0.0
    %4047 = vmatprep.subr.mxu0 0.0
    %4048 = vmatpush1.msra.mxu0 0.0
    %4049 = vmatprep.subr.mxu0 0.0
    %4050 = vmatpush1.msra.mxu0 0.0
    %4051 = vmatprep.subr.mxu0 0.0
    %4052 = vmatpush1.msra.mxu0 0.0
    %4053 = vmatprep.subr.mxu0 0.0
    %4054 = vmatpush1.msra.mxu0 0.0
    %4055 = vmatprep.subr.mxu0 0.0
    %4056 = vmatpush1.msra.mxu0 0.0
    %4057 = vmatprep.subr.mxu0 0.0
    %4058 = vmatpush1.msra.mxu0 0.0
    %4059 = vmatprep.subr.mxu0 0.0
    %4060 = vmatpush1.msra.mxu0 0.0
    %4061 = vmatprep.subr.mxu0 0.0
    %4062 = vmatpush1.msra.mxu0 0.0
    %4063 = vmatprep.subr.mxu0 0.0
    %4064 = vmatpush1.msra.mxu0 0.0
    %4065 = vmatprep.mubr.f32.mxu0 0.0
    %4066 = vmatmul.mubr.f32.gmra.mrb[0].mxu0 %v3999
    %v4067 = vpop.f32.mrb[0].mxu0
    %v4068 = vadd.f32 0.0, %v4067
    %v4069 = vpop.f32.mrb[0].mxu0
    %4070 = vdwg.mxu0
    %v4071 = vadd.f32 %v3997, %v4068
    %v4072 = vxor.u32 %v4071, 2147483648
    %v4073 = vmul.f32 %v4072, 1.442695
    %v4074 = vpow.pop %v4073
    %v4075 = vadd.f32 %v4074, 1.0
    %v4076 = vrcp.pop %v4075
    %v4077 = vmul.f32 1.0, %v4076
    %v4078 = vtanh.pop %v4071
    %v4079 = vmul.f32 %v4077, 0.0
    %4081 = vrot.lane.b32.xlu0 %v4078, 112
    %v4082 = vpop.permute.xlu0 %4081
    %v4084 = vmul.f32 %v4077, %v4082
    %4086 = vrot.lane.b32.xlu0 %v4084, 8
    %v4087 = vpop.permute.xlu0 %4086
    %v4089 = vadd.f32 %v4079, %v4087
    %v4090 = vtanh.pop %v4089
    %4092 = vrot.lane.b32.xlu0 %v4090, 16
    %v4093 = vpop.permute.xlu0 %4092
    %v4095 = vmul.f32 %v4077, %v4093
    %4097 = vrot.lane.b32.xlu0 %v4095, 104
    %v4098 = vpop.permute.xlu0 %4097
    %vm4100 = vcmask 58368
    %4101 = vst.msk [vmem:[%s12] sm:$0x3] %vm4100, %v4098
    %v4102 = vld [vmem:[#allocation5 + $0x2] sm:$0x3]
    %v4103 = vsel %vm3998, %v4098, 0
    %4105 = vmatprep.subr.mxu0 0.0
    %4106 = vmatpush1.msra.mxu0 %v3996
    %4107 = vmatprep.subr.mxu0 0.0
    %4108 = vmatpush1.msra.mxu0 0.0
    %4109 = vmatprep.subr.mxu0 0.0
    %4110 = vmatpush1.msra.mxu0 0.0
    %4111 = vmatprep.subr.mxu0 0.0
    %4112 = vmatpush1.msra.mxu0 0.0
    %4113 = vmatprep.subr.mxu0 0.0
    %4114 = vmatpush1.msra.mxu0 0.0
    %4115 = vmatprep.subr.mxu0 0.0
    %4116 = vmatpush1.msra.mxu0 0.0
    %4117 = vmatprep.subr.mxu0 0.0
    %4118 = vmatpush1.msra.mxu0 0.0
    %4119 = vmatprep.subr.mxu0 0.0
    %4120 = vmatpush1.msra.mxu0 0.0
    %4121 = vmatprep.subr.mxu0 0.0
    %4122 = vmatpush1.msra.mxu0 0.0
    %4123 = vmatprep.subr.mxu0 0.0
    %4124 = vmatpush1.msra.mxu0 0.0
    %4125 = vmatprep.subr.mxu0 0.0
    %4126 = vmatpush1.msra.mxu0 0.0
    %4127 = vmatprep.subr.mxu0 0.0
    %4128 = vmatpush1.msra.mxu0 0.0
    %4129 = vmatprep.subr.mxu0 0.0
    %4130 = vmatpush1.msra.mxu0 0.0
    %4131 = vmatprep.subr.mxu0 0.0
    %4132 = vmatpush1.msra.mxu0 0.0
    %4133 = vmatprep.subr.mxu0 0.0
    %4134 = vmatpush1.msra.mxu0 0.0
    %4135 = vmatprep.subr.mxu0 0.0
    %4136 = vmatpush1.msra.mxu0 0.0
    %4137 = vmatprep.subr.mxu0 0.0
    %4138 = vmatpush1.msra.mxu0 0.0
    %4139 = vmatprep.subr.mxu0 0.0
    %4140 = vmatpush1.msra.mxu0 0.0
    %4141 = vmatprep.subr.mxu0 0.0
    %4142 = vmatpush1.msra.mxu0 0.0
    %4143 = vmatprep.subr.mxu0 0.0
    %4144 = vmatpush1.msra.mxu0 0.0
    %4145 = vmatprep.subr.mxu0 0.0
    %4146 = vmatpush1.msra.mxu0 0.0
    %4147 = vmatprep.subr.mxu0 0.0
    %4148 = vmatpush1.msra.mxu0 0.0
    %4149 = vmatprep.subr.mxu0 0.0
    %4150 = vmatpush1.msra.mxu0 0.0
    %4151 = vmatprep.subr.mxu0 0.0
    %4152 = vmatpush1.msra.mxu0 0.0
    %4153 = vmatprep.subr.mxu0 0.0
    %4154 = vmatpush1.msra.mxu0 0.0
    %4155 = vmatprep.subr.mxu0 0.0
    %4156 = vmatpush1.msra.mxu0 0.0
    %4157 = vmatprep.subr.mxu0 0.0
    %4158 = vmatpush1.msra.mxu0 0.0
    %4159 = vmatprep.subr.mxu0 0.0
    %4160 = vmatpush1.msra.mxu0 0.0
    %4161 = vmatprep.subr.mxu0 0.0
    %4162 = vmatpush1.msra.mxu0 0.0
    %4163 = vmatprep.subr.mxu0 0.0
    %4164 = vmatpush1.msra.mxu0 0.0
    %4165 = vmatprep.subr.mxu0 0.0
    %4166 = vmatpush1.msra.mxu0 0.0
    %4167 = vmatprep.subr.mxu0 0.0
    %4168 = vmatpush1.msra.mxu0 0.0
    %4169 = vmatprep.mubr.f32.mxu0 0.0
    %4170 = vmatmul.mubr.f32.gmra.mrb[0].mxu0 %v4103
    %v4171 = vpop.f32.mrb[0].mxu0
    %v4172 = vadd.f32 0.0, %v4171
    %v4173 = vpop.f32.mrb[0].mxu0
    %4174 = vdwg.mxu0
    %v4175 = vadd.f32 %v4102, %v4172
    %v4176 = vxor.u32 %v4175, 2147483648
    %v4177 = vmul.f32 %v4176, 1.442695
    %v4178 = vpow.pop %v4177
    %v4179 = vadd.f32 %v4178, 1.0
    %v4180 = vrcp.pop %v4179
    %v4181 = vmul.f32 1.0, %v4180
    %v4182 = vtanh.pop %v4175
    %v4183 = vmul.f32 %v4181, %v4089
    %4185 = vrot.lane.b32.xlu0 %v4182, 112
    %v4186 = vpop.permute.xlu0 %4185
    %v4188 = vmul.f32 %v4181, %v4186
    %4190 = vrot.lane.b32.xlu0 %v4188, 8
    %v4191 = vpop.permute.xlu0 %4190
    %v4193 = vadd.f32 %v4183, %v4191
    %v4194 = vtanh.pop %v4193
    %4196 = vrot.lane.b32.xlu0 %v4194, 16
    %v4197 = vpop.permute.xlu0 %4196
    %v4199 = vmul.f32 %v4181, %v4197
    %4201 = vrot.lane.b32.xlu0 %v4199, 104
    %v4202 = vpop.permute.xlu0 %4201
    %4204 = vst.msk [vmem:[%s12 + $0x2] sm:$0x3] %vm4100, %v4202
    %v4205 = vld [vmem:[#allocation5 + $0x4] sm:$0x3]
    %v4206 = vsel %vm3998, %v4202, 0
    %4208 = vmatprep.subr.mxu0 0.0
    %4209 = vmatpush1.msra.mxu0 %v3996
    %4210 = vmatprep.subr.mxu0 0.0
    %4211 = vmatpush1.msra.mxu0 0.0
    %4212 = vmatprep.subr.mxu0 0.0
    %4213 = vmatpush1.msra.mxu0 0.0
    %4214 = vmatprep.subr.mxu0 0.0
    %4215 = vmatpush1.msra.mxu0 0.0
    %4216 = vmatprep.subr.mxu0 0.0
    %4217 = vmatpush1.msra.mxu0 0.0
    %4218 = vmatprep.subr.mxu0 0.0
    %4219 = vmatpush1.msra.mxu0 0.0
    %4220 = vmatprep.subr.mxu0 0.0
    %4221 = vmatpush1.msra.mxu0 0.0
    %4222 = vmatprep.subr.mxu0 0.0
    %4223 = vmatpush1.msra.mxu0 0.0
    %4224 = vmatprep.subr.mxu0 0.0
    %4225 = vmatpush1.msra.mxu0 0.0
    %4226 = vmatprep.subr.mxu0 0.0
    %4227 = vmatpush1.msra.mxu0 0.0
    %4228 = vmatprep.subr.mxu0 0.0
    %4229 = vmatpush1.msra.mxu0 0.0
    %4230 = vmatprep.subr.mxu0 0.0
    %4231 = vmatpush1.msra.mxu0 0.0
    %4232 = vmatprep.subr.mxu0 0.0
    %4233 = vmatpush1.msra.mxu0 0.0
    %4234 = vmatprep.subr.mxu0 0.0
    %4235 = vmatpush1.msra.mxu0 0.0
    %4236 = vmatprep.subr.mxu0 0.0
    %4237 = vmatpush1.msra.mxu0 0.0
    %4238 = vmatprep.subr.mxu0 0.0
    %4239 = vmatpush1.msra.mxu0 0.0
    %4240 = vmatprep.subr.mxu0 0.0
    %4241 = vmatpush1.msra.mxu0 0.0
    %4242 = vmatprep.subr.mxu0 0.0
    %4243 = vmatpush1.msra.mxu0 0.0
    %4244 = vmatprep.subr.mxu0 0.0
    %4245 = vmatpush1.msra.mxu0 0.0
    %4246 = vmatprep.subr.mxu0 0.0
    %4247 = vmatpush1.msra.mxu0 0.0
    %4248 = vmatprep.subr.mxu0 0.0
    %4249 = vmatpush1.msra.mxu0 0.0
    %4250 = vmatprep.subr.mxu0 0.0
    %4251 = vmatpush1.msra.mxu0 0.0
    %4252 = vmatprep.subr.mxu0 0.0
    %4253 = vmatpush1.msra.mxu0 0.0
    %4254 = vmatprep.subr.mxu0 0.0
    %4255 = vmatpush1.msra.mxu0 0.0
    %4256 = vmatprep.subr.mxu0 0.0
    %4257 = vmatpush1.msra.mxu0 0.0
    %4258 = vmatprep.subr.mxu0 0.0
    %4259 = vmatpush1.msra.mxu0 0.0
    %4260 = vmatprep.subr.mxu0 0.0
    %4261 = vmatpush1.msra.mxu0 0.0
    %4262 = vmatprep.subr.mxu0 0.0
    %4263 = vmatpush1.msra.mxu0 0.0
    %4264 = vmatprep.subr.mxu0 0.0
    %4265 = vmatpush1.msra.mxu0 0.0
    %4266 = vmatprep.subr.mxu0 0.0
    %4267 = vmatpush1.msra.mxu0 0.0
    %4268 = vmatprep.subr.mxu0 0.0
    %4269 = vmatpush1.msra.mxu0 0.0
    %4270 = vmatprep.subr.mxu0 0.0
    %4271 = vmatpush1.msra.mxu0 0.0
    %4272 = vmatprep.mubr.f32.mxu0 0.0
    %4273 = vmatmul.mubr.f32.gmra.mrb[0].mxu0 %v4206
    %v4274 = vpop.f32.mrb[0].mxu0
    %v4275 = vadd.f32 0.0, %v4274
    %v4276 = vpop.f32.mrb[0].mxu0
    %4277 = vdwg.mxu0
    %v4278 = vadd.f32 %v4205, %v4275
    %v4279 = vxor.u32 %v4278, 2147483648
    %v4280 = vmul.f32 %v4279, 1.442695
    %v4281 = vpow.pop %v4280
    %v4282 = vadd.f32 %v4281, 1.0
    %v4283 = vrcp.pop %v4282
    %v4284 = vmul.f32 1.0, %v4283
    %v4285 = vtanh.pop %v4278
    %v4286 = vmul.f32 %v4284, %v4193
    %4288 = vrot.lane.b32.xlu0 %v4285, 112
    %v4289 = vpop.permute.xlu0 %4288
    %v4291 = vmul.f32 %v4284, %v4289
    %4293 = vrot.lane.b32.xlu0 %v4291, 8
    %v4294 = vpop.permute.xlu0 %4293
    %v4296 = vadd.f32 %v4286, %v4294
    %v4297 = vtanh.pop %v4296
    %4299 = vrot.lane.b32.xlu0 %v4297, 16
    %v4300 = vpop.permute.xlu0 %4299
    %v4302 = vmul.f32 %v4284, %v4300
    %4304 = vrot.lane.b32.xlu0 %v4302, 104
    %v4305 = vpop.permute.xlu0 %4304
    %4307 = vst.msk [vmem:[%s12 + $0x4] sm:$0x3] %vm4100, %v4305
    %v4308 = vld [vmem:[#allocation5 + $0x6] sm:$0x3]
    %v4309 = vsel %vm3998, %v4305, 0
    %4311 = vmatprep.subr.mxu0 0.0
    %4312 = vmatpush1.msra.mxu0 %v3996
    %4313 = vmatprep.subr.mxu0 0.0
    %4314 = vmatpush1.msra.mxu0 0.0
    %4315 = vmatprep.subr.mxu0 0.0
    %4316 = vmatpush1.msra.mxu0 0.0
    %4317 = vmatprep.subr.mxu0 0.0
    %4318 = vmatpush1.msra.mxu0 0.0
    %4319 = vmatprep.subr.mxu0 0.0
    %4320 = vmatpush1.msra.mxu0 0.0
    %4321 = vmatprep.subr.mxu0 0.0
    %4322 = vmatpush1.msra.mxu0 0.0
    %4323 = vmatprep.subr.mxu0 0.0
    %4324 = vmatpush1.msra.mxu0 0.0
    %4325 = vmatprep.subr.mxu0 0.0
    %4326 = vmatpush1.msra.mxu0 0.0
    %4327 = vmatprep.subr.mxu0 0.0
    %4328 = vmatpush1.msra.mxu0 0.0
    %4329 = vmatprep.subr.mxu0 0.0
    %4330 = vmatpush1.msra.mxu0 0.0
    %4331 = vmatprep.subr.mxu0 0.0
    %4332 = vmatpush1.msra.mxu0 0.0
    %4333 = vmatprep.subr.mxu0 0.0
    %4334 = vmatpush1.msra.mxu0 0.0
    %4335 = vmatprep.subr.mxu0 0.0
    %4336 = vmatpush1.msra.mxu0 0.0
    %4337 = vmatprep.subr.mxu0 0.0
    %4338 = vmatpush1.msra.mxu0 0.0
    %4339 = vmatprep.subr.mxu0 0.0
    %4340 = vmatpush1.msra.mxu0 0.0
    %4341 = vmatprep.subr.mxu0 0.0
    %4342 = vmatpush1.msra.mxu0 0.0
    %4343 = vmatprep.subr.mxu0 0.0
    %4344 = vmatpush1.msra.mxu0 0.0
    %4345 = vmatprep.subr.mxu0 0.0
    %4346 = vmatpush1.msra.mxu0 0.0
    %4347 = vmatprep.subr.mxu0 0.0
    %4348 = vmatpush1.msra.mxu0 0.0
    %4349 = vmatprep.subr.mxu0 0.0
    %4350 = vmatpush1.msra.mxu0 0.0
    %4351 = vmatprep.subr.mxu0 0.0
    %4352 = vmatpush1.msra.mxu0 0.0
    %4353 = vmatprep.subr.mxu0 0.0
    %4354 = vmatpush1.msra.mxu0 0.0
    %4355 = vmatprep.subr.mxu0 0.0
    %4356 = vmatpush1.msra.mxu0 0.0
    %4357 = vmatprep.subr.mxu0 0.0
    %4358 = vmatpush1.msra.mxu0 0.0
    %4359 = vmatprep.subr.mxu0 0.0
    %4360 = vmatpush1.msra.mxu0 0.0
    %4361 = vmatprep.subr.mxu0 0.0
    %4362 = vmatpush1.msra.mxu0 0.0
    %4363 = vmatprep.subr.mxu0 0.0
    %4364 = vmatpush1.msra.mxu0 0.0
    %4365 = vmatprep.subr.mxu0 0.0
    %4366 = vmatpush1.msra.mxu0 0.0
    %4367 = vmatprep.subr.mxu0 0.0
    %4368 = vmatpush1.msra.mxu0 0.0
    %4369 = vmatprep.subr.mxu0 0.0
    %4370 = vmatpush1.msra.mxu0 0.0
    %4371 = vmatprep.subr.mxu0 0.0
    %4372 = vmatpush1.msra.mxu0 0.0
    %4373 = vmatprep.subr.mxu0 0.0
    %4374 = vmatpush1.msra.mxu0 0.0
    %4375 = vmatprep.mubr.f32.mxu0 0.0
    %4376 = vmatmul.mubr.f32.gmra.mrb[0].mxu0 %v4309
    %v4377 = vpop.f32.mrb[0].mxu0
    %v4378 = vadd.f32 0.0, %v4377
    %v4379 = vpop.f32.mrb[0].mxu0
    %4380 = vdwg.mxu0
    %v4381 = vadd.f32 %v4308, %v4378
    %v4382 = vxor.u32 %v4381, 2147483648
    %v4383 = vmul.f32 %v4382, 1.442695
    %v4384 = vpow.pop %v4383
    %v4385 = vadd.f32 %v4384, 1.0
    %v4386 = vrcp.pop %v4385
    %v4387 = vmul.f32 1.0, %v4386
    %v4388 = vtanh.pop %v4381
    %v4389 = vmul.f32 %v4387, %v4296
    %4391 = vrot.lane.b32.xlu0 %v4388, 112
    %v4392 = vpop.permute.xlu0 %4391
    %v4394 = vmul.f32 %v4387, %v4392
    %4396 = vrot.lane.b32.xlu0 %v4394, 8
    %v4397 = vpop.permute.xlu0 %4396
    %v4399 = vadd.f32 %v4389, %v4397
    %v4400 = vtanh.pop %v4399
    %4402 = vrot.lane.b32.xlu0 %v4400, 16
    %v4403 = vpop.permute.xlu0 %4402
    %v4405 = vmul.f32 %v4387, %v4403
    %4407 = vrot.lane.b32.xlu0 %v4405, 104
    %v4408 = vpop.permute.xlu0 %4407
    %4410 = vst.msk [vmem:[%s12 + $0x6] sm:$0x3] %vm4100, %v4408
    %v4411 = vld [vmem:[#allocation5 + $0x8] sm:$0x3]
    %v4412 = vsel %vm3998, %v4408, 0
    %4414 = vmatprep.subr.mxu0 0.0
    %4415 = vmatpush1.msra.mxu0 %v3996
    %4416 = vmatprep.subr.mxu0 0.0
    %4417 = vmatpush1.msra.mxu0 0.0
    %4418 = vmatprep.subr.mxu0 0.0
    %4419 = vmatpush1.msra.mxu0 0.0
    %4420 = vmatprep.subr.mxu0 0.0
    %4421 = vmatpush1.msra.mxu0 0.0
    %4422 = vmatprep.subr.mxu0 0.0
    %4423 = vmatpush1.msra.mxu0 0.0
    %4424 = vmatprep.subr.mxu0 0.0
    %4425 = vmatpush1.msra.mxu0 0.0
    %4426 = vmatprep.subr.mxu0 0.0
    %4427 = vmatpush1.msra.mxu0 0.0
    %4428 = vmatprep.subr.mxu0 0.0
    %4429 = vmatpush1.msra.mxu0 0.0
    %4430 = vmatprep.subr.mxu0 0.0
    %4431 = vmatpush1.msra.mxu0 0.0
    %4432 = vmatprep.subr.mxu0 0.0
    %4433 = vmatpush1.msra.mxu0 0.0
    %4434 = vmatprep.subr.mxu0 0.0
    %4435 = vmatpush1.msra.mxu0 0.0
    %4436 = vmatprep.subr.mxu0 0.0
    %4437 = vmatpush1.msra.mxu0 0.0
    %4438 = vmatprep.subr.mxu0 0.0
    %4439 = vmatpush1.msra.mxu0 0.0
    %4440 = vmatprep.subr.mxu0 0.0
    %4441 = vmatpush1.msra.mxu0 0.0
    %4442 = vmatprep.subr.mxu0 0.0
    %4443 = vmatpush1.msra.mxu0 0.0
    %4444 = vmatprep.subr.mxu0 0.0
    %4445 = vmatpush1.msra.mxu0 0.0
    %4446 = vmatprep.subr.mxu0 0.0
    %4447 = vmatpush1.msra.mxu0 0.0
    %4448 = vmatprep.subr.mxu0 0.0
    %4449 = vmatpush1.msra.mxu0 0.0
    %4450 = vmatprep.subr.mxu0 0.0
    %4451 = vmatpush1.msra.mxu0 0.0
    %4452 = vmatprep.subr.mxu0 0.0
    %4453 = vmatpush1.msra.mxu0 0.0
    %4454 = vmatprep.subr.mxu0 0.0
    %4455 = vmatpush1.msra.mxu0 0.0
    %4456 = vmatprep.subr.mxu0 0.0
    %4457 = vmatpush1.msra.mxu0 0.0
    %4458 = vmatprep.subr.mxu0 0.0
    %4459 = vmatpush1.msra.mxu0 0.0
    %4460 = vmatprep.subr.mxu0 0.0
    %4461 = vmatpush1.msra.mxu0 0.0
    %4462 = vmatprep.subr.mxu0 0.0
    %4463 = vmatpush1.msra.mxu0 0.0
    %4464 = vmatprep.subr.mxu0 0.0
    %4465 = vmatpush1.msra.mxu0 0.0
    %4466 = vmatprep.subr.mxu0 0.0
    %4467 = vmatpush1.msra.mxu0 0.0
    %4468 = vmatprep.subr.mxu0 0.0
    %4469 = vmatpush1.msra.mxu0 0.0
    %4470 = vmatprep.subr.mxu0 0.0
    %4471 = vmatpush1.msra.mxu0 0.0
    %4472 = vmatprep.subr.mxu0 0.0
    %4473 = vmatpush1.msra.mxu0 0.0
    %4474 = vmatprep.subr.mxu0 0.0
    %4475 = vmatpush1.msra.mxu0 0.0
    %4476 = vmatprep.subr.mxu0 0.0
    %4477 = vmatpush1.msra.mxu0 0.0
    %4478 = vmatprep.mubr.f32.mxu0 0.0
    %4479 = vmatmul.mubr.f32.gmra.mrb[0].mxu0 %v4412
    %v4480 = vpop.f32.mrb[0].mxu0
    %v4481 = vadd.f32 0.0, %v4480
    %v4482 = vpop.f32.mrb[0].mxu0
    %4483 = vdwg.mxu0
    %v4484 = vadd.f32 %v4411, %v4481
    %v4485 = vxor.u32 %v4484, 2147483648
    %v4486 = vmul.f32 %v4485, 1.442695
    %v4487 = vpow.pop %v4486
    %v4488 = vadd.f32 %v4487, 1.0
    %v4489 = vrcp.pop %v4488
    %v4490 = vmul.f32 1.0, %v4489
    %v4491 = vtanh.pop %v4484
    %v4492 = vmul.f32 %v4490, %v4399
    %4494 = vrot.lane.b32.xlu0 %v4491, 112
    %v4495 = vpop.permute.xlu0 %4494
    %v4497 = vmul.f32 %v4490, %v4495
    %4499 = vrot.lane.b32.xlu0 %v4497, 8
    %v4500 = vpop.permute.xlu0 %4499
    %v4502 = vadd.f32 %v4492, %v4500
    %v4503 = vtanh.pop %v4502
    %4505 = vrot.lane.b32.xlu0 %v4503, 16
    %v4506 = vpop.permute.xlu0 %4505
    %v4508 = vmul.f32 %v4490, %v4506
    %4510 = vrot.lane.b32.xlu0 %v4508, 104
    %v4511 = vpop.permute.xlu0 %4510
    %4513 = vst.msk [vmem:[%s12 + $0x8] sm:$0x3] %vm4100, %v4511
    %v4514 = vld [vmem:[#allocation5 + $0xa] sm:$0x3]
    %v4515 = vsel %vm3998, %v4511, 0
    %4517 = vmatprep.subr.mxu0 0.0
    %4518 = vmatpush1.msra.mxu0 %v3996
    %4519 = vmatprep.subr.mxu0 0.0
    %4520 = vmatpush1.msra.mxu0 0.0
    %4521 = vmatprep.subr.mxu0 0.0
    %4522 = vmatpush1.msra.mxu0 0.0
    %4523 = vmatprep.subr.mxu0 0.0
    %4524 = vmatpush1.msra.mxu0 0.0
    %4525 = vmatprep.subr.mxu0 0.0
    %4526 = vmatpush1.msra.mxu0 0.0
    %4527 = vmatprep.subr.mxu0 0.0
    %4528 = vmatpush1.msra.mxu0 0.0
    %4529 = vmatprep.subr.mxu0 0.0
    %4530 = vmatpush1.msra.mxu0 0.0
    %4531 = vmatprep.subr.mxu0 0.0
    %4532 = vmatpush1.msra.mxu0 0.0
    %4533 = vmatprep.subr.mxu0 0.0
    %4534 = vmatpush1.msra.mxu0 0.0
    %4535 = vmatprep.subr.mxu0 0.0
    %4536 = vmatpush1.msra.mxu0 0.0
    %4537 = vmatprep.subr.mxu0 0.0
    %4538 = vmatpush1.msra.mxu0 0.0
    %4539 = vmatprep.subr.mxu0 0.0
    %4540 = vmatpush1.msra.mxu0 0.0
    %4541 = vmatprep.subr.mxu0 0.0
    %4542 = vmatpush1.msra.mxu0 0.0
    %4543 = vmatprep.subr.mxu0 0.0
    %4544 = vmatpush1.msra.mxu0 0.0
    %4545 = vmatprep.subr.mxu0 0.0
    %4546 = vmatpush1.msra.mxu0 0.0
    %4547 = vmatprep.subr.mxu0 0.0
    %4548 = vmatpush1.msra.mxu0 0.0
    %4549 = vmatprep.subr.mxu0 0.0
    %4550 = vmatpush1.msra.mxu0 0.0
    %4551 = vmatprep.subr.mxu0 0.0
    %4552 = vmatpush1.msra.mxu0 0.0
    %4553 = vmatprep.subr.mxu0 0.0
    %4554 = vmatpush1.msra.mxu0 0.0
    %4555 = vmatprep.subr.mxu0 0.0
    %4556 = vmatpush1.msra.mxu0 0.0
    %4557 = vmatprep.subr.mxu0 0.0
    %4558 = vmatpush1.msra.mxu0 0.0
    %4559 = vmatprep.subr.mxu0 0.0
    %4560 = vmatpush1.msra.mxu0 0.0
    %4561 = vmatprep.subr.mxu0 0.0
    %4562 = vmatpush1.msra.mxu0 0.0
    %4563 = vmatprep.subr.mxu0 0.0
    %4564 = vmatpush1.msra.mxu0 0.0
    %4565 = vmatprep.subr.mxu0 0.0
    %4566 = vmatpush1.msra.mxu0 0.0
    %4567 = vmatprep.subr.mxu0 0.0
    %4568 = vmatpush1.msra.mxu0 0.0
    %4569 = vmatprep.subr.mxu0 0.0
    %4570 = vmatpush1.msra.mxu0 0.0
    %4571 = vmatprep.subr.mxu0 0.0
    %4572 = vmatpush1.msra.mxu0 0.0
    %4573 = vmatprep.subr.mxu0 0.0
    %4574 = vmatpush1.msra.mxu0 0.0
    %4575 = vmatprep.subr.mxu0 0.0
    %4576 = vmatpush1.msra.mxu0 0.0
    %4577 = vmatprep.subr.mxu0 0.0
    %4578 = vmatpush1.msra.mxu0 0.0
    %4579 = vmatprep.subr.mxu0 0.0
    %4580 = vmatpush1.msra.mxu0 0.0
    %4581 = vmatprep.mubr.f32.mxu0 0.0
    %4582 = vmatmul.mubr.f32.gmra.mrb[0].mxu0 %v4515
    %v4583 = vpop.f32.mrb[0].mxu0
    %v4584 = vadd.f32 0.0, %v4583
    %v4585 = vpop.f32.mrb[0].mxu0
    %4586 = vdwg.mxu0
    %v4587 = vadd.f32 %v4514, %v4584
    %v4588 = vxor.u32 %v4587, 2147483648
    %v4589 = vmul.f32 %v4588, 1.442695
    %v4590 = vpow.pop %v4589
    %v4591 = vadd.f32 %v4590, 1.0
    %v4592 = vrcp.pop %v4591
    %v4593 = vmul.f32 1.0, %v4592
    %v4594 = vtanh.pop %v4587
    %v4595 = vmul.f32 %v4593, %v4502
    %4597 = vrot.lane.b32.xlu0 %v4594, 112
    %v4598 = vpop.permute.xlu0 %4597
    %v4600 = vmul.f32 %v4593, %v4598
    %4602 = vrot.lane.b32.xlu0 %v4600, 8
    %v4603 = vpop.permute.xlu0 %4602
    %v4605 = vadd.f32 %v4595, %v4603
    %v4606 = vtanh.pop %v4605
    %4608 = vrot.lane.b32.xlu0 %v4606, 16
    %v4609 = vpop.permute.xlu0 %4608
    %v4611 = vmul.f32 %v4593, %v4609
    %4613 = vrot.lane.b32.xlu0 %v4611, 104
    %v4614 = vpop.permute.xlu0 %4613
    %4616 = vst.msk [vmem:[%s12 + $0xa] sm:$0x3] %vm4100, %v4614
    %v4617 = vld [vmem:[#allocation5 + $0xc] sm:$0x3]
    %v4618 = vsel %vm3998, %v4614, 0
    %4620 = vmatprep.subr.mxu0 0.0
    %4621 = vmatpush1.msra.mxu0 %v3996
    %4622 = vmatprep.subr.mxu0 0.0
    %4623 = vmatpush1.msra.mxu0 0.0
    %4624 = vmatprep.subr.mxu0 0.0
    %4625 = vmatpush1.msra.mxu0 0.0
    %4626 = vmatprep.subr.mxu0 0.0
    %4627 = vmatpush1.msra.mxu0 0.0
    %4628 = vmatprep.subr.mxu0 0.0
    %4629 = vmatpush1.msra.mxu0 0.0
    %4630 = vmatprep.subr.mxu0 0.0
    %4631 = vmatpush1.msra.mxu0 0.0
    %4632 = vmatprep.subr.mxu0 0.0
    %4633 = vmatpush1.msra.mxu0 0.0
    %4634 = vmatprep.subr.mxu0 0.0
    %4635 = vmatpush1.msra.mxu0 0.0
    %4636 = vmatprep.subr.mxu0 0.0
    %4637 = vmatpush1.msra.mxu0 0.0
    %4638 = vmatprep.subr.mxu0 0.0
    %4639 = vmatpush1.msra.mxu0 0.0
    %4640 = vmatprep.subr.mxu0 0.0
    %4641 = vmatpush1.msra.mxu0 0.0
    %4642 = vmatprep.subr.mxu0 0.0
    %4643 = vmatpush1.msra.mxu0 0.0
    %4644 = vmatprep.subr.mxu0 0.0
    %4645 = vmatpush1.msra.mxu0 0.0
    %4646 = vmatprep.subr.mxu0 0.0
    %4647 = vmatpush1.msra.mxu0 0.0
    %4648 = vmatprep.subr.mxu0 0.0
    %4649 = vmatpush1.msra.mxu0 0.0
    %4650 = vmatprep.subr.mxu0 0.0
    %4651 = vmatpush1.msra.mxu0 0.0
    %4652 = vmatprep.subr.mxu0 0.0
    %4653 = vmatpush1.msra.mxu0 0.0
    %4654 = vmatprep.subr.mxu0 0.0
    %4655 = vmatpush1.msra.mxu0 0.0
    %4656 = vmatprep.subr.mxu0 0.0
    %4657 = vmatpush1.msra.mxu0 0.0
    %4658 = vmatprep.subr.mxu0 0.0
    %4659 = vmatpush1.msra.mxu0 0.0
    %4660 = vmatprep.subr.mxu0 0.0
    %4661 = vmatpush1.msra.mxu0 0.0
    %4662 = vmatprep.subr.mxu0 0.0
    %4663 = vmatpush1.msra.mxu0 0.0
    %4664 = vmatprep.subr.mxu0 0.0
    %4665 = vmatpush1.msra.mxu0 0.0
    %4666 = vmatprep.subr.mxu0 0.0
    %4667 = vmatpush1.msra.mxu0 0.0
    %4668 = vmatprep.subr.mxu0 0.0
    %4669 = vmatpush1.msra.mxu0 0.0
    %4670 = vmatprep.subr.mxu0 0.0
    %4671 = vmatpush1.msra.mxu0 0.0
    %4672 = vmatprep.subr.mxu0 0.0
    %4673 = vmatpush1.msra.mxu0 0.0
    %4674 = vmatprep.subr.mxu0 0.0
    %4675 = vmatpush1.msra.mxu0 0.0
    %4676 = vmatprep.subr.mxu0 0.0
    %4677 = vmatpush1.msra.mxu0 0.0
    %4678 = vmatprep.subr.mxu0 0.0
    %4679 = vmatpush1.msra.mxu0 0.0
    %4680 = vmatprep.subr.mxu0 0.0
    %4681 = vmatpush1.msra.mxu0 0.0
    %4682 = vmatprep.subr.mxu0 0.0
    %4683 = vmatpush1.msra.mxu0 0.0
    %4684 = vmatprep.mubr.f32.mxu0 0.0
    %4685 = vmatmul.mubr.f32.gmra.mrb[0].mxu0 %v4618
    %v4686 = vpop.f32.mrb[0].mxu0
    %v4687 = vadd.f32 0.0, %v4686
    %v4688 = vpop.f32.mrb[0].mxu0
    %4689 = vdwg.mxu0
    %v4690 = vadd.f32 %v4617, %v4687
    %v4691 = vxor.u32 %v4690, 2147483648
    %v4692 = vmul.f32 %v4691, 1.442695
    %v4693 = vpow.pop %v4692
    %v4694 = vadd.f32 %v4693, 1.0
    %v4695 = vrcp.pop %v4694
    %v4696 = vmul.f32 1.0, %v4695
    %v4697 = vtanh.pop %v4690
    %v4698 = vmul.f32 %v4696, %v4605
    %4700 = vrot.lane.b32.xlu0 %v4697, 112
    %v4701 = vpop.permute.xlu0 %4700
    %v4703 = vmul.f32 %v4696, %v4701
    %4705 = vrot.lane.b32.xlu0 %v4703, 8
    %v4706 = vpop.permute.xlu0 %4705
    %v4708 = vadd.f32 %v4698, %v4706
    %v4709 = vtanh.pop %v4708
    %4711 = vrot.lane.b32.xlu0 %v4709, 16
    %v4712 = vpop.permute.xlu0 %4711
    %v4714 = vmul.f32 %v4696, %v4712
    %4716 = vrot.lane.b32.xlu0 %v4714, 104
    %v4717 = vpop.permute.xlu0 %4716
    %4719 = vst.msk [vmem:[%s12 + $0xc] sm:$0x3] %vm4100, %v4717
    %v4720 = vld [vmem:[#allocation5 + $0xe] sm:$0x3]
    %v4721 = vsel %vm3998, %v4717, 0
    %4723 = vmatprep.subr.mxu0 0.0
    %4724 = vmatpush1.msra.mxu0 %v3996
    %4725 = vmatprep.subr.mxu0 0.0
    %4726 = vmatpush1.msra.mxu0 0.0
    %4727 = vmatprep.subr.mxu0 0.0
    %4728 = vmatpush1.msra.mxu0 0.0
    %4729 = vmatprep.subr.mxu0 0.0
    %4730 = vmatpush1.msra.mxu0 0.0
    %4731 = vmatprep.subr.mxu0 0.0
    %4732 = vmatpush1.msra.mxu0 0.0
    %4733 = vmatprep.subr.mxu0 0.0
    %4734 = vmatpush1.msra.mxu0 0.0
    %4735 = vmatprep.subr.mxu0 0.0
    %4736 = vmatpush1.msra.mxu0 0.0
    %4737 = vmatprep.subr.mxu0 0.0
    %4738 = vmatpush1.msra.mxu0 0.0
    %4739 = vmatprep.subr.mxu0 0.0
    %4740 = vmatpush1.msra.mxu0 0.0
    %4741 = vmatprep.subr.mxu0 0.0
    %4742 = vmatpush1.msra.mxu0 0.0
    %4743 = vmatprep.subr.mxu0 0.0
    %4744 = vmatpush1.msra.mxu0 0.0
    %4745 = vmatprep.subr.mxu0 0.0
    %4746 = vmatpush1.msra.mxu0 0.0
    %4747 = vmatprep.subr.mxu0 0.0
    %4748 = vmatpush1.msra.mxu0 0.0
    %4749 = vmatprep.subr.mxu0 0.0
    %4750 = vmatpush1.msra.mxu0 0.0
    %4751 = vmatprep.subr.mxu0 0.0
    %4752 = vmatpush1.msra.mxu0 0.0
    %4753 = vmatprep.subr.mxu0 0.0
    %4754 = vmatpush1.msra.mxu0 0.0
    %4755 = vmatprep.subr.mxu0 0.0
    %4756 = vmatpush1.msra.mxu0 0.0
    %4757 = vmatprep.subr.mxu0 0.0
    %4758 = vmatpush1.msra.mxu0 0.0
    %4759 = vmatprep.subr.mxu0 0.0
    %4760 = vmatpush1.msra.mxu0 0.0
    %4761 = vmatprep.subr.mxu0 0.0
    %4762 = vmatpush1.msra.mxu0 0.0
    %4763 = vmatprep.subr.mxu0 0.0
    %4764 = vmatpush1.msra.mxu0 0.0
    %4765 = vmatprep.subr.mxu0 0.0
    %4766 = vmatpush1.msra.mxu0 0.0
    %4767 = vmatprep.subr.mxu0 0.0
    %4768 = vmatpush1.msra.mxu0 0.0
    %4769 = vmatprep.subr.mxu0 0.0
    %4770 = vmatpush1.msra.mxu0 0.0
    %4771 = vmatprep.subr.mxu0 0.0
    %4772 = vmatpush1.msra.mxu0 0.0
    %4773 = vmatprep.subr.mxu0 0.0
    %4774 = vmatpush1.msra.mxu0 0.0
    %4775 = vmatprep.subr.mxu0 0.0
    %4776 = vmatpush1.msra.mxu0 0.0
    %4777 = vmatprep.subr.mxu0 0.0
    %4778 = vmatpush1.msra.mxu0 0.0
    %4779 = vmatprep.subr.mxu0 0.0
    %4780 = vmatpush1.msra.mxu0 0.0
    %4781 = vmatprep.subr.mxu0 0.0
    %4782 = vmatpush1.msra.mxu0 0.0
    %4783 = vmatprep.subr.mxu0 0.0
    %4784 = vmatpush1.msra.mxu0 0.0
    %4785 = vmatprep.subr.mxu0 0.0
    %4786 = vmatpush1.msra.mxu0 0.0
    %4787 = vmatprep.mubr.f32.mxu0 0.0
    %4788 = vmatmul.mubr.f32.gmra.mrb[0].mxu0 %v4721
    %v4789 = vpop.f32.mrb[0].mxu0
    %v4790 = vadd.f32 0.0, %v4789
    %v4791 = vpop.f32.mrb[0].mxu0
    %4792 = vdwg.mxu0
    %v4793 = vadd.f32 %v4720, %v4790
    %v4794 = vxor.u32 %v4793, 2147483648
    %v4795 = vmul.f32 %v4794, 1.442695
    %v4796 = vpow.pop %v4795
    %v4797 = vadd.f32 %v4796, 1.0
    %v4798 = vrcp.pop %v4797
    %v4799 = vmul.f32 1.0, %v4798
    %v4800 = vtanh.pop %v4793
    %v4801 = vmul.f32 %v4799, %v4708
    %4803 = vrot.lane.b32.xlu0 %v4800, 112
    %v4804 = vpop.permute.xlu0 %4803
    %v4806 = vmul.f32 %v4799, %v4804
    %4808 = vrot.lane.b32.xlu0 %v4806, 8
    %v4809 = vpop.permute.xlu0 %4808
    %v4811 = vadd.f32 %v4801, %v4809
    %v4812 = vtanh.pop %v4811
    %4814 = vrot.lane.b32.xlu0 %v4812, 16
    %v4815 = vpop.permute.xlu0 %4814
    %v4817 = vmul.f32 %v4799, %v4815
    %4819 = vrot.lane.b32.xlu0 %v4817, 104
    %v4820 = vpop.permute.xlu0 %4819
    %4822 = vst.msk [vmem:[%s12 + $0xe] sm:$0x3] %vm4100, %v4820
    // Predicated region
    $region74: #{tpu_custom_call.1} parent=1 // pred_check
      _
    $region75: #{tpu_custom_call.1} parent=1 // pred_check_branch
      %4824 = sbr.rel (0) target = $region77
    $region76: #{tpu_custom_call.1} parent=1 // pred_region
      _
    $region77: #{tpu_custom_call.1} parent=1 // pred_fallthru
      _
    // Predicated region
    $region78: #{tpu_custom_call.1} parent=1 // pred_check
      _
    $region79: #{tpu_custom_call.1} parent=1 // pred_check_branch
      %4826 = sbr.rel (0) target = $region81
    $region80: #{tpu_custom_call.1} parent=1 // pred_region
      _
    $region81: #{tpu_custom_call.1} parent=1 // pred_fallthru
      _
    %4827 = vsyncpa [#allocation7], 1
    %4828 = vsyncpa [#allocation9], 1
    %4829 = vsyncpa [#allocation12], 1
    %4830 = vsyncpa [#allocation15], 1

</llo_original>
